<compile_context>
chip_gen: v6e
topology: v6e:2x2x1
jax: 0.10.0
libtpu: 0.0.40
codegen_flags: <defaults>
</compile_context>

<pallas_src>
import functools
import math

import jax
import jax.numpy as jnp
from jax.experimental import pallas as pl


# ----------------------------------------------------------------------------
# Model configuration (tiny ViT feature extractor + classifier head)
# ----------------------------------------------------------------------------
IMG = 16
PATCH = 4
IN_CHANS = 1
DIM = 32
DEPTH = 2
HEADS = 4
DH = DIM // HEADS
MLP_RATIO = 4
HIDDEN = MLP_RATIO * DIM
CLASSES = 8
DROP_RATE = 0.25  # pos-drop / head dropout; identity in eval (inference) mode
N_PATCHES = (IMG // PATCH) ** 2
SEQ = N_PATCHES + 1
CPP = IN_CHANS * PATCH * PATCH


# ----------------------------------------------------------------------------
# Fused forward kernel (single pallas_call, everything resident in VMEM)
# ----------------------------------------------------------------------------
def _ln(x, g, b, eps=1e-6):
    mean = jnp.mean(x, axis=-1, keepdims=True)
    var = jnp.mean((x - mean) * (x - mean), axis=-1, keepdims=True)
    return (x - mean) * jax.lax.rsqrt(var + eps) * g + b


def _vit_forward_kernel(
    patches_ref,                       # (B*N, CPP)
    patch_w_ref, patch_b_ref,          # (CPP, DIM), (1, DIM)
    cls_ref, pos_ref,                  # (1, DIM), (SEQ, DIM)
    ln1_g_ref, ln1_b_ref,              # (DEPTH, 1, DIM)
    qkv_w_ref, qkv_b_ref,              # (DEPTH, DIM, 3*DIM), (DEPTH, 1, 3*DIM)
    proj_w_ref, proj_b_ref,            # (DEPTH, DIM, DIM),   (DEPTH, 1, DIM)
    ln2_g_ref, ln2_b_ref,              # (DEPTH, 1, DIM)
    fc1_w_ref, fc1_b_ref,              # (DEPTH, DIM, HIDDEN), (DEPTH, 1, HIDDEN)
    fc2_w_ref, fc2_b_ref,              # (DEPTH, HIDDEN, DIM), (DEPTH, 1, DIM)
    norm_g_ref, norm_b_ref,            # (1, DIM)
    head_w_ref, head_b_ref,            # (DIM, CLASSES), (1, CLASSES)
    o_ref,                             # (B, CLASSES)
    *, batch):
    B = batch
    T = SEQ
    scale = 1.0 / math.sqrt(DH)

    # ---- patch embedding: conv(1, DIM, k=PATCH, s=PATCH) as a matmul ----
    tok = jnp.dot(patches_ref[...], patch_w_ref[...],
                  preferred_element_type=jnp.float32) + patch_b_ref[...]   # (B*N, DIM)

    # ---- prepend cls token + add positional embedding (fused) ----
    cls = cls_ref[...]                 # (1, DIM)
    pos = pos_ref[...]                 # (T, DIM)
    rows = []
    for b in range(B):
        rows.append(cls + pos[0:1, :])
        rows.append(tok[b * N_PATCHES:(b + 1) * N_PATCHES, :] + pos[1:T, :])
    h = jnp.concatenate(rows, axis=0)  # (B*T, DIM)
    # pos_drop / head dropout: eval mode -> identity (drop_rate=0.25 unused).

    # ---- transformer blocks (statically unrolled, all in VMEM) ----
    for d in range(DEPTH):
        # --- attention: LN1 -> QKV -> per-head SDPA -> proj -> residual ---
        hn = _ln(h, ln1_g_ref[d], ln1_b_ref[d])
        qkv = jnp.dot(hn, qkv_w_ref[d],
                      preferred_element_type=jnp.float32) + qkv_b_ref[d]   # (B*T, 3*DIM)

        attn_rows = []
        for b in range(B):
            qkv_b = qkv[b * T:(b + 1) * T, :]                              # (T, 3*DIM)
            head_outs = []
            for hd in range(HEADS):
                q = qkv_b[:, hd * DH:(hd + 1) * DH]                        # (T, DH)
                k = qkv_b[:, DIM + hd * DH:DIM + (hd + 1) * DH]
                v = qkv_b[:, 2 * DIM + hd * DH:2 * DIM + (hd + 1) * DH]
                s = jax.lax.dot_general(
                    q, k, (((1,), (1,)), ((), ())),
                    preferred_element_type=jnp.float32) * scale            # (T, T)
                m = jnp.max(s, axis=-1, keepdims=True)
                p = jnp.exp(s - m)
                p = p * pl.reciprocal(jnp.sum(p, axis=-1, keepdims=True),
                                      approx=True)
                head_outs.append(
                    jnp.dot(p, v, preferred_element_type=jnp.float32))     # (T, DH)
            attn_rows.append(jnp.concatenate(head_outs, axis=-1))          # (T, DIM)
        attn = jnp.concatenate(attn_rows, axis=0)                          # (B*T, DIM)

        proj = jnp.dot(attn, proj_w_ref[d],
                       preferred_element_type=jnp.float32) + proj_b_ref[d]
        h = h + proj

        # --- MLP: LN2 -> fc1 -> GELU -> fc2 -> residual ---
        hn = _ln(h, ln2_g_ref[d], ln2_b_ref[d])
        m1 = jnp.dot(hn, fc1_w_ref[d],
                     preferred_element_type=jnp.float32) + fc1_b_ref[d]
        # TODO(synk): timm nn.GELU default is the exact erf form; tanh approximation
        # used here (guaranteed Mosaic lowering), ~1e-3 deviation.
        m1 = jax.nn.gelu(m1, approximate=True)
        m2 = jnp.dot(m1, fc2_w_ref[d],
                     preferred_element_type=jnp.float32) + fc2_b_ref[d]
        h = h + m2

    # ---- final norm, cls-token pooling, classifier head ----
    hn = _ln(h, norm_g_ref[...], norm_b_ref[...])
    cls_rows = jnp.concatenate([hn[b * T:b * T + 1, :] for b in range(B)], axis=0)
    logits = jnp.dot(cls_rows, head_w_ref[...],
                     preferred_element_type=jnp.float32) + head_b_ref[...]
    o_ref[...] = logits


# ----------------------------------------------------------------------------
# Parameters & host-side glue
# ----------------------------------------------------------------------------
def init_params(key):
    def trunc(kk, shape, std=0.02):
        return std * jax.random.normal(kk, shape, dtype=jnp.float32)

    keys = list(jax.random.split(key, 4 + 4 * DEPTH))
    kit = iter(keys)

    params = {
        # Conv2d(1, DIM, kernel=PATCH, stride=PATCH) flattened to a matmul.
        "patch_w": trunc(next(kit), (CPP, DIM)),
        "patch_b": jnp.zeros((1, DIM), jnp.float32),
        "cls": trunc(next(kit), (1, DIM)),
        "pos": trunc(next(kit), (SEQ, DIM)),
        "norm_g": jnp.ones((1, DIM), jnp.float32),
        "norm_b": jnp.zeros((1, DIM), jnp.float32),
        "head_w": trunc(next(kit), (DIM, CLASSES)),
        "head_b": jnp.zeros((1, CLASSES), jnp.float32),
        # Per-block params stacked along a leading DEPTH axis (indexed
        # statically inside the fused kernel).
        "ln1_g": jnp.ones((DEPTH, 1, DIM), jnp.float32),
        "ln1_b": jnp.zeros((DEPTH, 1, DIM), jnp.float32),
        "qkv_w": jnp.stack([trunc(next(kit), (DIM, 3 * DIM)) for _ in range(DEPTH)]),
        "qkv_b": jnp.zeros((DEPTH, 1, 3 * DIM), jnp.float32),
        "proj_w": jnp.stack([trunc(next(kit), (DIM, DIM)) for _ in range(DEPTH)]),
        "proj_b": jnp.zeros((DEPTH, 1, DIM), jnp.float32),
        "ln2_g": jnp.ones((DEPTH, 1, DIM), jnp.float32),
        "ln2_b": jnp.zeros((DEPTH, 1, DIM), jnp.float32),
        "fc1_w": jnp.stack([trunc(next(kit), (DIM, HIDDEN)) for _ in range(DEPTH)]),
        "fc1_b": jnp.zeros((DEPTH, 1, HIDDEN), jnp.float32),
        "fc2_w": jnp.stack([trunc(next(kit), (HIDDEN, DIM)) for _ in range(DEPTH)]),
        "fc2_b": jnp.zeros((DEPTH, 1, DIM), jnp.float32),
    }
    return params


def im2col_patches(x):
    """NCHW (B,C,H,W) -> (B*N_patches, C*P*P), matching Conv2d weight layout."""
    B, C, H, W = x.shape
    p = PATCH
    x = x.reshape(B, C, H // p, p, W // p, p)
    x = jnp.transpose(x, (0, 2, 4, 1, 3, 5))          # (B, H/p, W/p, C, p, p)
    return x.reshape(B * (H // p) * (W // p), C * p * p)


@jax.jit
def forward(params, x):
    B = x.shape[0]
    patches = im2col_patches(x.astype(jnp.float32))    # (B*N, CPP) -- layout glue only

    kernel = functools.partial(_vit_forward_kernel, batch=B)
    # Single fused pallas_call: no grid, no BlockSpecs needed -- every operand
    # (a few KB each) is resident as a whole-array VMEM block.
    return pl.pallas_call(
        kernel,
        out_shape=jax.ShapeDtypeStruct((B, CLASSES), jnp.float32),
    )(
        patches,
        params["patch_w"], params["patch_b"],
        params["cls"], params["pos"],
        params["ln1_g"], params["ln1_b"],
        params["qkv_w"], params["qkv_b"],
        params["proj_w"], params["proj_b"],
        params["ln2_g"], params["ln2_b"],
        params["fc1_w"], params["fc1_b"],
        params["fc2_w"], params["fc2_b"],
        params["norm_g"], params["norm_b"],
        params["head_w"], params["head_b"],
    )


if __name__ == "__main__":
    key = jax.random.PRNGKey(0)
    pkey, xkey = jax.random.split(key)
    params = init_params(pkey)
    # PyTorch-style NCHW input with in_chans=1.
    x = jax.random.normal(xkey, (2, IN_CHANS, IMG, IMG), dtype=jnp.float32)
    out = forward(params, x)
    jax.block_until_ready(out)
    assert out.shape == (2, CLASSES)
    print("KERNEL_OK")
</pallas_src>

<mosaic_0001>
module attributes {stable_mosaic.version = 11 : i64} {
  func.func @_vit_forward_kernel(%arg0: memref<32x16xf32, #tpu.memory_space<vmem>>, %arg1: memref<16x32xf32, #tpu.memory_space<vmem>>, %arg2: memref<1x32xf32, #tpu.memory_space<vmem>>, %arg3: memref<1x32xf32, #tpu.memory_space<vmem>>, %arg4: memref<17x32xf32, #tpu.memory_space<vmem>>, %arg5: memref<2x1x32xf32, #tpu.memory_space<vmem>>, %arg6: memref<2x1x32xf32, #tpu.memory_space<vmem>>, %arg7: memref<2x32x96xf32, #tpu.memory_space<vmem>>, %arg8: memref<2x1x96xf32, #tpu.memory_space<vmem>>, %arg9: memref<2x32x32xf32, #tpu.memory_space<vmem>>, %arg10: memref<2x1x32xf32, #tpu.memory_space<vmem>>, %arg11: memref<2x1x32xf32, #tpu.memory_space<vmem>>, %arg12: memref<2x1x32xf32, #tpu.memory_space<vmem>>, %arg13: memref<2x32x128xf32, #tpu.memory_space<vmem>>, %arg14: memref<2x1x128xf32, #tpu.memory_space<vmem>>, %arg15: memref<2x128x32xf32, #tpu.memory_space<vmem>>, %arg16: memref<2x1x32xf32, #tpu.memory_space<vmem>>, %arg17: memref<1x32xf32, #tpu.memory_space<vmem>>, %arg18: memref<1x32xf32, #tpu.memory_space<vmem>>, %arg19: memref<32x8xf32, #tpu.memory_space<vmem>>, %arg20: memref<1x8xf32, #tpu.memory_space<vmem>>, %arg21: memref<2x8xf32, #tpu.memory_space<vmem>>) attributes {dimension_semantics = [], scalar_prefetch = 0 : i64, scratch_operands = 0 : i64, tpu.core_type = #tpu.core_type<tc>} {
    %c0 = arith.constant 0 : index
    %c0_0 = arith.constant 0 : index
    %0 = vector.load %arg0[%c0, %c0_0] : memref<32x16xf32, #tpu.memory_space<vmem>>, vector<32x16xf32>
    %c0_1 = arith.constant 0 : index
    %c0_2 = arith.constant 0 : index
    %1 = vector.load %arg1[%c0_1, %c0_2] : memref<16x32xf32, #tpu.memory_space<vmem>>, vector<16x32xf32>
    %cst = arith.constant dense<0.000000e+00> : vector<32x32xf32>
    %2 = tpu.matmul %0, %1, %cst {dimension_numbers = #tpu.dot_dimension_numbers<[1], [0], [0], [1], [0, 0, 1, 1], [], []>} : vector<32x16xf32>, vector<16x32xf32>, vector<32x32xf32> -> vector<32x32xf32>
    %c0_3 = arith.constant 0 : index
    %c0_4 = arith.constant 0 : index
    %3 = vector.load %arg2[%c0_3, %c0_4] : memref<1x32xf32, #tpu.memory_space<vmem>>, vector<1x32xf32>
    %4 = vector.broadcast %3 : vector<1x32xf32> to vector<32x32xf32>
    %5 = arith.addf %2, %4 : vector<32x32xf32>
    %c0_5 = arith.constant 0 : index
    %c0_6 = arith.constant 0 : index
    %6 = vector.load %arg3[%c0_5, %c0_6] : memref<1x32xf32, #tpu.memory_space<vmem>>, vector<1x32xf32>
    %c0_7 = arith.constant 0 : index
    %c0_8 = arith.constant 0 : index
    %7 = vector.load %arg4[%c0_7, %c0_8] : memref<17x32xf32, #tpu.memory_space<vmem>>, vector<17x32xf32>
    %8 = vector.extract_strided_slice %7 {offsets = [0, 0], sizes = [1, 32], strides = [1, 1]} : vector<17x32xf32> to vector<1x32xf32>
    %9 = arith.addf %6, %8 : vector<1x32xf32>
    %10 = vector.extract_strided_slice %5 {offsets = [0, 0], sizes = [16, 32], strides = [1, 1]} : vector<32x32xf32> to vector<16x32xf32>
    %11 = vector.extract_strided_slice %7 {offsets = [1, 0], sizes = [16, 32], strides = [1, 1]} : vector<17x32xf32> to vector<16x32xf32>
    %12 = arith.addf %10, %11 : vector<16x32xf32>
    %13 = vector.extract_strided_slice %7 {offsets = [0, 0], sizes = [1, 32], strides = [1, 1]} : vector<17x32xf32> to vector<1x32xf32>
    %14 = arith.addf %6, %13 : vector<1x32xf32>
    %15 = vector.extract_strided_slice %5 {offsets = [16, 0], sizes = [16, 32], strides = [1, 1]} : vector<32x32xf32> to vector<16x32xf32>
    %16 = vector.extract_strided_slice %7 {offsets = [1, 0], sizes = [16, 32], strides = [1, 1]} : vector<17x32xf32> to vector<16x32xf32>
    %17 = arith.addf %15, %16 : vector<16x32xf32>
    %18 = tpu.concatenate %9, %12, %14, %17 in 0 : vector<1x32xf32>, vector<16x32xf32>, vector<1x32xf32>, vector<16x32xf32> -> vector<34x32xf32>
    %c0_9 = arith.constant 0 : index
    %c0_10 = arith.constant 0 : index
    %c0_11 = arith.constant 0 : index
    %19 = vector.load %arg5[%c0_9, %c0_10, %c0_11] : memref<2x1x32xf32, #tpu.memory_space<vmem>>, vector<1x1x32xf32>
    %20 = vector.shape_cast %19 : vector<1x1x32xf32> to vector<1x32xf32>
    %c0_12 = arith.constant 0 : index
    %c0_13 = arith.constant 0 : index
    %c0_14 = arith.constant 0 : index
    %21 = vector.load %arg6[%c0_12, %c0_13, %c0_14] : memref<2x1x32xf32, #tpu.memory_space<vmem>>, vector<1x1x32xf32>
    %22 = vector.shape_cast %21 : vector<1x1x32xf32> to vector<1x32xf32>
    %cst_15 = arith.constant dense<0.000000e+00> : vector<34xf32>
    %23 = vector.multi_reduction <add>, %18, %cst_15 [1] : vector<34x32xf32> to vector<34xf32>
    %24 = vector.shape_cast %23 : vector<34xf32> to vector<34x1xf32>
    %cst_16 = arith.constant 3.200000e+01 : f32
    %25 = vector.broadcast %cst_16 : f32 to vector<34x1xf32>
    %26 = arith.divf %24, %25 : vector<34x1xf32>
    %27 = vector.broadcast %26 : vector<34x1xf32> to vector<34x32xf32>
    %28 = arith.subf %18, %27 : vector<34x32xf32>
    %29 = vector.broadcast %26 : vector<34x1xf32> to vector<34x32xf32>
    %30 = arith.subf %18, %29 : vector<34x32xf32>
    %31 = arith.mulf %28, %30 : vector<34x32xf32>
    %cst_17 = arith.constant dense<0.000000e+00> : vector<34xf32>
    %32 = vector.multi_reduction <add>, %31, %cst_17 [1] : vector<34x32xf32> to vector<34xf32>
    %33 = vector.shape_cast %32 : vector<34xf32> to vector<34x1xf32>
    %cst_18 = arith.constant 3.200000e+01 : f32
    %34 = vector.broadcast %cst_18 : f32 to vector<34x1xf32>
    %35 = arith.divf %33, %34 : vector<34x1xf32>
    %36 = vector.broadcast %26 : vector<34x1xf32> to vector<34x32xf32>
    %37 = arith.subf %18, %36 : vector<34x32xf32>
    %cst_19 = arith.constant 9.99999997E-7 : f32
    %38 = vector.broadcast %cst_19 : f32 to vector<34x1xf32>
    %39 = arith.addf %35, %38 : vector<34x1xf32>
    %40 = math.rsqrt %39 : vector<34x1xf32>
    %41 = vector.broadcast %40 : vector<34x1xf32> to vector<34x32xf32>
    %42 = arith.mulf %37, %41 : vector<34x32xf32>
    %43 = vector.broadcast %20 : vector<1x32xf32> to vector<34x32xf32>
    %44 = arith.mulf %42, %43 : vector<34x32xf32>
    %45 = vector.broadcast %22 : vector<1x32xf32> to vector<34x32xf32>
    %46 = arith.addf %44, %45 : vector<34x32xf32>
    %c0_20 = arith.constant 0 : index
    %c0_21 = arith.constant 0 : index
    %c0_22 = arith.constant 0 : index
    %47 = vector.load %arg7[%c0_20, %c0_21, %c0_22] : memref<2x32x96xf32, #tpu.memory_space<vmem>>, vector<1x32x96xf32>
    %48 = vector.shape_cast %47 : vector<1x32x96xf32> to vector<32x96xf32>
    %cst_23 = arith.constant dense<0.000000e+00> : vector<34x96xf32>
    %49 = tpu.matmul %46, %48, %cst_23 {dimension_numbers = #tpu.dot_dimension_numbers<[1], [0], [0], [1], [0, 0, 1, 1], [], []>} : vector<34x32xf32>, vector<32x96xf32>, vector<34x96xf32> -> vector<34x96xf32>
    %c0_24 = arith.constant 0 : index
    %c0_25 = arith.constant 0 : index
    %c0_26 = arith.constant 0 : index
    %50 = vector.load %arg8[%c0_24, %c0_25, %c0_26] : memref<2x1x96xf32, #tpu.memory_space<vmem>>, vector<1x1x96xf32>
    %51 = vector.shape_cast %50 : vector<1x1x96xf32> to vector<1x96xf32>
    %52 = vector.broadcast %51 : vector<1x96xf32> to vector<34x96xf32>
    %53 = arith.addf %49, %52 : vector<34x96xf32>
    %54 = vector.extract_strided_slice %53 {offsets = [0, 0], sizes = [17, 96], strides = [1, 1]} : vector<34x96xf32> to vector<17x96xf32>
    %55 = vector.extract_strided_slice %54 {offsets = [0, 0], sizes = [17, 8], strides = [1, 1]} : vector<17x96xf32> to vector<17x8xf32>
    %56 = vector.extract_strided_slice %54 {offsets = [0, 32], sizes = [17, 8], strides = [1, 1]} : vector<17x96xf32> to vector<17x8xf32>
    %57 = vector.extract_strided_slice %54 {offsets = [0, 64], sizes = [17, 8], strides = [1, 1]} : vector<17x96xf32> to vector<17x8xf32>
    %cst_27 = arith.constant dense<0.000000e+00> : vector<17x17xf32>
    %58 = tpu.matmul %55, %56, %cst_27 {dimension_numbers = #tpu.dot_dimension_numbers<[1], [1], [0], [0], [0, 0, 1, 0], [], []>} : vector<17x8xf32>, vector<17x8xf32>, vector<17x17xf32> -> vector<17x17xf32>
    %cst_28 = arith.constant 0.353553385 : f32
    %59 = vector.broadcast %cst_28 : f32 to vector<17x17xf32>
    %60 = arith.mulf %58, %59 : vector<17x17xf32>
    %cst_29 = arith.constant dense<0xFF800000> : vector<17xf32>
    %61 = vector.multi_reduction <maximumf>, %60, %cst_29 [1] : vector<17x17xf32> to vector<17xf32>
    %62 = vector.shape_cast %61 : vector<17xf32> to vector<17x1xf32>
    %63 = vector.broadcast %62 : vector<17x1xf32> to vector<17x17xf32>
    %64 = arith.subf %60, %63 : vector<17x17xf32>
    %65 = math.exp %64 : vector<17x17xf32>
    %cst_30 = arith.constant dense<0.000000e+00> : vector<17xf32>
    %66 = vector.multi_reduction <add>, %65, %cst_30 [1] : vector<17x17xf32> to vector<17xf32>
    %67 = vector.shape_cast %66 : vector<17xf32> to vector<17x1xf32>
    %68 = tpu.reciprocal %67 {approx = true} : vector<17x1xf32> -> vector<17x1xf32>
    %69 = vector.broadcast %68 : vector<17x1xf32> to vector<17x17xf32>
    %70 = arith.mulf %65, %69 : vector<17x17xf32>
    %cst_31 = arith.constant dense<0.000000e+00> : vector<17x8xf32>
    %71 = tpu.matmul %70, %57, %cst_31 {dimension_numbers = #tpu.dot_dimension_numbers<[1], [0], [0], [1], [0, 0, 1, 1], [], []>} : vector<17x17xf32>, vector<17x8xf32>, vector<17x8xf32> -> vector<17x8xf32>
    %72 = vector.extract_strided_slice %54 {offsets = [0, 8], sizes = [17, 8], strides = [1, 1]} : vector<17x96xf32> to vector<17x8xf32>
    %73 = vector.extract_strided_slice %54 {offsets = [0, 40], sizes = [17, 8], strides = [1, 1]} : vector<17x96xf32> to vector<17x8xf32>
    %74 = vector.extract_strided_slice %54 {offsets = [0, 72], sizes = [17, 8], strides = [1, 1]} : vector<17x96xf32> to vector<17x8xf32>
    %cst_32 = arith.constant dense<0.000000e+00> : vector<17x17xf32>
    %75 = tpu.matmul %72, %73, %cst_32 {dimension_numbers = #tpu.dot_dimension_numbers<[1], [1], [0], [0], [0, 0, 1, 0], [], []>} : vector<17x8xf32>, vector<17x8xf32>, vector<17x17xf32> -> vector<17x17xf32>
    %cst_33 = arith.constant 0.353553385 : f32
    %76 = vector.broadcast %cst_33 : f32 to vector<17x17xf32>
    %77 = arith.mulf %75, %76 : vector<17x17xf32>
    %cst_34 = arith.constant dense<0xFF800000> : vector<17xf32>
    %78 = vector.multi_reduction <maximumf>, %77, %cst_34 [1] : vector<17x17xf32> to vector<17xf32>
    %79 = vector.shape_cast %78 : vector<17xf32> to vector<17x1xf32>
    %80 = vector.broadcast %79 : vector<17x1xf32> to vector<17x17xf32>
    %81 = arith.subf %77, %80 : vector<17x17xf32>
    %82 = math.exp %81 : vector<17x17xf32>
    %cst_35 = arith.constant dense<0.000000e+00> : vector<17xf32>
    %83 = vector.multi_reduction <add>, %82, %cst_35 [1] : vector<17x17xf32> to vector<17xf32>
    %84 = vector.shape_cast %83 : vector<17xf32> to vector<17x1xf32>
    %85 = tpu.reciprocal %84 {approx = true} : vector<17x1xf32> -> vector<17x1xf32>
    %86 = vector.broadcast %85 : vector<17x1xf32> to vector<17x17xf32>
    %87 = arith.mulf %82, %86 : vector<17x17xf32>
    %cst_36 = arith.constant dense<0.000000e+00> : vector<17x8xf32>
    %88 = tpu.matmul %87, %74, %cst_36 {dimension_numbers = #tpu.dot_dimension_numbers<[1], [0], [0], [1], [0, 0, 1, 1], [], []>} : vector<17x17xf32>, vector<17x8xf32>, vector<17x8xf32> -> vector<17x8xf32>
    %89 = vector.extract_strided_slice %54 {offsets = [0, 16], sizes = [17, 8], strides = [1, 1]} : vector<17x96xf32> to vector<17x8xf32>
    %90 = vector.extract_strided_slice %54 {offsets = [0, 48], sizes = [17, 8], strides = [1, 1]} : vector<17x96xf32> to vector<17x8xf32>
    %91 = vector.extract_strided_slice %54 {offsets = [0, 80], sizes = [17, 8], strides = [1, 1]} : vector<17x96xf32> to vector<17x8xf32>
    %cst_37 = arith.constant dense<0.000000e+00> : vector<17x17xf32>
    %92 = tpu.matmul %89, %90, %cst_37 {dimension_numbers = #tpu.dot_dimension_numbers<[1], [1], [0], [0], [0, 0, 1, 0], [], []>} : vector<17x8xf32>, vector<17x8xf32>, vector<17x17xf32> -> vector<17x17xf32>
    %cst_38 = arith.constant 0.353553385 : f32
    %93 = vector.broadcast %cst_38 : f32 to vector<17x17xf32>
    %94 = arith.mulf %92, %93 : vector<17x17xf32>
    %cst_39 = arith.constant dense<0xFF800000> : vector<17xf32>
    %95 = vector.multi_reduction <maximumf>, %94, %cst_39 [1] : vector<17x17xf32> to vector<17xf32>
    %96 = vector.shape_cast %95 : vector<17xf32> to vector<17x1xf32>
    %97 = vector.broadcast %96 : vector<17x1xf32> to vector<17x17xf32>
    %98 = arith.subf %94, %97 : vector<17x17xf32>
    %99 = math.exp %98 : vector<17x17xf32>
    %cst_40 = arith.constant dense<0.000000e+00> : vector<17xf32>
    %100 = vector.multi_reduction <add>, %99, %cst_40 [1] : vector<17x17xf32> to vector<17xf32>
    %101 = vector.shape_cast %100 : vector<17xf32> to vector<17x1xf32>
    %102 = tpu.reciprocal %101 {approx = true} : vector<17x1xf32> -> vector<17x1xf32>
    %103 = vector.broadcast %102 : vector<17x1xf32> to vector<17x17xf32>
    %104 = arith.mulf %99, %103 : vector<17x17xf32>
    %cst_41 = arith.constant dense<0.000000e+00> : vector<17x8xf32>
    %105 = tpu.matmul %104, %91, %cst_41 {dimension_numbers = #tpu.dot_dimension_numbers<[1], [0], [0], [1], [0, 0, 1, 1], [], []>} : vector<17x17xf32>, vector<17x8xf32>, vector<17x8xf32> -> vector<17x8xf32>
    %106 = vector.extract_strided_slice %54 {offsets = [0, 24], sizes = [17, 8], strides = [1, 1]} : vector<17x96xf32> to vector<17x8xf32>
    %107 = vector.extract_strided_slice %54 {offsets = [0, 56], sizes = [17, 8], strides = [1, 1]} : vector<17x96xf32> to vector<17x8xf32>
    %108 = vector.extract_strided_slice %54 {offsets = [0, 88], sizes = [17, 8], strides = [1, 1]} : vector<17x96xf32> to vector<17x8xf32>
    %cst_42 = arith.constant dense<0.000000e+00> : vector<17x17xf32>
    %109 = tpu.matmul %106, %107, %cst_42 {dimension_numbers = #tpu.dot_dimension_numbers<[1], [1], [0], [0], [0, 0, 1, 0], [], []>} : vector<17x8xf32>, vector<17x8xf32>, vector<17x17xf32> -> vector<17x17xf32>
    %cst_43 = arith.constant 0.353553385 : f32
    %110 = vector.broadcast %cst_43 : f32 to vector<17x17xf32>
    %111 = arith.mulf %109, %110 : vector<17x17xf32>
    %cst_44 = arith.constant dense<0xFF800000> : vector<17xf32>
    %112 = vector.multi_reduction <maximumf>, %111, %cst_44 [1] : vector<17x17xf32> to vector<17xf32>
    %113 = vector.shape_cast %112 : vector<17xf32> to vector<17x1xf32>
    %114 = vector.broadcast %113 : vector<17x1xf32> to vector<17x17xf32>
    %115 = arith.subf %111, %114 : vector<17x17xf32>
    %116 = math.exp %115 : vector<17x17xf32>
    %cst_45 = arith.constant dense<0.000000e+00> : vector<17xf32>
    %117 = vector.multi_reduction <add>, %116, %cst_45 [1] : vector<17x17xf32> to vector<17xf32>
    %118 = vector.shape_cast %117 : vector<17xf32> to vector<17x1xf32>
    %119 = tpu.reciprocal %118 {approx = true} : vector<17x1xf32> -> vector<17x1xf32>
    %120 = vector.broadcast %119 : vector<17x1xf32> to vector<17x17xf32>
    %121 = arith.mulf %116, %120 : vector<17x17xf32>
    %cst_46 = arith.constant dense<0.000000e+00> : vector<17x8xf32>
    %122 = tpu.matmul %121, %108, %cst_46 {dimension_numbers = #tpu.dot_dimension_numbers<[1], [0], [0], [1], [0, 0, 1, 1], [], []>} : vector<17x17xf32>, vector<17x8xf32>, vector<17x8xf32> -> vector<17x8xf32>
    %123 = tpu.concatenate %71, %88, %105, %122 in 1 : vector<17x8xf32>, vector<17x8xf32>, vector<17x8xf32>, vector<17x8xf32> -> vector<17x32xf32>
    %124 = vector.extract_strided_slice %53 {offsets = [17, 0], sizes = [17, 96], strides = [1, 1]} : vector<34x96xf32> to vector<17x96xf32>
    %125 = vector.extract_strided_slice %124 {offsets = [0, 0], sizes = [17, 8], strides = [1, 1]} : vector<17x96xf32> to vector<17x8xf32>
    %126 = vector.extract_strided_slice %124 {offsets = [0, 32], sizes = [17, 8], strides = [1, 1]} : vector<17x96xf32> to vector<17x8xf32>
    %127 = vector.extract_strided_slice %124 {offsets = [0, 64], sizes = [17, 8], strides = [1, 1]} : vector<17x96xf32> to vector<17x8xf32>
    %cst_47 = arith.constant dense<0.000000e+00> : vector<17x17xf32>
    %128 = tpu.matmul %125, %126, %cst_47 {dimension_numbers = #tpu.dot_dimension_numbers<[1], [1], [0], [0], [0, 0, 1, 0], [], []>} : vector<17x8xf32>, vector<17x8xf32>, vector<17x17xf32> -> vector<17x17xf32>
    %cst_48 = arith.constant 0.353553385 : f32
    %129 = vector.broadcast %cst_48 : f32 to vector<17x17xf32>
    %130 = arith.mulf %128, %129 : vector<17x17xf32>
    %cst_49 = arith.constant dense<0xFF800000> : vector<17xf32>
    %131 = vector.multi_reduction <maximumf>, %130, %cst_49 [1] : vector<17x17xf32> to vector<17xf32>
    %132 = vector.shape_cast %131 : vector<17xf32> to vector<17x1xf32>
    %133 = vector.broadcast %132 : vector<17x1xf32> to vector<17x17xf32>
    %134 = arith.subf %130, %133 : vector<17x17xf32>
    %135 = math.exp %134 : vector<17x17xf32>
    %cst_50 = arith.constant dense<0.000000e+00> : vector<17xf32>
    %136 = vector.multi_reduction <add>, %135, %cst_50 [1] : vector<17x17xf32> to vector<17xf32>
    %137 = vector.shape_cast %136 : vector<17xf32> to vector<17x1xf32>
    %138 = tpu.reciprocal %137 {approx = true} : vector<17x1xf32> -> vector<17x1xf32>
    %139 = vector.broadcast %138 : vector<17x1xf32> to vector<17x17xf32>
    %140 = arith.mulf %135, %139 : vector<17x17xf32>
    %cst_51 = arith.constant dense<0.000000e+00> : vector<17x8xf32>
    %141 = tpu.matmul %140, %127, %cst_51 {dimension_numbers = #tpu.dot_dimension_numbers<[1], [0], [0], [1], [0, 0, 1, 1], [], []>} : vector<17x17xf32>, vector<17x8xf32>, vector<17x8xf32> -> vector<17x8xf32>
    %142 = vector.extract_strided_slice %124 {offsets = [0, 8], sizes = [17, 8], strides = [1, 1]} : vector<17x96xf32> to vector<17x8xf32>
    %143 = vector.extract_strided_slice %124 {offsets = [0, 40], sizes = [17, 8], strides = [1, 1]} : vector<17x96xf32> to vector<17x8xf32>
    %144 = vector.extract_strided_slice %124 {offsets = [0, 72], sizes = [17, 8], strides = [1, 1]} : vector<17x96xf32> to vector<17x8xf32>
    %cst_52 = arith.constant dense<0.000000e+00> : vector<17x17xf32>
    %145 = tpu.matmul %142, %143, %cst_52 {dimension_numbers = #tpu.dot_dimension_numbers<[1], [1], [0], [0], [0, 0, 1, 0], [], []>} : vector<17x8xf32>, vector<17x8xf32>, vector<17x17xf32> -> vector<17x17xf32>
    %cst_53 = arith.constant 0.353553385 : f32
    %146 = vector.broadcast %cst_53 : f32 to vector<17x17xf32>
    %147 = arith.mulf %145, %146 : vector<17x17xf32>
    %cst_54 = arith.constant dense<0xFF800000> : vector<17xf32>
    %148 = vector.multi_reduction <maximumf>, %147, %cst_54 [1] : vector<17x17xf32> to vector<17xf32>
    %149 = vector.shape_cast %148 : vector<17xf32> to vector<17x1xf32>
    %150 = vector.broadcast %149 : vector<17x1xf32> to vector<17x17xf32>
    %151 = arith.subf %147, %150 : vector<17x17xf32>
    %152 = math.exp %151 : vector<17x17xf32>
    %cst_55 = arith.constant dense<0.000000e+00> : vector<17xf32>
    %153 = vector.multi_reduction <add>, %152, %cst_55 [1] : vector<17x17xf32> to vector<17xf32>
    %154 = vector.shape_cast %153 : vector<17xf32> to vector<17x1xf32>
    %155 = tpu.reciprocal %154 {approx = true} : vector<17x1xf32> -> vector<17x1xf32>
    %156 = vector.broadcast %155 : vector<17x1xf32> to vector<17x17xf32>
    %157 = arith.mulf %152, %156 : vector<17x17xf32>
    %cst_56 = arith.constant dense<0.000000e+00> : vector<17x8xf32>
    %158 = tpu.matmul %157, %144, %cst_56 {dimension_numbers = #tpu.dot_dimension_numbers<[1], [0], [0], [1], [0, 0, 1, 1], [], []>} : vector<17x17xf32>, vector<17x8xf32>, vector<17x8xf32> -> vector<17x8xf32>
    %159 = vector.extract_strided_slice %124 {offsets = [0, 16], sizes = [17, 8], strides = [1, 1]} : vector<17x96xf32> to vector<17x8xf32>
    %160 = vector.extract_strided_slice %124 {offsets = [0, 48], sizes = [17, 8], strides = [1, 1]} : vector<17x96xf32> to vector<17x8xf32>
    %161 = vector.extract_strided_slice %124 {offsets = [0, 80], sizes = [17, 8], strides = [1, 1]} : vector<17x96xf32> to vector<17x8xf32>
    %cst_57 = arith.constant dense<0.000000e+00> : vector<17x17xf32>
    %162 = tpu.matmul %159, %160, %cst_57 {dimension_numbers = #tpu.dot_dimension_numbers<[1], [1], [0], [0], [0, 0, 1, 0], [], []>} : vector<17x8xf32>, vector<17x8xf32>, vector<17x17xf32> -> vector<17x17xf32>
    %cst_58 = arith.constant 0.353553385 : f32
    %163 = vector.broadcast %cst_58 : f32 to vector<17x17xf32>
    %164 = arith.mulf %162, %163 : vector<17x17xf32>
    %cst_59 = arith.constant dense<0xFF800000> : vector<17xf32>
    %165 = vector.multi_reduction <maximumf>, %164, %cst_59 [1] : vector<17x17xf32> to vector<17xf32>
    %166 = vector.shape_cast %165 : vector<17xf32> to vector<17x1xf32>
    %167 = vector.broadcast %166 : vector<17x1xf32> to vector<17x17xf32>
    %168 = arith.subf %164, %167 : vector<17x17xf32>
    %169 = math.exp %168 : vector<17x17xf32>
    %cst_60 = arith.constant dense<0.000000e+00> : vector<17xf32>
    %170 = vector.multi_reduction <add>, %169, %cst_60 [1] : vector<17x17xf32> to vector<17xf32>
    %171 = vector.shape_cast %170 : vector<17xf32> to vector<17x1xf32>
    %172 = tpu.reciprocal %171 {approx = true} : vector<17x1xf32> -> vector<17x1xf32>
    %173 = vector.broadcast %172 : vector<17x1xf32> to vector<17x17xf32>
    %174 = arith.mulf %169, %173 : vector<17x17xf32>
    %cst_61 = arith.constant dense<0.000000e+00> : vector<17x8xf32>
    %175 = tpu.matmul %174, %161, %cst_61 {dimension_numbers = #tpu.dot_dimension_numbers<[1], [0], [0], [1], [0, 0, 1, 1], [], []>} : vector<17x17xf32>, vector<17x8xf32>, vector<17x8xf32> -> vector<17x8xf32>
    %176 = vector.extract_strided_slice %124 {offsets = [0, 24], sizes = [17, 8], strides = [1, 1]} : vector<17x96xf32> to vector<17x8xf32>
    %177 = vector.extract_strided_slice %124 {offsets = [0, 56], sizes = [17, 8], strides = [1, 1]} : vector<17x96xf32> to vector<17x8xf32>
    %178 = vector.extract_strided_slice %124 {offsets = [0, 88], sizes = [17, 8], strides = [1, 1]} : vector<17x96xf32> to vector<17x8xf32>
    %cst_62 = arith.constant dense<0.000000e+00> : vector<17x17xf32>
    %179 = tpu.matmul %176, %177, %cst_62 {dimension_numbers = #tpu.dot_dimension_numbers<[1], [1], [0], [0], [0, 0, 1, 0], [], []>} : vector<17x8xf32>, vector<17x8xf32>, vector<17x17xf32> -> vector<17x17xf32>
    %cst_63 = arith.constant 0.353553385 : f32
    %180 = vector.broadcast %cst_63 : f32 to vector<17x17xf32>
    %181 = arith.mulf %179, %180 : vector<17x17xf32>
    %cst_64 = arith.constant dense<0xFF800000> : vector<17xf32>
    %182 = vector.multi_reduction <maximumf>, %181, %cst_64 [1] : vector<17x17xf32> to vector<17xf32>
    %183 = vector.shape_cast %182 : vector<17xf32> to vector<17x1xf32>
    %184 = vector.broadcast %183 : vector<17x1xf32> to vector<17x17xf32>
    %185 = arith.subf %181, %184 : vector<17x17xf32>
    %186 = math.exp %185 : vector<17x17xf32>
    %cst_65 = arith.constant dense<0.000000e+00> : vector<17xf32>
    %187 = vector.multi_reduction <add>, %186, %cst_65 [1] : vector<17x17xf32> to vector<17xf32>
    %188 = vector.shape_cast %187 : vector<17xf32> to vector<17x1xf32>
    %189 = tpu.reciprocal %188 {approx = true} : vector<17x1xf32> -> vector<17x1xf32>
    %190 = vector.broadcast %189 : vector<17x1xf32> to vector<17x17xf32>
    %191 = arith.mulf %186, %190 : vector<17x17xf32>
    %cst_66 = arith.constant dense<0.000000e+00> : vector<17x8xf32>
    %192 = tpu.matmul %191, %178, %cst_66 {dimension_numbers = #tpu.dot_dimension_numbers<[1], [0], [0], [1], [0, 0, 1, 1], [], []>} : vector<17x17xf32>, vector<17x8xf32>, vector<17x8xf32> -> vector<17x8xf32>
    %193 = tpu.concatenate %141, %158, %175, %192 in 1 : vector<17x8xf32>, vector<17x8xf32>, vector<17x8xf32>, vector<17x8xf32> -> vector<17x32xf32>
    %194 = tpu.concatenate %123, %193 in 0 : vector<17x32xf32>, vector<17x32xf32> -> vector<34x32xf32>
    %c0_67 = arith.constant 0 : index
    %c0_68 = arith.constant 0 : index
    %c0_69 = arith.constant 0 : index
    %195 = vector.load %arg9[%c0_67, %c0_68, %c0_69] : memref<2x32x32xf32, #tpu.memory_space<vmem>>, vector<1x32x32xf32>
    %196 = vector.shape_cast %195 : vector<1x32x32xf32> to vector<32x32xf32>
    %cst_70 = arith.constant dense<0.000000e+00> : vector<34x32xf32>
    %197 = tpu.matmul %194, %196, %cst_70 {dimension_numbers = #tpu.dot_dimension_numbers<[1], [0], [0], [1], [0, 0, 1, 1], [], []>} : vector<34x32xf32>, vector<32x32xf32>, vector<34x32xf32> -> vector<34x32xf32>
    %c0_71 = arith.constant 0 : index
    %c0_72 = arith.constant 0 : index
    %c0_73 = arith.constant 0 : index
    %198 = vector.load %arg10[%c0_71, %c0_72, %c0_73] : memref<2x1x32xf32, #tpu.memory_space<vmem>>, vector<1x1x32xf32>
    %199 = vector.shape_cast %198 : vector<1x1x32xf32> to vector<1x32xf32>
    %200 = vector.broadcast %199 : vector<1x32xf32> to vector<34x32xf32>
    %201 = arith.addf %197, %200 : vector<34x32xf32>
    %202 = arith.addf %18, %201 : vector<34x32xf32>
    %c0_74 = arith.constant 0 : index
    %c0_75 = arith.constant 0 : index
    %c0_76 = arith.constant 0 : index
    %203 = vector.load %arg11[%c0_74, %c0_75, %c0_76] : memref<2x1x32xf32, #tpu.memory_space<vmem>>, vector<1x1x32xf32>
    %204 = vector.shape_cast %203 : vector<1x1x32xf32> to vector<1x32xf32>
    %c0_77 = arith.constant 0 : index
    %c0_78 = arith.constant 0 : index
    %c0_79 = arith.constant 0 : index
    %205 = vector.load %arg12[%c0_77, %c0_78, %c0_79] : memref<2x1x32xf32, #tpu.memory_space<vmem>>, vector<1x1x32xf32>
    %206 = vector.shape_cast %205 : vector<1x1x32xf32> to vector<1x32xf32>
    %cst_80 = arith.constant dense<0.000000e+00> : vector<34xf32>
    %207 = vector.multi_reduction <add>, %202, %cst_80 [1] : vector<34x32xf32> to vector<34xf32>
    %208 = vector.shape_cast %207 : vector<34xf32> to vector<34x1xf32>
    %cst_81 = arith.constant 3.200000e+01 : f32
    %209 = vector.broadcast %cst_81 : f32 to vector<34x1xf32>
    %210 = arith.divf %208, %209 : vector<34x1xf32>
    %211 = vector.broadcast %210 : vector<34x1xf32> to vector<34x32xf32>
    %212 = arith.subf %202, %211 : vector<34x32xf32>
    %213 = vector.broadcast %210 : vector<34x1xf32> to vector<34x32xf32>
    %214 = arith.subf %202, %213 : vector<34x32xf32>
    %215 = arith.mulf %212, %214 : vector<34x32xf32>
    %cst_82 = arith.constant dense<0.000000e+00> : vector<34xf32>
    %216 = vector.multi_reduction <add>, %215, %cst_82 [1] : vector<34x32xf32> to vector<34xf32>
    %217 = vector.shape_cast %216 : vector<34xf32> to vector<34x1xf32>
    %cst_83 = arith.constant 3.200000e+01 : f32
    %218 = vector.broadcast %cst_83 : f32 to vector<34x1xf32>
    %219 = arith.divf %217, %218 : vector<34x1xf32>
    %220 = vector.broadcast %210 : vector<34x1xf32> to vector<34x32xf32>
    %221 = arith.subf %202, %220 : vector<34x32xf32>
    %cst_84 = arith.constant 9.99999997E-7 : f32
    %222 = vector.broadcast %cst_84 : f32 to vector<34x1xf32>
    %223 = arith.addf %219, %222 : vector<34x1xf32>
    %224 = math.rsqrt %223 : vector<34x1xf32>
    %225 = vector.broadcast %224 : vector<34x1xf32> to vector<34x32xf32>
    %226 = arith.mulf %221, %225 : vector<34x32xf32>
    %227 = vector.broadcast %204 : vector<1x32xf32> to vector<34x32xf32>
    %228 = arith.mulf %226, %227 : vector<34x32xf32>
    %229 = vector.broadcast %206 : vector<1x32xf32> to vector<34x32xf32>
    %230 = arith.addf %228, %229 : vector<34x32xf32>
    %c0_85 = arith.constant 0 : index
    %c0_86 = arith.constant 0 : index
    %c0_87 = arith.constant 0 : index
    %231 = vector.load %arg13[%c0_85, %c0_86, %c0_87] : memref<2x32x128xf32, #tpu.memory_space<vmem>>, vector<1x32x128xf32>
    %232 = vector.shape_cast %231 : vector<1x32x128xf32> to vector<32x128xf32>
    %cst_88 = arith.constant dense<0.000000e+00> : vector<34x128xf32>
    %233 = tpu.matmul %230, %232, %cst_88 {dimension_numbers = #tpu.dot_dimension_numbers<[1], [0], [0], [1], [0, 0, 1, 1], [], []>} : vector<34x32xf32>, vector<32x128xf32>, vector<34x128xf32> -> vector<34x128xf32>
    %c0_89 = arith.constant 0 : index
    %c0_90 = arith.constant 0 : index
    %c0_91 = arith.constant 0 : index
    %234 = vector.load %arg14[%c0_89, %c0_90, %c0_91] : memref<2x1x128xf32, #tpu.memory_space<vmem>>, vector<1x1x128xf32>
    %235 = vector.shape_cast %234 : vector<1x1x128xf32> to vector<1x128xf32>
    %236 = vector.broadcast %235 : vector<1x128xf32> to vector<34x128xf32>
    %237 = arith.addf %233, %236 : vector<34x128xf32>
    %238 = arith.mulf %237, %237 : vector<34x128xf32>
    %239 = arith.mulf %237, %238 : vector<34x128xf32>
    %cst_92 = arith.constant 4.471500e-02 : f32
    %240 = vector.broadcast %cst_92 : f32 to vector<34x128xf32>
    %241 = arith.mulf %240, %239 : vector<34x128xf32>
    %242 = arith.addf %237, %241 : vector<34x128xf32>
    %cst_93 = arith.constant 0.797884583 : f32
    %243 = vector.broadcast %cst_93 : f32 to vector<34x128xf32>
    %244 = arith.mulf %243, %242 : vector<34x128xf32>
    %245 = math.tanh %244 : vector<34x128xf32>
    %cst_94 = arith.constant 1.000000e+00 : f32
    %246 = vector.broadcast %cst_94 : f32 to vector<34x128xf32>
    %247 = arith.addf %246, %245 : vector<34x128xf32>
    %cst_95 = arith.constant 5.000000e-01 : f32
    %248 = vector.broadcast %cst_95 : f32 to vector<34x128xf32>
    %249 = arith.mulf %248, %247 : vector<34x128xf32>
    %250 = arith.mulf %237, %249 : vector<34x128xf32>
    %c0_96 = arith.constant 0 : index
    %c0_97 = arith.constant 0 : index
    %c0_98 = arith.constant 0 : index
    %251 = vector.load %arg15[%c0_96, %c0_97, %c0_98] : memref<2x128x32xf32, #tpu.memory_space<vmem>>, vector<1x128x32xf32>
    %252 = vector.shape_cast %251 : vector<1x128x32xf32> to vector<128x32xf32>
    %cst_99 = arith.constant dense<0.000000e+00> : vector<34x32xf32>
    %253 = tpu.matmul %250, %252, %cst_99 {dimension_numbers = #tpu.dot_dimension_numbers<[1], [0], [0], [1], [0, 0, 1, 1], [], []>} : vector<34x128xf32>, vector<128x32xf32>, vector<34x32xf32> -> vector<34x32xf32>
    %c0_100 = arith.constant 0 : index
    %c0_101 = arith.constant 0 : index
    %c0_102 = arith.constant 0 : index
    %254 = vector.load %arg16[%c0_100, %c0_101, %c0_102] : memref<2x1x32xf32, #tpu.memory_space<vmem>>, vector<1x1x32xf32>
    %255 = vector.shape_cast %254 : vector<1x1x32xf32> to vector<1x32xf32>
    %256 = vector.broadcast %255 : vector<1x32xf32> to vector<34x32xf32>
    %257 = arith.addf %253, %256 : vector<34x32xf32>
    %258 = arith.addf %202, %257 : vector<34x32xf32>
    %c1 = arith.constant 1 : index
    %c0_103 = arith.constant 0 : index
    %c0_104 = arith.constant 0 : index
    %259 = vector.load %arg5[%c1, %c0_103, %c0_104] : memref<2x1x32xf32, #tpu.memory_space<vmem>>, vector<1x1x32xf32>
    %260 = vector.shape_cast %259 : vector<1x1x32xf32> to vector<1x32xf32>
    %c1_105 = arith.constant 1 : index
    %c0_106 = arith.constant 0 : index
    %c0_107 = arith.constant 0 : index
    %261 = vector.load %arg6[%c1_105, %c0_106, %c0_107] : memref<2x1x32xf32, #tpu.memory_space<vmem>>, vector<1x1x32xf32>
    %262 = vector.shape_cast %261 : vector<1x1x32xf32> to vector<1x32xf32>
    %cst_108 = arith.constant dense<0.000000e+00> : vector<34xf32>
    %263 = vector.multi_reduction <add>, %258, %cst_108 [1] : vector<34x32xf32> to vector<34xf32>
    %264 = vector.shape_cast %263 : vector<34xf32> to vector<34x1xf32>
    %cst_109 = arith.constant 3.200000e+01 : f32
    %265 = vector.broadcast %cst_109 : f32 to vector<34x1xf32>
    %266 = arith.divf %264, %265 : vector<34x1xf32>
    %267 = vector.broadcast %266 : vector<34x1xf32> to vector<34x32xf32>
    %268 = arith.subf %258, %267 : vector<34x32xf32>
    %269 = vector.broadcast %266 : vector<34x1xf32> to vector<34x32xf32>
    %270 = arith.subf %258, %269 : vector<34x32xf32>
    %271 = arith.mulf %268, %270 : vector<34x32xf32>
    %cst_110 = arith.constant dense<0.000000e+00> : vector<34xf32>
    %272 = vector.multi_reduction <add>, %271, %cst_110 [1] : vector<34x32xf32> to vector<34xf32>
    %273 = vector.shape_cast %272 : vector<34xf32> to vector<34x1xf32>
    %cst_111 = arith.constant 3.200000e+01 : f32
    %274 = vector.broadcast %cst_111 : f32 to vector<34x1xf32>
    %275 = arith.divf %273, %274 : vector<34x1xf32>
    %276 = vector.broadcast %266 : vector<34x1xf32> to vector<34x32xf32>
    %277 = arith.subf %258, %276 : vector<34x32xf32>
    %cst_112 = arith.constant 9.99999997E-7 : f32
    %278 = vector.broadcast %cst_112 : f32 to vector<34x1xf32>
    %279 = arith.addf %275, %278 : vector<34x1xf32>
    %280 = math.rsqrt %279 : vector<34x1xf32>
    %281 = vector.broadcast %280 : vector<34x1xf32> to vector<34x32xf32>
    %282 = arith.mulf %277, %281 : vector<34x32xf32>
    %283 = vector.broadcast %260 : vector<1x32xf32> to vector<34x32xf32>
    %284 = arith.mulf %282, %283 : vector<34x32xf32>
    %285 = vector.broadcast %262 : vector<1x32xf32> to vector<34x32xf32>
    %286 = arith.addf %284, %285 : vector<34x32xf32>
    %c1_113 = arith.constant 1 : index
    %c0_114 = arith.constant 0 : index
    %c0_115 = arith.constant 0 : index
    %287 = vector.load %arg7[%c1_113, %c0_114, %c0_115] : memref<2x32x96xf32, #tpu.memory_space<vmem>>, vector<1x32x96xf32>
    %288 = vector.shape_cast %287 : vector<1x32x96xf32> to vector<32x96xf32>
    %cst_116 = arith.constant dense<0.000000e+00> : vector<34x96xf32>
    %289 = tpu.matmul %286, %288, %cst_116 {dimension_numbers = #tpu.dot_dimension_numbers<[1], [0], [0], [1], [0, 0, 1, 1], [], []>} : vector<34x32xf32>, vector<32x96xf32>, vector<34x96xf32> -> vector<34x96xf32>
    %c1_117 = arith.constant 1 : index
    %c0_118 = arith.constant 0 : index
    %c0_119 = arith.constant 0 : index
    %290 = vector.load %arg8[%c1_117, %c0_118, %c0_119] : memref<2x1x96xf32, #tpu.memory_space<vmem>>, vector<1x1x96xf32>
    %291 = vector.shape_cast %290 : vector<1x1x96xf32> to vector<1x96xf32>
    %292 = vector.broadcast %291 : vector<1x96xf32> to vector<34x96xf32>
    %293 = arith.addf %289, %292 : vector<34x96xf32>
    %294 = vector.extract_strided_slice %293 {offsets = [0, 0], sizes = [17, 96], strides = [1, 1]} : vector<34x96xf32> to vector<17x96xf32>
    %295 = vector.extract_strided_slice %294 {offsets = [0, 0], sizes = [17, 8], strides = [1, 1]} : vector<17x96xf32> to vector<17x8xf32>
    %296 = vector.extract_strided_slice %294 {offsets = [0, 32], sizes = [17, 8], strides = [1, 1]} : vector<17x96xf32> to vector<17x8xf32>
    %297 = vector.extract_strided_slice %294 {offsets = [0, 64], sizes = [17, 8], strides = [1, 1]} : vector<17x96xf32> to vector<17x8xf32>
    %cst_120 = arith.constant dense<0.000000e+00> : vector<17x17xf32>
    %298 = tpu.matmul %295, %296, %cst_120 {dimension_numbers = #tpu.dot_dimension_numbers<[1], [1], [0], [0], [0, 0, 1, 0], [], []>} : vector<17x8xf32>, vector<17x8xf32>, vector<17x17xf32> -> vector<17x17xf32>
    %cst_121 = arith.constant 0.353553385 : f32
    %299 = vector.broadcast %cst_121 : f32 to vector<17x17xf32>
    %300 = arith.mulf %298, %299 : vector<17x17xf32>
    %cst_122 = arith.constant dense<0xFF800000> : vector<17xf32>
    %301 = vector.multi_reduction <maximumf>, %300, %cst_122 [1] : vector<17x17xf32> to vector<17xf32>
    %302 = vector.shape_cast %301 : vector<17xf32> to vector<17x1xf32>
    %303 = vector.broadcast %302 : vector<17x1xf32> to vector<17x17xf32>
    %304 = arith.subf %300, %303 : vector<17x17xf32>
    %305 = math.exp %304 : vector<17x17xf32>
    %cst_123 = arith.constant dense<0.000000e+00> : vector<17xf32>
    %306 = vector.multi_reduction <add>, %305, %cst_123 [1] : vector<17x17xf32> to vector<17xf32>
    %307 = vector.shape_cast %306 : vector<17xf32> to vector<17x1xf32>
    %308 = tpu.reciprocal %307 {approx = true} : vector<17x1xf32> -> vector<17x1xf32>
    %309 = vector.broadcast %308 : vector<17x1xf32> to vector<17x17xf32>
    %310 = arith.mulf %305, %309 : vector<17x17xf32>
    %cst_124 = arith.constant dense<0.000000e+00> : vector<17x8xf32>
    %311 = tpu.matmul %310, %297, %cst_124 {dimension_numbers = #tpu.dot_dimension_numbers<[1], [0], [0], [1], [0, 0, 1, 1], [], []>} : vector<17x17xf32>, vector<17x8xf32>, vector<17x8xf32> -> vector<17x8xf32>
    %312 = vector.extract_strided_slice %294 {offsets = [0, 8], sizes = [17, 8], strides = [1, 1]} : vector<17x96xf32> to vector<17x8xf32>
    %313 = vector.extract_strided_slice %294 {offsets = [0, 40], sizes = [17, 8], strides = [1, 1]} : vector<17x96xf32> to vector<17x8xf32>
    %314 = vector.extract_strided_slice %294 {offsets = [0, 72], sizes = [17, 8], strides = [1, 1]} : vector<17x96xf32> to vector<17x8xf32>
    %cst_125 = arith.constant dense<0.000000e+00> : vector<17x17xf32>
    %315 = tpu.matmul %312, %313, %cst_125 {dimension_numbers = #tpu.dot_dimension_numbers<[1], [1], [0], [0], [0, 0, 1, 0], [], []>} : vector<17x8xf32>, vector<17x8xf32>, vector<17x17xf32> -> vector<17x17xf32>
    %cst_126 = arith.constant 0.353553385 : f32
    %316 = vector.broadcast %cst_126 : f32 to vector<17x17xf32>
    %317 = arith.mulf %315, %316 : vector<17x17xf32>
    %cst_127 = arith.constant dense<0xFF800000> : vector<17xf32>
    %318 = vector.multi_reduction <maximumf>, %317, %cst_127 [1] : vector<17x17xf32> to vector<17xf32>
    %319 = vector.shape_cast %318 : vector<17xf32> to vector<17x1xf32>
    %320 = vector.broadcast %319 : vector<17x1xf32> to vector<17x17xf32>
    %321 = arith.subf %317, %320 : vector<17x17xf32>
    %322 = math.exp %321 : vector<17x17xf32>
    %cst_128 = arith.constant dense<0.000000e+00> : vector<17xf32>
    %323 = vector.multi_reduction <add>, %322, %cst_128 [1] : vector<17x17xf32> to vector<17xf32>
    %324 = vector.shape_cast %323 : vector<17xf32> to vector<17x1xf32>
    %325 = tpu.reciprocal %324 {approx = true} : vector<17x1xf32> -> vector<17x1xf32>
    %326 = vector.broadcast %325 : vector<17x1xf32> to vector<17x17xf32>
    %327 = arith.mulf %322, %326 : vector<17x17xf32>
    %cst_129 = arith.constant dense<0.000000e+00> : vector<17x8xf32>
    %328 = tpu.matmul %327, %314, %cst_129 {dimension_numbers = #tpu.dot_dimension_numbers<[1], [0], [0], [1], [0, 0, 1, 1], [], []>} : vector<17x17xf32>, vector<17x8xf32>, vector<17x8xf32> -> vector<17x8xf32>
    %329 = vector.extract_strided_slice %294 {offsets = [0, 16], sizes = [17, 8], strides = [1, 1]} : vector<17x96xf32> to vector<17x8xf32>
    %330 = vector.extract_strided_slice %294 {offsets = [0, 48], sizes = [17, 8], strides = [1, 1]} : vector<17x96xf32> to vector<17x8xf32>
    %331 = vector.extract_strided_slice %294 {offsets = [0, 80], sizes = [17, 8], strides = [1, 1]} : vector<17x96xf32> to vector<17x8xf32>
    %cst_130 = arith.constant dense<0.000000e+00> : vector<17x17xf32>
    %332 = tpu.matmul %329, %330, %cst_130 {dimension_numbers = #tpu.dot_dimension_numbers<[1], [1], [0], [0], [0, 0, 1, 0], [], []>} : vector<17x8xf32>, vector<17x8xf32>, vector<17x17xf32> -> vector<17x17xf32>
    %cst_131 = arith.constant 0.353553385 : f32
    %333 = vector.broadcast %cst_131 : f32 to vector<17x17xf32>
    %334 = arith.mulf %332, %333 : vector<17x17xf32>
    %cst_132 = arith.constant dense<0xFF800000> : vector<17xf32>
    %335 = vector.multi_reduction <maximumf>, %334, %cst_132 [1] : vector<17x17xf32> to vector<17xf32>
    %336 = vector.shape_cast %335 : vector<17xf32> to vector<17x1xf32>
    %337 = vector.broadcast %336 : vector<17x1xf32> to vector<17x17xf32>
    %338 = arith.subf %334, %337 : vector<17x17xf32>
    %339 = math.exp %338 : vector<17x17xf32>
    %cst_133 = arith.constant dense<0.000000e+00> : vector<17xf32>
    %340 = vector.multi_reduction <add>, %339, %cst_133 [1] : vector<17x17xf32> to vector<17xf32>
    %341 = vector.shape_cast %340 : vector<17xf32> to vector<17x1xf32>
    %342 = tpu.reciprocal %341 {approx = true} : vector<17x1xf32> -> vector<17x1xf32>
    %343 = vector.broadcast %342 : vector<17x1xf32> to vector<17x17xf32>
    %344 = arith.mulf %339, %343 : vector<17x17xf32>
    %cst_134 = arith.constant dense<0.000000e+00> : vector<17x8xf32>
    %345 = tpu.matmul %344, %331, %cst_134 {dimension_numbers = #tpu.dot_dimension_numbers<[1], [0], [0], [1], [0, 0, 1, 1], [], []>} : vector<17x17xf32>, vector<17x8xf32>, vector<17x8xf32> -> vector<17x8xf32>
    %346 = vector.extract_strided_slice %294 {offsets = [0, 24], sizes = [17, 8], strides = [1, 1]} : vector<17x96xf32> to vector<17x8xf32>
    %347 = vector.extract_strided_slice %294 {offsets = [0, 56], sizes = [17, 8], strides = [1, 1]} : vector<17x96xf32> to vector<17x8xf32>
    %348 = vector.extract_strided_slice %294 {offsets = [0, 88], sizes = [17, 8], strides = [1, 1]} : vector<17x96xf32> to vector<17x8xf32>
    %cst_135 = arith.constant dense<0.000000e+00> : vector<17x17xf32>
    %349 = tpu.matmul %346, %347, %cst_135 {dimension_numbers = #tpu.dot_dimension_numbers<[1], [1], [0], [0], [0, 0, 1, 0], [], []>} : vector<17x8xf32>, vector<17x8xf32>, vector<17x17xf32> -> vector<17x17xf32>
    %cst_136 = arith.constant 0.353553385 : f32
    %350 = vector.broadcast %cst_136 : f32 to vector<17x17xf32>
    %351 = arith.mulf %349, %350 : vector<17x17xf32>
    %cst_137 = arith.constant dense<0xFF800000> : vector<17xf32>
    %352 = vector.multi_reduction <maximumf>, %351, %cst_137 [1] : vector<17x17xf32> to vector<17xf32>
    %353 = vector.shape_cast %352 : vector<17xf32> to vector<17x1xf32>
    %354 = vector.broadcast %353 : vector<17x1xf32> to vector<17x17xf32>
    %355 = arith.subf %351, %354 : vector<17x17xf32>
    %356 = math.exp %355 : vector<17x17xf32>
    %cst_138 = arith.constant dense<0.000000e+00> : vector<17xf32>
    %357 = vector.multi_reduction <add>, %356, %cst_138 [1] : vector<17x17xf32> to vector<17xf32>
    %358 = vector.shape_cast %357 : vector<17xf32> to vector<17x1xf32>
    %359 = tpu.reciprocal %358 {approx = true} : vector<17x1xf32> -> vector<17x1xf32>
    %360 = vector.broadcast %359 : vector<17x1xf32> to vector<17x17xf32>
    %361 = arith.mulf %356, %360 : vector<17x17xf32>
    %cst_139 = arith.constant dense<0.000000e+00> : vector<17x8xf32>
    %362 = tpu.matmul %361, %348, %cst_139 {dimension_numbers = #tpu.dot_dimension_numbers<[1], [0], [0], [1], [0, 0, 1, 1], [], []>} : vector<17x17xf32>, vector<17x8xf32>, vector<17x8xf32> -> vector<17x8xf32>
    %363 = tpu.concatenate %311, %328, %345, %362 in 1 : vector<17x8xf32>, vector<17x8xf32>, vector<17x8xf32>, vector<17x8xf32> -> vector<17x32xf32>
    %364 = vector.extract_strided_slice %293 {offsets = [17, 0], sizes = [17, 96], strides = [1, 1]} : vector<34x96xf32> to vector<17x96xf32>
    %365 = vector.extract_strided_slice %364 {offsets = [0, 0], sizes = [17, 8], strides = [1, 1]} : vector<17x96xf32> to vector<17x8xf32>
    %366 = vector.extract_strided_slice %364 {offsets = [0, 32], sizes = [17, 8], strides = [1, 1]} : vector<17x96xf32> to vector<17x8xf32>
    %367 = vector.extract_strided_slice %364 {offsets = [0, 64], sizes = [17, 8], strides = [1, 1]} : vector<17x96xf32> to vector<17x8xf32>
    %cst_140 = arith.constant dense<0.000000e+00> : vector<17x17xf32>
    %368 = tpu.matmul %365, %366, %cst_140 {dimension_numbers = #tpu.dot_dimension_numbers<[1], [1], [0], [0], [0, 0, 1, 0], [], []>} : vector<17x8xf32>, vector<17x8xf32>, vector<17x17xf32> -> vector<17x17xf32>
    %cst_141 = arith.constant 0.353553385 : f32
    %369 = vector.broadcast %cst_141 : f32 to vector<17x17xf32>
    %370 = arith.mulf %368, %369 : vector<17x17xf32>
    %cst_142 = arith.constant dense<0xFF800000> : vector<17xf32>
    %371 = vector.multi_reduction <maximumf>, %370, %cst_142 [1] : vector<17x17xf32> to vector<17xf32>
    %372 = vector.shape_cast %371 : vector<17xf32> to vector<17x1xf32>
    %373 = vector.broadcast %372 : vector<17x1xf32> to vector<17x17xf32>
    %374 = arith.subf %370, %373 : vector<17x17xf32>
    %375 = math.exp %374 : vector<17x17xf32>
    %cst_143 = arith.constant dense<0.000000e+00> : vector<17xf32>
    %376 = vector.multi_reduction <add>, %375, %cst_143 [1] : vector<17x17xf32> to vector<17xf32>
    %377 = vector.shape_cast %376 : vector<17xf32> to vector<17x1xf32>
    %378 = tpu.reciprocal %377 {approx = true} : vector<17x1xf32> -> vector<17x1xf32>
    %379 = vector.broadcast %378 : vector<17x1xf32> to vector<17x17xf32>
    %380 = arith.mulf %375, %379 : vector<17x17xf32>
    %cst_144 = arith.constant dense<0.000000e+00> : vector<17x8xf32>
    %381 = tpu.matmul %380, %367, %cst_144 {dimension_numbers = #tpu.dot_dimension_numbers<[1], [0], [0], [1], [0, 0, 1, 1], [], []>} : vector<17x17xf32>, vector<17x8xf32>, vector<17x8xf32> -> vector<17x8xf32>
    %382 = vector.extract_strided_slice %364 {offsets = [0, 8], sizes = [17, 8], strides = [1, 1]} : vector<17x96xf32> to vector<17x8xf32>
    %383 = vector.extract_strided_slice %364 {offsets = [0, 40], sizes = [17, 8], strides = [1, 1]} : vector<17x96xf32> to vector<17x8xf32>
    %384 = vector.extract_strided_slice %364 {offsets = [0, 72], sizes = [17, 8], strides = [1, 1]} : vector<17x96xf32> to vector<17x8xf32>
    %cst_145 = arith.constant dense<0.000000e+00> : vector<17x17xf32>
    %385 = tpu.matmul %382, %383, %cst_145 {dimension_numbers = #tpu.dot_dimension_numbers<[1], [1], [0], [0], [0, 0, 1, 0], [], []>} : vector<17x8xf32>, vector<17x8xf32>, vector<17x17xf32> -> vector<17x17xf32>
    %cst_146 = arith.constant 0.353553385 : f32
    %386 = vector.broadcast %cst_146 : f32 to vector<17x17xf32>
    %387 = arith.mulf %385, %386 : vector<17x17xf32>
    %cst_147 = arith.constant dense<0xFF800000> : vector<17xf32>
    %388 = vector.multi_reduction <maximumf>, %387, %cst_147 [1] : vector<17x17xf32> to vector<17xf32>
    %389 = vector.shape_cast %388 : vector<17xf32> to vector<17x1xf32>
    %390 = vector.broadcast %389 : vector<17x1xf32> to vector<17x17xf32>
    %391 = arith.subf %387, %390 : vector<17x17xf32>
    %392 = math.exp %391 : vector<17x17xf32>
    %cst_148 = arith.constant dense<0.000000e+00> : vector<17xf32>
    %393 = vector.multi_reduction <add>, %392, %cst_148 [1] : vector<17x17xf32> to vector<17xf32>
    %394 = vector.shape_cast %393 : vector<17xf32> to vector<17x1xf32>
    %395 = tpu.reciprocal %394 {approx = true} : vector<17x1xf32> -> vector<17x1xf32>
    %396 = vector.broadcast %395 : vector<17x1xf32> to vector<17x17xf32>
    %397 = arith.mulf %392, %396 : vector<17x17xf32>
    %cst_149 = arith.constant dense<0.000000e+00> : vector<17x8xf32>
    %398 = tpu.matmul %397, %384, %cst_149 {dimension_numbers = #tpu.dot_dimension_numbers<[1], [0], [0], [1], [0, 0, 1, 1], [], []>} : vector<17x17xf32>, vector<17x8xf32>, vector<17x8xf32> -> vector<17x8xf32>
    %399 = vector.extract_strided_slice %364 {offsets = [0, 16], sizes = [17, 8], strides = [1, 1]} : vector<17x96xf32> to vector<17x8xf32>
    %400 = vector.extract_strided_slice %364 {offsets = [0, 48], sizes = [17, 8], strides = [1, 1]} : vector<17x96xf32> to vector<17x8xf32>
    %401 = vector.extract_strided_slice %364 {offsets = [0, 80], sizes = [17, 8], strides = [1, 1]} : vector<17x96xf32> to vector<17x8xf32>
    %cst_150 = arith.constant dense<0.000000e+00> : vector<17x17xf32>
    %402 = tpu.matmul %399, %400, %cst_150 {dimension_numbers = #tpu.dot_dimension_numbers<[1], [1], [0], [0], [0, 0, 1, 0], [], []>} : vector<17x8xf32>, vector<17x8xf32>, vector<17x17xf32> -> vector<17x17xf32>
    %cst_151 = arith.constant 0.353553385 : f32
    %403 = vector.broadcast %cst_151 : f32 to vector<17x17xf32>
    %404 = arith.mulf %402, %403 : vector<17x17xf32>
    %cst_152 = arith.constant dense<0xFF800000> : vector<17xf32>
    %405 = vector.multi_reduction <maximumf>, %404, %cst_152 [1] : vector<17x17xf32> to vector<17xf32>
    %406 = vector.shape_cast %405 : vector<17xf32> to vector<17x1xf32>
    %407 = vector.broadcast %406 : vector<17x1xf32> to vector<17x17xf32>
    %408 = arith.subf %404, %407 : vector<17x17xf32>
    %409 = math.exp %408 : vector<17x17xf32>
    %cst_153 = arith.constant dense<0.000000e+00> : vector<17xf32>
    %410 = vector.multi_reduction <add>, %409, %cst_153 [1] : vector<17x17xf32> to vector<17xf32>
    %411 = vector.shape_cast %410 : vector<17xf32> to vector<17x1xf32>
    %412 = tpu.reciprocal %411 {approx = true} : vector<17x1xf32> -> vector<17x1xf32>
    %413 = vector.broadcast %412 : vector<17x1xf32> to vector<17x17xf32>
    %414 = arith.mulf %409, %413 : vector<17x17xf32>
    %cst_154 = arith.constant dense<0.000000e+00> : vector<17x8xf32>
    %415 = tpu.matmul %414, %401, %cst_154 {dimension_numbers = #tpu.dot_dimension_numbers<[1], [0], [0], [1], [0, 0, 1, 1], [], []>} : vector<17x17xf32>, vector<17x8xf32>, vector<17x8xf32> -> vector<17x8xf32>
    %416 = vector.extract_strided_slice %364 {offsets = [0, 24], sizes = [17, 8], strides = [1, 1]} : vector<17x96xf32> to vector<17x8xf32>
    %417 = vector.extract_strided_slice %364 {offsets = [0, 56], sizes = [17, 8], strides = [1, 1]} : vector<17x96xf32> to vector<17x8xf32>
    %418 = vector.extract_strided_slice %364 {offsets = [0, 88], sizes = [17, 8], strides = [1, 1]} : vector<17x96xf32> to vector<17x8xf32>
    %cst_155 = arith.constant dense<0.000000e+00> : vector<17x17xf32>
    %419 = tpu.matmul %416, %417, %cst_155 {dimension_numbers = #tpu.dot_dimension_numbers<[1], [1], [0], [0], [0, 0, 1, 0], [], []>} : vector<17x8xf32>, vector<17x8xf32>, vector<17x17xf32> -> vector<17x17xf32>
    %cst_156 = arith.constant 0.353553385 : f32
    %420 = vector.broadcast %cst_156 : f32 to vector<17x17xf32>
    %421 = arith.mulf %419, %420 : vector<17x17xf32>
    %cst_157 = arith.constant dense<0xFF800000> : vector<17xf32>
    %422 = vector.multi_reduction <maximumf>, %421, %cst_157 [1] : vector<17x17xf32> to vector<17xf32>
    %423 = vector.shape_cast %422 : vector<17xf32> to vector<17x1xf32>
    %424 = vector.broadcast %423 : vector<17x1xf32> to vector<17x17xf32>
    %425 = arith.subf %421, %424 : vector<17x17xf32>
    %426 = math.exp %425 : vector<17x17xf32>
    %cst_158 = arith.constant dense<0.000000e+00> : vector<17xf32>
    %427 = vector.multi_reduction <add>, %426, %cst_158 [1] : vector<17x17xf32> to vector<17xf32>
    %428 = vector.shape_cast %427 : vector<17xf32> to vector<17x1xf32>
    %429 = tpu.reciprocal %428 {approx = true} : vector<17x1xf32> -> vector<17x1xf32>
    %430 = vector.broadcast %429 : vector<17x1xf32> to vector<17x17xf32>
    %431 = arith.mulf %426, %430 : vector<17x17xf32>
    %cst_159 = arith.constant dense<0.000000e+00> : vector<17x8xf32>
    %432 = tpu.matmul %431, %418, %cst_159 {dimension_numbers = #tpu.dot_dimension_numbers<[1], [0], [0], [1], [0, 0, 1, 1], [], []>} : vector<17x17xf32>, vector<17x8xf32>, vector<17x8xf32> -> vector<17x8xf32>
    %433 = tpu.concatenate %381, %398, %415, %432 in 1 : vector<17x8xf32>, vector<17x8xf32>, vector<17x8xf32>, vector<17x8xf32> -> vector<17x32xf32>
    %434 = tpu.concatenate %363, %433 in 0 : vector<17x32xf32>, vector<17x32xf32> -> vector<34x32xf32>
    %c1_160 = arith.constant 1 : index
    %c0_161 = arith.constant 0 : index
    %c0_162 = arith.constant 0 : index
    %435 = vector.load %arg9[%c1_160, %c0_161, %c0_162] : memref<2x32x32xf32, #tpu.memory_space<vmem>>, vector<1x32x32xf32>
    %436 = vector.shape_cast %435 : vector<1x32x32xf32> to vector<32x32xf32>
    %cst_163 = arith.constant dense<0.000000e+00> : vector<34x32xf32>
    %437 = tpu.matmul %434, %436, %cst_163 {dimension_numbers = #tpu.dot_dimension_numbers<[1], [0], [0], [1], [0, 0, 1, 1], [], []>} : vector<34x32xf32>, vector<32x32xf32>, vector<34x32xf32> -> vector<34x32xf32>
    %c1_164 = arith.constant 1 : index
    %c0_165 = arith.constant 0 : index
    %c0_166 = arith.constant 0 : index
    %438 = vector.load %arg10[%c1_164, %c0_165, %c0_166] : memref<2x1x32xf32, #tpu.memory_space<vmem>>, vector<1x1x32xf32>
    %439 = vector.shape_cast %438 : vector<1x1x32xf32> to vector<1x32xf32>
    %440 = vector.broadcast %439 : vector<1x32xf32> to vector<34x32xf32>
    %441 = arith.addf %437, %440 : vector<34x32xf32>
    %442 = arith.addf %258, %441 : vector<34x32xf32>
    %c1_167 = arith.constant 1 : index
    %c0_168 = arith.constant 0 : index
    %c0_169 = arith.constant 0 : index
    %443 = vector.load %arg11[%c1_167, %c0_168, %c0_169] : memref<2x1x32xf32, #tpu.memory_space<vmem>>, vector<1x1x32xf32>
    %444 = vector.shape_cast %443 : vector<1x1x32xf32> to vector<1x32xf32>
    %c1_170 = arith.constant 1 : index
    %c0_171 = arith.constant 0 : index
    %c0_172 = arith.constant 0 : index
    %445 = vector.load %arg12[%c1_170, %c0_171, %c0_172] : memref<2x1x32xf32, #tpu.memory_space<vmem>>, vector<1x1x32xf32>
    %446 = vector.shape_cast %445 : vector<1x1x32xf32> to vector<1x32xf32>
    %cst_173 = arith.constant dense<0.000000e+00> : vector<34xf32>
    %447 = vector.multi_reduction <add>, %442, %cst_173 [1] : vector<34x32xf32> to vector<34xf32>
    %448 = vector.shape_cast %447 : vector<34xf32> to vector<34x1xf32>
    %cst_174 = arith.constant 3.200000e+01 : f32
    %449 = vector.broadcast %cst_174 : f32 to vector<34x1xf32>
    %450 = arith.divf %448, %449 : vector<34x1xf32>
    %451 = vector.broadcast %450 : vector<34x1xf32> to vector<34x32xf32>
    %452 = arith.subf %442, %451 : vector<34x32xf32>
    %453 = vector.broadcast %450 : vector<34x1xf32> to vector<34x32xf32>
    %454 = arith.subf %442, %453 : vector<34x32xf32>
    %455 = arith.mulf %452, %454 : vector<34x32xf32>
    %cst_175 = arith.constant dense<0.000000e+00> : vector<34xf32>
    %456 = vector.multi_reduction <add>, %455, %cst_175 [1] : vector<34x32xf32> to vector<34xf32>
    %457 = vector.shape_cast %456 : vector<34xf32> to vector<34x1xf32>
    %cst_176 = arith.constant 3.200000e+01 : f32
    %458 = vector.broadcast %cst_176 : f32 to vector<34x1xf32>
    %459 = arith.divf %457, %458 : vector<34x1xf32>
    %460 = vector.broadcast %450 : vector<34x1xf32> to vector<34x32xf32>
    %461 = arith.subf %442, %460 : vector<34x32xf32>
    %cst_177 = arith.constant 9.99999997E-7 : f32
    %462 = vector.broadcast %cst_177 : f32 to vector<34x1xf32>
    %463 = arith.addf %459, %462 : vector<34x1xf32>
    %464 = math.rsqrt %463 : vector<34x1xf32>
    %465 = vector.broadcast %464 : vector<34x1xf32> to vector<34x32xf32>
    %466 = arith.mulf %461, %465 : vector<34x32xf32>
    %467 = vector.broadcast %444 : vector<1x32xf32> to vector<34x32xf32>
    %468 = arith.mulf %466, %467 : vector<34x32xf32>
    %469 = vector.broadcast %446 : vector<1x32xf32> to vector<34x32xf32>
    %470 = arith.addf %468, %469 : vector<34x32xf32>
    %c1_178 = arith.constant 1 : index
    %c0_179 = arith.constant 0 : index
    %c0_180 = arith.constant 0 : index
    %471 = vector.load %arg13[%c1_178, %c0_179, %c0_180] : memref<2x32x128xf32, #tpu.memory_space<vmem>>, vector<1x32x128xf32>
    %472 = vector.shape_cast %471 : vector<1x32x128xf32> to vector<32x128xf32>
    %cst_181 = arith.constant dense<0.000000e+00> : vector<34x128xf32>
    %473 = tpu.matmul %470, %472, %cst_181 {dimension_numbers = #tpu.dot_dimension_numbers<[1], [0], [0], [1], [0, 0, 1, 1], [], []>} : vector<34x32xf32>, vector<32x128xf32>, vector<34x128xf32> -> vector<34x128xf32>
    %c1_182 = arith.constant 1 : index
    %c0_183 = arith.constant 0 : index
    %c0_184 = arith.constant 0 : index
    %474 = vector.load %arg14[%c1_182, %c0_183, %c0_184] : memref<2x1x128xf32, #tpu.memory_space<vmem>>, vector<1x1x128xf32>
    %475 = vector.shape_cast %474 : vector<1x1x128xf32> to vector<1x128xf32>
    %476 = vector.broadcast %475 : vector<1x128xf32> to vector<34x128xf32>
    %477 = arith.addf %473, %476 : vector<34x128xf32>
    %478 = arith.mulf %477, %477 : vector<34x128xf32>
    %479 = arith.mulf %477, %478 : vector<34x128xf32>
    %cst_185 = arith.constant 4.471500e-02 : f32
    %480 = vector.broadcast %cst_185 : f32 to vector<34x128xf32>
    %481 = arith.mulf %480, %479 : vector<34x128xf32>
    %482 = arith.addf %477, %481 : vector<34x128xf32>
    %cst_186 = arith.constant 0.797884583 : f32
    %483 = vector.broadcast %cst_186 : f32 to vector<34x128xf32>
    %484 = arith.mulf %483, %482 : vector<34x128xf32>
    %485 = math.tanh %484 : vector<34x128xf32>
    %cst_187 = arith.constant 1.000000e+00 : f32
    %486 = vector.broadcast %cst_187 : f32 to vector<34x128xf32>
    %487 = arith.addf %486, %485 : vector<34x128xf32>
    %cst_188 = arith.constant 5.000000e-01 : f32
    %488 = vector.broadcast %cst_188 : f32 to vector<34x128xf32>
    %489 = arith.mulf %488, %487 : vector<34x128xf32>
    %490 = arith.mulf %477, %489 : vector<34x128xf32>
    %c1_189 = arith.constant 1 : index
    %c0_190 = arith.constant 0 : index
    %c0_191 = arith.constant 0 : index
    %491 = vector.load %arg15[%c1_189, %c0_190, %c0_191] : memref<2x128x32xf32, #tpu.memory_space<vmem>>, vector<1x128x32xf32>
    %492 = vector.shape_cast %491 : vector<1x128x32xf32> to vector<128x32xf32>
    %cst_192 = arith.constant dense<0.000000e+00> : vector<34x32xf32>
    %493 = tpu.matmul %490, %492, %cst_192 {dimension_numbers = #tpu.dot_dimension_numbers<[1], [0], [0], [1], [0, 0, 1, 1], [], []>} : vector<34x128xf32>, vector<128x32xf32>, vector<34x32xf32> -> vector<34x32xf32>
    %c1_193 = arith.constant 1 : index
    %c0_194 = arith.constant 0 : index
    %c0_195 = arith.constant 0 : index
    %494 = vector.load %arg16[%c1_193, %c0_194, %c0_195] : memref<2x1x32xf32, #tpu.memory_space<vmem>>, vector<1x1x32xf32>
    %495 = vector.shape_cast %494 : vector<1x1x32xf32> to vector<1x32xf32>
    %496 = vector.broadcast %495 : vector<1x32xf32> to vector<34x32xf32>
    %497 = arith.addf %493, %496 : vector<34x32xf32>
    %498 = arith.addf %442, %497 : vector<34x32xf32>
    %c0_196 = arith.constant 0 : index
    %c0_197 = arith.constant 0 : index
    %499 = vector.load %arg17[%c0_196, %c0_197] : memref<1x32xf32, #tpu.memory_space<vmem>>, vector<1x32xf32>
    %c0_198 = arith.constant 0 : index
    %c0_199 = arith.constant 0 : index
    %500 = vector.load %arg18[%c0_198, %c0_199] : memref<1x32xf32, #tpu.memory_space<vmem>>, vector<1x32xf32>
    %cst_200 = arith.constant dense<0.000000e+00> : vector<34xf32>
    %501 = vector.multi_reduction <add>, %498, %cst_200 [1] : vector<34x32xf32> to vector<34xf32>
    %502 = vector.shape_cast %501 : vector<34xf32> to vector<34x1xf32>
    %cst_201 = arith.constant 3.200000e+01 : f32
    %503 = vector.broadcast %cst_201 : f32 to vector<34x1xf32>
    %504 = arith.divf %502, %503 : vector<34x1xf32>
    %505 = vector.broadcast %504 : vector<34x1xf32> to vector<34x32xf32>
    %506 = arith.subf %498, %505 : vector<34x32xf32>
    %507 = vector.broadcast %504 : vector<34x1xf32> to vector<34x32xf32>
    %508 = arith.subf %498, %507 : vector<34x32xf32>
    %509 = arith.mulf %506, %508 : vector<34x32xf32>
    %cst_202 = arith.constant dense<0.000000e+00> : vector<34xf32>
    %510 = vector.multi_reduction <add>, %509, %cst_202 [1] : vector<34x32xf32> to vector<34xf32>
    %511 = vector.shape_cast %510 : vector<34xf32> to vector<34x1xf32>
    %cst_203 = arith.constant 3.200000e+01 : f32
    %512 = vector.broadcast %cst_203 : f32 to vector<34x1xf32>
    %513 = arith.divf %511, %512 : vector<34x1xf32>
    %514 = vector.broadcast %504 : vector<34x1xf32> to vector<34x32xf32>
    %515 = arith.subf %498, %514 : vector<34x32xf32>
    %cst_204 = arith.constant 9.99999997E-7 : f32
    %516 = vector.broadcast %cst_204 : f32 to vector<34x1xf32>
    %517 = arith.addf %513, %516 : vector<34x1xf32>
    %518 = math.rsqrt %517 : vector<34x1xf32>
    %519 = vector.broadcast %518 : vector<34x1xf32> to vector<34x32xf32>
    %520 = arith.mulf %515, %519 : vector<34x32xf32>
    %521 = vector.broadcast %499 : vector<1x32xf32> to vector<34x32xf32>
    %522 = arith.mulf %520, %521 : vector<34x32xf32>
    %523 = vector.broadcast %500 : vector<1x32xf32> to vector<34x32xf32>
    %524 = arith.addf %522, %523 : vector<34x32xf32>
    %525 = vector.extract_strided_slice %524 {offsets = [0, 0], sizes = [1, 32], strides = [1, 1]} : vector<34x32xf32> to vector<1x32xf32>
    %526 = vector.extract_strided_slice %524 {offsets = [17, 0], sizes = [1, 32], strides = [1, 1]} : vector<34x32xf32> to vector<1x32xf32>
    %527 = tpu.concatenate %525, %526 in 0 : vector<1x32xf32>, vector<1x32xf32> -> vector<2x32xf32>
    %c0_205 = arith.constant 0 : index
    %c0_206 = arith.constant 0 : index
    %528 = vector.load %arg19[%c0_205, %c0_206] : memref<32x8xf32, #tpu.memory_space<vmem>>, vector<32x8xf32>
    %cst_207 = arith.constant dense<0.000000e+00> : vector<2x8xf32>
    %529 = tpu.matmul %527, %528, %cst_207 {dimension_numbers = #tpu.dot_dimension_numbers<[1], [0], [0], [1], [0, 0, 1, 1], [], []>} : vector<2x32xf32>, vector<32x8xf32>, vector<2x8xf32> -> vector<2x8xf32>
    %c0_208 = arith.constant 0 : index
    %c0_209 = arith.constant 0 : index
    %530 = vector.load %arg20[%c0_208, %c0_209] : memref<1x8xf32, #tpu.memory_space<vmem>>, vector<1x8xf32>
    %531 = vector.broadcast %530 : vector<1x8xf32> to vector<2x8xf32>
    %532 = arith.addf %529, %531 : vector<2x8xf32>
    %c0_210 = arith.constant 0 : index
    %c0_211 = arith.constant 0 : index
    %533 = vector.load %arg21[%c0_210, %c0_211] : memref<2x8xf32, #tpu.memory_space<vmem>>, vector<2x8xf32>
    tpu.vector_store %arg21[%c0_210, %c0_211], %532 {strides = array<i32>} : memref<2x8xf32, #tpu.memory_space<vmem>>, vector<2x8xf32>,
    return
  }
}

</mosaic_0001>

<llo_original>
// kernel: forward.1
$region0: #{forward.1}
  #allocation0 [shape = 'u32[]', space=smem, size = 0x4, offset = 0x4, fixed_abs, tag = 'smem constant byte address 0x4 - core index']
  #allocation1 [shape = 'u32[144,128]{1,0:T(1,128)}', space=vmem, size = 0x12000, scoped, tag = 'internal scratch']
  %s0 = inlined_call_operand.vmem [shape: f32[32,16], index: 0, kind: input, shape index: {}]
  %s1 = inlined_call_operand.vmem [shape: f32[16,32], index: 1, kind: input, shape index: {}]
  %s2 = inlined_call_operand.vmem [shape: f32[1,32], index: 2, kind: input, shape index: {}]
  %s3 = inlined_call_operand.vmem [shape: f32[1,32], index: 3, kind: input, shape index: {}]
  %s4 = inlined_call_operand.vmem [shape: f32[17,32], index: 4, kind: input, shape index: {}]
  %s5 = inlined_call_operand.vmem [shape: f32[2,1,32], index: 5, kind: input, shape index: {}]
  %s6 = inlined_call_operand.vmem [shape: f32[2,1,32], index: 6, kind: input, shape index: {}]
  %s7 = inlined_call_operand.vmem [shape: f32[2,32,96], index: 7, kind: input, shape index: {}]
  %s8 = inlined_call_operand.vmem [shape: f32[2,1,96], index: 8, kind: input, shape index: {}]
  %s9 = inlined_call_operand.vmem [shape: f32[2,32,32], index: 9, kind: input, shape index: {}]
  %s10 = inlined_call_operand.vmem [shape: f32[2,1,32], index: 10, kind: input, shape index: {}]
  %s11 = inlined_call_operand.vmem [shape: f32[2,1,32], index: 11, kind: input, shape index: {}]
  %s12 = inlined_call_operand.vmem [shape: f32[2,1,32], index: 12, kind: input, shape index: {}]
  %s13 = inlined_call_operand.vmem [shape: f32[2,32,128], index: 13, kind: input, shape index: {}]
  %s14 = inlined_call_operand.vmem [shape: f32[2,1,128], index: 14, kind: input, shape index: {}]
  %s15 = inlined_call_operand.vmem [shape: f32[2,128,32], index: 15, kind: input, shape index: {}]
  %s16 = inlined_call_operand.vmem [shape: f32[2,1,32], index: 16, kind: input, shape index: {}]
  %s17 = inlined_call_operand.vmem [shape: f32[1,32], index: 17, kind: input, shape index: {}]
  %s18 = inlined_call_operand.vmem [shape: f32[1,32], index: 18, kind: input, shape index: {}]
  %s19 = inlined_call_operand.vmem [shape: f32[32,8], index: 19, kind: input, shape index: {}]
  %s20 = inlined_call_operand.vmem [shape: f32[1,8], index: 20, kind: input, shape index: {}]
  %s21 = inlined_call_operand.hbm [shape: f32[2,8], index: 21, kind: output, shape index: {}]
  %s22 = sld [smem:[#allocation0]]
  $region94: #{forward.1} parent=0
    _
  %s24 = ssub.s32 1, %s22
  %s25 = scalar_select 0, %s24, %s22
  $region1: #{forward.1} parent=0
    #allocation2 [shape = 'u8[1024]{0}', space=vmem, size = 0x400, scoped, tag = 'output window, operand 0, single buffered']
    #allocation3 [shape = 's32[1]{0}', space=sflag, size = 0x4, scoped, tag = 'scoped memory for forward.1']
    %26 = vsyncpa [#allocation3], 0
    // Predicated region
    $region2: #{forward.1} parent=1 // pred_check
      _
    $region3: #{forward.1} parent=1 // pred_check_branch
      %28 = sbr.rel (0) target = $region5
    $region4: #{forward.1} parent=1 // pred_region
      _
    $region5: #{forward.1} parent=1 // pred_fallthru
      _
    // Predicated region
    $region6: #{forward.1} parent=1 // pred_check
      _
    $region7: #{forward.1} parent=1 // pred_check_branch
      %30 = sbr.rel (0) target = $region9
    $region8: #{forward.1} parent=1 // pred_region
      _
    $region9: #{forward.1} parent=1 // pred_fallthru
      _
    // Predicated region
    $region10: #{forward.1} parent=1 // pred_check
      _
    $region11: #{forward.1} parent=1 // pred_check_branch
      %32 = sbr.rel (0) target = $region13
    $region12: #{forward.1} parent=1 // pred_region
      _
    $region13: #{forward.1} parent=1 // pred_fallthru
      _
    // Predicated region
    $region14: #{forward.1} parent=1 // pred_check
      _
    $region15: #{forward.1} parent=1 // pred_check_branch
      %34 = sbr.rel (0) target = $region17
    $region16: #{forward.1} parent=1 // pred_region
      _
    $region17: #{forward.1} parent=1 // pred_fallthru
      _
    // Predicated region
    $region18: #{forward.1} parent=1 // pred_check
      _
    $region19: #{forward.1} parent=1 // pred_check_branch
      %36 = sbr.rel (0) target = $region21
    $region20: #{forward.1} parent=1 // pred_region
      _
    $region21: #{forward.1} parent=1 // pred_fallthru
      _
    // Predicated region
    $region22: #{forward.1} parent=1 // pred_check
      _
    $region23: #{forward.1} parent=1 // pred_check_branch
      %38 = sbr.rel (0) target = $region25
    $region24: #{forward.1} parent=1 // pred_region
      _
    $region25: #{forward.1} parent=1 // pred_fallthru
      _
    // Predicated region
    $region26: #{forward.1} parent=1 // pred_check
      _
    $region27: #{forward.1} parent=1 // pred_check_branch
      %40 = sbr.rel (0) target = $region29
    $region28: #{forward.1} parent=1 // pred_region
      _
    $region29: #{forward.1} parent=1 // pred_fallthru
      _
    // Predicated region
    $region30: #{forward.1} parent=1 // pred_check
      _
    $region31: #{forward.1} parent=1 // pred_check_branch
      %42 = sbr.rel (0) target = $region33
    $region32: #{forward.1} parent=1 // pred_region
      _
    $region33: #{forward.1} parent=1 // pred_fallthru
      _
    // Predicated region
    $region34: #{forward.1} parent=1 // pred_check
      _
    $region35: #{forward.1} parent=1 // pred_check_branch
      %44 = sbr.rel (0) target = $region37
    $region36: #{forward.1} parent=1 // pred_region
      _
    $region37: #{forward.1} parent=1 // pred_fallthru
      _
    // Predicated region
    $region38: #{forward.1} parent=1 // pred_check
      _
    $region39: #{forward.1} parent=1 // pred_check_branch
      %46 = sbr.rel (0) target = $region41
    $region40: #{forward.1} parent=1 // pred_region
      _
    $region41: #{forward.1} parent=1 // pred_fallthru
      _
    // Predicated region
    $region42: #{forward.1} parent=1 // pred_check
      _
    $region43: #{forward.1} parent=1 // pred_check_branch
      %48 = sbr.rel (0) target = $region45
    $region44: #{forward.1} parent=1 // pred_region
      _
    $region45: #{forward.1} parent=1 // pred_fallthru
      _
    // Predicated region
    $region46: #{forward.1} parent=1 // pred_check
      _
    $region47: #{forward.1} parent=1 // pred_check_branch
      %50 = sbr.rel (0) target = $region49
    $region48: #{forward.1} parent=1 // pred_region
      _
    $region49: #{forward.1} parent=1 // pred_fallthru
      _
    // Predicated region
    $region50: #{forward.1} parent=1 // pred_check
      _
    $region51: #{forward.1} parent=1 // pred_check_branch
      %52 = sbr.rel (0) target = $region53
    $region52: #{forward.1} parent=1 // pred_region
      _
    $region53: #{forward.1} parent=1 // pred_fallthru
      _
    // Predicated region
    $region54: #{forward.1} parent=1 // pred_check
      _
    $region55: #{forward.1} parent=1 // pred_check_branch
      %54 = sbr.rel (0) target = $region57
    $region56: #{forward.1} parent=1 // pred_region
      _
    $region57: #{forward.1} parent=1 // pred_fallthru
      _
    // Predicated region
    $region58: #{forward.1} parent=1 // pred_check
      _
    $region59: #{forward.1} parent=1 // pred_check_branch
      %56 = sbr.rel (0) target = $region61
    $region60: #{forward.1} parent=1 // pred_region
      _
    $region61: #{forward.1} parent=1 // pred_fallthru
      _
    // Predicated region
    $region62: #{forward.1} parent=1 // pred_check
      _
    $region63: #{forward.1} parent=1 // pred_check_branch
      %58 = sbr.rel (0) target = $region65
    $region64: #{forward.1} parent=1 // pred_region
      _
    $region65: #{forward.1} parent=1 // pred_fallthru
      _
    // Predicated region
    $region66: #{forward.1} parent=1 // pred_check
      _
    $region67: #{forward.1} parent=1 // pred_check_branch
      %60 = sbr.rel (0) target = $region69
    $region68: #{forward.1} parent=1 // pred_region
      _
    $region69: #{forward.1} parent=1 // pred_fallthru
      _
    // Predicated region
    $region70: #{forward.1} parent=1 // pred_check
      _
    $region71: #{forward.1} parent=1 // pred_check_branch
      %62 = sbr.rel (0) target = $region73
    $region72: #{forward.1} parent=1 // pred_region
      _
    $region73: #{forward.1} parent=1 // pred_fallthru
      _
    // Predicated region
    $region74: #{forward.1} parent=1 // pred_check
      _
    $region75: #{forward.1} parent=1 // pred_check_branch
      %64 = sbr.rel (0) target = $region77
    $region76: #{forward.1} parent=1 // pred_region
      _
    $region77: #{forward.1} parent=1 // pred_fallthru
      _
    // Predicated region
    $region78: #{forward.1} parent=1 // pred_check
      _
    $region79: #{forward.1} parent=1 // pred_check_branch
      %66 = sbr.rel (0) target = $region81
    $region80: #{forward.1} parent=1 // pred_region
      _
    $region81: #{forward.1} parent=1 // pred_fallthru
      _
    // Predicated region
    $region82: #{forward.1} parent=1 // pred_check
      _
    $region83: #{forward.1} parent=1 // pred_check_branch
      %68 = sbr.rel (0) target = $region85
    $region84: #{forward.1} parent=1 // pred_region
      _
    $region85: #{forward.1} parent=1 // pred_fallthru
      _
    %v69 = vld [vmem:[%s0] sm:$0xff]
    %v70 = vld [vmem:[%s0 + $0x8] sm:$0xff]
    %v71 = vld [vmem:[%s0 + $0x10] sm:$0xff]
    %v72 = vld [vmem:[%s0 + $0x18] sm:$0xff]
    %v73 = vld [vmem:[%s1] sm:$0xff]
    %v74 = vld [vmem:[%s1 + $0x8] sm:$0xff]
    %v75 = vld [vmem:[%s2] sm:$0x1]
    %v77 = vlaneseq
    %v78 = vshrl.u32 %v77, 7
    %v79 = vsub.s32 0, %v78
    %v80 = vrot.slane %v75, %v79
    %vm82 = vcmask 130048
    %v84 = vsel %vm82, %v69, 0
    %v87 = vsel %vm82, %v70, 0
    %v90 = vsel %vm82, %v71, 0
    %v93 = vsel %vm82, %v72, 0
    %95 = vmatprep.subr.mxu0 0.0
    %96 = vmatpush1.msra.mxu0 0.0
    %97 = vmatprep.subr.mxu0 0.0
    %98 = vmatpush1.msra.mxu0 0.0
    %99 = vmatprep.subr.mxu0 0.0
    %100 = vmatpush1.msra.mxu0 0.0
    %101 = vmatprep.subr.mxu0 0.0
    %102 = vmatpush1.msra.mxu0 0.0
    %103 = vmatprep.subr.mxu0 0.0
    %104 = vmatpush1.msra.mxu0 0.0
    %105 = vmatprep.subr.mxu0 0.0
    %106 = vmatpush1.msra.mxu0 0.0
    %107 = vmatprep.subr.mxu0 0.0
    %108 = vmatpush1.msra.mxu0 0.0
    %109 = vmatprep.subr.mxu0 0.0
    %110 = vmatpush1.msra.mxu0 0.0
    %111 = vmatprep.subr.mxu0 0.0
    %112 = vmatpush1.msra.mxu0 0.0
    %113 = vmatprep.subr.mxu0 0.0
    %114 = vmatpush1.msra.mxu0 0.0
    %115 = vmatprep.subr.mxu0 0.0
    %116 = vmatpush1.msra.mxu0 0.0
    %117 = vmatprep.subr.mxu0 0.0
    %118 = vmatpush1.msra.mxu0 0.0
    %119 = vmatprep.subr.mxu0 0.0
    %120 = vmatpush1.msra.mxu0 0.0
    %121 = vmatprep.subr.mxu0 0.0
    %122 = vmatpush1.msra.mxu0 0.0
    %123 = vmatprep.subr.mxu0 0.0
    %124 = vmatpush1.msra.mxu0 %v74
    %125 = vmatprep.subr.mxu0 0.0
    %126 = vmatpush1.msra.mxu0 %v73
    %127 = vmatprep.subr.mxu0 0.0
    %128 = vmatpush2.msra.mxu0 0.0
    %129 = vmatprep.subr.mxu0 0.0
    %130 = vmatpush2.msra.mxu0 0.0
    %131 = vmatprep.subr.mxu0 0.0
    %132 = vmatpush2.msra.mxu0 0.0
    %133 = vmatprep.subr.mxu0 0.0
    %134 = vmatpush2.msra.mxu0 0.0
    %135 = vmatprep.subr.mxu0 0.0
    %136 = vmatpush2.msra.mxu0 0.0
    %137 = vmatprep.subr.mxu0 0.0
    %138 = vmatpush2.msra.mxu0 0.0
    %139 = vmatprep.subr.mxu0 0.0
    %140 = vmatpush2.msra.mxu0 0.0
    %141 = vmatprep.subr.mxu0 0.0
    %142 = vmatpush2.msra.mxu0 0.0
    %143 = vmatprep.subr.mxu0 0.0
    %144 = vmatpush2.msra.mxu0 0.0
    %145 = vmatprep.subr.mxu0 0.0
    %146 = vmatpush2.msra.mxu0 0.0
    %147 = vmatprep.subr.mxu0 0.0
    %148 = vmatpush2.msra.mxu0 0.0
    %149 = vmatprep.subr.mxu0 0.0
    %150 = vmatpush2.msra.mxu0 0.0
    %151 = vmatprep.subr.mxu0 0.0
    %152 = vmatpush2.msra.mxu0 0.0
    %153 = vmatprep.subr.mxu0 0.0
    %154 = vmatpush2.msra.mxu0 0.0
    %155 = vmatprep.subr.mxu0 0.0
    %156 = vmatpush2.msra.mxu0 0.0
    %157 = vmatprep.subr.mxu0 0.0
    %158 = vmatpush2.msra.mxu0 0.0
    %159 = vmatprep.mubr.f32.mxu0 0.0
    %160 = vmatmul.mubr.f32.gmra.mxu0 %v84
    %v161 = vpop.f32.mrf.mxu0
    %v162 = vadd.f32 %v80, %v161
    %v163 = vpop.f32.mrf.mxu0
    %164 = vmatprep.mubr.f32.mxu0 0.0
    %165 = vmatmul.mubr.f32.gmra.mxu0 %v87
    %v166 = vpop.f32.mrf.mxu0
    %v167 = vadd.f32 %v80, %v166
    %v168 = vpop.f32.mrf.mxu0
    %169 = vmatprep.mubr.f32.mxu0 0.0
    %170 = vmatmul.mubr.f32.gmra.mxu0 %v90
    %v171 = vpop.f32.mrf.mxu0
    %v172 = vadd.f32 %v80, %v171
    %v173 = vpop.f32.mrf.mxu0
    %174 = vmatprep.mubr.f32.mxu0 0.0
    %175 = vmatmul.mubr.f32.gmra.mxu0 %v93
    %v176 = vpop.f32.mrf.mxu0
    %v177 = vadd.f32 %v80, %v176
    %v178 = vpop.f32.mrf.mxu0
    %179 = vdwg.mxu0
    %v180 = vld [vmem:[%s3] sm:$0x1]
    %v181 = vld [vmem:[%s4] sm:$0xff]
    %v182 = vld [vmem:[%s4 + $0x8] sm:$0xff]
    %v183 = vld [vmem:[%s4 + $0x10] sm:$0x1]
    %v184 = vadd.f32 %v180, %v181
    %vm188 = vcmask 1046528
    %v189 = vrot.slane %v181, 1
    %v190 = vrot.slane %v182, 1
    %v191 = vsel %vm188, %v189, %v190
    %v192 = vrot.slane %v183, 1
    %v193 = vsel %vm188, %v190, %v192
    %v196 = vadd.f32 %v162, %v191
    %v197 = vadd.f32 %v167, %v193
    %v198 = vadd.f32 %v172, %v191
    %v199 = vadd.f32 %v177, %v193
    %vm202 = vcmask 1040384
    %v203 = vrot.slane %v196, 7
    %v204 = vrot.slane %v197, 7
    %v205 = vsel %vm202, %v203, %v204
    %v210 = vlaneseq
    %v211 = vshrl.u32 %v210, 7
    %v212 = vsub.s32 0, %v211
    %v213 = vrot.slane %v184, %v212
    %vm217 = vcmask 1041408
    %v218 = vrot.slane %v198, 6
    %v219 = vrot.slane %v199, 6
    %v220 = vsel %vm217, %v218, %v219
    %v224 = vsel %vm202, %v184, %v203
    %v225 = vsel %vm202, %v204, %v213
    %v226 = vsel %vm217, %v225, %v218
    %v227 = vld [vmem:[%s5] sm:$0x1]
    %v228 = vld [vmem:[%s6] sm:$0x1]
    %vm229 = vcmask 261120
    %v230 = vsel %vm229, %v224, 0.0
    %231 = vadd.xlane.f32.xlu0 %v230
    %v232 = vpop.xlane.xlu0 %231
    %v233 = vsel %vm229, %v205, 0.0
    %234 = vadd.xlane.f32.xlu0 %v233
    %v235 = vpop.xlane.xlu0 %234
    %v236 = vsel %vm229, %v226, 0.0
    %237 = vadd.xlane.f32.xlu0 %v236
    %v238 = vpop.xlane.xlu0 %237
    %v239 = vsel %vm229, %v220, 0.0
    %240 = vadd.xlane.f32.xlu0 %v239
    %v241 = vpop.xlane.xlu0 %240
    %vm242 = vcmask 254976
    %v243 = vsel %vm242, %v219, 0.0
    %244 = vadd.xlane.f32.xlu0 %v243
    %v245 = vpop.xlane.xlu0 %244
    %v246 = vrcp.pop 32.0
    %v247 = vmul.f32 %v232, %v246
    %v248 = vmul.f32 %v235, %v246
    %v249 = vmul.f32 %v238, %v246
    %v250 = vmul.f32 %v241, %v246
    %v251 = vmul.f32 %v245, %v246
    %v252 = vsub.f32 %v224, %v247
    %v253 = vsub.f32 %v205, %v248
    %v254 = vsub.f32 %v226, %v249
    %v255 = vsub.f32 %v220, %v250
    %v256 = vsub.f32 %v219, %v251
    %v257 = vmul.f32 %v252, %v252
    %v258 = vmul.f32 %v253, %v253
    %v259 = vmul.f32 %v254, %v254
    %v260 = vmul.f32 %v255, %v255
    %v261 = vmul.f32 %v256, %v256
    %v262 = vsel %vm229, %v257, 0.0
    %263 = vadd.xlane.f32.xlu0 %v262
    %v264 = vpop.xlane.xlu0 %263
    %v265 = vsel %vm229, %v258, 0.0
    %266 = vadd.xlane.f32.xlu0 %v265
    %v267 = vpop.xlane.xlu0 %266
    %v268 = vsel %vm229, %v259, 0.0
    %269 = vadd.xlane.f32.xlu0 %v268
    %v270 = vpop.xlane.xlu0 %269
    %v271 = vsel %vm229, %v260, 0.0
    %272 = vadd.xlane.f32.xlu0 %v271
    %v273 = vpop.xlane.xlu0 %272
    %v274 = vsel %vm242, %v261, 0.0
    %275 = vadd.xlane.f32.xlu0 %v274
    %v276 = vpop.xlane.xlu0 %275
    %v277 = vmul.f32 %v264, %v246
    %v278 = vmul.f32 %v267, %v246
    %v279 = vmul.f32 %v270, %v246
    %v280 = vmul.f32 %v273, %v246
    %v281 = vmul.f32 %v276, %v246
    %v282 = vadd.f32 %v277, 1e-06
    %v283 = vadd.f32 %v278, 1e-06
    %v284 = vadd.f32 %v279, 1e-06
    %v285 = vadd.f32 %v280, 1e-06
    %v286 = vadd.f32 %v281, 1e-06
    %v287 = vrsqrt.pop %v282
    %v288 = vrsqrt.pop %v283
    %v289 = vrsqrt.pop %v284
    %v290 = vrsqrt.pop %v285
    %v291 = vrsqrt.pop %v286
    %v292 = vmul.f32 %v252, %v287
    %v293 = vmul.f32 %v253, %v288
    %v294 = vmul.f32 %v254, %v289
    %v295 = vmul.f32 %v255, %v290
    %v296 = vmul.f32 %v256, %v291
    %v298 = vlaneseq
    %v299 = vshrl.u32 %v298, 7
    %v300 = vsub.s32 0, %v299
    %v301 = vrot.slane %v227, %v300
    %v303 = vmul.f32 %v292, %v301
    %v304 = vmul.f32 %v293, %v301
    %v305 = vmul.f32 %v294, %v301
    %v306 = vmul.f32 %v295, %v301
    %v307 = vmul.f32 %v296, %v301
    %v309 = vlaneseq
    %v310 = vshrl.u32 %v309, 7
    %v311 = vsub.s32 0, %v310
    %v312 = vrot.slane %v228, %v311
    %v314 = vadd.f32 %v303, %v312
    %v315 = vadd.f32 %v304, %v312
    %v316 = vadd.f32 %v305, %v312
    %v317 = vadd.f32 %v306, %v312
    %v318 = vadd.f32 %v307, %v312
    %v319 = vld [vmem:[%s7] sm:$0xff]
    %v320 = vld [vmem:[%s7 + $0x8] sm:$0xff]
    %v321 = vld [vmem:[%s7 + $0x10] sm:$0xff]
    %v322 = vld [vmem:[%s7 + $0x18] sm:$0xff]
    %v323 = vld [vmem:[%s8] sm:$0x1]
    %v325 = vlaneseq
    %v326 = vshrl.u32 %v325, 7
    %v327 = vsub.s32 0, %v326
    %v328 = vrot.slane %v323, %v327
    %v331 = vsel %vm229, %v314, 0
    %v334 = vsel %vm229, %v315, 0
    %v337 = vsel %vm229, %v316, 0
    %v340 = vsel %vm229, %v317, 0
    %v343 = vsel %vm229, %v318, 0
    %345 = vmatprep.subr.mxu0 0.0
    %346 = vmatpush1.msra.mxu0 0.0
    %347 = vmatprep.subr.mxu0 0.0
    %348 = vmatpush1.msra.mxu0 0.0
    %349 = vmatprep.subr.mxu0 0.0
    %350 = vmatpush1.msra.mxu0 0.0
    %351 = vmatprep.subr.mxu0 0.0
    %352 = vmatpush1.msra.mxu0 0.0
    %353 = vmatprep.subr.mxu0 0.0
    %354 = vmatpush1.msra.mxu0 0.0
    %355 = vmatprep.subr.mxu0 0.0
    %356 = vmatpush1.msra.mxu0 0.0
    %357 = vmatprep.subr.mxu0 0.0
    %358 = vmatpush1.msra.mxu0 0.0
    %359 = vmatprep.subr.mxu0 0.0
    %360 = vmatpush1.msra.mxu0 0.0
    %361 = vmatprep.subr.mxu0 0.0
    %362 = vmatpush1.msra.mxu0 0.0
    %363 = vmatprep.subr.mxu0 0.0
    %364 = vmatpush1.msra.mxu0 0.0
    %365 = vmatprep.subr.mxu0 0.0
    %366 = vmatpush1.msra.mxu0 0.0
    %367 = vmatprep.subr.mxu0 0.0
    %368 = vmatpush1.msra.mxu0 0.0
    %369 = vmatprep.subr.mxu0 0.0
    %370 = vmatpush1.msra.mxu0 %v322
    %371 = vmatprep.subr.mxu0 0.0
    %372 = vmatpush1.msra.mxu0 %v321
    %373 = vmatprep.subr.mxu0 0.0
    %374 = vmatpush1.msra.mxu0 %v320
    %375 = vmatprep.subr.mxu0 0.0
    %376 = vmatpush1.msra.mxu0 %v319
    %377 = vmatprep.subr.mxu0 0.0
    %378 = vmatpush2.msra.mxu0 0.0
    %379 = vmatprep.subr.mxu0 0.0
    %380 = vmatpush2.msra.mxu0 0.0
    %381 = vmatprep.subr.mxu0 0.0
    %382 = vmatpush2.msra.mxu0 0.0
    %383 = vmatprep.subr.mxu0 0.0
    %384 = vmatpush2.msra.mxu0 0.0
    %385 = vmatprep.subr.mxu0 0.0
    %386 = vmatpush2.msra.mxu0 0.0
    %387 = vmatprep.subr.mxu0 0.0
    %388 = vmatpush2.msra.mxu0 0.0
    %389 = vmatprep.subr.mxu0 0.0
    %390 = vmatpush2.msra.mxu0 0.0
    %391 = vmatprep.subr.mxu0 0.0
    %392 = vmatpush2.msra.mxu0 0.0
    %393 = vmatprep.subr.mxu0 0.0
    %394 = vmatpush2.msra.mxu0 0.0
    %395 = vmatprep.subr.mxu0 0.0
    %396 = vmatpush2.msra.mxu0 0.0
    %397 = vmatprep.subr.mxu0 0.0
    %398 = vmatpush2.msra.mxu0 0.0
    %399 = vmatprep.subr.mxu0 0.0
    %400 = vmatpush2.msra.mxu0 0.0
    %401 = vmatprep.subr.mxu0 0.0
    %402 = vmatpush2.msra.mxu0 0.0
    %403 = vmatprep.subr.mxu0 0.0
    %404 = vmatpush2.msra.mxu0 0.0
    %405 = vmatprep.subr.mxu0 0.0
    %406 = vmatpush2.msra.mxu0 0.0
    %407 = vmatprep.subr.mxu0 0.0
    %408 = vmatpush2.msra.mxu0 0.0
    %409 = vmatprep.mubr.f32.mxu0 0.0
    %410 = vmatmul.mubr.f32.gmra.mxu0 %v331
    %v411 = vpop.f32.mrf.mxu0
    %v412 = vadd.f32 %v328, %v411
    %v413 = vpop.f32.mrf.mxu0
    %414 = vmatprep.mubr.f32.mxu0 0.0
    %415 = vmatmul.mubr.f32.gmra.mxu0 %v334
    %v416 = vpop.f32.mrf.mxu0
    %v417 = vadd.f32 %v328, %v416
    %v418 = vpop.f32.mrf.mxu0
    %419 = vmatprep.mubr.f32.mxu0 0.0
    %420 = vmatmul.mubr.f32.gmra.mxu0 %v337
    %v421 = vpop.f32.mrf.mxu0
    %v422 = vadd.f32 %v328, %v421
    %v423 = vpop.f32.mrf.mxu0
    %424 = vmatprep.mubr.f32.mxu0 0.0
    %425 = vmatmul.mubr.f32.gmra.mxu0 %v340
    %v426 = vpop.f32.mrf.mxu0
    %v427 = vadd.f32 %v328, %v426
    %v428 = vpop.f32.mrf.mxu0
    %429 = vmatprep.mubr.f32.mxu0 0.0
    %430 = vmatmul.mubr.f32.gmra.mxu0 %v343
    %v431 = vpop.f32.mrf.mxu0
    %v432 = vadd.f32 %v328, %v431
    %v433 = vpop.f32.mrf.mxu0
    %434 = vdwg.mxu0
    %438 = vrot.lane.b32.xlu0 %v412, 96
    %v439 = vpop.permute.xlu0 %438
    %440 = vrot.lane.b32.xlu0 %v417, 96
    %v441 = vpop.permute.xlu0 %440
    %442 = vrot.lane.b32.xlu0 %v422, 96
    %v443 = vpop.permute.xlu0 %442
    %vm444 = vcmask 64512
    %v445 = vsel %vm444, %v412, 0
    %v447 = vsel %vm444, %v417, 0
    %v449 = vsel %vm444, %v422, 0
    %v451 = vsel %vm444, %v439, 0
    %v453 = vsel %vm444, %v441, 0
    %v455 = vsel %vm444, %v443, 0
    %457 = vmatprep.subr.mxu0 0.0
    %458 = vmatpush1.xpose.msra.mxu0 0.0
    %459 = vmatprep.subr.mxu0 0.0
    %460 = vmatpush1.xpose.msra.mxu0 0.0
    %461 = vmatprep.subr.mxu0 0.0
    %462 = vmatpush1.xpose.msra.mxu0 0.0
    %463 = vmatprep.subr.mxu0 0.0
    %464 = vmatpush1.xpose.msra.mxu0 0.0
    %465 = vmatprep.subr.mxu0 0.0
    %466 = vmatpush1.xpose.msra.mxu0 0.0
    %467 = vmatprep.subr.mxu0 0.0
    %468 = vmatpush1.xpose.msra.mxu0 0.0
    %469 = vmatprep.subr.mxu0 0.0
    %470 = vmatpush1.xpose.msra.mxu0 0.0
    %471 = vmatprep.subr.mxu0 0.0
    %472 = vmatpush1.xpose.msra.mxu0 0.0
    %473 = vmatprep.subr.mxu0 0.0
    %474 = vmatpush1.xpose.msra.mxu0 0.0
    %475 = vmatprep.subr.mxu0 0.0
    %476 = vmatpush1.xpose.msra.mxu0 0.0
    %477 = vmatprep.subr.mxu0 0.0
    %478 = vmatpush1.xpose.msra.mxu0 0.0
    %479 = vmatprep.subr.mxu0 0.0
    %480 = vmatpush1.xpose.msra.mxu0 0.0
    %481 = vmatprep.subr.mxu0 0.0
    %482 = vmatpush1.xpose.msra.mxu0 0.0
    %483 = vmatprep.subr.mxu0 0.0
    %484 = vmatpush1.xpose.msra.mxu0 %v455
    %485 = vmatprep.subr.mxu0 0.0
    %486 = vmatpush1.xpose.msra.mxu0 %v453
    %487 = vmatprep.subr.mxu0 0.0
    %488 = vmatpush1.xpose.msra.mxu0 %v451
    %489 = vmatprep.subr.mxu0 0.0
    %490 = vmatpush2.xpose.msra.mxu0 0.0
    %491 = vmatprep.subr.mxu0 0.0
    %492 = vmatpush2.xpose.msra.mxu0 0.0
    %493 = vmatprep.subr.mxu0 0.0
    %494 = vmatpush2.xpose.msra.mxu0 0.0
    %495 = vmatprep.subr.mxu0 0.0
    %496 = vmatpush2.xpose.msra.mxu0 0.0
    %497 = vmatprep.subr.mxu0 0.0
    %498 = vmatpush2.xpose.msra.mxu0 0.0
    %499 = vmatprep.subr.mxu0 0.0
    %500 = vmatpush2.xpose.msra.mxu0 0.0
    %501 = vmatprep.subr.mxu0 0.0
    %502 = vmatpush2.xpose.msra.mxu0 0.0
    %503 = vmatprep.subr.mxu0 0.0
    %504 = vmatpush2.xpose.msra.mxu0 0.0
    %505 = vmatprep.subr.mxu0 0.0
    %506 = vmatpush2.xpose.msra.mxu0 0.0
    %507 = vmatprep.subr.mxu0 0.0
    %508 = vmatpush2.xpose.msra.mxu0 0.0
    %509 = vmatprep.subr.mxu0 0.0
    %510 = vmatpush2.xpose.msra.mxu0 0.0
    %511 = vmatprep.subr.mxu0 0.0
    %512 = vmatpush2.xpose.msra.mxu0 0.0
    %513 = vmatprep.subr.mxu0 0.0
    %514 = vmatpush2.xpose.msra.mxu0 0.0
    %515 = vmatprep.subr.mxu0 0.0
    %516 = vmatpush2.xpose.msra.mxu0 0.0
    %517 = vmatprep.subr.mxu0 0.0
    %518 = vmatpush2.xpose.msra.mxu0 0.0
    %519 = vmatprep.subr.mxu0 0.0
    %520 = vmatpush2.xpose.msra.mxu0 0.0
    %521 = vmatprep.mubr.f32.mxu0 0.0
    %522 = vmatmul.mubr.f32.gmra.mxu0 %v445
    %v523 = vpop.f32.mrf.mxu0
    %v524 = vadd.f32 0.0, %v523
    %v525 = vpop.f32.mrf.mxu0
    %526 = vmatprep.mubr.f32.mxu0 0.0
    %527 = vmatmul.mubr.f32.gmra.mxu0 %v447
    %v528 = vpop.f32.mrf.mxu0
    %v529 = vadd.f32 0.0, %v528
    %v530 = vpop.f32.mrf.mxu0
    %531 = vmatprep.mubr.f32.mxu0 0.0
    %532 = vmatmul.mubr.f32.gmra.mxu0 %v449
    %v533 = vpop.f32.mrf.mxu0
    %v534 = vadd.f32 0.0, %v533
    %v535 = vpop.f32.mrf.mxu0
    %536 = vdwg.mxu0
    %v537 = vmul.f32 %v524, 0.35355338
    %v538 = vmul.f32 %v529, 0.35355338
    %v539 = vmul.f32 %v534, 0.35355338
    %vm540 = vcmask 138240
    %v541 = vsel %vm540, %v537, -inf
    %542 = vmax.xlane.f32.xlu0 %v541
    %v543 = vpop.xlane.xlu0 %542
    %v544 = vsel %vm540, %v538, -inf
    %545 = vmax.xlane.f32.xlu0 %v544
    %v546 = vpop.xlane.xlu0 %545
    %vm547 = vcmask 131072
    %v548 = vsel %vm547, %v539, -inf
    %549 = vmax.xlane.f32.xlu0 %v548
    %v550 = vpop.xlane.xlu0 %549
    %v551 = vsub.f32 %v537, %v543
    %v552 = vsub.f32 %v538, %v546
    %v553 = vsub.f32 %v539, %v550
    %v554 = vmul.f32 %v551, 1.442695
    %v555 = vpow.pop %v554
    %v556 = vmul.f32 %v552, 1.442695
    %v557 = vpow.pop %v556
    %v558 = vmul.f32 %v553, 1.442695
    %v559 = vpow.pop %v558
    %v560 = vsel %vm540, %v555, 0.0
    %561 = vadd.xlane.f32.xlu0 %v560
    %v562 = vpop.xlane.xlu0 %561
    %v563 = vsel %vm540, %v557, 0.0
    %564 = vadd.xlane.f32.xlu0 %v563
    %v565 = vpop.xlane.xlu0 %564
    %v566 = vsel %vm547, %v559, 0.0
    %567 = vadd.xlane.f32.xlu0 %v566
    %v568 = vpop.xlane.xlu0 %567
    %v569 = vrcp.pop %v562
    %v570 = vrcp.pop %v565
    %v571 = vrcp.pop %v568
    %v572 = vmul.f32 %v555, %v569
    %v573 = vmul.f32 %v557, %v570
    %v574 = vmul.f32 %v559, %v571
    %575 = vrot.lane.b32.xlu0 %v412, 64
    %v576 = vpop.permute.xlu0 %575
    %577 = vrot.lane.b32.xlu0 %v417, 64
    %v578 = vpop.permute.xlu0 %577
    %579 = vrot.lane.b32.xlu0 %v422, 64
    %v580 = vpop.permute.xlu0 %579
    %v584 = vsel %vm540, %v572, 0
    %v587 = vsel %vm540, %v573, 0
    %v590 = vsel %vm540, %v574, 0
    %v592 = vsel %vm202, %v580, 0
    %594 = vmatprep.subr.mxu0 0.0
    %595 = vmatpush1.msra.mxu0 0.0
    %596 = vmatprep.subr.mxu0 0.0
    %597 = vmatpush1.msra.mxu0 0.0
    %598 = vmatprep.subr.mxu0 0.0
    %599 = vmatpush1.msra.mxu0 0.0
    %600 = vmatprep.subr.mxu0 0.0
    %601 = vmatpush1.msra.mxu0 0.0
    %602 = vmatprep.subr.mxu0 0.0
    %603 = vmatpush1.msra.mxu0 0.0
    %604 = vmatprep.subr.mxu0 0.0
    %605 = vmatpush1.msra.mxu0 0.0
    %606 = vmatprep.subr.mxu0 0.0
    %607 = vmatpush1.msra.mxu0 0.0
    %608 = vmatprep.subr.mxu0 0.0
    %609 = vmatpush1.msra.mxu0 0.0
    %610 = vmatprep.subr.mxu0 0.0
    %611 = vmatpush1.msra.mxu0 0.0
    %612 = vmatprep.subr.mxu0 0.0
    %613 = vmatpush1.msra.mxu0 0.0
    %614 = vmatprep.subr.mxu0 0.0
    %615 = vmatpush1.msra.mxu0 0.0
    %616 = vmatprep.subr.mxu0 0.0
    %617 = vmatpush1.msra.mxu0 0.0
    %618 = vmatprep.subr.mxu0 0.0
    %619 = vmatpush1.msra.mxu0 0.0
    %620 = vmatprep.subr.mxu0 0.0
    %621 = vmatpush1.msra.mxu0 %v592
    %622 = vmatprep.subr.mxu0 0.0
    %623 = vmatpush1.msra.mxu0 %v578
    %624 = vmatprep.subr.mxu0 0.0
    %625 = vmatpush1.msra.mxu0 %v576
    %626 = vmatprep.subr.mxu0 0.0
    %627 = vmatpush2.msra.mxu0 0.0
    %628 = vmatprep.subr.mxu0 0.0
    %629 = vmatpush2.msra.mxu0 0.0
    %630 = vmatprep.subr.mxu0 0.0
    %631 = vmatpush2.msra.mxu0 0.0
    %632 = vmatprep.subr.mxu0 0.0
    %633 = vmatpush2.msra.mxu0 0.0
    %634 = vmatprep.subr.mxu0 0.0
    %635 = vmatpush2.msra.mxu0 0.0
    %636 = vmatprep.subr.mxu0 0.0
    %637 = vmatpush2.msra.mxu0 0.0
    %638 = vmatprep.subr.mxu0 0.0
    %639 = vmatpush2.msra.mxu0 0.0
    %640 = vmatprep.subr.mxu0 0.0
    %641 = vmatpush2.msra.mxu0 0.0
    %642 = vmatprep.subr.mxu0 0.0
    %643 = vmatpush2.msra.mxu0 0.0
    %644 = vmatprep.subr.mxu0 0.0
    %645 = vmatpush2.msra.mxu0 0.0
    %646 = vmatprep.subr.mxu0 0.0
    %647 = vmatpush2.msra.mxu0 0.0
    %648 = vmatprep.subr.mxu0 0.0
    %649 = vmatpush2.msra.mxu0 0.0
    %650 = vmatprep.subr.mxu0 0.0
    %651 = vmatpush2.msra.mxu0 0.0
    %652 = vmatprep.subr.mxu0 0.0
    %653 = vmatpush2.msra.mxu0 0.0
    %654 = vmatprep.subr.mxu0 0.0
    %655 = vmatpush2.msra.mxu0 0.0
    %656 = vmatprep.subr.mxu0 0.0
    %657 = vmatpush2.msra.mxu0 0.0
    %658 = vmatprep.mubr.f32.mxu0 0.0
    %659 = vmatmul.mubr.f32.gmra.mxu0 %v584
    %v660 = vpop.f32.mrf.mxu0
    %v661 = vadd.f32 0.0, %v660
    %v662 = vpop.f32.mrf.mxu0
    %663 = vmatprep.mubr.f32.mxu0 0.0
    %664 = vmatmul.mubr.f32.gmra.mxu0 %v587
    %v665 = vpop.f32.mrf.mxu0
    %v666 = vadd.f32 0.0, %v665
    %v667 = vpop.f32.mrf.mxu0
    %668 = vmatprep.mubr.f32.mxu0 0.0
    %669 = vmatmul.mubr.f32.gmra.mxu0 %v590
    %v670 = vpop.f32.mrf.mxu0
    %v671 = vadd.f32 0.0, %v670
    %v672 = vpop.f32.mrf.mxu0
    %673 = vdwg.mxu0
    %674 = vrot.lane.b32.xlu0 %v412, 120
    %v675 = vpop.permute.xlu0 %674
    %676 = vrot.lane.b32.xlu0 %v417, 120
    %v677 = vpop.permute.xlu0 %676
    %678 = vrot.lane.b32.xlu0 %v422, 120
    %v679 = vpop.permute.xlu0 %678
    %680 = vrot.lane.b32.xlu0 %v412, 88
    %v681 = vpop.permute.xlu0 %680
    %682 = vrot.lane.b32.xlu0 %v417, 88
    %v683 = vpop.permute.xlu0 %682
    %684 = vrot.lane.b32.xlu0 %v422, 88
    %v685 = vpop.permute.xlu0 %684
    %v686 = vsel %vm444, %v675, 0
    %v688 = vsel %vm444, %v677, 0
    %v690 = vsel %vm444, %v679, 0
    %v692 = vsel %vm444, %v681, 0
    %v694 = vsel %vm444, %v683, 0
    %v696 = vsel %vm444, %v685, 0
    %698 = vmatprep.subr.mxu0 0.0
    %699 = vmatpush1.xpose.msra.mxu0 0.0
    %700 = vmatprep.subr.mxu0 0.0
    %701 = vmatpush1.xpose.msra.mxu0 0.0
    %702 = vmatprep.subr.mxu0 0.0
    %703 = vmatpush1.xpose.msra.mxu0 0.0
    %704 = vmatprep.subr.mxu0 0.0
    %705 = vmatpush1.xpose.msra.mxu0 0.0
    %706 = vmatprep.subr.mxu0 0.0
    %707 = vmatpush1.xpose.msra.mxu0 0.0
    %708 = vmatprep.subr.mxu0 0.0
    %709 = vmatpush1.xpose.msra.mxu0 0.0
    %710 = vmatprep.subr.mxu0 0.0
    %711 = vmatpush1.xpose.msra.mxu0 0.0
    %712 = vmatprep.subr.mxu0 0.0
    %713 = vmatpush1.xpose.msra.mxu0 0.0
    %714 = vmatprep.subr.mxu0 0.0
    %715 = vmatpush1.xpose.msra.mxu0 0.0
    %716 = vmatprep.subr.mxu0 0.0
    %717 = vmatpush1.xpose.msra.mxu0 0.0
    %718 = vmatprep.subr.mxu0 0.0
    %719 = vmatpush1.xpose.msra.mxu0 0.0
    %720 = vmatprep.subr.mxu0 0.0
    %721 = vmatpush1.xpose.msra.mxu0 0.0
    %722 = vmatprep.subr.mxu0 0.0
    %723 = vmatpush1.xpose.msra.mxu0 0.0
    %724 = vmatprep.subr.mxu0 0.0
    %725 = vmatpush1.xpose.msra.mxu0 %v696
    %726 = vmatprep.subr.mxu0 0.0
    %727 = vmatpush1.xpose.msra.mxu0 %v694
    %728 = vmatprep.subr.mxu0 0.0
    %729 = vmatpush1.xpose.msra.mxu0 %v692
    %730 = vmatprep.subr.mxu0 0.0
    %731 = vmatpush2.xpose.msra.mxu0 0.0
    %732 = vmatprep.subr.mxu0 0.0
    %733 = vmatpush2.xpose.msra.mxu0 0.0
    %734 = vmatprep.subr.mxu0 0.0
    %735 = vmatpush2.xpose.msra.mxu0 0.0
    %736 = vmatprep.subr.mxu0 0.0
    %737 = vmatpush2.xpose.msra.mxu0 0.0
    %738 = vmatprep.subr.mxu0 0.0
    %739 = vmatpush2.xpose.msra.mxu0 0.0
    %740 = vmatprep.subr.mxu0 0.0
    %741 = vmatpush2.xpose.msra.mxu0 0.0
    %742 = vmatprep.subr.mxu0 0.0
    %743 = vmatpush2.xpose.msra.mxu0 0.0
    %744 = vmatprep.subr.mxu0 0.0
    %745 = vmatpush2.xpose.msra.mxu0 0.0
    %746 = vmatprep.subr.mxu0 0.0
    %747 = vmatpush2.xpose.msra.mxu0 0.0
    %748 = vmatprep.subr.mxu0 0.0
    %749 = vmatpush2.xpose.msra.mxu0 0.0
    %750 = vmatprep.subr.mxu0 0.0
    %751 = vmatpush2.xpose.msra.mxu0 0.0
    %752 = vmatprep.subr.mxu0 0.0
    %753 = vmatpush2.xpose.msra.mxu0 0.0
    %754 = vmatprep.subr.mxu0 0.0
    %755 = vmatpush2.xpose.msra.mxu0 0.0
    %756 = vmatprep.subr.mxu0 0.0
    %757 = vmatpush2.xpose.msra.mxu0 0.0
    %758 = vmatprep.subr.mxu0 0.0
    %759 = vmatpush2.xpose.msra.mxu0 0.0
    %760 = vmatprep.subr.mxu0 0.0
    %761 = vmatpush2.xpose.msra.mxu0 0.0
    %762 = vmatprep.mubr.f32.mxu0 0.0
    %763 = vmatmul.mubr.f32.gmra.mxu0 %v686
    %v764 = vpop.f32.mrf.mxu0
    %v765 = vadd.f32 0.0, %v764
    %v766 = vpop.f32.mrf.mxu0
    %767 = vmatprep.mubr.f32.mxu0 0.0
    %768 = vmatmul.mubr.f32.gmra.mxu0 %v688
    %v769 = vpop.f32.mrf.mxu0
    %v770 = vadd.f32 0.0, %v769
    %v771 = vpop.f32.mrf.mxu0
    %772 = vmatprep.mubr.f32.mxu0 0.0
    %773 = vmatmul.mubr.f32.gmra.mxu0 %v690
    %v774 = vpop.f32.mrf.mxu0
    %v775 = vadd.f32 0.0, %v774
    %v776 = vpop.f32.mrf.mxu0
    %777 = vdwg.mxu0
    %v778 = vmul.f32 %v765, 0.35355338
    %v779 = vmul.f32 %v770, 0.35355338
    %v780 = vmul.f32 %v775, 0.35355338
    %v781 = vsel %vm540, %v778, -inf
    %782 = vmax.xlane.f32.xlu0 %v781
    %v783 = vpop.xlane.xlu0 %782
    %v784 = vsel %vm540, %v779, -inf
    %785 = vmax.xlane.f32.xlu0 %v784
    %v786 = vpop.xlane.xlu0 %785
    %v787 = vsel %vm547, %v780, -inf
    %788 = vmax.xlane.f32.xlu0 %v787
    %v789 = vpop.xlane.xlu0 %788
    %v790 = vsub.f32 %v778, %v783
    %v791 = vsub.f32 %v779, %v786
    %v792 = vsub.f32 %v780, %v789
    %v793 = vmul.f32 %v790, 1.442695
    %v794 = vpow.pop %v793
    %v795 = vmul.f32 %v791, 1.442695
    %v796 = vpow.pop %v795
    %v797 = vmul.f32 %v792, 1.442695
    %v798 = vpow.pop %v797
    %v799 = vsel %vm540, %v794, 0.0
    %800 = vadd.xlane.f32.xlu0 %v799
    %v801 = vpop.xlane.xlu0 %800
    %v802 = vsel %vm540, %v796, 0.0
    %803 = vadd.xlane.f32.xlu0 %v802
    %v804 = vpop.xlane.xlu0 %803
    %v805 = vsel %vm547, %v798, 0.0
    %806 = vadd.xlane.f32.xlu0 %v805
    %v807 = vpop.xlane.xlu0 %806
    %v808 = vrcp.pop %v801
    %v809 = vrcp.pop %v804
    %v810 = vrcp.pop %v807
    %v811 = vmul.f32 %v794, %v808
    %v812 = vmul.f32 %v796, %v809
    %v813 = vmul.f32 %v798, %v810
    %814 = vrot.lane.b32.xlu0 %v412, 56
    %v815 = vpop.permute.xlu0 %814
    %816 = vrot.lane.b32.xlu0 %v417, 56
    %v817 = vpop.permute.xlu0 %816
    %818 = vrot.lane.b32.xlu0 %v422, 56
    %v819 = vpop.permute.xlu0 %818
    %v823 = vsel %vm540, %v811, 0
    %v826 = vsel %vm540, %v812, 0
    %v829 = vsel %vm540, %v813, 0
    %v831 = vsel %vm202, %v819, 0
    %833 = vmatprep.subr.mxu0 0.0
    %834 = vmatpush1.msra.mxu0 0.0
    %835 = vmatprep.subr.mxu0 0.0
    %836 = vmatpush1.msra.mxu0 0.0
    %837 = vmatprep.subr.mxu0 0.0
    %838 = vmatpush1.msra.mxu0 0.0
    %839 = vmatprep.subr.mxu0 0.0
    %840 = vmatpush1.msra.mxu0 0.0
    %841 = vmatprep.subr.mxu0 0.0
    %842 = vmatpush1.msra.mxu0 0.0
    %843 = vmatprep.subr.mxu0 0.0
    %844 = vmatpush1.msra.mxu0 0.0
    %845 = vmatprep.subr.mxu0 0.0
    %846 = vmatpush1.msra.mxu0 0.0
    %847 = vmatprep.subr.mxu0 0.0
    %848 = vmatpush1.msra.mxu0 0.0
    %849 = vmatprep.subr.mxu0 0.0
    %850 = vmatpush1.msra.mxu0 0.0
    %851 = vmatprep.subr.mxu0 0.0
    %852 = vmatpush1.msra.mxu0 0.0
    %853 = vmatprep.subr.mxu0 0.0
    %854 = vmatpush1.msra.mxu0 0.0
    %855 = vmatprep.subr.mxu0 0.0
    %856 = vmatpush1.msra.mxu0 0.0
    %857 = vmatprep.subr.mxu0 0.0
    %858 = vmatpush1.msra.mxu0 0.0
    %859 = vmatprep.subr.mxu0 0.0
    %860 = vmatpush1.msra.mxu0 %v831
    %861 = vmatprep.subr.mxu0 0.0
    %862 = vmatpush1.msra.mxu0 %v817
    %863 = vmatprep.subr.mxu0 0.0
    %864 = vmatpush1.msra.mxu0 %v815
    %865 = vmatprep.subr.mxu0 0.0
    %866 = vmatpush2.msra.mxu0 0.0
    %867 = vmatprep.subr.mxu0 0.0
    %868 = vmatpush2.msra.mxu0 0.0
    %869 = vmatprep.subr.mxu0 0.0
    %870 = vmatpush2.msra.mxu0 0.0
    %871 = vmatprep.subr.mxu0 0.0
    %872 = vmatpush2.msra.mxu0 0.0
    %873 = vmatprep.subr.mxu0 0.0
    %874 = vmatpush2.msra.mxu0 0.0
    %875 = vmatprep.subr.mxu0 0.0
    %876 = vmatpush2.msra.mxu0 0.0
    %877 = vmatprep.subr.mxu0 0.0
    %878 = vmatpush2.msra.mxu0 0.0
    %879 = vmatprep.subr.mxu0 0.0
    %880 = vmatpush2.msra.mxu0 0.0
    %881 = vmatprep.subr.mxu0 0.0
    %882 = vmatpush2.msra.mxu0 0.0
    %883 = vmatprep.subr.mxu0 0.0
    %884 = vmatpush2.msra.mxu0 0.0
    %885 = vmatprep.subr.mxu0 0.0
    %886 = vmatpush2.msra.mxu0 0.0
    %887 = vmatprep.subr.mxu0 0.0
    %888 = vmatpush2.msra.mxu0 0.0
    %889 = vmatprep.subr.mxu0 0.0
    %890 = vmatpush2.msra.mxu0 0.0
    %891 = vmatprep.subr.mxu0 0.0
    %892 = vmatpush2.msra.mxu0 0.0
    %893 = vmatprep.subr.mxu0 0.0
    %894 = vmatpush2.msra.mxu0 0.0
    %895 = vmatprep.subr.mxu0 0.0
    %896 = vmatpush2.msra.mxu0 0.0
    %897 = vmatprep.mubr.f32.mxu0 0.0
    %898 = vmatmul.mubr.f32.gmra.mxu0 %v823
    %v899 = vpop.f32.mrf.mxu0
    %v900 = vadd.f32 0.0, %v899
    %v901 = vpop.f32.mrf.mxu0
    %902 = vmatprep.mubr.f32.mxu0 0.0
    %903 = vmatmul.mubr.f32.gmra.mxu0 %v826
    %v904 = vpop.f32.mrf.mxu0
    %v905 = vadd.f32 0.0, %v904
    %v906 = vpop.f32.mrf.mxu0
    %907 = vmatprep.mubr.f32.mxu0 0.0
    %908 = vmatmul.mubr.f32.gmra.mxu0 %v829
    %v909 = vpop.f32.mrf.mxu0
    %v910 = vadd.f32 0.0, %v909
    %v911 = vpop.f32.mrf.mxu0
    %912 = vdwg.mxu0
    %913 = vrot.lane.b32.xlu0 %v412, 112
    %v914 = vpop.permute.xlu0 %913
    %915 = vrot.lane.b32.xlu0 %v417, 112
    %v916 = vpop.permute.xlu0 %915
    %917 = vrot.lane.b32.xlu0 %v422, 112
    %v918 = vpop.permute.xlu0 %917
    %919 = vrot.lane.b32.xlu0 %v412, 80
    %v920 = vpop.permute.xlu0 %919
    %921 = vrot.lane.b32.xlu0 %v417, 80
    %v922 = vpop.permute.xlu0 %921
    %923 = vrot.lane.b32.xlu0 %v422, 80
    %v924 = vpop.permute.xlu0 %923
    %v925 = vsel %vm444, %v914, 0
    %v927 = vsel %vm444, %v916, 0
    %v929 = vsel %vm444, %v918, 0
    %v931 = vsel %vm444, %v920, 0
    %v933 = vsel %vm444, %v922, 0
    %v935 = vsel %vm444, %v924, 0
    %937 = vmatprep.subr.mxu0 0.0
    %938 = vmatpush1.xpose.msra.mxu0 0.0
    %939 = vmatprep.subr.mxu0 0.0
    %940 = vmatpush1.xpose.msra.mxu0 0.0
    %941 = vmatprep.subr.mxu0 0.0
    %942 = vmatpush1.xpose.msra.mxu0 0.0
    %943 = vmatprep.subr.mxu0 0.0
    %944 = vmatpush1.xpose.msra.mxu0 0.0
    %945 = vmatprep.subr.mxu0 0.0
    %946 = vmatpush1.xpose.msra.mxu0 0.0
    %947 = vmatprep.subr.mxu0 0.0
    %948 = vmatpush1.xpose.msra.mxu0 0.0
    %949 = vmatprep.subr.mxu0 0.0
    %950 = vmatpush1.xpose.msra.mxu0 0.0
    %951 = vmatprep.subr.mxu0 0.0
    %952 = vmatpush1.xpose.msra.mxu0 0.0
    %953 = vmatprep.subr.mxu0 0.0
    %954 = vmatpush1.xpose.msra.mxu0 0.0
    %955 = vmatprep.subr.mxu0 0.0
    %956 = vmatpush1.xpose.msra.mxu0 0.0
    %957 = vmatprep.subr.mxu0 0.0
    %958 = vmatpush1.xpose.msra.mxu0 0.0
    %959 = vmatprep.subr.mxu0 0.0
    %960 = vmatpush1.xpose.msra.mxu0 0.0
    %961 = vmatprep.subr.mxu0 0.0
    %962 = vmatpush1.xpose.msra.mxu0 0.0
    %963 = vmatprep.subr.mxu0 0.0
    %964 = vmatpush1.xpose.msra.mxu0 %v935
    %965 = vmatprep.subr.mxu0 0.0
    %966 = vmatpush1.xpose.msra.mxu0 %v933
    %967 = vmatprep.subr.mxu0 0.0
    %968 = vmatpush1.xpose.msra.mxu0 %v931
    %969 = vmatprep.subr.mxu0 0.0
    %970 = vmatpush2.xpose.msra.mxu0 0.0
    %971 = vmatprep.subr.mxu0 0.0
    %972 = vmatpush2.xpose.msra.mxu0 0.0
    %973 = vmatprep.subr.mxu0 0.0
    %974 = vmatpush2.xpose.msra.mxu0 0.0
    %975 = vmatprep.subr.mxu0 0.0
    %976 = vmatpush2.xpose.msra.mxu0 0.0
    %977 = vmatprep.subr.mxu0 0.0
    %978 = vmatpush2.xpose.msra.mxu0 0.0
    %979 = vmatprep.subr.mxu0 0.0
    %980 = vmatpush2.xpose.msra.mxu0 0.0
    %981 = vmatprep.subr.mxu0 0.0
    %982 = vmatpush2.xpose.msra.mxu0 0.0
    %983 = vmatprep.subr.mxu0 0.0
    %984 = vmatpush2.xpose.msra.mxu0 0.0
    %985 = vmatprep.subr.mxu0 0.0
    %986 = vmatpush2.xpose.msra.mxu0 0.0
    %987 = vmatprep.subr.mxu0 0.0
    %988 = vmatpush2.xpose.msra.mxu0 0.0
    %989 = vmatprep.subr.mxu0 0.0
    %990 = vmatpush2.xpose.msra.mxu0 0.0
    %991 = vmatprep.subr.mxu0 0.0
    %992 = vmatpush2.xpose.msra.mxu0 0.0
    %993 = vmatprep.subr.mxu0 0.0
    %994 = vmatpush2.xpose.msra.mxu0 0.0
    %995 = vmatprep.subr.mxu0 0.0
    %996 = vmatpush2.xpose.msra.mxu0 0.0
    %997 = vmatprep.subr.mxu0 0.0
    %998 = vmatpush2.xpose.msra.mxu0 0.0
    %999 = vmatprep.subr.mxu0 0.0
    %1000 = vmatpush2.xpose.msra.mxu0 0.0
    %1001 = vmatprep.mubr.f32.mxu0 0.0
    %1002 = vmatmul.mubr.f32.gmra.mxu0 %v925
    %v1003 = vpop.f32.mrf.mxu0
    %v1004 = vadd.f32 0.0, %v1003
    %v1005 = vpop.f32.mrf.mxu0
    %1006 = vmatprep.mubr.f32.mxu0 0.0
    %1007 = vmatmul.mubr.f32.gmra.mxu0 %v927
    %v1008 = vpop.f32.mrf.mxu0
    %v1009 = vadd.f32 0.0, %v1008
    %v1010 = vpop.f32.mrf.mxu0
    %1011 = vmatprep.mubr.f32.mxu0 0.0
    %1012 = vmatmul.mubr.f32.gmra.mxu0 %v929
    %v1013 = vpop.f32.mrf.mxu0
    %v1014 = vadd.f32 0.0, %v1013
    %v1015 = vpop.f32.mrf.mxu0
    %1016 = vdwg.mxu0
    %v1017 = vmul.f32 %v1004, 0.35355338
    %v1018 = vmul.f32 %v1009, 0.35355338
    %v1019 = vmul.f32 %v1014, 0.35355338
    %v1020 = vsel %vm540, %v1017, -inf
    %1021 = vmax.xlane.f32.xlu0 %v1020
    %v1022 = vpop.xlane.xlu0 %1021
    %v1023 = vsel %vm540, %v1018, -inf
    %1024 = vmax.xlane.f32.xlu0 %v1023
    %v1025 = vpop.xlane.xlu0 %1024
    %v1026 = vsel %vm547, %v1019, -inf
    %1027 = vmax.xlane.f32.xlu0 %v1026
    %v1028 = vpop.xlane.xlu0 %1027
    %v1029 = vsub.f32 %v1017, %v1022
    %v1030 = vsub.f32 %v1018, %v1025
    %v1031 = vsub.f32 %v1019, %v1028
    %v1032 = vmul.f32 %v1029, 1.442695
    %v1033 = vpow.pop %v1032
    %v1034 = vmul.f32 %v1030, 1.442695
    %v1035 = vpow.pop %v1034
    %v1036 = vmul.f32 %v1031, 1.442695
    %v1037 = vpow.pop %v1036
    %v1038 = vsel %vm540, %v1033, 0.0
    %1039 = vadd.xlane.f32.xlu0 %v1038
    %v1040 = vpop.xlane.xlu0 %1039
    %v1041 = vsel %vm540, %v1035, 0.0
    %1042 = vadd.xlane.f32.xlu0 %v1041
    %v1043 = vpop.xlane.xlu0 %1042
    %v1044 = vsel %vm547, %v1037, 0.0
    %1045 = vadd.xlane.f32.xlu0 %v1044
    %v1046 = vpop.xlane.xlu0 %1045
    %v1047 = vrcp.pop %v1040
    %v1048 = vrcp.pop %v1043
    %v1049 = vrcp.pop %v1046
    %v1050 = vmul.f32 %v1033, %v1047
    %v1051 = vmul.f32 %v1035, %v1048
    %v1052 = vmul.f32 %v1037, %v1049
    %1053 = vrot.lane.b32.xlu0 %v412, 48
    %v1054 = vpop.permute.xlu0 %1053
    %1055 = vrot.lane.b32.xlu0 %v417, 48
    %v1056 = vpop.permute.xlu0 %1055
    %1057 = vrot.lane.b32.xlu0 %v422, 48
    %v1058 = vpop.permute.xlu0 %1057
    %v1062 = vsel %vm540, %v1050, 0
    %v1065 = vsel %vm540, %v1051, 0
    %v1068 = vsel %vm540, %v1052, 0
    %v1070 = vsel %vm202, %v1058, 0
    %1072 = vmatprep.subr.mxu0 0.0
    %1073 = vmatpush1.msra.mxu0 0.0
    %1074 = vmatprep.subr.mxu0 0.0
    %1075 = vmatpush1.msra.mxu0 0.0
    %1076 = vmatprep.subr.mxu0 0.0
    %1077 = vmatpush1.msra.mxu0 0.0
    %1078 = vmatprep.subr.mxu0 0.0
    %1079 = vmatpush1.msra.mxu0 0.0
    %1080 = vmatprep.subr.mxu0 0.0
    %1081 = vmatpush1.msra.mxu0 0.0
    %1082 = vmatprep.subr.mxu0 0.0
    %1083 = vmatpush1.msra.mxu0 0.0
    %1084 = vmatprep.subr.mxu0 0.0
    %1085 = vmatpush1.msra.mxu0 0.0
    %1086 = vmatprep.subr.mxu0 0.0
    %1087 = vmatpush1.msra.mxu0 0.0
    %1088 = vmatprep.subr.mxu0 0.0
    %1089 = vmatpush1.msra.mxu0 0.0
    %1090 = vmatprep.subr.mxu0 0.0
    %1091 = vmatpush1.msra.mxu0 0.0
    %1092 = vmatprep.subr.mxu0 0.0
    %1093 = vmatpush1.msra.mxu0 0.0
    %1094 = vmatprep.subr.mxu0 0.0
    %1095 = vmatpush1.msra.mxu0 0.0
    %1096 = vmatprep.subr.mxu0 0.0
    %1097 = vmatpush1.msra.mxu0 0.0
    %1098 = vmatprep.subr.mxu0 0.0
    %1099 = vmatpush1.msra.mxu0 %v1070
    %1100 = vmatprep.subr.mxu0 0.0
    %1101 = vmatpush1.msra.mxu0 %v1056
    %1102 = vmatprep.subr.mxu0 0.0
    %1103 = vmatpush1.msra.mxu0 %v1054
    %1104 = vmatprep.subr.mxu0 0.0
    %1105 = vmatpush2.msra.mxu0 0.0
    %1106 = vmatprep.subr.mxu0 0.0
    %1107 = vmatpush2.msra.mxu0 0.0
    %1108 = vmatprep.subr.mxu0 0.0
    %1109 = vmatpush2.msra.mxu0 0.0
    %1110 = vmatprep.subr.mxu0 0.0
    %1111 = vmatpush2.msra.mxu0 0.0
    %1112 = vmatprep.subr.mxu0 0.0
    %1113 = vmatpush2.msra.mxu0 0.0
    %1114 = vmatprep.subr.mxu0 0.0
    %1115 = vmatpush2.msra.mxu0 0.0
    %1116 = vmatprep.subr.mxu0 0.0
    %1117 = vmatpush2.msra.mxu0 0.0
    %1118 = vmatprep.subr.mxu0 0.0
    %1119 = vmatpush2.msra.mxu0 0.0
    %1120 = vmatprep.subr.mxu0 0.0
    %1121 = vmatpush2.msra.mxu0 0.0
    %1122 = vmatprep.subr.mxu0 0.0
    %1123 = vmatpush2.msra.mxu0 0.0
    %1124 = vmatprep.subr.mxu0 0.0
    %1125 = vmatpush2.msra.mxu0 0.0
    %1126 = vmatprep.subr.mxu0 0.0
    %1127 = vmatpush2.msra.mxu0 0.0
    %1128 = vmatprep.subr.mxu0 0.0
    %1129 = vmatpush2.msra.mxu0 0.0
    %1130 = vmatprep.subr.mxu0 0.0
    %1131 = vmatpush2.msra.mxu0 0.0
    %1132 = vmatprep.subr.mxu0 0.0
    %1133 = vmatpush2.msra.mxu0 0.0
    %1134 = vmatprep.subr.mxu0 0.0
    %1135 = vmatpush2.msra.mxu0 0.0
    %1136 = vmatprep.mubr.f32.mxu0 0.0
    %1137 = vmatmul.mubr.f32.gmra.mxu0 %v1062
    %v1138 = vpop.f32.mrf.mxu0
    %v1139 = vadd.f32 0.0, %v1138
    %v1140 = vpop.f32.mrf.mxu0
    %1141 = vmatprep.mubr.f32.mxu0 0.0
    %1142 = vmatmul.mubr.f32.gmra.mxu0 %v1065
    %v1143 = vpop.f32.mrf.mxu0
    %v1144 = vadd.f32 0.0, %v1143
    %v1145 = vpop.f32.mrf.mxu0
    %1146 = vmatprep.mubr.f32.mxu0 0.0
    %1147 = vmatmul.mubr.f32.gmra.mxu0 %v1068
    %v1148 = vpop.f32.mrf.mxu0
    %v1149 = vadd.f32 0.0, %v1148
    %v1150 = vpop.f32.mrf.mxu0
    %1151 = vdwg.mxu0
    %1152 = vrot.lane.b32.xlu0 %v412, 104
    %v1153 = vpop.permute.xlu0 %1152
    %1154 = vrot.lane.b32.xlu0 %v417, 104
    %v1155 = vpop.permute.xlu0 %1154
    %1156 = vrot.lane.b32.xlu0 %v422, 104
    %v1157 = vpop.permute.xlu0 %1156
    %1158 = vrot.lane.b32.xlu0 %v412, 72
    %v1159 = vpop.permute.xlu0 %1158
    %1160 = vrot.lane.b32.xlu0 %v417, 72
    %v1161 = vpop.permute.xlu0 %1160
    %1162 = vrot.lane.b32.xlu0 %v422, 72
    %v1163 = vpop.permute.xlu0 %1162
    %v1164 = vsel %vm444, %v1153, 0
    %v1166 = vsel %vm444, %v1155, 0
    %v1168 = vsel %vm444, %v1157, 0
    %v1170 = vsel %vm444, %v1159, 0
    %v1172 = vsel %vm444, %v1161, 0
    %v1174 = vsel %vm444, %v1163, 0
    %1176 = vmatprep.subr.mxu0 0.0
    %1177 = vmatpush1.xpose.msra.mxu0 0.0
    %1178 = vmatprep.subr.mxu0 0.0
    %1179 = vmatpush1.xpose.msra.mxu0 0.0
    %1180 = vmatprep.subr.mxu0 0.0
    %1181 = vmatpush1.xpose.msra.mxu0 0.0
    %1182 = vmatprep.subr.mxu0 0.0
    %1183 = vmatpush1.xpose.msra.mxu0 0.0
    %1184 = vmatprep.subr.mxu0 0.0
    %1185 = vmatpush1.xpose.msra.mxu0 0.0
    %1186 = vmatprep.subr.mxu0 0.0
    %1187 = vmatpush1.xpose.msra.mxu0 0.0
    %1188 = vmatprep.subr.mxu0 0.0
    %1189 = vmatpush1.xpose.msra.mxu0 0.0
    %1190 = vmatprep.subr.mxu0 0.0
    %1191 = vmatpush1.xpose.msra.mxu0 0.0
    %1192 = vmatprep.subr.mxu0 0.0
    %1193 = vmatpush1.xpose.msra.mxu0 0.0
    %1194 = vmatprep.subr.mxu0 0.0
    %1195 = vmatpush1.xpose.msra.mxu0 0.0
    %1196 = vmatprep.subr.mxu0 0.0
    %1197 = vmatpush1.xpose.msra.mxu0 0.0
    %1198 = vmatprep.subr.mxu0 0.0
    %1199 = vmatpush1.xpose.msra.mxu0 0.0
    %1200 = vmatprep.subr.mxu0 0.0
    %1201 = vmatpush1.xpose.msra.mxu0 0.0
    %1202 = vmatprep.subr.mxu0 0.0
    %1203 = vmatpush1.xpose.msra.mxu0 %v1174
    %1204 = vmatprep.subr.mxu0 0.0
    %1205 = vmatpush1.xpose.msra.mxu0 %v1172
    %1206 = vmatprep.subr.mxu0 0.0
    %1207 = vmatpush1.xpose.msra.mxu0 %v1170
    %1208 = vmatprep.subr.mxu0 0.0
    %1209 = vmatpush2.xpose.msra.mxu0 0.0
    %1210 = vmatprep.subr.mxu0 0.0
    %1211 = vmatpush2.xpose.msra.mxu0 0.0
    %1212 = vmatprep.subr.mxu0 0.0
    %1213 = vmatpush2.xpose.msra.mxu0 0.0
    %1214 = vmatprep.subr.mxu0 0.0
    %1215 = vmatpush2.xpose.msra.mxu0 0.0
    %1216 = vmatprep.subr.mxu0 0.0
    %1217 = vmatpush2.xpose.msra.mxu0 0.0
    %1218 = vmatprep.subr.mxu0 0.0
    %1219 = vmatpush2.xpose.msra.mxu0 0.0
    %1220 = vmatprep.subr.mxu0 0.0
    %1221 = vmatpush2.xpose.msra.mxu0 0.0
    %1222 = vmatprep.subr.mxu0 0.0
    %1223 = vmatpush2.xpose.msra.mxu0 0.0
    %1224 = vmatprep.subr.mxu0 0.0
    %1225 = vmatpush2.xpose.msra.mxu0 0.0
    %1226 = vmatprep.subr.mxu0 0.0
    %1227 = vmatpush2.xpose.msra.mxu0 0.0
    %1228 = vmatprep.subr.mxu0 0.0
    %1229 = vmatpush2.xpose.msra.mxu0 0.0
    %1230 = vmatprep.subr.mxu0 0.0
    %1231 = vmatpush2.xpose.msra.mxu0 0.0
    %1232 = vmatprep.subr.mxu0 0.0
    %1233 = vmatpush2.xpose.msra.mxu0 0.0
    %1234 = vmatprep.subr.mxu0 0.0
    %1235 = vmatpush2.xpose.msra.mxu0 0.0
    %1236 = vmatprep.subr.mxu0 0.0
    %1237 = vmatpush2.xpose.msra.mxu0 0.0
    %1238 = vmatprep.subr.mxu0 0.0
    %1239 = vmatpush2.xpose.msra.mxu0 0.0
    %1240 = vmatprep.mubr.f32.mxu0 0.0
    %1241 = vmatmul.mubr.f32.gmra.mxu0 %v1164
    %v1242 = vpop.f32.mrf.mxu0
    %v1243 = vadd.f32 0.0, %v1242
    %v1244 = vpop.f32.mrf.mxu0
    %1245 = vmatprep.mubr.f32.mxu0 0.0
    %1246 = vmatmul.mubr.f32.gmra.mxu0 %v1166
    %v1247 = vpop.f32.mrf.mxu0
    %v1248 = vadd.f32 0.0, %v1247
    %v1249 = vpop.f32.mrf.mxu0
    %1250 = vmatprep.mubr.f32.mxu0 0.0
    %1251 = vmatmul.mubr.f32.gmra.mxu0 %v1168
    %v1252 = vpop.f32.mrf.mxu0
    %v1253 = vadd.f32 0.0, %v1252
    %v1254 = vpop.f32.mrf.mxu0
    %1255 = vdwg.mxu0
    %v1256 = vmul.f32 %v1243, 0.35355338
    %v1257 = vmul.f32 %v1248, 0.35355338
    %v1258 = vmul.f32 %v1253, 0.35355338
    %v1259 = vsel %vm540, %v1256, -inf
    %1260 = vmax.xlane.f32.xlu0 %v1259
    %v1261 = vpop.xlane.xlu0 %1260
    %v1262 = vsel %vm540, %v1257, -inf
    %1263 = vmax.xlane.f32.xlu0 %v1262
    %v1264 = vpop.xlane.xlu0 %1263
    %v1265 = vsel %vm547, %v1258, -inf
    %1266 = vmax.xlane.f32.xlu0 %v1265
    %v1267 = vpop.xlane.xlu0 %1266
    %v1268 = vsub.f32 %v1256, %v1261
    %v1269 = vsub.f32 %v1257, %v1264
    %v1270 = vsub.f32 %v1258, %v1267
    %v1271 = vmul.f32 %v1268, 1.442695
    %v1272 = vpow.pop %v1271
    %v1273 = vmul.f32 %v1269, 1.442695
    %v1274 = vpow.pop %v1273
    %v1275 = vmul.f32 %v1270, 1.442695
    %v1276 = vpow.pop %v1275
    %v1277 = vsel %vm540, %v1272, 0.0
    %1278 = vadd.xlane.f32.xlu0 %v1277
    %v1279 = vpop.xlane.xlu0 %1278
    %v1280 = vsel %vm540, %v1274, 0.0
    %1281 = vadd.xlane.f32.xlu0 %v1280
    %v1282 = vpop.xlane.xlu0 %1281
    %v1283 = vsel %vm547, %v1276, 0.0
    %1284 = vadd.xlane.f32.xlu0 %v1283
    %v1285 = vpop.xlane.xlu0 %1284
    %v1286 = vrcp.pop %v1279
    %v1287 = vrcp.pop %v1282
    %v1288 = vrcp.pop %v1285
    %v1289 = vmul.f32 %v1272, %v1286
    %v1290 = vmul.f32 %v1274, %v1287
    %v1291 = vmul.f32 %v1276, %v1288
    %1292 = vrot.lane.b32.xlu0 %v412, 40
    %v1293 = vpop.permute.xlu0 %1292
    %1294 = vrot.lane.b32.xlu0 %v417, 40
    %v1295 = vpop.permute.xlu0 %1294
    %1296 = vrot.lane.b32.xlu0 %v422, 40
    %v1297 = vpop.permute.xlu0 %1296
    %v1301 = vsel %vm540, %v1289, 0
    %v1304 = vsel %vm540, %v1290, 0
    %v1307 = vsel %vm540, %v1291, 0
    %v1309 = vsel %vm202, %v1297, 0
    %1311 = vmatprep.subr.mxu0 0.0
    %1312 = vmatpush1.msra.mxu0 0.0
    %1313 = vmatprep.subr.mxu0 0.0
    %1314 = vmatpush1.msra.mxu0 0.0
    %1315 = vmatprep.subr.mxu0 0.0
    %1316 = vmatpush1.msra.mxu0 0.0
    %1317 = vmatprep.subr.mxu0 0.0
    %1318 = vmatpush1.msra.mxu0 0.0
    %1319 = vmatprep.subr.mxu0 0.0
    %1320 = vmatpush1.msra.mxu0 0.0
    %1321 = vmatprep.subr.mxu0 0.0
    %1322 = vmatpush1.msra.mxu0 0.0
    %1323 = vmatprep.subr.mxu0 0.0
    %1324 = vmatpush1.msra.mxu0 0.0
    %1325 = vmatprep.subr.mxu0 0.0
    %1326 = vmatpush1.msra.mxu0 0.0
    %1327 = vmatprep.subr.mxu0 0.0
    %1328 = vmatpush1.msra.mxu0 0.0
    %1329 = vmatprep.subr.mxu0 0.0
    %1330 = vmatpush1.msra.mxu0 0.0
    %1331 = vmatprep.subr.mxu0 0.0
    %1332 = vmatpush1.msra.mxu0 0.0
    %1333 = vmatprep.subr.mxu0 0.0
    %1334 = vmatpush1.msra.mxu0 0.0
    %1335 = vmatprep.subr.mxu0 0.0
    %1336 = vmatpush1.msra.mxu0 0.0
    %1337 = vmatprep.subr.mxu0 0.0
    %1338 = vmatpush1.msra.mxu0 %v1309
    %1339 = vmatprep.subr.mxu0 0.0
    %1340 = vmatpush1.msra.mxu0 %v1295
    %1341 = vmatprep.subr.mxu0 0.0
    %1342 = vmatpush1.msra.mxu0 %v1293
    %1343 = vmatprep.subr.mxu0 0.0
    %1344 = vmatpush2.msra.mxu0 0.0
    %1345 = vmatprep.subr.mxu0 0.0
    %1346 = vmatpush2.msra.mxu0 0.0
    %1347 = vmatprep.subr.mxu0 0.0
    %1348 = vmatpush2.msra.mxu0 0.0
    %1349 = vmatprep.subr.mxu0 0.0
    %1350 = vmatpush2.msra.mxu0 0.0
    %1351 = vmatprep.subr.mxu0 0.0
    %1352 = vmatpush2.msra.mxu0 0.0
    %1353 = vmatprep.subr.mxu0 0.0
    %1354 = vmatpush2.msra.mxu0 0.0
    %1355 = vmatprep.subr.mxu0 0.0
    %1356 = vmatpush2.msra.mxu0 0.0
    %1357 = vmatprep.subr.mxu0 0.0
    %1358 = vmatpush2.msra.mxu0 0.0
    %1359 = vmatprep.subr.mxu0 0.0
    %1360 = vmatpush2.msra.mxu0 0.0
    %1361 = vmatprep.subr.mxu0 0.0
    %1362 = vmatpush2.msra.mxu0 0.0
    %1363 = vmatprep.subr.mxu0 0.0
    %1364 = vmatpush2.msra.mxu0 0.0
    %1365 = vmatprep.subr.mxu0 0.0
    %1366 = vmatpush2.msra.mxu0 0.0
    %1367 = vmatprep.subr.mxu0 0.0
    %1368 = vmatpush2.msra.mxu0 0.0
    %1369 = vmatprep.subr.mxu0 0.0
    %1370 = vmatpush2.msra.mxu0 0.0
    %1371 = vmatprep.subr.mxu0 0.0
    %1372 = vmatpush2.msra.mxu0 0.0
    %1373 = vmatprep.subr.mxu0 0.0
    %1374 = vmatpush2.msra.mxu0 0.0
    %1375 = vmatprep.mubr.f32.mxu0 0.0
    %1376 = vmatmul.mubr.f32.gmra.mxu0 %v1301
    %v1377 = vpop.f32.mrf.mxu0
    %v1378 = vadd.f32 0.0, %v1377
    %v1379 = vpop.f32.mrf.mxu0
    %1380 = vmatprep.mubr.f32.mxu0 0.0
    %1381 = vmatmul.mubr.f32.gmra.mxu0 %v1304
    %v1382 = vpop.f32.mrf.mxu0
    %v1383 = vadd.f32 0.0, %v1382
    %v1384 = vpop.f32.mrf.mxu0
    %1385 = vmatprep.mubr.f32.mxu0 0.0
    %1386 = vmatmul.mubr.f32.gmra.mxu0 %v1307
    %v1387 = vpop.f32.mrf.mxu0
    %v1388 = vadd.f32 0.0, %v1387
    %v1389 = vpop.f32.mrf.mxu0
    %1390 = vdwg.mxu0
    %1394 = vrot.lane.b32.xlu0 %v900, 8
    %v1395 = vpop.permute.xlu0 %1394
    %1396 = vrot.lane.b32.xlu0 %v905, 8
    %v1397 = vpop.permute.xlu0 %1396
    %1398 = vrot.lane.b32.xlu0 %v910, 8
    %v1399 = vpop.permute.xlu0 %1398
    %1406 = vrot.lane.b32.xlu0 %v1139, 16
    %v1407 = vpop.permute.xlu0 %1406
    %1408 = vrot.lane.b32.xlu0 %v1144, 16
    %v1409 = vpop.permute.xlu0 %1408
    %1410 = vrot.lane.b32.xlu0 %v1149, 16
    %v1411 = vpop.permute.xlu0 %1410
    %1418 = vrot.lane.b32.xlu0 %v1378, 24
    %v1419 = vpop.permute.xlu0 %1418
    %1420 = vrot.lane.b32.xlu0 %v1383, 24
    %v1421 = vpop.permute.xlu0 %1420
    %1422 = vrot.lane.b32.xlu0 %v1388, 24
    %v1423 = vpop.permute.xlu0 %1422
    %v1427 = vsel %vm444, %v661, %v1395
    %v1428 = vsel %vm444, %v666, %v1397
    %v1429 = vsel %vm444, %v671, %v1399
    %v1430 = vsel %vm82, %v1427, %v1407
    %v1431 = vsel %vm82, %v1428, %v1409
    %v1432 = vsel %vm82, %v1429, %v1411
    %vm1433 = vcmask 195584
    %v1434 = vsel %vm1433, %v1430, %v1419
    %v1435 = vsel %vm1433, %v1431, %v1421
    %v1436 = vsel %vm1433, %v1432, %v1423
    %v1439 = vrot.slane %v422, 1
    %v1440 = vrot.slane %v427, 1
    %v1441 = vsel %vm188, %v1439, %v1440
    %v1442 = vrot.slane %v432, 1
    %v1443 = vsel %vm188, %v1440, %v1442
    %1444 = vrot.lane.b32.xlu0 %v1441, 96
    %v1445 = vpop.permute.xlu0 %1444
    %1446 = vrot.lane.b32.xlu0 %v1443, 96
    %v1447 = vpop.permute.xlu0 %1446
    %1448 = vrot.lane.b32.xlu0 %v1442, 96
    %v1449 = vpop.permute.xlu0 %1448
    %v1450 = vsel %vm444, %v1441, 0
    %v1452 = vsel %vm444, %v1443, 0
    %v1454 = vsel %vm444, %v1442, 0
    %v1456 = vsel %vm444, %v1445, 0
    %v1458 = vsel %vm444, %v1447, 0
    %v1460 = vsel %vm444, %v1449, 0
    %1462 = vmatprep.subr.mxu0 0.0
    %1463 = vmatpush1.xpose.msra.mxu0 0.0
    %1464 = vmatprep.subr.mxu0 0.0
    %1465 = vmatpush1.xpose.msra.mxu0 0.0
    %1466 = vmatprep.subr.mxu0 0.0
    %1467 = vmatpush1.xpose.msra.mxu0 0.0
    %1468 = vmatprep.subr.mxu0 0.0
    %1469 = vmatpush1.xpose.msra.mxu0 0.0
    %1470 = vmatprep.subr.mxu0 0.0
    %1471 = vmatpush1.xpose.msra.mxu0 0.0
    %1472 = vmatprep.subr.mxu0 0.0
    %1473 = vmatpush1.xpose.msra.mxu0 0.0
    %1474 = vmatprep.subr.mxu0 0.0
    %1475 = vmatpush1.xpose.msra.mxu0 0.0
    %1476 = vmatprep.subr.mxu0 0.0
    %1477 = vmatpush1.xpose.msra.mxu0 0.0
    %1478 = vmatprep.subr.mxu0 0.0
    %1479 = vmatpush1.xpose.msra.mxu0 0.0
    %1480 = vmatprep.subr.mxu0 0.0
    %1481 = vmatpush1.xpose.msra.mxu0 0.0
    %1482 = vmatprep.subr.mxu0 0.0
    %1483 = vmatpush1.xpose.msra.mxu0 0.0
    %1484 = vmatprep.subr.mxu0 0.0
    %1485 = vmatpush1.xpose.msra.mxu0 0.0
    %1486 = vmatprep.subr.mxu0 0.0
    %1487 = vmatpush1.xpose.msra.mxu0 0.0
    %1488 = vmatprep.subr.mxu0 0.0
    %1489 = vmatpush1.xpose.msra.mxu0 %v1460
    %1490 = vmatprep.subr.mxu0 0.0
    %1491 = vmatpush1.xpose.msra.mxu0 %v1458
    %1492 = vmatprep.subr.mxu0 0.0
    %1493 = vmatpush1.xpose.msra.mxu0 %v1456
    %1494 = vmatprep.subr.mxu0 0.0
    %1495 = vmatpush2.xpose.msra.mxu0 0.0
    %1496 = vmatprep.subr.mxu0 0.0
    %1497 = vmatpush2.xpose.msra.mxu0 0.0
    %1498 = vmatprep.subr.mxu0 0.0
    %1499 = vmatpush2.xpose.msra.mxu0 0.0
    %1500 = vmatprep.subr.mxu0 0.0
    %1501 = vmatpush2.xpose.msra.mxu0 0.0
    %1502 = vmatprep.subr.mxu0 0.0
    %1503 = vmatpush2.xpose.msra.mxu0 0.0
    %1504 = vmatprep.subr.mxu0 0.0
    %1505 = vmatpush2.xpose.msra.mxu0 0.0
    %1506 = vmatprep.subr.mxu0 0.0
    %1507 = vmatpush2.xpose.msra.mxu0 0.0
    %1508 = vmatprep.subr.mxu0 0.0
    %1509 = vmatpush2.xpose.msra.mxu0 0.0
    %1510 = vmatprep.subr.mxu0 0.0
    %1511 = vmatpush2.xpose.msra.mxu0 0.0
    %1512 = vmatprep.subr.mxu0 0.0
    %1513 = vmatpush2.xpose.msra.mxu0 0.0
    %1514 = vmatprep.subr.mxu0 0.0
    %1515 = vmatpush2.xpose.msra.mxu0 0.0
    %1516 = vmatprep.subr.mxu0 0.0
    %1517 = vmatpush2.xpose.msra.mxu0 0.0
    %1518 = vmatprep.subr.mxu0 0.0
    %1519 = vmatpush2.xpose.msra.mxu0 0.0
    %1520 = vmatprep.subr.mxu0 0.0
    %1521 = vmatpush2.xpose.msra.mxu0 0.0
    %1522 = vmatprep.subr.mxu0 0.0
    %1523 = vmatpush2.xpose.msra.mxu0 0.0
    %1524 = vmatprep.subr.mxu0 0.0
    %1525 = vmatpush2.xpose.msra.mxu0 0.0
    %1526 = vmatprep.mubr.f32.mxu0 0.0
    %1527 = vmatmul.mubr.f32.gmra.mxu0 %v1450
    %v1528 = vpop.f32.mrf.mxu0
    %v1529 = vadd.f32 0.0, %v1528
    %v1530 = vpop.f32.mrf.mxu0
    %1531 = vmatprep.mubr.f32.mxu0 0.0
    %1532 = vmatmul.mubr.f32.gmra.mxu0 %v1452
    %v1533 = vpop.f32.mrf.mxu0
    %v1534 = vadd.f32 0.0, %v1533
    %v1535 = vpop.f32.mrf.mxu0
    %1536 = vmatprep.mubr.f32.mxu0 0.0
    %1537 = vmatmul.mubr.f32.gmra.mxu0 %v1454
    %v1538 = vpop.f32.mrf.mxu0
    %v1539 = vadd.f32 0.0, %v1538
    %v1540 = vpop.f32.mrf.mxu0
    %1541 = vdwg.mxu0
    %v1542 = vmul.f32 %v1529, 0.35355338
    %v1543 = vmul.f32 %v1534, 0.35355338
    %v1544 = vmul.f32 %v1539, 0.35355338
    %v1545 = vsel %vm540, %v1542, -inf
    %1546 = vmax.xlane.f32.xlu0 %v1545
    %v1547 = vpop.xlane.xlu0 %1546
    %v1548 = vsel %vm540, %v1543, -inf
    %1549 = vmax.xlane.f32.xlu0 %v1548
    %v1550 = vpop.xlane.xlu0 %1549
    %v1551 = vsel %vm547, %v1544, -inf
    %1552 = vmax.xlane.f32.xlu0 %v1551
    %v1553 = vpop.xlane.xlu0 %1552
    %v1554 = vsub.f32 %v1542, %v1547
    %v1555 = vsub.f32 %v1543, %v1550
    %v1556 = vsub.f32 %v1544, %v1553
    %v1557 = vmul.f32 %v1554, 1.442695
    %v1558 = vpow.pop %v1557
    %v1559 = vmul.f32 %v1555, 1.442695
    %v1560 = vpow.pop %v1559
    %v1561 = vmul.f32 %v1556, 1.442695
    %v1562 = vpow.pop %v1561
    %v1563 = vsel %vm540, %v1558, 0.0
    %1564 = vadd.xlane.f32.xlu0 %v1563
    %v1565 = vpop.xlane.xlu0 %1564
    %v1566 = vsel %vm540, %v1560, 0.0
    %1567 = vadd.xlane.f32.xlu0 %v1566
    %v1568 = vpop.xlane.xlu0 %1567
    %v1569 = vsel %vm547, %v1562, 0.0
    %1570 = vadd.xlane.f32.xlu0 %v1569
    %v1571 = vpop.xlane.xlu0 %1570
    %v1572 = vrcp.pop %v1565
    %v1573 = vrcp.pop %v1568
    %v1574 = vrcp.pop %v1571
    %v1575 = vmul.f32 %v1558, %v1572
    %v1576 = vmul.f32 %v1560, %v1573
    %v1577 = vmul.f32 %v1562, %v1574
    %1578 = vrot.lane.b32.xlu0 %v1441, 64
    %v1579 = vpop.permute.xlu0 %1578
    %1580 = vrot.lane.b32.xlu0 %v1443, 64
    %v1581 = vpop.permute.xlu0 %1580
    %1582 = vrot.lane.b32.xlu0 %v1442, 64
    %v1583 = vpop.permute.xlu0 %1582
    %v1587 = vsel %vm540, %v1575, 0
    %v1590 = vsel %vm540, %v1576, 0
    %v1593 = vsel %vm540, %v1577, 0
    %v1595 = vsel %vm202, %v1583, 0
    %1597 = vmatprep.subr.mxu0 0.0
    %1598 = vmatpush1.msra.mxu0 0.0
    %1599 = vmatprep.subr.mxu0 0.0
    %1600 = vmatpush1.msra.mxu0 0.0
    %1601 = vmatprep.subr.mxu0 0.0
    %1602 = vmatpush1.msra.mxu0 0.0
    %1603 = vmatprep.subr.mxu0 0.0
    %1604 = vmatpush1.msra.mxu0 0.0
    %1605 = vmatprep.subr.mxu0 0.0
    %1606 = vmatpush1.msra.mxu0 0.0
    %1607 = vmatprep.subr.mxu0 0.0
    %1608 = vmatpush1.msra.mxu0 0.0
    %1609 = vmatprep.subr.mxu0 0.0
    %1610 = vmatpush1.msra.mxu0 0.0
    %1611 = vmatprep.subr.mxu0 0.0
    %1612 = vmatpush1.msra.mxu0 0.0
    %1613 = vmatprep.subr.mxu0 0.0
    %1614 = vmatpush1.msra.mxu0 0.0
    %1615 = vmatprep.subr.mxu0 0.0
    %1616 = vmatpush1.msra.mxu0 0.0
    %1617 = vmatprep.subr.mxu0 0.0
    %1618 = vmatpush1.msra.mxu0 0.0
    %1619 = vmatprep.subr.mxu0 0.0
    %1620 = vmatpush1.msra.mxu0 0.0
    %1621 = vmatprep.subr.mxu0 0.0
    %1622 = vmatpush1.msra.mxu0 0.0
    %1623 = vmatprep.subr.mxu0 0.0
    %1624 = vmatpush1.msra.mxu0 %v1595
    %1625 = vmatprep.subr.mxu0 0.0
    %1626 = vmatpush1.msra.mxu0 %v1581
    %1627 = vmatprep.subr.mxu0 0.0
    %1628 = vmatpush1.msra.mxu0 %v1579
    %1629 = vmatprep.subr.mxu0 0.0
    %1630 = vmatpush2.msra.mxu0 0.0
    %1631 = vmatprep.subr.mxu0 0.0
    %1632 = vmatpush2.msra.mxu0 0.0
    %1633 = vmatprep.subr.mxu0 0.0
    %1634 = vmatpush2.msra.mxu0 0.0
    %1635 = vmatprep.subr.mxu0 0.0
    %1636 = vmatpush2.msra.mxu0 0.0
    %1637 = vmatprep.subr.mxu0 0.0
    %1638 = vmatpush2.msra.mxu0 0.0
    %1639 = vmatprep.subr.mxu0 0.0
    %1640 = vmatpush2.msra.mxu0 0.0
    %1641 = vmatprep.subr.mxu0 0.0
    %1642 = vmatpush2.msra.mxu0 0.0
    %1643 = vmatprep.subr.mxu0 0.0
    %1644 = vmatpush2.msra.mxu0 0.0
    %1645 = vmatprep.subr.mxu0 0.0
    %1646 = vmatpush2.msra.mxu0 0.0
    %1647 = vmatprep.subr.mxu0 0.0
    %1648 = vmatpush2.msra.mxu0 0.0
    %1649 = vmatprep.subr.mxu0 0.0
    %1650 = vmatpush2.msra.mxu0 0.0
    %1651 = vmatprep.subr.mxu0 0.0
    %1652 = vmatpush2.msra.mxu0 0.0
    %1653 = vmatprep.subr.mxu0 0.0
    %1654 = vmatpush2.msra.mxu0 0.0
    %1655 = vmatprep.subr.mxu0 0.0
    %1656 = vmatpush2.msra.mxu0 0.0
    %1657 = vmatprep.subr.mxu0 0.0
    %1658 = vmatpush2.msra.mxu0 0.0
    %1659 = vmatprep.subr.mxu0 0.0
    %1660 = vmatpush2.msra.mxu0 0.0
    %1661 = vmatprep.mubr.f32.mxu0 0.0
    %1662 = vmatmul.mubr.f32.gmra.mxu0 %v1587
    %v1663 = vpop.f32.mrf.mxu0
    %v1664 = vadd.f32 0.0, %v1663
    %v1665 = vpop.f32.mrf.mxu0
    %1666 = vmatprep.mubr.f32.mxu0 0.0
    %1667 = vmatmul.mubr.f32.gmra.mxu0 %v1590
    %v1668 = vpop.f32.mrf.mxu0
    %v1669 = vadd.f32 0.0, %v1668
    %v1670 = vpop.f32.mrf.mxu0
    %1671 = vmatprep.mubr.f32.mxu0 0.0
    %1672 = vmatmul.mubr.f32.gmra.mxu0 %v1593
    %v1673 = vpop.f32.mrf.mxu0
    %v1674 = vadd.f32 0.0, %v1673
    %v1675 = vpop.f32.mrf.mxu0
    %1676 = vdwg.mxu0
    %1677 = vrot.lane.b32.xlu0 %v1441, 120
    %v1678 = vpop.permute.xlu0 %1677
    %1679 = vrot.lane.b32.xlu0 %v1443, 120
    %v1680 = vpop.permute.xlu0 %1679
    %1681 = vrot.lane.b32.xlu0 %v1442, 120
    %v1682 = vpop.permute.xlu0 %1681
    %1683 = vrot.lane.b32.xlu0 %v1441, 88
    %v1684 = vpop.permute.xlu0 %1683
    %1685 = vrot.lane.b32.xlu0 %v1443, 88
    %v1686 = vpop.permute.xlu0 %1685
    %1687 = vrot.lane.b32.xlu0 %v1442, 88
    %v1688 = vpop.permute.xlu0 %1687
    %v1689 = vsel %vm444, %v1678, 0
    %v1691 = vsel %vm444, %v1680, 0
    %v1693 = vsel %vm444, %v1682, 0
    %v1695 = vsel %vm444, %v1684, 0
    %v1697 = vsel %vm444, %v1686, 0
    %v1699 = vsel %vm444, %v1688, 0
    %1701 = vmatprep.subr.mxu0 0.0
    %1702 = vmatpush1.xpose.msra.mxu0 0.0
    %1703 = vmatprep.subr.mxu0 0.0
    %1704 = vmatpush1.xpose.msra.mxu0 0.0
    %1705 = vmatprep.subr.mxu0 0.0
    %1706 = vmatpush1.xpose.msra.mxu0 0.0
    %1707 = vmatprep.subr.mxu0 0.0
    %1708 = vmatpush1.xpose.msra.mxu0 0.0
    %1709 = vmatprep.subr.mxu0 0.0
    %1710 = vmatpush1.xpose.msra.mxu0 0.0
    %1711 = vmatprep.subr.mxu0 0.0
    %1712 = vmatpush1.xpose.msra.mxu0 0.0
    %1713 = vmatprep.subr.mxu0 0.0
    %1714 = vmatpush1.xpose.msra.mxu0 0.0
    %1715 = vmatprep.subr.mxu0 0.0
    %1716 = vmatpush1.xpose.msra.mxu0 0.0
    %1717 = vmatprep.subr.mxu0 0.0
    %1718 = vmatpush1.xpose.msra.mxu0 0.0
    %1719 = vmatprep.subr.mxu0 0.0
    %1720 = vmatpush1.xpose.msra.mxu0 0.0
    %1721 = vmatprep.subr.mxu0 0.0
    %1722 = vmatpush1.xpose.msra.mxu0 0.0
    %1723 = vmatprep.subr.mxu0 0.0
    %1724 = vmatpush1.xpose.msra.mxu0 0.0
    %1725 = vmatprep.subr.mxu0 0.0
    %1726 = vmatpush1.xpose.msra.mxu0 0.0
    %1727 = vmatprep.subr.mxu0 0.0
    %1728 = vmatpush1.xpose.msra.mxu0 %v1699
    %1729 = vmatprep.subr.mxu0 0.0
    %1730 = vmatpush1.xpose.msra.mxu0 %v1697
    %1731 = vmatprep.subr.mxu0 0.0
    %1732 = vmatpush1.xpose.msra.mxu0 %v1695
    %1733 = vmatprep.subr.mxu0 0.0
    %1734 = vmatpush2.xpose.msra.mxu0 0.0
    %1735 = vmatprep.subr.mxu0 0.0
    %1736 = vmatpush2.xpose.msra.mxu0 0.0
    %1737 = vmatprep.subr.mxu0 0.0
    %1738 = vmatpush2.xpose.msra.mxu0 0.0
    %1739 = vmatprep.subr.mxu0 0.0
    %1740 = vmatpush2.xpose.msra.mxu0 0.0
    %1741 = vmatprep.subr.mxu0 0.0
    %1742 = vmatpush2.xpose.msra.mxu0 0.0
    %1743 = vmatprep.subr.mxu0 0.0
    %1744 = vmatpush2.xpose.msra.mxu0 0.0
    %1745 = vmatprep.subr.mxu0 0.0
    %1746 = vmatpush2.xpose.msra.mxu0 0.0
    %1747 = vmatprep.subr.mxu0 0.0
    %1748 = vmatpush2.xpose.msra.mxu0 0.0
    %1749 = vmatprep.subr.mxu0 0.0
    %1750 = vmatpush2.xpose.msra.mxu0 0.0
    %1751 = vmatprep.subr.mxu0 0.0
    %1752 = vmatpush2.xpose.msra.mxu0 0.0
    %1753 = vmatprep.subr.mxu0 0.0
    %1754 = vmatpush2.xpose.msra.mxu0 0.0
    %1755 = vmatprep.subr.mxu0 0.0
    %1756 = vmatpush2.xpose.msra.mxu0 0.0
    %1757 = vmatprep.subr.mxu0 0.0
    %1758 = vmatpush2.xpose.msra.mxu0 0.0
    %1759 = vmatprep.subr.mxu0 0.0
    %1760 = vmatpush2.xpose.msra.mxu0 0.0
    %1761 = vmatprep.subr.mxu0 0.0
    %1762 = vmatpush2.xpose.msra.mxu0 0.0
    %1763 = vmatprep.subr.mxu0 0.0
    %1764 = vmatpush2.xpose.msra.mxu0 0.0
    %1765 = vmatprep.mubr.f32.mxu0 0.0
    %1766 = vmatmul.mubr.f32.gmra.mxu0 %v1689
    %v1767 = vpop.f32.mrf.mxu0
    %v1768 = vadd.f32 0.0, %v1767
    %v1769 = vpop.f32.mrf.mxu0
    %1770 = vmatprep.mubr.f32.mxu0 0.0
    %1771 = vmatmul.mubr.f32.gmra.mxu0 %v1691
    %v1772 = vpop.f32.mrf.mxu0
    %v1773 = vadd.f32 0.0, %v1772
    %v1774 = vpop.f32.mrf.mxu0
    %1775 = vmatprep.mubr.f32.mxu0 0.0
    %1776 = vmatmul.mubr.f32.gmra.mxu0 %v1693
    %v1777 = vpop.f32.mrf.mxu0
    %v1778 = vadd.f32 0.0, %v1777
    %v1779 = vpop.f32.mrf.mxu0
    %1780 = vdwg.mxu0
    %v1781 = vmul.f32 %v1768, 0.35355338
    %v1782 = vmul.f32 %v1773, 0.35355338
    %v1783 = vmul.f32 %v1778, 0.35355338
    %v1784 = vsel %vm540, %v1781, -inf
    %1785 = vmax.xlane.f32.xlu0 %v1784
    %v1786 = vpop.xlane.xlu0 %1785
    %v1787 = vsel %vm540, %v1782, -inf
    %1788 = vmax.xlane.f32.xlu0 %v1787
    %v1789 = vpop.xlane.xlu0 %1788
    %v1790 = vsel %vm547, %v1783, -inf
    %1791 = vmax.xlane.f32.xlu0 %v1790
    %v1792 = vpop.xlane.xlu0 %1791
    %v1793 = vsub.f32 %v1781, %v1786
    %v1794 = vsub.f32 %v1782, %v1789
    %v1795 = vsub.f32 %v1783, %v1792
    %v1796 = vmul.f32 %v1793, 1.442695
    %v1797 = vpow.pop %v1796
    %v1798 = vmul.f32 %v1794, 1.442695
    %v1799 = vpow.pop %v1798
    %v1800 = vmul.f32 %v1795, 1.442695
    %v1801 = vpow.pop %v1800
    %v1802 = vsel %vm540, %v1797, 0.0
    %1803 = vadd.xlane.f32.xlu0 %v1802
    %v1804 = vpop.xlane.xlu0 %1803
    %v1805 = vsel %vm540, %v1799, 0.0
    %1806 = vadd.xlane.f32.xlu0 %v1805
    %v1807 = vpop.xlane.xlu0 %1806
    %v1808 = vsel %vm547, %v1801, 0.0
    %1809 = vadd.xlane.f32.xlu0 %v1808
    %v1810 = vpop.xlane.xlu0 %1809
    %v1811 = vrcp.pop %v1804
    %v1812 = vrcp.pop %v1807
    %v1813 = vrcp.pop %v1810
    %v1814 = vmul.f32 %v1797, %v1811
    %v1815 = vmul.f32 %v1799, %v1812
    %v1816 = vmul.f32 %v1801, %v1813
    %1817 = vrot.lane.b32.xlu0 %v1441, 56
    %v1818 = vpop.permute.xlu0 %1817
    %1819 = vrot.lane.b32.xlu0 %v1443, 56
    %v1820 = vpop.permute.xlu0 %1819
    %1821 = vrot.lane.b32.xlu0 %v1442, 56
    %v1822 = vpop.permute.xlu0 %1821
    %v1826 = vsel %vm540, %v1814, 0
    %v1829 = vsel %vm540, %v1815, 0
    %v1832 = vsel %vm540, %v1816, 0
    %v1834 = vsel %vm202, %v1822, 0
    %1836 = vmatprep.subr.mxu0 0.0
    %1837 = vmatpush1.msra.mxu0 0.0
    %1838 = vmatprep.subr.mxu0 0.0
    %1839 = vmatpush1.msra.mxu0 0.0
    %1840 = vmatprep.subr.mxu0 0.0
    %1841 = vmatpush1.msra.mxu0 0.0
    %1842 = vmatprep.subr.mxu0 0.0
    %1843 = vmatpush1.msra.mxu0 0.0
    %1844 = vmatprep.subr.mxu0 0.0
    %1845 = vmatpush1.msra.mxu0 0.0
    %1846 = vmatprep.subr.mxu0 0.0
    %1847 = vmatpush1.msra.mxu0 0.0
    %1848 = vmatprep.subr.mxu0 0.0
    %1849 = vmatpush1.msra.mxu0 0.0
    %1850 = vmatprep.subr.mxu0 0.0
    %1851 = vmatpush1.msra.mxu0 0.0
    %1852 = vmatprep.subr.mxu0 0.0
    %1853 = vmatpush1.msra.mxu0 0.0
    %1854 = vmatprep.subr.mxu0 0.0
    %1855 = vmatpush1.msra.mxu0 0.0
    %1856 = vmatprep.subr.mxu0 0.0
    %1857 = vmatpush1.msra.mxu0 0.0
    %1858 = vmatprep.subr.mxu0 0.0
    %1859 = vmatpush1.msra.mxu0 0.0
    %1860 = vmatprep.subr.mxu0 0.0
    %1861 = vmatpush1.msra.mxu0 0.0
    %1862 = vmatprep.subr.mxu0 0.0
    %1863 = vmatpush1.msra.mxu0 %v1834
    %1864 = vmatprep.subr.mxu0 0.0
    %1865 = vmatpush1.msra.mxu0 %v1820
    %1866 = vmatprep.subr.mxu0 0.0
    %1867 = vmatpush1.msra.mxu0 %v1818
    %1868 = vmatprep.subr.mxu0 0.0
    %1869 = vmatpush2.msra.mxu0 0.0
    %1870 = vmatprep.subr.mxu0 0.0
    %1871 = vmatpush2.msra.mxu0 0.0
    %1872 = vmatprep.subr.mxu0 0.0
    %1873 = vmatpush2.msra.mxu0 0.0
    %1874 = vmatprep.subr.mxu0 0.0
    %1875 = vmatpush2.msra.mxu0 0.0
    %1876 = vmatprep.subr.mxu0 0.0
    %1877 = vmatpush2.msra.mxu0 0.0
    %1878 = vmatprep.subr.mxu0 0.0
    %1879 = vmatpush2.msra.mxu0 0.0
    %1880 = vmatprep.subr.mxu0 0.0
    %1881 = vmatpush2.msra.mxu0 0.0
    %1882 = vmatprep.subr.mxu0 0.0
    %1883 = vmatpush2.msra.mxu0 0.0
    %1884 = vmatprep.subr.mxu0 0.0
    %1885 = vmatpush2.msra.mxu0 0.0
    %1886 = vmatprep.subr.mxu0 0.0
    %1887 = vmatpush2.msra.mxu0 0.0
    %1888 = vmatprep.subr.mxu0 0.0
    %1889 = vmatpush2.msra.mxu0 0.0
    %1890 = vmatprep.subr.mxu0 0.0
    %1891 = vmatpush2.msra.mxu0 0.0
    %1892 = vmatprep.subr.mxu0 0.0
    %1893 = vmatpush2.msra.mxu0 0.0
    %1894 = vmatprep.subr.mxu0 0.0
    %1895 = vmatpush2.msra.mxu0 0.0
    %1896 = vmatprep.subr.mxu0 0.0
    %1897 = vmatpush2.msra.mxu0 0.0
    %1898 = vmatprep.subr.mxu0 0.0
    %1899 = vmatpush2.msra.mxu0 0.0
    %1900 = vmatprep.mubr.f32.mxu0 0.0
    %1901 = vmatmul.mubr.f32.gmra.mxu0 %v1826
    %v1902 = vpop.f32.mrf.mxu0
    %v1903 = vadd.f32 0.0, %v1902
    %v1904 = vpop.f32.mrf.mxu0
    %1905 = vmatprep.mubr.f32.mxu0 0.0
    %1906 = vmatmul.mubr.f32.gmra.mxu0 %v1829
    %v1907 = vpop.f32.mrf.mxu0
    %v1908 = vadd.f32 0.0, %v1907
    %v1909 = vpop.f32.mrf.mxu0
    %1910 = vmatprep.mubr.f32.mxu0 0.0
    %1911 = vmatmul.mubr.f32.gmra.mxu0 %v1832
    %v1912 = vpop.f32.mrf.mxu0
    %v1913 = vadd.f32 0.0, %v1912
    %v1914 = vpop.f32.mrf.mxu0
    %1915 = vdwg.mxu0
    %1916 = vrot.lane.b32.xlu0 %v1441, 112
    %v1917 = vpop.permute.xlu0 %1916
    %1918 = vrot.lane.b32.xlu0 %v1443, 112
    %v1919 = vpop.permute.xlu0 %1918
    %1920 = vrot.lane.b32.xlu0 %v1442, 112
    %v1921 = vpop.permute.xlu0 %1920
    %1922 = vrot.lane.b32.xlu0 %v1441, 80
    %v1923 = vpop.permute.xlu0 %1922
    %1924 = vrot.lane.b32.xlu0 %v1443, 80
    %v1925 = vpop.permute.xlu0 %1924
    %1926 = vrot.lane.b32.xlu0 %v1442, 80
    %v1927 = vpop.permute.xlu0 %1926
    %v1928 = vsel %vm444, %v1917, 0
    %v1930 = vsel %vm444, %v1919, 0
    %v1932 = vsel %vm444, %v1921, 0
    %v1934 = vsel %vm444, %v1923, 0
    %v1936 = vsel %vm444, %v1925, 0
    %v1938 = vsel %vm444, %v1927, 0
    %1940 = vmatprep.subr.mxu0 0.0
    %1941 = vmatpush1.xpose.msra.mxu0 0.0
    %1942 = vmatprep.subr.mxu0 0.0
    %1943 = vmatpush1.xpose.msra.mxu0 0.0
    %1944 = vmatprep.subr.mxu0 0.0
    %1945 = vmatpush1.xpose.msra.mxu0 0.0
    %1946 = vmatprep.subr.mxu0 0.0
    %1947 = vmatpush1.xpose.msra.mxu0 0.0
    %1948 = vmatprep.subr.mxu0 0.0
    %1949 = vmatpush1.xpose.msra.mxu0 0.0
    %1950 = vmatprep.subr.mxu0 0.0
    %1951 = vmatpush1.xpose.msra.mxu0 0.0
    %1952 = vmatprep.subr.mxu0 0.0
    %1953 = vmatpush1.xpose.msra.mxu0 0.0
    %1954 = vmatprep.subr.mxu0 0.0
    %1955 = vmatpush1.xpose.msra.mxu0 0.0
    %1956 = vmatprep.subr.mxu0 0.0
    %1957 = vmatpush1.xpose.msra.mxu0 0.0
    %1958 = vmatprep.subr.mxu0 0.0
    %1959 = vmatpush1.xpose.msra.mxu0 0.0
    %1960 = vmatprep.subr.mxu0 0.0
    %1961 = vmatpush1.xpose.msra.mxu0 0.0
    %1962 = vmatprep.subr.mxu0 0.0
    %1963 = vmatpush1.xpose.msra.mxu0 0.0
    %1964 = vmatprep.subr.mxu0 0.0
    %1965 = vmatpush1.xpose.msra.mxu0 0.0
    %1966 = vmatprep.subr.mxu0 0.0
    %1967 = vmatpush1.xpose.msra.mxu0 %v1938
    %1968 = vmatprep.subr.mxu0 0.0
    %1969 = vmatpush1.xpose.msra.mxu0 %v1936
    %1970 = vmatprep.subr.mxu0 0.0
    %1971 = vmatpush1.xpose.msra.mxu0 %v1934
    %1972 = vmatprep.subr.mxu0 0.0
    %1973 = vmatpush2.xpose.msra.mxu0 0.0
    %1974 = vmatprep.subr.mxu0 0.0
    %1975 = vmatpush2.xpose.msra.mxu0 0.0
    %1976 = vmatprep.subr.mxu0 0.0
    %1977 = vmatpush2.xpose.msra.mxu0 0.0
    %1978 = vmatprep.subr.mxu0 0.0
    %1979 = vmatpush2.xpose.msra.mxu0 0.0
    %1980 = vmatprep.subr.mxu0 0.0
    %1981 = vmatpush2.xpose.msra.mxu0 0.0
    %1982 = vmatprep.subr.mxu0 0.0
    %1983 = vmatpush2.xpose.msra.mxu0 0.0
    %1984 = vmatprep.subr.mxu0 0.0
    %1985 = vmatpush2.xpose.msra.mxu0 0.0
    %1986 = vmatprep.subr.mxu0 0.0
    %1987 = vmatpush2.xpose.msra.mxu0 0.0
    %1988 = vmatprep.subr.mxu0 0.0
    %1989 = vmatpush2.xpose.msra.mxu0 0.0
    %1990 = vmatprep.subr.mxu0 0.0
    %1991 = vmatpush2.xpose.msra.mxu0 0.0
    %1992 = vmatprep.subr.mxu0 0.0
    %1993 = vmatpush2.xpose.msra.mxu0 0.0
    %1994 = vmatprep.subr.mxu0 0.0
    %1995 = vmatpush2.xpose.msra.mxu0 0.0
    %1996 = vmatprep.subr.mxu0 0.0
    %1997 = vmatpush2.xpose.msra.mxu0 0.0
    %1998 = vmatprep.subr.mxu0 0.0
    %1999 = vmatpush2.xpose.msra.mxu0 0.0
    %2000 = vmatprep.subr.mxu0 0.0
    %2001 = vmatpush2.xpose.msra.mxu0 0.0
    %2002 = vmatprep.subr.mxu0 0.0
    %2003 = vmatpush2.xpose.msra.mxu0 0.0
    %2004 = vmatprep.mubr.f32.mxu0 0.0
    %2005 = vmatmul.mubr.f32.gmra.mxu0 %v1928
    %v2006 = vpop.f32.mrf.mxu0
    %v2007 = vadd.f32 0.0, %v2006
    %v2008 = vpop.f32.mrf.mxu0
    %2009 = vmatprep.mubr.f32.mxu0 0.0
    %2010 = vmatmul.mubr.f32.gmra.mxu0 %v1930
    %v2011 = vpop.f32.mrf.mxu0
    %v2012 = vadd.f32 0.0, %v2011
    %v2013 = vpop.f32.mrf.mxu0
    %2014 = vmatprep.mubr.f32.mxu0 0.0
    %2015 = vmatmul.mubr.f32.gmra.mxu0 %v1932
    %v2016 = vpop.f32.mrf.mxu0
    %v2017 = vadd.f32 0.0, %v2016
    %v2018 = vpop.f32.mrf.mxu0
    %2019 = vdwg.mxu0
    %v2020 = vmul.f32 %v2007, 0.35355338
    %v2021 = vmul.f32 %v2012, 0.35355338
    %v2022 = vmul.f32 %v2017, 0.35355338
    %v2023 = vsel %vm540, %v2020, -inf
    %2024 = vmax.xlane.f32.xlu0 %v2023
    %v2025 = vpop.xlane.xlu0 %2024
    %v2026 = vsel %vm540, %v2021, -inf
    %2027 = vmax.xlane.f32.xlu0 %v2026
    %v2028 = vpop.xlane.xlu0 %2027
    %v2029 = vsel %vm547, %v2022, -inf
    %2030 = vmax.xlane.f32.xlu0 %v2029
    %v2031 = vpop.xlane.xlu0 %2030
    %v2032 = vsub.f32 %v2020, %v2025
    %v2033 = vsub.f32 %v2021, %v2028
    %v2034 = vsub.f32 %v2022, %v2031
    %v2035 = vmul.f32 %v2032, 1.442695
    %v2036 = vpow.pop %v2035
    %v2037 = vmul.f32 %v2033, 1.442695
    %v2038 = vpow.pop %v2037
    %v2039 = vmul.f32 %v2034, 1.442695
    %v2040 = vpow.pop %v2039
    %v2041 = vsel %vm540, %v2036, 0.0
    %2042 = vadd.xlane.f32.xlu0 %v2041
    %v2043 = vpop.xlane.xlu0 %2042
    %v2044 = vsel %vm540, %v2038, 0.0
    %2045 = vadd.xlane.f32.xlu0 %v2044
    %v2046 = vpop.xlane.xlu0 %2045
    %v2047 = vsel %vm547, %v2040, 0.0
    %2048 = vadd.xlane.f32.xlu0 %v2047
    %v2049 = vpop.xlane.xlu0 %2048
    %v2050 = vrcp.pop %v2043
    %v2051 = vrcp.pop %v2046
    %v2052 = vrcp.pop %v2049
    %v2053 = vmul.f32 %v2036, %v2050
    %v2054 = vmul.f32 %v2038, %v2051
    %v2055 = vmul.f32 %v2040, %v2052
    %2056 = vrot.lane.b32.xlu0 %v1441, 48
    %v2057 = vpop.permute.xlu0 %2056
    %2058 = vrot.lane.b32.xlu0 %v1443, 48
    %v2059 = vpop.permute.xlu0 %2058
    %2060 = vrot.lane.b32.xlu0 %v1442, 48
    %v2061 = vpop.permute.xlu0 %2060
    %v2065 = vsel %vm540, %v2053, 0
    %v2068 = vsel %vm540, %v2054, 0
    %v2071 = vsel %vm540, %v2055, 0
    %v2073 = vsel %vm202, %v2061, 0
    %2075 = vmatprep.subr.mxu0 0.0
    %2076 = vmatpush1.msra.mxu0 0.0
    %2077 = vmatprep.subr.mxu0 0.0
    %2078 = vmatpush1.msra.mxu0 0.0
    %2079 = vmatprep.subr.mxu0 0.0
    %2080 = vmatpush1.msra.mxu0 0.0
    %2081 = vmatprep.subr.mxu0 0.0
    %2082 = vmatpush1.msra.mxu0 0.0
    %2083 = vmatprep.subr.mxu0 0.0
    %2084 = vmatpush1.msra.mxu0 0.0
    %2085 = vmatprep.subr.mxu0 0.0
    %2086 = vmatpush1.msra.mxu0 0.0
    %2087 = vmatprep.subr.mxu0 0.0
    %2088 = vmatpush1.msra.mxu0 0.0
    %2089 = vmatprep.subr.mxu0 0.0
    %2090 = vmatpush1.msra.mxu0 0.0
    %2091 = vmatprep.subr.mxu0 0.0
    %2092 = vmatpush1.msra.mxu0 0.0
    %2093 = vmatprep.subr.mxu0 0.0
    %2094 = vmatpush1.msra.mxu0 0.0
    %2095 = vmatprep.subr.mxu0 0.0
    %2096 = vmatpush1.msra.mxu0 0.0
    %2097 = vmatprep.subr.mxu0 0.0
    %2098 = vmatpush1.msra.mxu0 0.0
    %2099 = vmatprep.subr.mxu0 0.0
    %2100 = vmatpush1.msra.mxu0 0.0
    %2101 = vmatprep.subr.mxu0 0.0
    %2102 = vmatpush1.msra.mxu0 %v2073
    %2103 = vmatprep.subr.mxu0 0.0
    %2104 = vmatpush1.msra.mxu0 %v2059
    %2105 = vmatprep.subr.mxu0 0.0
    %2106 = vmatpush1.msra.mxu0 %v2057
    %2107 = vmatprep.subr.mxu0 0.0
    %2108 = vmatpush2.msra.mxu0 0.0
    %2109 = vmatprep.subr.mxu0 0.0
    %2110 = vmatpush2.msra.mxu0 0.0
    %2111 = vmatprep.subr.mxu0 0.0
    %2112 = vmatpush2.msra.mxu0 0.0
    %2113 = vmatprep.subr.mxu0 0.0
    %2114 = vmatpush2.msra.mxu0 0.0
    %2115 = vmatprep.subr.mxu0 0.0
    %2116 = vmatpush2.msra.mxu0 0.0
    %2117 = vmatprep.subr.mxu0 0.0
    %2118 = vmatpush2.msra.mxu0 0.0
    %2119 = vmatprep.subr.mxu0 0.0
    %2120 = vmatpush2.msra.mxu0 0.0
    %2121 = vmatprep.subr.mxu0 0.0
    %2122 = vmatpush2.msra.mxu0 0.0
    %2123 = vmatprep.subr.mxu0 0.0
    %2124 = vmatpush2.msra.mxu0 0.0
    %2125 = vmatprep.subr.mxu0 0.0
    %2126 = vmatpush2.msra.mxu0 0.0
    %2127 = vmatprep.subr.mxu0 0.0
    %2128 = vmatpush2.msra.mxu0 0.0
    %2129 = vmatprep.subr.mxu0 0.0
    %2130 = vmatpush2.msra.mxu0 0.0
    %2131 = vmatprep.subr.mxu0 0.0
    %2132 = vmatpush2.msra.mxu0 0.0
    %2133 = vmatprep.subr.mxu0 0.0
    %2134 = vmatpush2.msra.mxu0 0.0
    %2135 = vmatprep.subr.mxu0 0.0
    %2136 = vmatpush2.msra.mxu0 0.0
    %2137 = vmatprep.subr.mxu0 0.0
    %2138 = vmatpush2.msra.mxu0 0.0
    %2139 = vmatprep.mubr.f32.mxu0 0.0
    %2140 = vmatmul.mubr.f32.gmra.mxu0 %v2065
    %v2141 = vpop.f32.mrf.mxu0
    %v2142 = vadd.f32 0.0, %v2141
    %v2143 = vpop.f32.mrf.mxu0
    %2144 = vmatprep.mubr.f32.mxu0 0.0
    %2145 = vmatmul.mubr.f32.gmra.mxu0 %v2068
    %v2146 = vpop.f32.mrf.mxu0
    %v2147 = vadd.f32 0.0, %v2146
    %v2148 = vpop.f32.mrf.mxu0
    %2149 = vmatprep.mubr.f32.mxu0 0.0
    %2150 = vmatmul.mubr.f32.gmra.mxu0 %v2071
    %v2151 = vpop.f32.mrf.mxu0
    %v2152 = vadd.f32 0.0, %v2151
    %v2153 = vpop.f32.mrf.mxu0
    %2154 = vdwg.mxu0
    %2155 = vrot.lane.b32.xlu0 %v1441, 104
    %v2156 = vpop.permute.xlu0 %2155
    %2157 = vrot.lane.b32.xlu0 %v1443, 104
    %v2158 = vpop.permute.xlu0 %2157
    %2159 = vrot.lane.b32.xlu0 %v1442, 104
    %v2160 = vpop.permute.xlu0 %2159
    %2161 = vrot.lane.b32.xlu0 %v1441, 72
    %v2162 = vpop.permute.xlu0 %2161
    %2163 = vrot.lane.b32.xlu0 %v1443, 72
    %v2164 = vpop.permute.xlu0 %2163
    %2165 = vrot.lane.b32.xlu0 %v1442, 72
    %v2166 = vpop.permute.xlu0 %2165
    %v2167 = vsel %vm444, %v2156, 0
    %v2169 = vsel %vm444, %v2158, 0
    %v2171 = vsel %vm444, %v2160, 0
    %v2173 = vsel %vm444, %v2162, 0
    %v2175 = vsel %vm444, %v2164, 0
    %v2177 = vsel %vm444, %v2166, 0
    %2179 = vmatprep.subr.mxu0 0.0
    %2180 = vmatpush1.xpose.msra.mxu0 0.0
    %2181 = vmatprep.subr.mxu0 0.0
    %2182 = vmatpush1.xpose.msra.mxu0 0.0
    %2183 = vmatprep.subr.mxu0 0.0
    %2184 = vmatpush1.xpose.msra.mxu0 0.0
    %2185 = vmatprep.subr.mxu0 0.0
    %2186 = vmatpush1.xpose.msra.mxu0 0.0
    %2187 = vmatprep.subr.mxu0 0.0
    %2188 = vmatpush1.xpose.msra.mxu0 0.0
    %2189 = vmatprep.subr.mxu0 0.0
    %2190 = vmatpush1.xpose.msra.mxu0 0.0
    %2191 = vmatprep.subr.mxu0 0.0
    %2192 = vmatpush1.xpose.msra.mxu0 0.0
    %2193 = vmatprep.subr.mxu0 0.0
    %2194 = vmatpush1.xpose.msra.mxu0 0.0
    %2195 = vmatprep.subr.mxu0 0.0
    %2196 = vmatpush1.xpose.msra.mxu0 0.0
    %2197 = vmatprep.subr.mxu0 0.0
    %2198 = vmatpush1.xpose.msra.mxu0 0.0
    %2199 = vmatprep.subr.mxu0 0.0
    %2200 = vmatpush1.xpose.msra.mxu0 0.0
    %2201 = vmatprep.subr.mxu0 0.0
    %2202 = vmatpush1.xpose.msra.mxu0 0.0
    %2203 = vmatprep.subr.mxu0 0.0
    %2204 = vmatpush1.xpose.msra.mxu0 0.0
    %2205 = vmatprep.subr.mxu0 0.0
    %2206 = vmatpush1.xpose.msra.mxu0 %v2177
    %2207 = vmatprep.subr.mxu0 0.0
    %2208 = vmatpush1.xpose.msra.mxu0 %v2175
    %2209 = vmatprep.subr.mxu0 0.0
    %2210 = vmatpush1.xpose.msra.mxu0 %v2173
    %2211 = vmatprep.subr.mxu0 0.0
    %2212 = vmatpush2.xpose.msra.mxu0 0.0
    %2213 = vmatprep.subr.mxu0 0.0
    %2214 = vmatpush2.xpose.msra.mxu0 0.0
    %2215 = vmatprep.subr.mxu0 0.0
    %2216 = vmatpush2.xpose.msra.mxu0 0.0
    %2217 = vmatprep.subr.mxu0 0.0
    %2218 = vmatpush2.xpose.msra.mxu0 0.0
    %2219 = vmatprep.subr.mxu0 0.0
    %2220 = vmatpush2.xpose.msra.mxu0 0.0
    %2221 = vmatprep.subr.mxu0 0.0
    %2222 = vmatpush2.xpose.msra.mxu0 0.0
    %2223 = vmatprep.subr.mxu0 0.0
    %2224 = vmatpush2.xpose.msra.mxu0 0.0
    %2225 = vmatprep.subr.mxu0 0.0
    %2226 = vmatpush2.xpose.msra.mxu0 0.0
    %2227 = vmatprep.subr.mxu0 0.0
    %2228 = vmatpush2.xpose.msra.mxu0 0.0
    %2229 = vmatprep.subr.mxu0 0.0
    %2230 = vmatpush2.xpose.msra.mxu0 0.0
    %2231 = vmatprep.subr.mxu0 0.0
    %2232 = vmatpush2.xpose.msra.mxu0 0.0
    %2233 = vmatprep.subr.mxu0 0.0
    %2234 = vmatpush2.xpose.msra.mxu0 0.0
    %2235 = vmatprep.subr.mxu0 0.0
    %2236 = vmatpush2.xpose.msra.mxu0 0.0
    %2237 = vmatprep.subr.mxu0 0.0
    %2238 = vmatpush2.xpose.msra.mxu0 0.0
    %2239 = vmatprep.subr.mxu0 0.0
    %2240 = vmatpush2.xpose.msra.mxu0 0.0
    %2241 = vmatprep.subr.mxu0 0.0
    %2242 = vmatpush2.xpose.msra.mxu0 0.0
    %2243 = vmatprep.mubr.f32.mxu0 0.0
    %2244 = vmatmul.mubr.f32.gmra.mxu0 %v2167
    %v2245 = vpop.f32.mrf.mxu0
    %v2246 = vadd.f32 0.0, %v2245
    %v2247 = vpop.f32.mrf.mxu0
    %2248 = vmatprep.mubr.f32.mxu0 0.0
    %2249 = vmatmul.mubr.f32.gmra.mxu0 %v2169
    %v2250 = vpop.f32.mrf.mxu0
    %v2251 = vadd.f32 0.0, %v2250
    %v2252 = vpop.f32.mrf.mxu0
    %2253 = vmatprep.mubr.f32.mxu0 0.0
    %2254 = vmatmul.mubr.f32.gmra.mxu0 %v2171
    %v2255 = vpop.f32.mrf.mxu0
    %v2256 = vadd.f32 0.0, %v2255
    %v2257 = vpop.f32.mrf.mxu0
    %2258 = vdwg.mxu0
    %v2259 = vmul.f32 %v2246, 0.35355338
    %v2260 = vmul.f32 %v2251, 0.35355338
    %v2261 = vmul.f32 %v2256, 0.35355338
    %v2262 = vsel %vm540, %v2259, -inf
    %2263 = vmax.xlane.f32.xlu0 %v2262
    %v2264 = vpop.xlane.xlu0 %2263
    %v2265 = vsel %vm540, %v2260, -inf
    %2266 = vmax.xlane.f32.xlu0 %v2265
    %v2267 = vpop.xlane.xlu0 %2266
    %v2268 = vsel %vm547, %v2261, -inf
    %2269 = vmax.xlane.f32.xlu0 %v2268
    %v2270 = vpop.xlane.xlu0 %2269
    %v2271 = vsub.f32 %v2259, %v2264
    %v2272 = vsub.f32 %v2260, %v2267
    %v2273 = vsub.f32 %v2261, %v2270
    %v2274 = vmul.f32 %v2271, 1.442695
    %v2275 = vpow.pop %v2274
    %v2276 = vmul.f32 %v2272, 1.442695
    %v2277 = vpow.pop %v2276
    %v2278 = vmul.f32 %v2273, 1.442695
    %v2279 = vpow.pop %v2278
    %v2280 = vsel %vm540, %v2275, 0.0
    %2281 = vadd.xlane.f32.xlu0 %v2280
    %v2282 = vpop.xlane.xlu0 %2281
    %v2283 = vsel %vm540, %v2277, 0.0
    %2284 = vadd.xlane.f32.xlu0 %v2283
    %v2285 = vpop.xlane.xlu0 %2284
    %v2286 = vsel %vm547, %v2279, 0.0
    %2287 = vadd.xlane.f32.xlu0 %v2286
    %v2288 = vpop.xlane.xlu0 %2287
    %v2289 = vrcp.pop %v2282
    %v2290 = vrcp.pop %v2285
    %v2291 = vrcp.pop %v2288
    %v2292 = vmul.f32 %v2275, %v2289
    %v2293 = vmul.f32 %v2277, %v2290
    %v2294 = vmul.f32 %v2279, %v2291
    %2295 = vrot.lane.b32.xlu0 %v1441, 40
    %v2296 = vpop.permute.xlu0 %2295
    %2297 = vrot.lane.b32.xlu0 %v1443, 40
    %v2298 = vpop.permute.xlu0 %2297
    %2299 = vrot.lane.b32.xlu0 %v1442, 40
    %v2300 = vpop.permute.xlu0 %2299
    %v2304 = vsel %vm540, %v2292, 0
    %v2307 = vsel %vm540, %v2293, 0
    %v2310 = vsel %vm540, %v2294, 0
    %v2312 = vsel %vm202, %v2300, 0
    %2314 = vmatprep.subr.mxu0 0.0
    %2315 = vmatpush1.msra.mxu0 0.0
    %2316 = vmatprep.subr.mxu0 0.0
    %2317 = vmatpush1.msra.mxu0 0.0
    %2318 = vmatprep.subr.mxu0 0.0
    %2319 = vmatpush1.msra.mxu0 0.0
    %2320 = vmatprep.subr.mxu0 0.0
    %2321 = vmatpush1.msra.mxu0 0.0
    %2322 = vmatprep.subr.mxu0 0.0
    %2323 = vmatpush1.msra.mxu0 0.0
    %2324 = vmatprep.subr.mxu0 0.0
    %2325 = vmatpush1.msra.mxu0 0.0
    %2326 = vmatprep.subr.mxu0 0.0
    %2327 = vmatpush1.msra.mxu0 0.0
    %2328 = vmatprep.subr.mxu0 0.0
    %2329 = vmatpush1.msra.mxu0 0.0
    %2330 = vmatprep.subr.mxu0 0.0
    %2331 = vmatpush1.msra.mxu0 0.0
    %2332 = vmatprep.subr.mxu0 0.0
    %2333 = vmatpush1.msra.mxu0 0.0
    %2334 = vmatprep.subr.mxu0 0.0
    %2335 = vmatpush1.msra.mxu0 0.0
    %2336 = vmatprep.subr.mxu0 0.0
    %2337 = vmatpush1.msra.mxu0 0.0
    %2338 = vmatprep.subr.mxu0 0.0
    %2339 = vmatpush1.msra.mxu0 0.0
    %2340 = vmatprep.subr.mxu0 0.0
    %2341 = vmatpush1.msra.mxu0 %v2312
    %2342 = vmatprep.subr.mxu0 0.0
    %2343 = vmatpush1.msra.mxu0 %v2298
    %2344 = vmatprep.subr.mxu0 0.0
    %2345 = vmatpush1.msra.mxu0 %v2296
    %2346 = vmatprep.subr.mxu0 0.0
    %2347 = vmatpush2.msra.mxu0 0.0
    %2348 = vmatprep.subr.mxu0 0.0
    %2349 = vmatpush2.msra.mxu0 0.0
    %2350 = vmatprep.subr.mxu0 0.0
    %2351 = vmatpush2.msra.mxu0 0.0
    %2352 = vmatprep.subr.mxu0 0.0
    %2353 = vmatpush2.msra.mxu0 0.0
    %2354 = vmatprep.subr.mxu0 0.0
    %2355 = vmatpush2.msra.mxu0 0.0
    %2356 = vmatprep.subr.mxu0 0.0
    %2357 = vmatpush2.msra.mxu0 0.0
    %2358 = vmatprep.subr.mxu0 0.0
    %2359 = vmatpush2.msra.mxu0 0.0
    %2360 = vmatprep.subr.mxu0 0.0
    %2361 = vmatpush2.msra.mxu0 0.0
    %2362 = vmatprep.subr.mxu0 0.0
    %2363 = vmatpush2.msra.mxu0 0.0
    %2364 = vmatprep.subr.mxu0 0.0
    %2365 = vmatpush2.msra.mxu0 0.0
    %2366 = vmatprep.subr.mxu0 0.0
    %2367 = vmatpush2.msra.mxu0 0.0
    %2368 = vmatprep.subr.mxu0 0.0
    %2369 = vmatpush2.msra.mxu0 0.0
    %2370 = vmatprep.subr.mxu0 0.0
    %2371 = vmatpush2.msra.mxu0 0.0
    %2372 = vmatprep.subr.mxu0 0.0
    %2373 = vmatpush2.msra.mxu0 0.0
    %2374 = vmatprep.subr.mxu0 0.0
    %2375 = vmatpush2.msra.mxu0 0.0
    %2376 = vmatprep.subr.mxu0 0.0
    %2377 = vmatpush2.msra.mxu0 0.0
    %2378 = vmatprep.mubr.f32.mxu0 0.0
    %2379 = vmatmul.mubr.f32.gmra.mxu0 %v2304
    %v2380 = vpop.f32.mrf.mxu0
    %v2381 = vadd.f32 0.0, %v2380
    %v2382 = vpop.f32.mrf.mxu0
    %2383 = vmatprep.mubr.f32.mxu0 0.0
    %2384 = vmatmul.mubr.f32.gmra.mxu0 %v2307
    %v2385 = vpop.f32.mrf.mxu0
    %v2386 = vadd.f32 0.0, %v2385
    %v2387 = vpop.f32.mrf.mxu0
    %2388 = vmatprep.mubr.f32.mxu0 0.0
    %2389 = vmatmul.mubr.f32.gmra.mxu0 %v2310
    %v2390 = vpop.f32.mrf.mxu0
    %v2391 = vadd.f32 0.0, %v2390
    %v2392 = vpop.f32.mrf.mxu0
    %2393 = vdwg.mxu0
    %2397 = vrot.lane.b32.xlu0 %v1903, 8
    %v2398 = vpop.permute.xlu0 %2397
    %2399 = vrot.lane.b32.xlu0 %v1908, 8
    %v2400 = vpop.permute.xlu0 %2399
    %2401 = vrot.lane.b32.xlu0 %v1913, 8
    %v2402 = vpop.permute.xlu0 %2401
    %2409 = vrot.lane.b32.xlu0 %v2142, 16
    %v2410 = vpop.permute.xlu0 %2409
    %2411 = vrot.lane.b32.xlu0 %v2147, 16
    %v2412 = vpop.permute.xlu0 %2411
    %2413 = vrot.lane.b32.xlu0 %v2152, 16
    %v2414 = vpop.permute.xlu0 %2413
    %2421 = vrot.lane.b32.xlu0 %v2381, 24
    %v2422 = vpop.permute.xlu0 %2421
    %2423 = vrot.lane.b32.xlu0 %v2386, 24
    %v2424 = vpop.permute.xlu0 %2423
    %2425 = vrot.lane.b32.xlu0 %v2391, 24
    %v2426 = vpop.permute.xlu0 %2425
    %v2430 = vsel %vm444, %v1664, %v2398
    %v2431 = vsel %vm444, %v1669, %v2400
    %v2432 = vsel %vm444, %v1674, %v2402
    %v2433 = vsel %vm82, %v2430, %v2410
    %v2434 = vsel %vm82, %v2431, %v2412
    %v2435 = vsel %vm82, %v2432, %v2414
    %v2436 = vsel %vm1433, %v2433, %v2422
    %v2437 = vsel %vm1433, %v2434, %v2424
    %v2438 = vsel %vm1433, %v2435, %v2426
    %v2442 = vrot.slane %v2436, 7
    %v2443 = vrot.slane %v2437, 7
    %v2444 = vsel %vm202, %v2442, %v2443
    %v2445 = vrot.slane %v2438, 7
    %v2446 = vsel %vm202, %v2443, %v2445
    %v2448 = vsel %vm202, %v1436, %v2442
    %v2449 = vld [vmem:[%s9] sm:$0xff]
    %v2450 = vld [vmem:[%s9 + $0x8] sm:$0xff]
    %v2451 = vld [vmem:[%s9 + $0x10] sm:$0xff]
    %v2452 = vld [vmem:[%s9 + $0x18] sm:$0xff]
    %v2453 = vld [vmem:[%s10] sm:$0x1]
    %v2455 = vlaneseq
    %v2456 = vshrl.u32 %v2455, 7
    %v2457 = vsub.s32 0, %v2456
    %v2458 = vrot.slane %v2453, %v2457
    %v2461 = vsel %vm229, %v1434, 0
    %v2464 = vsel %vm229, %v1435, 0
    %v2467 = vsel %vm229, %v2448, 0
    %v2469 = vsel %vm229, %v2444, 0
    %v2471 = vsel %vm229, %v2446, 0
    %2473 = vmatprep.subr.mxu0 0.0
    %2474 = vmatpush1.msra.mxu0 0.0
    %2475 = vmatprep.subr.mxu0 0.0
    %2476 = vmatpush1.msra.mxu0 0.0
    %2477 = vmatprep.subr.mxu0 0.0
    %2478 = vmatpush1.msra.mxu0 0.0
    %2479 = vmatprep.subr.mxu0 0.0
    %2480 = vmatpush1.msra.mxu0 0.0
    %2481 = vmatprep.subr.mxu0 0.0
    %2482 = vmatpush1.msra.mxu0 0.0
    %2483 = vmatprep.subr.mxu0 0.0
    %2484 = vmatpush1.msra.mxu0 0.0
    %2485 = vmatprep.subr.mxu0 0.0
    %2486 = vmatpush1.msra.mxu0 0.0
    %2487 = vmatprep.subr.mxu0 0.0
    %2488 = vmatpush1.msra.mxu0 0.0
    %2489 = vmatprep.subr.mxu0 0.0
    %2490 = vmatpush1.msra.mxu0 0.0
    %2491 = vmatprep.subr.mxu0 0.0
    %2492 = vmatpush1.msra.mxu0 0.0
    %2493 = vmatprep.subr.mxu0 0.0
    %2494 = vmatpush1.msra.mxu0 0.0
    %2495 = vmatprep.subr.mxu0 0.0
    %2496 = vmatpush1.msra.mxu0 0.0
    %2497 = vmatprep.subr.mxu0 0.0
    %2498 = vmatpush1.msra.mxu0 %v2452
    %2499 = vmatprep.subr.mxu0 0.0
    %2500 = vmatpush1.msra.mxu0 %v2451
    %2501 = vmatprep.subr.mxu0 0.0
    %2502 = vmatpush1.msra.mxu0 %v2450
    %2503 = vmatprep.subr.mxu0 0.0
    %2504 = vmatpush1.msra.mxu0 %v2449
    %2505 = vmatprep.subr.mxu0 0.0
    %2506 = vmatpush2.msra.mxu0 0.0
    %2507 = vmatprep.subr.mxu0 0.0
    %2508 = vmatpush2.msra.mxu0 0.0
    %2509 = vmatprep.subr.mxu0 0.0
    %2510 = vmatpush2.msra.mxu0 0.0
    %2511 = vmatprep.subr.mxu0 0.0
    %2512 = vmatpush2.msra.mxu0 0.0
    %2513 = vmatprep.subr.mxu0 0.0
    %2514 = vmatpush2.msra.mxu0 0.0
    %2515 = vmatprep.subr.mxu0 0.0
    %2516 = vmatpush2.msra.mxu0 0.0
    %2517 = vmatprep.subr.mxu0 0.0
    %2518 = vmatpush2.msra.mxu0 0.0
    %2519 = vmatprep.subr.mxu0 0.0
    %2520 = vmatpush2.msra.mxu0 0.0
    %2521 = vmatprep.subr.mxu0 0.0
    %2522 = vmatpush2.msra.mxu0 0.0
    %2523 = vmatprep.subr.mxu0 0.0
    %2524 = vmatpush2.msra.mxu0 0.0
    %2525 = vmatprep.subr.mxu0 0.0
    %2526 = vmatpush2.msra.mxu0 0.0
    %2527 = vmatprep.subr.mxu0 0.0
    %2528 = vmatpush2.msra.mxu0 0.0
    %2529 = vmatprep.subr.mxu0 0.0
    %2530 = vmatpush2.msra.mxu0 0.0
    %2531 = vmatprep.subr.mxu0 0.0
    %2532 = vmatpush2.msra.mxu0 0.0
    %2533 = vmatprep.subr.mxu0 0.0
    %2534 = vmatpush2.msra.mxu0 0.0
    %2535 = vmatprep.subr.mxu0 0.0
    %2536 = vmatpush2.msra.mxu0 0.0
    %2537 = vmatprep.mubr.f32.mxu0 0.0
    %2538 = vmatmul.mubr.f32.gmra.mxu0 %v2461
    %v2539 = vpop.f32.mrf.mxu0
    %v2540 = vadd.f32 %v2458, %v2539
    %v2541 = vpop.f32.mrf.mxu0
    %2542 = vmatprep.mubr.f32.mxu0 0.0
    %2543 = vmatmul.mubr.f32.gmra.mxu0 %v2464
    %v2544 = vpop.f32.mrf.mxu0
    %v2545 = vadd.f32 %v2458, %v2544
    %v2546 = vpop.f32.mrf.mxu0
    %2547 = vmatprep.mubr.f32.mxu0 0.0
    %2548 = vmatmul.mubr.f32.gmra.mxu0 %v2467
    %v2549 = vpop.f32.mrf.mxu0
    %v2550 = vadd.f32 %v2458, %v2549
    %v2551 = vpop.f32.mrf.mxu0
    %2552 = vmatprep.mubr.f32.mxu0 0.0
    %2553 = vmatmul.mubr.f32.gmra.mxu0 %v2469
    %v2554 = vpop.f32.mrf.mxu0
    %v2555 = vadd.f32 %v2458, %v2554
    %v2556 = vpop.f32.mrf.mxu0
    %2557 = vmatprep.mubr.f32.mxu0 0.0
    %2558 = vmatmul.mubr.f32.gmra.mxu0 %v2471
    %v2559 = vpop.f32.mrf.mxu0
    %v2560 = vadd.f32 %v2458, %v2559
    %v2561 = vpop.f32.mrf.mxu0
    %2562 = vdwg.mxu0
    %v2563 = vadd.f32 %v224, %v2540
    %v2564 = vadd.f32 %v205, %v2545
    %v2565 = vadd.f32 %v226, %v2550
    %v2566 = vadd.f32 %v220, %v2555
    %v2567 = vadd.f32 %v219, %v2560
    %v2568 = vld [vmem:[%s11] sm:$0x1]
    %v2569 = vld [vmem:[%s12] sm:$0x1]
    %v2570 = vsel %vm229, %v2563, 0.0
    %2571 = vadd.xlane.f32.xlu0 %v2570
    %v2572 = vpop.xlane.xlu0 %2571
    %v2573 = vsel %vm229, %v2564, 0.0
    %2574 = vadd.xlane.f32.xlu0 %v2573
    %v2575 = vpop.xlane.xlu0 %2574
    %v2576 = vsel %vm229, %v2565, 0.0
    %2577 = vadd.xlane.f32.xlu0 %v2576
    %v2578 = vpop.xlane.xlu0 %2577
    %v2579 = vsel %vm229, %v2566, 0.0
    %2580 = vadd.xlane.f32.xlu0 %v2579
    %v2581 = vpop.xlane.xlu0 %2580
    %v2582 = vsel %vm242, %v2567, 0.0
    %2583 = vadd.xlane.f32.xlu0 %v2582
    %v2584 = vpop.xlane.xlu0 %2583
    %v2585 = vmul.f32 %v2572, %v246
    %v2586 = vmul.f32 %v2575, %v246
    %v2587 = vmul.f32 %v2578, %v246
    %v2588 = vmul.f32 %v2581, %v246
    %v2589 = vmul.f32 %v2584, %v246
    %v2590 = vsub.f32 %v2563, %v2585
    %v2591 = vsub.f32 %v2564, %v2586
    %v2592 = vsub.f32 %v2565, %v2587
    %v2593 = vsub.f32 %v2566, %v2588
    %v2594 = vsub.f32 %v2567, %v2589
    %v2595 = vmul.f32 %v2590, %v2590
    %v2596 = vmul.f32 %v2591, %v2591
    %v2597 = vmul.f32 %v2592, %v2592
    %v2598 = vmul.f32 %v2593, %v2593
    %v2599 = vmul.f32 %v2594, %v2594
    %v2600 = vsel %vm229, %v2595, 0.0
    %2601 = vadd.xlane.f32.xlu0 %v2600
    %v2602 = vpop.xlane.xlu0 %2601
    %v2603 = vsel %vm229, %v2596, 0.0
    %2604 = vadd.xlane.f32.xlu0 %v2603
    %v2605 = vpop.xlane.xlu0 %2604
    %v2606 = vsel %vm229, %v2597, 0.0
    %2607 = vadd.xlane.f32.xlu0 %v2606
    %v2608 = vpop.xlane.xlu0 %2607
    %v2609 = vsel %vm229, %v2598, 0.0
    %2610 = vadd.xlane.f32.xlu0 %v2609
    %v2611 = vpop.xlane.xlu0 %2610
    %v2612 = vsel %vm242, %v2599, 0.0
    %2613 = vadd.xlane.f32.xlu0 %v2612
    %v2614 = vpop.xlane.xlu0 %2613
    %v2615 = vmul.f32 %v2602, %v246
    %v2616 = vmul.f32 %v2605, %v246
    %v2617 = vmul.f32 %v2608, %v246
    %v2618 = vmul.f32 %v2611, %v246
    %v2619 = vmul.f32 %v2614, %v246
    %v2620 = vadd.f32 %v2615, 1e-06
    %v2621 = vadd.f32 %v2616, 1e-06
    %v2622 = vadd.f32 %v2617, 1e-06
    %v2623 = vadd.f32 %v2618, 1e-06
    %v2624 = vadd.f32 %v2619, 1e-06
    %v2625 = vrsqrt.pop %v2620
    %v2626 = vrsqrt.pop %v2621
    %v2627 = vrsqrt.pop %v2622
    %v2628 = vrsqrt.pop %v2623
    %v2629 = vrsqrt.pop %v2624
    %v2630 = vmul.f32 %v2590, %v2625
    %v2631 = vmul.f32 %v2591, %v2626
    %v2632 = vmul.f32 %v2592, %v2627
    %v2633 = vmul.f32 %v2593, %v2628
    %v2634 = vmul.f32 %v2594, %v2629
    %v2636 = vlaneseq
    %v2637 = vshrl.u32 %v2636, 7
    %v2638 = vsub.s32 0, %v2637
    %v2639 = vrot.slane %v2568, %v2638
    %v2641 = vmul.f32 %v2630, %v2639
    %v2642 = vmul.f32 %v2631, %v2639
    %v2643 = vmul.f32 %v2632, %v2639
    %v2644 = vmul.f32 %v2633, %v2639
    %v2645 = vmul.f32 %v2634, %v2639
    %v2647 = vlaneseq
    %v2648 = vshrl.u32 %v2647, 7
    %v2649 = vsub.s32 0, %v2648
    %v2650 = vrot.slane %v2569, %v2649
    %v2652 = vadd.f32 %v2641, %v2650
    %v2653 = vadd.f32 %v2642, %v2650
    %v2654 = vadd.f32 %v2643, %v2650
    %v2655 = vadd.f32 %v2644, %v2650
    %v2656 = vadd.f32 %v2645, %v2650
    %v2657 = vld [vmem:[%s13] sm:$0xff]
    %v2658 = vld [vmem:[%s13 + $0x8] sm:$0xff]
    %v2659 = vld [vmem:[%s13 + $0x10] sm:$0xff]
    %v2660 = vld [vmem:[%s13 + $0x18] sm:$0xff]
    %v2661 = vld [vmem:[%s14] sm:$0x1]
    %v2663 = vlaneseq
    %v2664 = vshrl.u32 %v2663, 7
    %v2665 = vsub.s32 0, %v2664
    %v2666 = vrot.slane %v2661, %v2665
    %v2669 = vsel %vm229, %v2652, 0
    %v2672 = vsel %vm229, %v2653, 0
    %v2675 = vsel %vm229, %v2654, 0
    %v2678 = vsel %vm229, %v2655, 0
    %v2681 = vsel %vm229, %v2656, 0
    %2683 = vmatprep.subr.mxu0 0.0
    %2684 = vmatpush1.msra.mxu0 0.0
    %2685 = vmatprep.subr.mxu0 0.0
    %2686 = vmatpush1.msra.mxu0 0.0
    %2687 = vmatprep.subr.mxu0 0.0
    %2688 = vmatpush1.msra.mxu0 0.0
    %2689 = vmatprep.subr.mxu0 0.0
    %2690 = vmatpush1.msra.mxu0 0.0
    %2691 = vmatprep.subr.mxu0 0.0
    %2692 = vmatpush1.msra.mxu0 0.0
    %2693 = vmatprep.subr.mxu0 0.0
    %2694 = vmatpush1.msra.mxu0 0.0
    %2695 = vmatprep.subr.mxu0 0.0
    %2696 = vmatpush1.msra.mxu0 0.0
    %2697 = vmatprep.subr.mxu0 0.0
    %2698 = vmatpush1.msra.mxu0 0.0
    %2699 = vmatprep.subr.mxu0 0.0
    %2700 = vmatpush1.msra.mxu0 0.0
    %2701 = vmatprep.subr.mxu0 0.0
    %2702 = vmatpush1.msra.mxu0 0.0
    %2703 = vmatprep.subr.mxu0 0.0
    %2704 = vmatpush1.msra.mxu0 0.0
    %2705 = vmatprep.subr.mxu0 0.0
    %2706 = vmatpush1.msra.mxu0 0.0
    %2707 = vmatprep.subr.mxu0 0.0
    %2708 = vmatpush1.msra.mxu0 %v2660
    %2709 = vmatprep.subr.mxu0 0.0
    %2710 = vmatpush1.msra.mxu0 %v2659
    %2711 = vmatprep.subr.mxu0 0.0
    %2712 = vmatpush1.msra.mxu0 %v2658
    %2713 = vmatprep.subr.mxu0 0.0
    %2714 = vmatpush1.msra.mxu0 %v2657
    %2715 = vmatprep.subr.mxu0 0.0
    %2716 = vmatpush2.msra.mxu0 0.0
    %2717 = vmatprep.subr.mxu0 0.0
    %2718 = vmatpush2.msra.mxu0 0.0
    %2719 = vmatprep.subr.mxu0 0.0
    %2720 = vmatpush2.msra.mxu0 0.0
    %2721 = vmatprep.subr.mxu0 0.0
    %2722 = vmatpush2.msra.mxu0 0.0
    %2723 = vmatprep.subr.mxu0 0.0
    %2724 = vmatpush2.msra.mxu0 0.0
    %2725 = vmatprep.subr.mxu0 0.0
    %2726 = vmatpush2.msra.mxu0 0.0
    %2727 = vmatprep.subr.mxu0 0.0
    %2728 = vmatpush2.msra.mxu0 0.0
    %2729 = vmatprep.subr.mxu0 0.0
    %2730 = vmatpush2.msra.mxu0 0.0
    %2731 = vmatprep.subr.mxu0 0.0
    %2732 = vmatpush2.msra.mxu0 0.0
    %2733 = vmatprep.subr.mxu0 0.0
    %2734 = vmatpush2.msra.mxu0 0.0
    %2735 = vmatprep.subr.mxu0 0.0
    %2736 = vmatpush2.msra.mxu0 0.0
    %2737 = vmatprep.subr.mxu0 0.0
    %2738 = vmatpush2.msra.mxu0 0.0
    %2739 = vmatprep.subr.mxu0 0.0
    %2740 = vmatpush2.msra.mxu0 0.0
    %2741 = vmatprep.subr.mxu0 0.0
    %2742 = vmatpush2.msra.mxu0 0.0
    %2743 = vmatprep.subr.mxu0 0.0
    %2744 = vmatpush2.msra.mxu0 0.0
    %2745 = vmatprep.subr.mxu0 0.0
    %2746 = vmatpush2.msra.mxu0 0.0
    %2747 = vmatprep.mubr.f32.mxu0 0.0
    %2748 = vmatmul.mubr.f32.gmra.mxu0 %v2669
    %v2749 = vpop.f32.mrf.mxu0
    %v2750 = vadd.f32 %v2666, %v2749
    %v2751 = vpop.f32.mrf.mxu0
    %2752 = vmatprep.mubr.f32.mxu0 0.0
    %2753 = vmatmul.mubr.f32.gmra.mxu0 %v2672
    %v2754 = vpop.f32.mrf.mxu0
    %v2755 = vadd.f32 %v2666, %v2754
    %v2756 = vpop.f32.mrf.mxu0
    %2757 = vmatprep.mubr.f32.mxu0 0.0
    %2758 = vmatmul.mubr.f32.gmra.mxu0 %v2675
    %v2759 = vpop.f32.mrf.mxu0
    %v2760 = vadd.f32 %v2666, %v2759
    %v2761 = vpop.f32.mrf.mxu0
    %2762 = vmatprep.mubr.f32.mxu0 0.0
    %2763 = vmatmul.mubr.f32.gmra.mxu0 %v2678
    %v2764 = vpop.f32.mrf.mxu0
    %v2765 = vadd.f32 %v2666, %v2764
    %v2766 = vpop.f32.mrf.mxu0
    %2767 = vmatprep.mubr.f32.mxu0 0.0
    %2768 = vmatmul.mubr.f32.gmra.mxu0 %v2681
    %v2769 = vpop.f32.mrf.mxu0
    %v2770 = vadd.f32 %v2666, %v2769
    %v2771 = vpop.f32.mrf.mxu0
    %2772 = vdwg.mxu0
    %v2773 = vmul.f32 %v2750, %v2750
    %v2774 = vmul.f32 %v2755, %v2755
    %v2775 = vmul.f32 %v2760, %v2760
    %v2776 = vmul.f32 %v2765, %v2765
    %v2777 = vmul.f32 %v2770, %v2770
    %v2778 = vmul.f32 %v2750, %v2773
    %v2779 = vmul.f32 %v2755, %v2774
    %v2780 = vmul.f32 %v2760, %v2775
    %v2781 = vmul.f32 %v2765, %v2776
    %v2782 = vmul.f32 %v2770, %v2777
    %v2783 = vmul.f32 %v2778, 0.044715
    %v2784 = vmul.f32 %v2779, 0.044715
    %v2785 = vmul.f32 %v2780, 0.044715
    %v2786 = vmul.f32 %v2781, 0.044715
    %v2787 = vmul.f32 %v2782, 0.044715
    %v2788 = vadd.f32 %v2750, %v2783
    %v2789 = vadd.f32 %v2755, %v2784
    %v2790 = vadd.f32 %v2760, %v2785
    %v2791 = vadd.f32 %v2765, %v2786
    %v2792 = vadd.f32 %v2770, %v2787
    %v2793 = vmul.f32 %v2788, 0.7978846
    %v2794 = vmul.f32 %v2789, 0.7978846
    %v2795 = vmul.f32 %v2790, 0.7978846
    %v2796 = vmul.f32 %v2791, 0.7978846
    %v2797 = vmul.f32 %v2792, 0.7978846
    %v2798 = vtanh.pop %v2793
    %v2799 = vtanh.pop %v2794
    %v2800 = vtanh.pop %v2795
    %v2801 = vtanh.pop %v2796
    %v2802 = vtanh.pop %v2797
    %v2803 = vadd.f32 %v2798, 1.0
    %v2804 = vadd.f32 %v2799, 1.0
    %v2805 = vadd.f32 %v2800, 1.0
    %v2806 = vadd.f32 %v2801, 1.0
    %v2807 = vadd.f32 %v2802, 1.0
    %v2808 = vmul.f32 %v2803, 0.5
    %v2809 = vmul.f32 %v2804, 0.5
    %v2810 = vmul.f32 %v2805, 0.5
    %v2811 = vmul.f32 %v2806, 0.5
    %v2812 = vmul.f32 %v2807, 0.5
    %v2813 = vmul.f32 %v2750, %v2808
    %v2814 = vmul.f32 %v2755, %v2809
    %v2815 = vmul.f32 %v2760, %v2810
    %v2816 = vmul.f32 %v2765, %v2811
    %v2817 = vmul.f32 %v2770, %v2812
    %v2818 = vld [vmem:[%s15] sm:$0xff]
    %v2819 = vld [vmem:[%s15 + $0x8] sm:$0xff]
    %v2820 = vld [vmem:[%s15 + $0x10] sm:$0xff]
    %v2821 = vld [vmem:[%s15 + $0x18] sm:$0xff]
    %v2822 = vld [vmem:[%s15 + $0x20] sm:$0xff]
    %v2823 = vld [vmem:[%s15 + $0x28] sm:$0xff]
    %v2824 = vld [vmem:[%s15 + $0x30] sm:$0xff]
    %v2825 = vld [vmem:[%s15 + $0x38] sm:$0xff]
    %v2826 = vld [vmem:[%s15 + $0x40] sm:$0xff]
    %v2827 = vld [vmem:[%s15 + $0x48] sm:$0xff]
    %v2828 = vld [vmem:[%s15 + $0x50] sm:$0xff]
    %v2829 = vld [vmem:[%s15 + $0x58] sm:$0xff]
    %v2830 = vld [vmem:[%s15 + $0x60] sm:$0xff]
    %v2831 = vld [vmem:[%s15 + $0x68] sm:$0xff]
    %v2832 = vld [vmem:[%s15 + $0x70] sm:$0xff]
    %v2833 = vld [vmem:[%s15 + $0x78] sm:$0xff]
    %v2834 = vld [vmem:[%s16] sm:$0x1]
    %v2836 = vlaneseq
    %v2837 = vshrl.u32 %v2836, 7
    %v2838 = vsub.s32 0, %v2837
    %v2839 = vrot.slane %v2834, %v2838
    %2841 = vmatprep.subr.mxu0 0.0
    %2842 = vmatpush1.msra.mxu0 %v2833
    %2843 = vmatprep.subr.mxu0 0.0
    %2844 = vmatpush1.msra.mxu0 %v2832
    %2845 = vmatprep.subr.mxu0 0.0
    %2846 = vmatpush1.msra.mxu0 %v2831
    %2847 = vmatprep.subr.mxu0 0.0
    %2848 = vmatpush1.msra.mxu0 %v2830
    %2849 = vmatprep.subr.mxu0 0.0
    %2850 = vmatpush1.msra.mxu0 %v2829
    %2851 = vmatprep.subr.mxu0 0.0
    %2852 = vmatpush1.msra.mxu0 %v2828
    %2853 = vmatprep.subr.mxu0 0.0
    %2854 = vmatpush1.msra.mxu0 %v2827
    %2855 = vmatprep.subr.mxu0 0.0
    %2856 = vmatpush1.msra.mxu0 %v2826
    %2857 = vmatprep.subr.mxu0 0.0
    %2858 = vmatpush1.msra.mxu0 %v2825
    %2859 = vmatprep.subr.mxu0 0.0
    %2860 = vmatpush1.msra.mxu0 %v2824
    %2861 = vmatprep.subr.mxu0 0.0
    %2862 = vmatpush1.msra.mxu0 %v2823
    %2863 = vmatprep.subr.mxu0 0.0
    %2864 = vmatpush1.msra.mxu0 %v2822
    %2865 = vmatprep.subr.mxu0 0.0
    %2866 = vmatpush1.msra.mxu0 %v2821
    %2867 = vmatprep.subr.mxu0 0.0
    %2868 = vmatpush1.msra.mxu0 %v2820
    %2869 = vmatprep.subr.mxu0 0.0
    %2870 = vmatpush1.msra.mxu0 %v2819
    %2871 = vmatprep.subr.mxu0 0.0
    %2872 = vmatpush1.msra.mxu0 %v2818
    %2873 = vmatprep.subr.mxu0 0.0
    %2874 = vmatpush2.msra.mxu0 0.0
    %2875 = vmatprep.subr.mxu0 0.0
    %2876 = vmatpush2.msra.mxu0 0.0
    %2877 = vmatprep.subr.mxu0 0.0
    %2878 = vmatpush2.msra.mxu0 0.0
    %2879 = vmatprep.subr.mxu0 0.0
    %2880 = vmatpush2.msra.mxu0 0.0
    %2881 = vmatprep.subr.mxu0 0.0
    %2882 = vmatpush2.msra.mxu0 0.0
    %2883 = vmatprep.subr.mxu0 0.0
    %2884 = vmatpush2.msra.mxu0 0.0
    %2885 = vmatprep.subr.mxu0 0.0
    %2886 = vmatpush2.msra.mxu0 0.0
    %2887 = vmatprep.subr.mxu0 0.0
    %2888 = vmatpush2.msra.mxu0 0.0
    %2889 = vmatprep.subr.mxu0 0.0
    %2890 = vmatpush2.msra.mxu0 0.0
    %2891 = vmatprep.subr.mxu0 0.0
    %2892 = vmatpush2.msra.mxu0 0.0
    %2893 = vmatprep.subr.mxu0 0.0
    %2894 = vmatpush2.msra.mxu0 0.0
    %2895 = vmatprep.subr.mxu0 0.0
    %2896 = vmatpush2.msra.mxu0 0.0
    %2897 = vmatprep.subr.mxu0 0.0
    %2898 = vmatpush2.msra.mxu0 0.0
    %2899 = vmatprep.subr.mxu0 0.0
    %2900 = vmatpush2.msra.mxu0 0.0
    %2901 = vmatprep.subr.mxu0 0.0
    %2902 = vmatpush2.msra.mxu0 0.0
    %2903 = vmatprep.subr.mxu0 0.0
    %2904 = vmatpush2.msra.mxu0 0.0
    %2905 = vmatprep.mubr.f32.mxu0 0.0
    %2906 = vmatmul.mubr.f32.gmra.mxu0 %v2813
    %v2907 = vpop.f32.mrf.mxu0
    %v2908 = vadd.f32 %v2839, %v2907
    %v2909 = vpop.f32.mrf.mxu0
    %2910 = vmatprep.mubr.f32.mxu0 0.0
    %2911 = vmatmul.mubr.f32.gmra.mxu0 %v2814
    %v2912 = vpop.f32.mrf.mxu0
    %v2913 = vadd.f32 %v2839, %v2912
    %v2914 = vpop.f32.mrf.mxu0
    %2915 = vmatprep.mubr.f32.mxu0 0.0
    %2916 = vmatmul.mubr.f32.gmra.mxu0 %v2815
    %v2917 = vpop.f32.mrf.mxu0
    %v2918 = vadd.f32 %v2839, %v2917
    %v2919 = vpop.f32.mrf.mxu0
    %2920 = vmatprep.mubr.f32.mxu0 0.0
    %2921 = vmatmul.mubr.f32.gmra.mxu0 %v2816
    %v2922 = vpop.f32.mrf.mxu0
    %v2923 = vadd.f32 %v2839, %v2922
    %v2924 = vpop.f32.mrf.mxu0
    %2925 = vmatprep.mubr.f32.mxu0 0.0
    %2926 = vmatmul.mubr.f32.gmra.mxu0 %v2817
    %v2927 = vpop.f32.mrf.mxu0
    %v2928 = vadd.f32 %v2839, %v2927
    %v2929 = vpop.f32.mrf.mxu0
    %2930 = vdwg.mxu0
    %v2931 = vadd.f32 %v2563, %v2908
    %v2932 = vadd.f32 %v2564, %v2913
    %v2933 = vadd.f32 %v2565, %v2918
    %v2934 = vadd.f32 %v2566, %v2923
    %v2935 = vadd.f32 %v2567, %v2928
    %s2936 = scalar_lea.vmem %s5, 1
    %v2937 = vld [vmem:[%s2936] sm:$0x1]
    %s2938 = scalar_lea.vmem %s6, 1
    %v2939 = vld [vmem:[%s2938] sm:$0x1]
    %v2940 = vsel %vm229, %v2931, 0.0
    %2941 = vadd.xlane.f32.xlu0 %v2940
    %v2942 = vpop.xlane.xlu0 %2941
    %v2943 = vsel %vm229, %v2932, 0.0
    %2944 = vadd.xlane.f32.xlu0 %v2943
    %v2945 = vpop.xlane.xlu0 %2944
    %v2946 = vsel %vm229, %v2933, 0.0
    %2947 = vadd.xlane.f32.xlu0 %v2946
    %v2948 = vpop.xlane.xlu0 %2947
    %v2949 = vsel %vm229, %v2934, 0.0
    %2950 = vadd.xlane.f32.xlu0 %v2949
    %v2951 = vpop.xlane.xlu0 %2950
    %v2952 = vsel %vm242, %v2935, 0.0
    %2953 = vadd.xlane.f32.xlu0 %v2952
    %v2954 = vpop.xlane.xlu0 %2953
    %v2955 = vmul.f32 %v2942, %v246
    %v2956 = vmul.f32 %v2945, %v246
    %v2957 = vmul.f32 %v2948, %v246
    %v2958 = vmul.f32 %v2951, %v246
    %v2959 = vmul.f32 %v2954, %v246
    %v2960 = vsub.f32 %v2931, %v2955
    %v2961 = vsub.f32 %v2932, %v2956
    %v2962 = vsub.f32 %v2933, %v2957
    %v2963 = vsub.f32 %v2934, %v2958
    %v2964 = vsub.f32 %v2935, %v2959
    %v2965 = vmul.f32 %v2960, %v2960
    %v2966 = vmul.f32 %v2961, %v2961
    %v2967 = vmul.f32 %v2962, %v2962
    %v2968 = vmul.f32 %v2963, %v2963
    %v2969 = vmul.f32 %v2964, %v2964
    %v2970 = vsel %vm229, %v2965, 0.0
    %2971 = vadd.xlane.f32.xlu0 %v2970
    %v2972 = vpop.xlane.xlu0 %2971
    %v2973 = vsel %vm229, %v2966, 0.0
    %2974 = vadd.xlane.f32.xlu0 %v2973
    %v2975 = vpop.xlane.xlu0 %2974
    %v2976 = vsel %vm229, %v2967, 0.0
    %2977 = vadd.xlane.f32.xlu0 %v2976
    %v2978 = vpop.xlane.xlu0 %2977
    %v2979 = vsel %vm229, %v2968, 0.0
    %2980 = vadd.xlane.f32.xlu0 %v2979
    %v2981 = vpop.xlane.xlu0 %2980
    %v2982 = vsel %vm242, %v2969, 0.0
    %2983 = vadd.xlane.f32.xlu0 %v2982
    %v2984 = vpop.xlane.xlu0 %2983
    %v2985 = vmul.f32 %v2972, %v246
    %v2986 = vmul.f32 %v2975, %v246
    %v2987 = vmul.f32 %v2978, %v246
    %v2988 = vmul.f32 %v2981, %v246
    %v2989 = vmul.f32 %v2984, %v246
    %v2990 = vadd.f32 %v2985, 1e-06
    %v2991 = vadd.f32 %v2986, 1e-06
    %v2992 = vadd.f32 %v2987, 1e-06
    %v2993 = vadd.f32 %v2988, 1e-06
    %v2994 = vadd.f32 %v2989, 1e-06
    %v2995 = vrsqrt.pop %v2990
    %v2996 = vrsqrt.pop %v2991
    %v2997 = vrsqrt.pop %v2992
    %v2998 = vrsqrt.pop %v2993
    %v2999 = vrsqrt.pop %v2994
    %v3000 = vmul.f32 %v2960, %v2995
    %v3001 = vmul.f32 %v2961, %v2996
    %v3002 = vmul.f32 %v2962, %v2997
    %v3003 = vmul.f32 %v2963, %v2998
    %v3004 = vmul.f32 %v2964, %v2999
    %v3006 = vlaneseq
    %v3007 = vshrl.u32 %v3006, 7
    %v3008 = vsub.s32 0, %v3007
    %v3009 = vrot.slane %v2937, %v3008
    %v3011 = vmul.f32 %v3000, %v3009
    %v3012 = vmul.f32 %v3001, %v3009
    %v3013 = vmul.f32 %v3002, %v3009
    %v3014 = vmul.f32 %v3003, %v3009
    %v3015 = vmul.f32 %v3004, %v3009
    %v3017 = vlaneseq
    %v3018 = vshrl.u32 %v3017, 7
    %v3019 = vsub.s32 0, %v3018
    %v3020 = vrot.slane %v2939, %v3019
    %v3022 = vadd.f32 %v3011, %v3020
    %v3023 = vadd.f32 %v3012, %v3020
    %v3024 = vadd.f32 %v3013, %v3020
    %v3025 = vadd.f32 %v3014, %v3020
    %v3026 = vadd.f32 %v3015, %v3020
    %s3027 = scalar_lea.vmem %s7, 32
    %v3028 = vld [vmem:[%s3027] sm:$0xff]
    %v3029 = vld [vmem:[%s3027 + $0x8] sm:$0xff]
    %v3030 = vld [vmem:[%s3027 + $0x10] sm:$0xff]
    %v3031 = vld [vmem:[%s3027 + $0x18] sm:$0xff]
    %s3032 = scalar_lea.vmem %s8, 1
    %v3033 = vld [vmem:[%s3032] sm:$0x1]
    %v3035 = vlaneseq
    %v3036 = vshrl.u32 %v3035, 7
    %v3037 = vsub.s32 0, %v3036
    %v3038 = vrot.slane %v3033, %v3037
    %v3041 = vsel %vm229, %v3022, 0
    %v3044 = vsel %vm229, %v3023, 0
    %v3047 = vsel %vm229, %v3024, 0
    %v3050 = vsel %vm229, %v3025, 0
    %v3053 = vsel %vm229, %v3026, 0
    %3055 = vmatprep.subr.mxu0 0.0
    %3056 = vmatpush1.msra.mxu0 0.0
    %3057 = vmatprep.subr.mxu0 0.0
    %3058 = vmatpush1.msra.mxu0 0.0
    %3059 = vmatprep.subr.mxu0 0.0
    %3060 = vmatpush1.msra.mxu0 0.0
    %3061 = vmatprep.subr.mxu0 0.0
    %3062 = vmatpush1.msra.mxu0 0.0
    %3063 = vmatprep.subr.mxu0 0.0
    %3064 = vmatpush1.msra.mxu0 0.0
    %3065 = vmatprep.subr.mxu0 0.0
    %3066 = vmatpush1.msra.mxu0 0.0
    %3067 = vmatprep.subr.mxu0 0.0
    %3068 = vmatpush1.msra.mxu0 0.0
    %3069 = vmatprep.subr.mxu0 0.0
    %3070 = vmatpush1.msra.mxu0 0.0
    %3071 = vmatprep.subr.mxu0 0.0
    %3072 = vmatpush1.msra.mxu0 0.0
    %3073 = vmatprep.subr.mxu0 0.0
    %3074 = vmatpush1.msra.mxu0 0.0
    %3075 = vmatprep.subr.mxu0 0.0
    %3076 = vmatpush1.msra.mxu0 0.0
    %3077 = vmatprep.subr.mxu0 0.0
    %3078 = vmatpush1.msra.mxu0 0.0
    %3079 = vmatprep.subr.mxu0 0.0
    %3080 = vmatpush1.msra.mxu0 %v3031
    %3081 = vmatprep.subr.mxu0 0.0
    %3082 = vmatpush1.msra.mxu0 %v3030
    %3083 = vmatprep.subr.mxu0 0.0
    %3084 = vmatpush1.msra.mxu0 %v3029
    %3085 = vmatprep.subr.mxu0 0.0
    %3086 = vmatpush1.msra.mxu0 %v3028
    %3087 = vmatprep.subr.mxu0 0.0
    %3088 = vmatpush2.msra.mxu0 0.0
    %3089 = vmatprep.subr.mxu0 0.0
    %3090 = vmatpush2.msra.mxu0 0.0
    %3091 = vmatprep.subr.mxu0 0.0
    %3092 = vmatpush2.msra.mxu0 0.0
    %3093 = vmatprep.subr.mxu0 0.0
    %3094 = vmatpush2.msra.mxu0 0.0
    %3095 = vmatprep.subr.mxu0 0.0
    %3096 = vmatpush2.msra.mxu0 0.0
    %3097 = vmatprep.subr.mxu0 0.0
    %3098 = vmatpush2.msra.mxu0 0.0
    %3099 = vmatprep.subr.mxu0 0.0
    %3100 = vmatpush2.msra.mxu0 0.0
    %3101 = vmatprep.subr.mxu0 0.0
    %3102 = vmatpush2.msra.mxu0 0.0
    %3103 = vmatprep.subr.mxu0 0.0
    %3104 = vmatpush2.msra.mxu0 0.0
    %3105 = vmatprep.subr.mxu0 0.0
    %3106 = vmatpush2.msra.mxu0 0.0
    %3107 = vmatprep.subr.mxu0 0.0
    %3108 = vmatpush2.msra.mxu0 0.0
    %3109 = vmatprep.subr.mxu0 0.0
    %3110 = vmatpush2.msra.mxu0 0.0
    %3111 = vmatprep.subr.mxu0 0.0
    %3112 = vmatpush2.msra.mxu0 0.0
    %3113 = vmatprep.subr.mxu0 0.0
    %3114 = vmatpush2.msra.mxu0 0.0
    %3115 = vmatprep.subr.mxu0 0.0
    %3116 = vmatpush2.msra.mxu0 0.0
    %3117 = vmatprep.subr.mxu0 0.0
    %3118 = vmatpush2.msra.mxu0 0.0
    %3119 = vmatprep.mubr.f32.mxu0 0.0
    %3120 = vmatmul.mubr.f32.gmra.mxu0 %v3041
    %v3121 = vpop.f32.mrf.mxu0
    %v3122 = vadd.f32 %v3038, %v3121
    %v3123 = vpop.f32.mrf.mxu0
    %3124 = vmatprep.mubr.f32.mxu0 0.0
    %3125 = vmatmul.mubr.f32.gmra.mxu0 %v3044
    %v3126 = vpop.f32.mrf.mxu0
    %v3127 = vadd.f32 %v3038, %v3126
    %v3128 = vpop.f32.mrf.mxu0
    %3129 = vmatprep.mubr.f32.mxu0 0.0
    %3130 = vmatmul.mubr.f32.gmra.mxu0 %v3047
    %v3131 = vpop.f32.mrf.mxu0
    %v3132 = vadd.f32 %v3038, %v3131
    %v3133 = vpop.f32.mrf.mxu0
    %3134 = vmatprep.mubr.f32.mxu0 0.0
    %3135 = vmatmul.mubr.f32.gmra.mxu0 %v3050
    %v3136 = vpop.f32.mrf.mxu0
    %v3137 = vadd.f32 %v3038, %v3136
    %v3138 = vpop.f32.mrf.mxu0
    %3139 = vmatprep.mubr.f32.mxu0 0.0
    %3140 = vmatmul.mubr.f32.gmra.mxu0 %v3053
    %v3141 = vpop.f32.mrf.mxu0
    %v3142 = vadd.f32 %v3038, %v3141
    %v3143 = vpop.f32.mrf.mxu0
    %3144 = vdwg.mxu0
    %3148 = vrot.lane.b32.xlu0 %v3122, 96
    %v3149 = vpop.permute.xlu0 %3148
    %3150 = vrot.lane.b32.xlu0 %v3127, 96
    %v3151 = vpop.permute.xlu0 %3150
    %3152 = vrot.lane.b32.xlu0 %v3132, 96
    %v3153 = vpop.permute.xlu0 %3152
    %v3154 = vsel %vm444, %v3122, 0
    %v3156 = vsel %vm444, %v3127, 0
    %v3158 = vsel %vm444, %v3132, 0
    %v3160 = vsel %vm444, %v3149, 0
    %v3162 = vsel %vm444, %v3151, 0
    %v3164 = vsel %vm444, %v3153, 0
    %3166 = vmatprep.subr.mxu0 0.0
    %3167 = vmatpush1.xpose.msra.mxu0 0.0
    %3168 = vmatprep.subr.mxu0 0.0
    %3169 = vmatpush1.xpose.msra.mxu0 0.0
    %3170 = vmatprep.subr.mxu0 0.0
    %3171 = vmatpush1.xpose.msra.mxu0 0.0
    %3172 = vmatprep.subr.mxu0 0.0
    %3173 = vmatpush1.xpose.msra.mxu0 0.0
    %3174 = vmatprep.subr.mxu0 0.0
    %3175 = vmatpush1.xpose.msra.mxu0 0.0
    %3176 = vmatprep.subr.mxu0 0.0
    %3177 = vmatpush1.xpose.msra.mxu0 0.0
    %3178 = vmatprep.subr.mxu0 0.0
    %3179 = vmatpush1.xpose.msra.mxu0 0.0
    %3180 = vmatprep.subr.mxu0 0.0
    %3181 = vmatpush1.xpose.msra.mxu0 0.0
    %3182 = vmatprep.subr.mxu0 0.0
    %3183 = vmatpush1.xpose.msra.mxu0 0.0
    %3184 = vmatprep.subr.mxu0 0.0
    %3185 = vmatpush1.xpose.msra.mxu0 0.0
    %3186 = vmatprep.subr.mxu0 0.0
    %3187 = vmatpush1.xpose.msra.mxu0 0.0
    %3188 = vmatprep.subr.mxu0 0.0
    %3189 = vmatpush1.xpose.msra.mxu0 0.0
    %3190 = vmatprep.subr.mxu0 0.0
    %3191 = vmatpush1.xpose.msra.mxu0 0.0
    %3192 = vmatprep.subr.mxu0 0.0
    %3193 = vmatpush1.xpose.msra.mxu0 %v3164
    %3194 = vmatprep.subr.mxu0 0.0
    %3195 = vmatpush1.xpose.msra.mxu0 %v3162
    %3196 = vmatprep.subr.mxu0 0.0
    %3197 = vmatpush1.xpose.msra.mxu0 %v3160
    %3198 = vmatprep.subr.mxu0 0.0
    %3199 = vmatpush2.xpose.msra.mxu0 0.0
    %3200 = vmatprep.subr.mxu0 0.0
    %3201 = vmatpush2.xpose.msra.mxu0 0.0
    %3202 = vmatprep.subr.mxu0 0.0
    %3203 = vmatpush2.xpose.msra.mxu0 0.0
    %3204 = vmatprep.subr.mxu0 0.0
    %3205 = vmatpush2.xpose.msra.mxu0 0.0
    %3206 = vmatprep.subr.mxu0 0.0
    %3207 = vmatpush2.xpose.msra.mxu0 0.0
    %3208 = vmatprep.subr.mxu0 0.0
    %3209 = vmatpush2.xpose.msra.mxu0 0.0
    %3210 = vmatprep.subr.mxu0 0.0
    %3211 = vmatpush2.xpose.msra.mxu0 0.0
    %3212 = vmatprep.subr.mxu0 0.0
    %3213 = vmatpush2.xpose.msra.mxu0 0.0
    %3214 = vmatprep.subr.mxu0 0.0
    %3215 = vmatpush2.xpose.msra.mxu0 0.0
    %3216 = vmatprep.subr.mxu0 0.0
    %3217 = vmatpush2.xpose.msra.mxu0 0.0
    %3218 = vmatprep.subr.mxu0 0.0
    %3219 = vmatpush2.xpose.msra.mxu0 0.0
    %3220 = vmatprep.subr.mxu0 0.0
    %3221 = vmatpush2.xpose.msra.mxu0 0.0
    %3222 = vmatprep.subr.mxu0 0.0
    %3223 = vmatpush2.xpose.msra.mxu0 0.0
    %3224 = vmatprep.subr.mxu0 0.0
    %3225 = vmatpush2.xpose.msra.mxu0 0.0
    %3226 = vmatprep.subr.mxu0 0.0
    %3227 = vmatpush2.xpose.msra.mxu0 0.0
    %3228 = vmatprep.subr.mxu0 0.0
    %3229 = vmatpush2.xpose.msra.mxu0 0.0
    %3230 = vmatprep.mubr.f32.mxu0 0.0
    %3231 = vmatmul.mubr.f32.gmra.mxu0 %v3154
    %v3232 = vpop.f32.mrf.mxu0
    %v3233 = vadd.f32 0.0, %v3232
    %v3234 = vpop.f32.mrf.mxu0
    %3235 = vmatprep.mubr.f32.mxu0 0.0
    %3236 = vmatmul.mubr.f32.gmra.mxu0 %v3156
    %v3237 = vpop.f32.mrf.mxu0
    %v3238 = vadd.f32 0.0, %v3237
    %v3239 = vpop.f32.mrf.mxu0
    %3240 = vmatprep.mubr.f32.mxu0 0.0
    %3241 = vmatmul.mubr.f32.gmra.mxu0 %v3158
    %v3242 = vpop.f32.mrf.mxu0
    %v3243 = vadd.f32 0.0, %v3242
    %v3244 = vpop.f32.mrf.mxu0
    %3245 = vdwg.mxu0
    %v3246 = vmul.f32 %v3233, 0.35355338
    %v3247 = vmul.f32 %v3238, 0.35355338
    %v3248 = vmul.f32 %v3243, 0.35355338
    %v3249 = vsel %vm540, %v3246, -inf
    %3250 = vmax.xlane.f32.xlu0 %v3249
    %v3251 = vpop.xlane.xlu0 %3250
    %v3252 = vsel %vm540, %v3247, -inf
    %3253 = vmax.xlane.f32.xlu0 %v3252
    %v3254 = vpop.xlane.xlu0 %3253
    %v3255 = vsel %vm547, %v3248, -inf
    %3256 = vmax.xlane.f32.xlu0 %v3255
    %v3257 = vpop.xlane.xlu0 %3256
    %v3258 = vsub.f32 %v3246, %v3251
    %v3259 = vsub.f32 %v3247, %v3254
    %v3260 = vsub.f32 %v3248, %v3257
    %v3261 = vmul.f32 %v3258, 1.442695
    %v3262 = vpow.pop %v3261
    %v3263 = vmul.f32 %v3259, 1.442695
    %v3264 = vpow.pop %v3263
    %v3265 = vmul.f32 %v3260, 1.442695
    %v3266 = vpow.pop %v3265
    %v3267 = vsel %vm540, %v3262, 0.0
    %3268 = vadd.xlane.f32.xlu0 %v3267
    %v3269 = vpop.xlane.xlu0 %3268
    %v3270 = vsel %vm540, %v3264, 0.0
    %3271 = vadd.xlane.f32.xlu0 %v3270
    %v3272 = vpop.xlane.xlu0 %3271
    %v3273 = vsel %vm547, %v3266, 0.0
    %3274 = vadd.xlane.f32.xlu0 %v3273
    %v3275 = vpop.xlane.xlu0 %3274
    %v3276 = vrcp.pop %v3269
    %v3277 = vrcp.pop %v3272
    %v3278 = vrcp.pop %v3275
    %v3279 = vmul.f32 %v3262, %v3276
    %v3280 = vmul.f32 %v3264, %v3277
    %v3281 = vmul.f32 %v3266, %v3278
    %3282 = vrot.lane.b32.xlu0 %v3122, 64
    %v3283 = vpop.permute.xlu0 %3282
    %3284 = vrot.lane.b32.xlu0 %v3127, 64
    %v3285 = vpop.permute.xlu0 %3284
    %3286 = vrot.lane.b32.xlu0 %v3132, 64
    %v3287 = vpop.permute.xlu0 %3286
    %v3291 = vsel %vm540, %v3279, 0
    %v3294 = vsel %vm540, %v3280, 0
    %v3297 = vsel %vm540, %v3281, 0
    %v3299 = vsel %vm202, %v3287, 0
    %3301 = vmatprep.subr.mxu0 0.0
    %3302 = vmatpush1.msra.mxu0 0.0
    %3303 = vmatprep.subr.mxu0 0.0
    %3304 = vmatpush1.msra.mxu0 0.0
    %3305 = vmatprep.subr.mxu0 0.0
    %3306 = vmatpush1.msra.mxu0 0.0
    %3307 = vmatprep.subr.mxu0 0.0
    %3308 = vmatpush1.msra.mxu0 0.0
    %3309 = vmatprep.subr.mxu0 0.0
    %3310 = vmatpush1.msra.mxu0 0.0
    %3311 = vmatprep.subr.mxu0 0.0
    %3312 = vmatpush1.msra.mxu0 0.0
    %3313 = vmatprep.subr.mxu0 0.0
    %3314 = vmatpush1.msra.mxu0 0.0
    %3315 = vmatprep.subr.mxu0 0.0
    %3316 = vmatpush1.msra.mxu0 0.0
    %3317 = vmatprep.subr.mxu0 0.0
    %3318 = vmatpush1.msra.mxu0 0.0
    %3319 = vmatprep.subr.mxu0 0.0
    %3320 = vmatpush1.msra.mxu0 0.0
    %3321 = vmatprep.subr.mxu0 0.0
    %3322 = vmatpush1.msra.mxu0 0.0
    %3323 = vmatprep.subr.mxu0 0.0
    %3324 = vmatpush1.msra.mxu0 0.0
    %3325 = vmatprep.subr.mxu0 0.0
    %3326 = vmatpush1.msra.mxu0 0.0
    %3327 = vmatprep.subr.mxu0 0.0
    %3328 = vmatpush1.msra.mxu0 %v3299
    %3329 = vmatprep.subr.mxu0 0.0
    %3330 = vmatpush1.msra.mxu0 %v3285
    %3331 = vmatprep.subr.mxu0 0.0
    %3332 = vmatpush1.msra.mxu0 %v3283
    %3333 = vmatprep.subr.mxu0 0.0
    %3334 = vmatpush2.msra.mxu0 0.0
    %3335 = vmatprep.subr.mxu0 0.0
    %3336 = vmatpush2.msra.mxu0 0.0
    %3337 = vmatprep.subr.mxu0 0.0
    %3338 = vmatpush2.msra.mxu0 0.0
    %3339 = vmatprep.subr.mxu0 0.0
    %3340 = vmatpush2.msra.mxu0 0.0
    %3341 = vmatprep.subr.mxu0 0.0
    %3342 = vmatpush2.msra.mxu0 0.0
    %3343 = vmatprep.subr.mxu0 0.0
    %3344 = vmatpush2.msra.mxu0 0.0
    %3345 = vmatprep.subr.mxu0 0.0
    %3346 = vmatpush2.msra.mxu0 0.0
    %3347 = vmatprep.subr.mxu0 0.0
    %3348 = vmatpush2.msra.mxu0 0.0
    %3349 = vmatprep.subr.mxu0 0.0
    %3350 = vmatpush2.msra.mxu0 0.0
    %3351 = vmatprep.subr.mxu0 0.0
    %3352 = vmatpush2.msra.mxu0 0.0
    %3353 = vmatprep.subr.mxu0 0.0
    %3354 = vmatpush2.msra.mxu0 0.0
    %3355 = vmatprep.subr.mxu0 0.0
    %3356 = vmatpush2.msra.mxu0 0.0
    %3357 = vmatprep.subr.mxu0 0.0
    %3358 = vmatpush2.msra.mxu0 0.0
    %3359 = vmatprep.subr.mxu0 0.0
    %3360 = vmatpush2.msra.mxu0 0.0
    %3361 = vmatprep.subr.mxu0 0.0
    %3362 = vmatpush2.msra.mxu0 0.0
    %3363 = vmatprep.subr.mxu0 0.0
    %3364 = vmatpush2.msra.mxu0 0.0
    %3365 = vmatprep.mubr.f32.mxu0 0.0
    %3366 = vmatmul.mubr.f32.gmra.mxu0 %v3291
    %v3367 = vpop.f32.mrf.mxu0
    %v3368 = vadd.f32 0.0, %v3367
    %v3369 = vpop.f32.mrf.mxu0
    %3370 = vmatprep.mubr.f32.mxu0 0.0
    %3371 = vmatmul.mubr.f32.gmra.mxu0 %v3294
    %v3372 = vpop.f32.mrf.mxu0
    %v3373 = vadd.f32 0.0, %v3372
    %v3374 = vpop.f32.mrf.mxu0
    %3375 = vmatprep.mubr.f32.mxu0 0.0
    %3376 = vmatmul.mubr.f32.gmra.mxu0 %v3297
    %v3377 = vpop.f32.mrf.mxu0
    %v3378 = vadd.f32 0.0, %v3377
    %v3379 = vpop.f32.mrf.mxu0
    %3380 = vdwg.mxu0
    %3381 = vrot.lane.b32.xlu0 %v3122, 120
    %v3382 = vpop.permute.xlu0 %3381
    %3383 = vrot.lane.b32.xlu0 %v3127, 120
    %v3384 = vpop.permute.xlu0 %3383
    %3385 = vrot.lane.b32.xlu0 %v3132, 120
    %v3386 = vpop.permute.xlu0 %3385
    %3387 = vrot.lane.b32.xlu0 %v3122, 88
    %v3388 = vpop.permute.xlu0 %3387
    %3389 = vrot.lane.b32.xlu0 %v3127, 88
    %v3390 = vpop.permute.xlu0 %3389
    %3391 = vrot.lane.b32.xlu0 %v3132, 88
    %v3392 = vpop.permute.xlu0 %3391
    %v3393 = vsel %vm444, %v3382, 0
    %v3395 = vsel %vm444, %v3384, 0
    %v3397 = vsel %vm444, %v3386, 0
    %v3399 = vsel %vm444, %v3388, 0
    %v3401 = vsel %vm444, %v3390, 0
    %v3403 = vsel %vm444, %v3392, 0
    %3405 = vmatprep.subr.mxu0 0.0
    %3406 = vmatpush1.xpose.msra.mxu0 0.0
    %3407 = vmatprep.subr.mxu0 0.0
    %3408 = vmatpush1.xpose.msra.mxu0 0.0
    %3409 = vmatprep.subr.mxu0 0.0
    %3410 = vmatpush1.xpose.msra.mxu0 0.0
    %3411 = vmatprep.subr.mxu0 0.0
    %3412 = vmatpush1.xpose.msra.mxu0 0.0
    %3413 = vmatprep.subr.mxu0 0.0
    %3414 = vmatpush1.xpose.msra.mxu0 0.0
    %3415 = vmatprep.subr.mxu0 0.0
    %3416 = vmatpush1.xpose.msra.mxu0 0.0
    %3417 = vmatprep.subr.mxu0 0.0
    %3418 = vmatpush1.xpose.msra.mxu0 0.0
    %3419 = vmatprep.subr.mxu0 0.0
    %3420 = vmatpush1.xpose.msra.mxu0 0.0
    %3421 = vmatprep.subr.mxu0 0.0
    %3422 = vmatpush1.xpose.msra.mxu0 0.0
    %3423 = vmatprep.subr.mxu0 0.0
    %3424 = vmatpush1.xpose.msra.mxu0 0.0
    %3425 = vmatprep.subr.mxu0 0.0
    %3426 = vmatpush1.xpose.msra.mxu0 0.0
    %3427 = vmatprep.subr.mxu0 0.0
    %3428 = vmatpush1.xpose.msra.mxu0 0.0
    %3429 = vmatprep.subr.mxu0 0.0
    %3430 = vmatpush1.xpose.msra.mxu0 0.0
    %3431 = vmatprep.subr.mxu0 0.0
    %3432 = vmatpush1.xpose.msra.mxu0 %v3403
    %3433 = vmatprep.subr.mxu0 0.0
    %3434 = vmatpush1.xpose.msra.mxu0 %v3401
    %3435 = vmatprep.subr.mxu0 0.0
    %3436 = vmatpush1.xpose.msra.mxu0 %v3399
    %3437 = vmatprep.subr.mxu0 0.0
    %3438 = vmatpush2.xpose.msra.mxu0 0.0
    %3439 = vmatprep.subr.mxu0 0.0
    %3440 = vmatpush2.xpose.msra.mxu0 0.0
    %3441 = vmatprep.subr.mxu0 0.0
    %3442 = vmatpush2.xpose.msra.mxu0 0.0
    %3443 = vmatprep.subr.mxu0 0.0
    %3444 = vmatpush2.xpose.msra.mxu0 0.0
    %3445 = vmatprep.subr.mxu0 0.0
    %3446 = vmatpush2.xpose.msra.mxu0 0.0
    %3447 = vmatprep.subr.mxu0 0.0
    %3448 = vmatpush2.xpose.msra.mxu0 0.0
    %3449 = vmatprep.subr.mxu0 0.0
    %3450 = vmatpush2.xpose.msra.mxu0 0.0
    %3451 = vmatprep.subr.mxu0 0.0
    %3452 = vmatpush2.xpose.msra.mxu0 0.0
    %3453 = vmatprep.subr.mxu0 0.0
    %3454 = vmatpush2.xpose.msra.mxu0 0.0
    %3455 = vmatprep.subr.mxu0 0.0
    %3456 = vmatpush2.xpose.msra.mxu0 0.0
    %3457 = vmatprep.subr.mxu0 0.0
    %3458 = vmatpush2.xpose.msra.mxu0 0.0
    %3459 = vmatprep.subr.mxu0 0.0
    %3460 = vmatpush2.xpose.msra.mxu0 0.0
    %3461 = vmatprep.subr.mxu0 0.0
    %3462 = vmatpush2.xpose.msra.mxu0 0.0
    %3463 = vmatprep.subr.mxu0 0.0
    %3464 = vmatpush2.xpose.msra.mxu0 0.0
    %3465 = vmatprep.subr.mxu0 0.0
    %3466 = vmatpush2.xpose.msra.mxu0 0.0
    %3467 = vmatprep.subr.mxu0 0.0
    %3468 = vmatpush2.xpose.msra.mxu0 0.0
    %3469 = vmatprep.mubr.f32.mxu0 0.0
    %3470 = vmatmul.mubr.f32.gmra.mxu0 %v3393
    %v3471 = vpop.f32.mrf.mxu0
    %v3472 = vadd.f32 0.0, %v3471
    %v3473 = vpop.f32.mrf.mxu0
    %3474 = vmatprep.mubr.f32.mxu0 0.0
    %3475 = vmatmul.mubr.f32.gmra.mxu0 %v3395
    %v3476 = vpop.f32.mrf.mxu0
    %v3477 = vadd.f32 0.0, %v3476
    %v3478 = vpop.f32.mrf.mxu0
    %3479 = vmatprep.mubr.f32.mxu0 0.0
    %3480 = vmatmul.mubr.f32.gmra.mxu0 %v3397
    %v3481 = vpop.f32.mrf.mxu0
    %v3482 = vadd.f32 0.0, %v3481
    %v3483 = vpop.f32.mrf.mxu0
    %3484 = vdwg.mxu0
    %v3485 = vmul.f32 %v3472, 0.35355338
    %v3486 = vmul.f32 %v3477, 0.35355338
    %v3487 = vmul.f32 %v3482, 0.35355338
    %v3488 = vsel %vm540, %v3485, -inf
    %3489 = vmax.xlane.f32.xlu0 %v3488
    %v3490 = vpop.xlane.xlu0 %3489
    %v3491 = vsel %vm540, %v3486, -inf
    %3492 = vmax.xlane.f32.xlu0 %v3491
    %v3493 = vpop.xlane.xlu0 %3492
    %v3494 = vsel %vm547, %v3487, -inf
    %3495 = vmax.xlane.f32.xlu0 %v3494
    %v3496 = vpop.xlane.xlu0 %3495
    %v3497 = vsub.f32 %v3485, %v3490
    %v3498 = vsub.f32 %v3486, %v3493
    %v3499 = vsub.f32 %v3487, %v3496
    %v3500 = vmul.f32 %v3497, 1.442695
    %v3501 = vpow.pop %v3500
    %v3502 = vmul.f32 %v3498, 1.442695
    %v3503 = vpow.pop %v3502
    %v3504 = vmul.f32 %v3499, 1.442695
    %v3505 = vpow.pop %v3504
    %v3506 = vsel %vm540, %v3501, 0.0
    %3507 = vadd.xlane.f32.xlu0 %v3506
    %v3508 = vpop.xlane.xlu0 %3507
    %v3509 = vsel %vm540, %v3503, 0.0
    %3510 = vadd.xlane.f32.xlu0 %v3509
    %v3511 = vpop.xlane.xlu0 %3510
    %v3512 = vsel %vm547, %v3505, 0.0
    %3513 = vadd.xlane.f32.xlu0 %v3512
    %v3514 = vpop.xlane.xlu0 %3513
    %v3515 = vrcp.pop %v3508
    %v3516 = vrcp.pop %v3511
    %v3517 = vrcp.pop %v3514
    %v3518 = vmul.f32 %v3501, %v3515
    %v3519 = vmul.f32 %v3503, %v3516
    %v3520 = vmul.f32 %v3505, %v3517
    %3521 = vrot.lane.b32.xlu0 %v3122, 56
    %v3522 = vpop.permute.xlu0 %3521
    %3523 = vrot.lane.b32.xlu0 %v3127, 56
    %v3524 = vpop.permute.xlu0 %3523
    %3525 = vrot.lane.b32.xlu0 %v3132, 56
    %v3526 = vpop.permute.xlu0 %3525
    %v3530 = vsel %vm540, %v3518, 0
    %v3533 = vsel %vm540, %v3519, 0
    %v3536 = vsel %vm540, %v3520, 0
    %v3538 = vsel %vm202, %v3526, 0
    %3540 = vmatprep.subr.mxu0 0.0
    %3541 = vmatpush1.msra.mxu0 0.0
    %3542 = vmatprep.subr.mxu0 0.0
    %3543 = vmatpush1.msra.mxu0 0.0
    %3544 = vmatprep.subr.mxu0 0.0
    %3545 = vmatpush1.msra.mxu0 0.0
    %3546 = vmatprep.subr.mxu0 0.0
    %3547 = vmatpush1.msra.mxu0 0.0
    %3548 = vmatprep.subr.mxu0 0.0
    %3549 = vmatpush1.msra.mxu0 0.0
    %3550 = vmatprep.subr.mxu0 0.0
    %3551 = vmatpush1.msra.mxu0 0.0
    %3552 = vmatprep.subr.mxu0 0.0
    %3553 = vmatpush1.msra.mxu0 0.0
    %3554 = vmatprep.subr.mxu0 0.0
    %3555 = vmatpush1.msra.mxu0 0.0
    %3556 = vmatprep.subr.mxu0 0.0
    %3557 = vmatpush1.msra.mxu0 0.0
    %3558 = vmatprep.subr.mxu0 0.0
    %3559 = vmatpush1.msra.mxu0 0.0
    %3560 = vmatprep.subr.mxu0 0.0
    %3561 = vmatpush1.msra.mxu0 0.0
    %3562 = vmatprep.subr.mxu0 0.0
    %3563 = vmatpush1.msra.mxu0 0.0
    %3564 = vmatprep.subr.mxu0 0.0
    %3565 = vmatpush1.msra.mxu0 0.0
    %3566 = vmatprep.subr.mxu0 0.0
    %3567 = vmatpush1.msra.mxu0 %v3538
    %3568 = vmatprep.subr.mxu0 0.0
    %3569 = vmatpush1.msra.mxu0 %v3524
    %3570 = vmatprep.subr.mxu0 0.0
    %3571 = vmatpush1.msra.mxu0 %v3522
    %3572 = vmatprep.subr.mxu0 0.0
    %3573 = vmatpush2.msra.mxu0 0.0
    %3574 = vmatprep.subr.mxu0 0.0
    %3575 = vmatpush2.msra.mxu0 0.0
    %3576 = vmatprep.subr.mxu0 0.0
    %3577 = vmatpush2.msra.mxu0 0.0
    %3578 = vmatprep.subr.mxu0 0.0
    %3579 = vmatpush2.msra.mxu0 0.0
    %3580 = vmatprep.subr.mxu0 0.0
    %3581 = vmatpush2.msra.mxu0 0.0
    %3582 = vmatprep.subr.mxu0 0.0
    %3583 = vmatpush2.msra.mxu0 0.0
    %3584 = vmatprep.subr.mxu0 0.0
    %3585 = vmatpush2.msra.mxu0 0.0
    %3586 = vmatprep.subr.mxu0 0.0
    %3587 = vmatpush2.msra.mxu0 0.0
    %3588 = vmatprep.subr.mxu0 0.0
    %3589 = vmatpush2.msra.mxu0 0.0
    %3590 = vmatprep.subr.mxu0 0.0
    %3591 = vmatpush2.msra.mxu0 0.0
    %3592 = vmatprep.subr.mxu0 0.0
    %3593 = vmatpush2.msra.mxu0 0.0
    %3594 = vmatprep.subr.mxu0 0.0
    %3595 = vmatpush2.msra.mxu0 0.0
    %3596 = vmatprep.subr.mxu0 0.0
    %3597 = vmatpush2.msra.mxu0 0.0
    %3598 = vmatprep.subr.mxu0 0.0
    %3599 = vmatpush2.msra.mxu0 0.0
    %3600 = vmatprep.subr.mxu0 0.0
    %3601 = vmatpush2.msra.mxu0 0.0
    %3602 = vmatprep.subr.mxu0 0.0
    %3603 = vmatpush2.msra.mxu0 0.0
    %3604 = vmatprep.mubr.f32.mxu0 0.0
    %3605 = vmatmul.mubr.f32.gmra.mxu0 %v3530
    %v3606 = vpop.f32.mrf.mxu0
    %v3607 = vadd.f32 0.0, %v3606
    %v3608 = vpop.f32.mrf.mxu0
    %3609 = vmatprep.mubr.f32.mxu0 0.0
    %3610 = vmatmul.mubr.f32.gmra.mxu0 %v3533
    %v3611 = vpop.f32.mrf.mxu0
    %v3612 = vadd.f32 0.0, %v3611
    %v3613 = vpop.f32.mrf.mxu0
    %3614 = vmatprep.mubr.f32.mxu0 0.0
    %3615 = vmatmul.mubr.f32.gmra.mxu0 %v3536
    %v3616 = vpop.f32.mrf.mxu0
    %v3617 = vadd.f32 0.0, %v3616
    %v3618 = vpop.f32.mrf.mxu0
    %3619 = vdwg.mxu0
    %3620 = vrot.lane.b32.xlu0 %v3122, 112
    %v3621 = vpop.permute.xlu0 %3620
    %3622 = vrot.lane.b32.xlu0 %v3127, 112
    %v3623 = vpop.permute.xlu0 %3622
    %3624 = vrot.lane.b32.xlu0 %v3132, 112
    %v3625 = vpop.permute.xlu0 %3624
    %3626 = vrot.lane.b32.xlu0 %v3122, 80
    %v3627 = vpop.permute.xlu0 %3626
    %3628 = vrot.lane.b32.xlu0 %v3127, 80
    %v3629 = vpop.permute.xlu0 %3628
    %3630 = vrot.lane.b32.xlu0 %v3132, 80
    %v3631 = vpop.permute.xlu0 %3630
    %v3632 = vsel %vm444, %v3621, 0
    %v3634 = vsel %vm444, %v3623, 0
    %v3636 = vsel %vm444, %v3625, 0
    %v3638 = vsel %vm444, %v3627, 0
    %v3640 = vsel %vm444, %v3629, 0
    %v3642 = vsel %vm444, %v3631, 0
    %3644 = vmatprep.subr.mxu0 0.0
    %3645 = vmatpush1.xpose.msra.mxu0 0.0
    %3646 = vmatprep.subr.mxu0 0.0
    %3647 = vmatpush1.xpose.msra.mxu0 0.0
    %3648 = vmatprep.subr.mxu0 0.0
    %3649 = vmatpush1.xpose.msra.mxu0 0.0
    %3650 = vmatprep.subr.mxu0 0.0
    %3651 = vmatpush1.xpose.msra.mxu0 0.0
    %3652 = vmatprep.subr.mxu0 0.0
    %3653 = vmatpush1.xpose.msra.mxu0 0.0
    %3654 = vmatprep.subr.mxu0 0.0
    %3655 = vmatpush1.xpose.msra.mxu0 0.0
    %3656 = vmatprep.subr.mxu0 0.0
    %3657 = vmatpush1.xpose.msra.mxu0 0.0
    %3658 = vmatprep.subr.mxu0 0.0
    %3659 = vmatpush1.xpose.msra.mxu0 0.0
    %3660 = vmatprep.subr.mxu0 0.0
    %3661 = vmatpush1.xpose.msra.mxu0 0.0
    %3662 = vmatprep.subr.mxu0 0.0
    %3663 = vmatpush1.xpose.msra.mxu0 0.0
    %3664 = vmatprep.subr.mxu0 0.0
    %3665 = vmatpush1.xpose.msra.mxu0 0.0
    %3666 = vmatprep.subr.mxu0 0.0
    %3667 = vmatpush1.xpose.msra.mxu0 0.0
    %3668 = vmatprep.subr.mxu0 0.0
    %3669 = vmatpush1.xpose.msra.mxu0 0.0
    %3670 = vmatprep.subr.mxu0 0.0
    %3671 = vmatpush1.xpose.msra.mxu0 %v3642
    %3672 = vmatprep.subr.mxu0 0.0
    %3673 = vmatpush1.xpose.msra.mxu0 %v3640
    %3674 = vmatprep.subr.mxu0 0.0
    %3675 = vmatpush1.xpose.msra.mxu0 %v3638
    %3676 = vmatprep.subr.mxu0 0.0
    %3677 = vmatpush2.xpose.msra.mxu0 0.0
    %3678 = vmatprep.subr.mxu0 0.0
    %3679 = vmatpush2.xpose.msra.mxu0 0.0
    %3680 = vmatprep.subr.mxu0 0.0
    %3681 = vmatpush2.xpose.msra.mxu0 0.0
    %3682 = vmatprep.subr.mxu0 0.0
    %3683 = vmatpush2.xpose.msra.mxu0 0.0
    %3684 = vmatprep.subr.mxu0 0.0
    %3685 = vmatpush2.xpose.msra.mxu0 0.0
    %3686 = vmatprep.subr.mxu0 0.0
    %3687 = vmatpush2.xpose.msra.mxu0 0.0
    %3688 = vmatprep.subr.mxu0 0.0
    %3689 = vmatpush2.xpose.msra.mxu0 0.0
    %3690 = vmatprep.subr.mxu0 0.0
    %3691 = vmatpush2.xpose.msra.mxu0 0.0
    %3692 = vmatprep.subr.mxu0 0.0
    %3693 = vmatpush2.xpose.msra.mxu0 0.0
    %3694 = vmatprep.subr.mxu0 0.0
    %3695 = vmatpush2.xpose.msra.mxu0 0.0
    %3696 = vmatprep.subr.mxu0 0.0
    %3697 = vmatpush2.xpose.msra.mxu0 0.0
    %3698 = vmatprep.subr.mxu0 0.0
    %3699 = vmatpush2.xpose.msra.mxu0 0.0
    %3700 = vmatprep.subr.mxu0 0.0
    %3701 = vmatpush2.xpose.msra.mxu0 0.0
    %3702 = vmatprep.subr.mxu0 0.0
    %3703 = vmatpush2.xpose.msra.mxu0 0.0
    %3704 = vmatprep.subr.mxu0 0.0
    %3705 = vmatpush2.xpose.msra.mxu0 0.0
    %3706 = vmatprep.subr.mxu0 0.0
    %3707 = vmatpush2.xpose.msra.mxu0 0.0
    %3708 = vmatprep.mubr.f32.mxu0 0.0
    %3709 = vmatmul.mubr.f32.gmra.mxu0 %v3632
    %v3710 = vpop.f32.mrf.mxu0
    %v3711 = vadd.f32 0.0, %v3710
    %v3712 = vpop.f32.mrf.mxu0
    %3713 = vmatprep.mubr.f32.mxu0 0.0
    %3714 = vmatmul.mubr.f32.gmra.mxu0 %v3634
    %v3715 = vpop.f32.mrf.mxu0
    %v3716 = vadd.f32 0.0, %v3715
    %v3717 = vpop.f32.mrf.mxu0
    %3718 = vmatprep.mubr.f32.mxu0 0.0
    %3719 = vmatmul.mubr.f32.gmra.mxu0 %v3636
    %v3720 = vpop.f32.mrf.mxu0
    %v3721 = vadd.f32 0.0, %v3720
    %v3722 = vpop.f32.mrf.mxu0
    %3723 = vdwg.mxu0
    %v3724 = vmul.f32 %v3711, 0.35355338
    %v3725 = vmul.f32 %v3716, 0.35355338
    %v3726 = vmul.f32 %v3721, 0.35355338
    %v3727 = vsel %vm540, %v3724, -inf
    %3728 = vmax.xlane.f32.xlu0 %v3727
    %v3729 = vpop.xlane.xlu0 %3728
    %v3730 = vsel %vm540, %v3725, -inf
    %3731 = vmax.xlane.f32.xlu0 %v3730
    %v3732 = vpop.xlane.xlu0 %3731
    %v3733 = vsel %vm547, %v3726, -inf
    %3734 = vmax.xlane.f32.xlu0 %v3733
    %v3735 = vpop.xlane.xlu0 %3734
    %v3736 = vsub.f32 %v3724, %v3729
    %v3737 = vsub.f32 %v3725, %v3732
    %v3738 = vsub.f32 %v3726, %v3735
    %v3739 = vmul.f32 %v3736, 1.442695
    %v3740 = vpow.pop %v3739
    %v3741 = vmul.f32 %v3737, 1.442695
    %v3742 = vpow.pop %v3741
    %v3743 = vmul.f32 %v3738, 1.442695
    %v3744 = vpow.pop %v3743
    %v3745 = vsel %vm540, %v3740, 0.0
    %3746 = vadd.xlane.f32.xlu0 %v3745
    %v3747 = vpop.xlane.xlu0 %3746
    %v3748 = vsel %vm540, %v3742, 0.0
    %3749 = vadd.xlane.f32.xlu0 %v3748
    %v3750 = vpop.xlane.xlu0 %3749
    %v3751 = vsel %vm547, %v3744, 0.0
    %3752 = vadd.xlane.f32.xlu0 %v3751
    %v3753 = vpop.xlane.xlu0 %3752
    %v3754 = vrcp.pop %v3747
    %v3755 = vrcp.pop %v3750
    %v3756 = vrcp.pop %v3753
    %v3757 = vmul.f32 %v3740, %v3754
    %v3758 = vmul.f32 %v3742, %v3755
    %v3759 = vmul.f32 %v3744, %v3756
    %3760 = vrot.lane.b32.xlu0 %v3122, 48
    %v3761 = vpop.permute.xlu0 %3760
    %3762 = vrot.lane.b32.xlu0 %v3127, 48
    %v3763 = vpop.permute.xlu0 %3762
    %3764 = vrot.lane.b32.xlu0 %v3132, 48
    %v3765 = vpop.permute.xlu0 %3764
    %v3769 = vsel %vm540, %v3757, 0
    %v3772 = vsel %vm540, %v3758, 0
    %v3775 = vsel %vm540, %v3759, 0
    %v3777 = vsel %vm202, %v3765, 0
    %3779 = vmatprep.subr.mxu0 0.0
    %3780 = vmatpush1.msra.mxu0 0.0
    %3781 = vmatprep.subr.mxu0 0.0
    %3782 = vmatpush1.msra.mxu0 0.0
    %3783 = vmatprep.subr.mxu0 0.0
    %3784 = vmatpush1.msra.mxu0 0.0
    %3785 = vmatprep.subr.mxu0 0.0
    %3786 = vmatpush1.msra.mxu0 0.0
    %3787 = vmatprep.subr.mxu0 0.0
    %3788 = vmatpush1.msra.mxu0 0.0
    %3789 = vmatprep.subr.mxu0 0.0
    %3790 = vmatpush1.msra.mxu0 0.0
    %3791 = vmatprep.subr.mxu0 0.0
    %3792 = vmatpush1.msra.mxu0 0.0
    %3793 = vmatprep.subr.mxu0 0.0
    %3794 = vmatpush1.msra.mxu0 0.0
    %3795 = vmatprep.subr.mxu0 0.0
    %3796 = vmatpush1.msra.mxu0 0.0
    %3797 = vmatprep.subr.mxu0 0.0
    %3798 = vmatpush1.msra.mxu0 0.0
    %3799 = vmatprep.subr.mxu0 0.0
    %3800 = vmatpush1.msra.mxu0 0.0
    %3801 = vmatprep.subr.mxu0 0.0
    %3802 = vmatpush1.msra.mxu0 0.0
    %3803 = vmatprep.subr.mxu0 0.0
    %3804 = vmatpush1.msra.mxu0 0.0
    %3805 = vmatprep.subr.mxu0 0.0
    %3806 = vmatpush1.msra.mxu0 %v3777
    %3807 = vmatprep.subr.mxu0 0.0
    %3808 = vmatpush1.msra.mxu0 %v3763
    %3809 = vmatprep.subr.mxu0 0.0
    %3810 = vmatpush1.msra.mxu0 %v3761
    %3811 = vmatprep.subr.mxu0 0.0
    %3812 = vmatpush2.msra.mxu0 0.0
    %3813 = vmatprep.subr.mxu0 0.0
    %3814 = vmatpush2.msra.mxu0 0.0
    %3815 = vmatprep.subr.mxu0 0.0
    %3816 = vmatpush2.msra.mxu0 0.0
    %3817 = vmatprep.subr.mxu0 0.0
    %3818 = vmatpush2.msra.mxu0 0.0
    %3819 = vmatprep.subr.mxu0 0.0
    %3820 = vmatpush2.msra.mxu0 0.0
    %3821 = vmatprep.subr.mxu0 0.0
    %3822 = vmatpush2.msra.mxu0 0.0
    %3823 = vmatprep.subr.mxu0 0.0
    %3824 = vmatpush2.msra.mxu0 0.0
    %3825 = vmatprep.subr.mxu0 0.0
    %3826 = vmatpush2.msra.mxu0 0.0
    %3827 = vmatprep.subr.mxu0 0.0
    %3828 = vmatpush2.msra.mxu0 0.0
    %3829 = vmatprep.subr.mxu0 0.0
    %3830 = vmatpush2.msra.mxu0 0.0
    %3831 = vmatprep.subr.mxu0 0.0
    %3832 = vmatpush2.msra.mxu0 0.0
    %3833 = vmatprep.subr.mxu0 0.0
    %3834 = vmatpush2.msra.mxu0 0.0
    %3835 = vmatprep.subr.mxu0 0.0
    %3836 = vmatpush2.msra.mxu0 0.0
    %3837 = vmatprep.subr.mxu0 0.0
    %3838 = vmatpush2.msra.mxu0 0.0
    %3839 = vmatprep.subr.mxu0 0.0
    %3840 = vmatpush2.msra.mxu0 0.0
    %3841 = vmatprep.subr.mxu0 0.0
    %3842 = vmatpush2.msra.mxu0 0.0
    %3843 = vmatprep.mubr.f32.mxu0 0.0
    %3844 = vmatmul.mubr.f32.gmra.mxu0 %v3769
    %v3845 = vpop.f32.mrf.mxu0
    %v3846 = vadd.f32 0.0, %v3845
    %v3847 = vpop.f32.mrf.mxu0
    %3848 = vmatprep.mubr.f32.mxu0 0.0
    %3849 = vmatmul.mubr.f32.gmra.mxu0 %v3772
    %v3850 = vpop.f32.mrf.mxu0
    %v3851 = vadd.f32 0.0, %v3850
    %v3852 = vpop.f32.mrf.mxu0
    %3853 = vmatprep.mubr.f32.mxu0 0.0
    %3854 = vmatmul.mubr.f32.gmra.mxu0 %v3775
    %v3855 = vpop.f32.mrf.mxu0
    %v3856 = vadd.f32 0.0, %v3855
    %v3857 = vpop.f32.mrf.mxu0
    %3858 = vdwg.mxu0
    %3859 = vrot.lane.b32.xlu0 %v3122, 104
    %v3860 = vpop.permute.xlu0 %3859
    %3861 = vrot.lane.b32.xlu0 %v3127, 104
    %v3862 = vpop.permute.xlu0 %3861
    %3863 = vrot.lane.b32.xlu0 %v3132, 104
    %v3864 = vpop.permute.xlu0 %3863
    %3865 = vrot.lane.b32.xlu0 %v3122, 72
    %v3866 = vpop.permute.xlu0 %3865
    %3867 = vrot.lane.b32.xlu0 %v3127, 72
    %v3868 = vpop.permute.xlu0 %3867
    %3869 = vrot.lane.b32.xlu0 %v3132, 72
    %v3870 = vpop.permute.xlu0 %3869
    %v3871 = vsel %vm444, %v3860, 0
    %v3873 = vsel %vm444, %v3862, 0
    %v3875 = vsel %vm444, %v3864, 0
    %v3877 = vsel %vm444, %v3866, 0
    %v3879 = vsel %vm444, %v3868, 0
    %v3881 = vsel %vm444, %v3870, 0
    %3883 = vmatprep.subr.mxu0 0.0
    %3884 = vmatpush1.xpose.msra.mxu0 0.0
    %3885 = vmatprep.subr.mxu0 0.0
    %3886 = vmatpush1.xpose.msra.mxu0 0.0
    %3887 = vmatprep.subr.mxu0 0.0
    %3888 = vmatpush1.xpose.msra.mxu0 0.0
    %3889 = vmatprep.subr.mxu0 0.0
    %3890 = vmatpush1.xpose.msra.mxu0 0.0
    %3891 = vmatprep.subr.mxu0 0.0
    %3892 = vmatpush1.xpose.msra.mxu0 0.0
    %3893 = vmatprep.subr.mxu0 0.0
    %3894 = vmatpush1.xpose.msra.mxu0 0.0
    %3895 = vmatprep.subr.mxu0 0.0
    %3896 = vmatpush1.xpose.msra.mxu0 0.0
    %3897 = vmatprep.subr.mxu0 0.0
    %3898 = vmatpush1.xpose.msra.mxu0 0.0
    %3899 = vmatprep.subr.mxu0 0.0
    %3900 = vmatpush1.xpose.msra.mxu0 0.0
    %3901 = vmatprep.subr.mxu0 0.0
    %3902 = vmatpush1.xpose.msra.mxu0 0.0
    %3903 = vmatprep.subr.mxu0 0.0
    %3904 = vmatpush1.xpose.msra.mxu0 0.0
    %3905 = vmatprep.subr.mxu0 0.0
    %3906 = vmatpush1.xpose.msra.mxu0 0.0
    %3907 = vmatprep.subr.mxu0 0.0
    %3908 = vmatpush1.xpose.msra.mxu0 0.0
    %3909 = vmatprep.subr.mxu0 0.0
    %3910 = vmatpush1.xpose.msra.mxu0 %v3881
    %3911 = vmatprep.subr.mxu0 0.0
    %3912 = vmatpush1.xpose.msra.mxu0 %v3879
    %3913 = vmatprep.subr.mxu0 0.0
    %3914 = vmatpush1.xpose.msra.mxu0 %v3877
    %3915 = vmatprep.subr.mxu0 0.0
    %3916 = vmatpush2.xpose.msra.mxu0 0.0
    %3917 = vmatprep.subr.mxu0 0.0
    %3918 = vmatpush2.xpose.msra.mxu0 0.0
    %3919 = vmatprep.subr.mxu0 0.0
    %3920 = vmatpush2.xpose.msra.mxu0 0.0
    %3921 = vmatprep.subr.mxu0 0.0
    %3922 = vmatpush2.xpose.msra.mxu0 0.0
    %3923 = vmatprep.subr.mxu0 0.0
    %3924 = vmatpush2.xpose.msra.mxu0 0.0
    %3925 = vmatprep.subr.mxu0 0.0
    %3926 = vmatpush2.xpose.msra.mxu0 0.0
    %3927 = vmatprep.subr.mxu0 0.0
    %3928 = vmatpush2.xpose.msra.mxu0 0.0
    %3929 = vmatprep.subr.mxu0 0.0
    %3930 = vmatpush2.xpose.msra.mxu0 0.0
    %3931 = vmatprep.subr.mxu0 0.0
    %3932 = vmatpush2.xpose.msra.mxu0 0.0
    %3933 = vmatprep.subr.mxu0 0.0
    %3934 = vmatpush2.xpose.msra.mxu0 0.0
    %3935 = vmatprep.subr.mxu0 0.0
    %3936 = vmatpush2.xpose.msra.mxu0 0.0
    %3937 = vmatprep.subr.mxu0 0.0
    %3938 = vmatpush2.xpose.msra.mxu0 0.0
    %3939 = vmatprep.subr.mxu0 0.0
    %3940 = vmatpush2.xpose.msra.mxu0 0.0
    %3941 = vmatprep.subr.mxu0 0.0
    %3942 = vmatpush2.xpose.msra.mxu0 0.0
    %3943 = vmatprep.subr.mxu0 0.0
    %3944 = vmatpush2.xpose.msra.mxu0 0.0
    %3945 = vmatprep.subr.mxu0 0.0
    %3946 = vmatpush2.xpose.msra.mxu0 0.0
    %3947 = vmatprep.mubr.f32.mxu0 0.0
    %3948 = vmatmul.mubr.f32.gmra.mxu0 %v3871
    %v3949 = vpop.f32.mrf.mxu0
    %v3950 = vadd.f32 0.0, %v3949
    %v3951 = vpop.f32.mrf.mxu0
    %3952 = vmatprep.mubr.f32.mxu0 0.0
    %3953 = vmatmul.mubr.f32.gmra.mxu0 %v3873
    %v3954 = vpop.f32.mrf.mxu0
    %v3955 = vadd.f32 0.0, %v3954
    %v3956 = vpop.f32.mrf.mxu0
    %3957 = vmatprep.mubr.f32.mxu0 0.0
    %3958 = vmatmul.mubr.f32.gmra.mxu0 %v3875
    %v3959 = vpop.f32.mrf.mxu0
    %v3960 = vadd.f32 0.0, %v3959
    %v3961 = vpop.f32.mrf.mxu0
    %3962 = vdwg.mxu0
    %v3963 = vmul.f32 %v3950, 0.35355338
    %v3964 = vmul.f32 %v3955, 0.35355338
    %v3965 = vmul.f32 %v3960, 0.35355338
    %v3966 = vsel %vm540, %v3963, -inf
    %3967 = vmax.xlane.f32.xlu0 %v3966
    %v3968 = vpop.xlane.xlu0 %3967
    %v3969 = vsel %vm540, %v3964, -inf
    %3970 = vmax.xlane.f32.xlu0 %v3969
    %v3971 = vpop.xlane.xlu0 %3970
    %v3972 = vsel %vm547, %v3965, -inf
    %3973 = vmax.xlane.f32.xlu0 %v3972
    %v3974 = vpop.xlane.xlu0 %3973
    %v3975 = vsub.f32 %v3963, %v3968
    %v3976 = vsub.f32 %v3964, %v3971
    %v3977 = vsub.f32 %v3965, %v3974
    %v3978 = vmul.f32 %v3975, 1.442695
    %v3979 = vpow.pop %v3978
    %v3980 = vmul.f32 %v3976, 1.442695
    %v3981 = vpow.pop %v3980
    %v3982 = vmul.f32 %v3977, 1.442695
    %v3983 = vpow.pop %v3982
    %v3984 = vsel %vm540, %v3979, 0.0
    %3985 = vadd.xlane.f32.xlu0 %v3984
    %v3986 = vpop.xlane.xlu0 %3985
    %v3987 = vsel %vm540, %v3981, 0.0
    %3988 = vadd.xlane.f32.xlu0 %v3987
    %v3989 = vpop.xlane.xlu0 %3988
    %v3990 = vsel %vm547, %v3983, 0.0
    %3991 = vadd.xlane.f32.xlu0 %v3990
    %v3992 = vpop.xlane.xlu0 %3991
    %v3993 = vrcp.pop %v3986
    %v3994 = vrcp.pop %v3989
    %v3995 = vrcp.pop %v3992
    %v3996 = vmul.f32 %v3979, %v3993
    %v3997 = vmul.f32 %v3981, %v3994
    %v3998 = vmul.f32 %v3983, %v3995
    %3999 = vrot.lane.b32.xlu0 %v3122, 40
    %v4000 = vpop.permute.xlu0 %3999
    %4001 = vrot.lane.b32.xlu0 %v3127, 40
    %v4002 = vpop.permute.xlu0 %4001
    %4003 = vrot.lane.b32.xlu0 %v3132, 40
    %v4004 = vpop.permute.xlu0 %4003
    %v4008 = vsel %vm540, %v3996, 0
    %v4011 = vsel %vm540, %v3997, 0
    %v4014 = vsel %vm540, %v3998, 0
    %v4016 = vsel %vm202, %v4004, 0
    %4018 = vmatprep.subr.mxu0 0.0
    %4019 = vmatpush1.msra.mxu0 0.0
    %4020 = vmatprep.subr.mxu0 0.0
    %4021 = vmatpush1.msra.mxu0 0.0
    %4022 = vmatprep.subr.mxu0 0.0
    %4023 = vmatpush1.msra.mxu0 0.0
    %4024 = vmatprep.subr.mxu0 0.0
    %4025 = vmatpush1.msra.mxu0 0.0
    %4026 = vmatprep.subr.mxu0 0.0
    %4027 = vmatpush1.msra.mxu0 0.0
    %4028 = vmatprep.subr.mxu0 0.0
    %4029 = vmatpush1.msra.mxu0 0.0
    %4030 = vmatprep.subr.mxu0 0.0
    %4031 = vmatpush1.msra.mxu0 0.0
    %4032 = vmatprep.subr.mxu0 0.0
    %4033 = vmatpush1.msra.mxu0 0.0
    %4034 = vmatprep.subr.mxu0 0.0
    %4035 = vmatpush1.msra.mxu0 0.0
    %4036 = vmatprep.subr.mxu0 0.0
    %4037 = vmatpush1.msra.mxu0 0.0
    %4038 = vmatprep.subr.mxu0 0.0
    %4039 = vmatpush1.msra.mxu0 0.0
    %4040 = vmatprep.subr.mxu0 0.0
    %4041 = vmatpush1.msra.mxu0 0.0
    %4042 = vmatprep.subr.mxu0 0.0
    %4043 = vmatpush1.msra.mxu0 0.0
    %4044 = vmatprep.subr.mxu0 0.0
    %4045 = vmatpush1.msra.mxu0 %v4016
    %4046 = vmatprep.subr.mxu0 0.0
    %4047 = vmatpush1.msra.mxu0 %v4002
    %4048 = vmatprep.subr.mxu0 0.0
    %4049 = vmatpush1.msra.mxu0 %v4000
    %4050 = vmatprep.subr.mxu0 0.0
    %4051 = vmatpush2.msra.mxu0 0.0
    %4052 = vmatprep.subr.mxu0 0.0
    %4053 = vmatpush2.msra.mxu0 0.0
    %4054 = vmatprep.subr.mxu0 0.0
    %4055 = vmatpush2.msra.mxu0 0.0
    %4056 = vmatprep.subr.mxu0 0.0
    %4057 = vmatpush2.msra.mxu0 0.0
    %4058 = vmatprep.subr.mxu0 0.0
    %4059 = vmatpush2.msra.mxu0 0.0
    %4060 = vmatprep.subr.mxu0 0.0
    %4061 = vmatpush2.msra.mxu0 0.0
    %4062 = vmatprep.subr.mxu0 0.0
    %4063 = vmatpush2.msra.mxu0 0.0
    %4064 = vmatprep.subr.mxu0 0.0
    %4065 = vmatpush2.msra.mxu0 0.0
    %4066 = vmatprep.subr.mxu0 0.0
    %4067 = vmatpush2.msra.mxu0 0.0
    %4068 = vmatprep.subr.mxu0 0.0
    %4069 = vmatpush2.msra.mxu0 0.0
    %4070 = vmatprep.subr.mxu0 0.0
    %4071 = vmatpush2.msra.mxu0 0.0
    %4072 = vmatprep.subr.mxu0 0.0
    %4073 = vmatpush2.msra.mxu0 0.0
    %4074 = vmatprep.subr.mxu0 0.0
    %4075 = vmatpush2.msra.mxu0 0.0
    %4076 = vmatprep.subr.mxu0 0.0
    %4077 = vmatpush2.msra.mxu0 0.0
    %4078 = vmatprep.subr.mxu0 0.0
    %4079 = vmatpush2.msra.mxu0 0.0
    %4080 = vmatprep.subr.mxu0 0.0
    %4081 = vmatpush2.msra.mxu0 0.0
    %4082 = vmatprep.mubr.f32.mxu0 0.0
    %4083 = vmatmul.mubr.f32.gmra.mxu0 %v4008
    %v4084 = vpop.f32.mrf.mxu0
    %v4085 = vadd.f32 0.0, %v4084
    %v4086 = vpop.f32.mrf.mxu0
    %4087 = vmatprep.mubr.f32.mxu0 0.0
    %4088 = vmatmul.mubr.f32.gmra.mxu0 %v4011
    %v4089 = vpop.f32.mrf.mxu0
    %v4090 = vadd.f32 0.0, %v4089
    %v4091 = vpop.f32.mrf.mxu0
    %4092 = vmatprep.mubr.f32.mxu0 0.0
    %4093 = vmatmul.mubr.f32.gmra.mxu0 %v4014
    %v4094 = vpop.f32.mrf.mxu0
    %v4095 = vadd.f32 0.0, %v4094
    %v4096 = vpop.f32.mrf.mxu0
    %4097 = vdwg.mxu0
    %4101 = vrot.lane.b32.xlu0 %v3607, 8
    %v4102 = vpop.permute.xlu0 %4101
    %4103 = vrot.lane.b32.xlu0 %v3612, 8
    %v4104 = vpop.permute.xlu0 %4103
    %4105 = vrot.lane.b32.xlu0 %v3617, 8
    %v4106 = vpop.permute.xlu0 %4105
    %4113 = vrot.lane.b32.xlu0 %v3846, 16
    %v4114 = vpop.permute.xlu0 %4113
    %4115 = vrot.lane.b32.xlu0 %v3851, 16
    %v4116 = vpop.permute.xlu0 %4115
    %4117 = vrot.lane.b32.xlu0 %v3856, 16
    %v4118 = vpop.permute.xlu0 %4117
    %4125 = vrot.lane.b32.xlu0 %v4085, 24
    %v4126 = vpop.permute.xlu0 %4125
    %4127 = vrot.lane.b32.xlu0 %v4090, 24
    %v4128 = vpop.permute.xlu0 %4127
    %4129 = vrot.lane.b32.xlu0 %v4095, 24
    %v4130 = vpop.permute.xlu0 %4129
    %v4134 = vsel %vm444, %v3368, %v4102
    %v4135 = vsel %vm444, %v3373, %v4104
    %v4136 = vsel %vm444, %v3378, %v4106
    %v4137 = vsel %vm82, %v4134, %v4114
    %v4138 = vsel %vm82, %v4135, %v4116
    %v4139 = vsel %vm82, %v4136, %v4118
    %v4140 = vsel %vm1433, %v4137, %v4126
    %v4141 = vsel %vm1433, %v4138, %v4128
    %v4142 = vsel %vm1433, %v4139, %v4130
    %v4145 = vrot.slane %v3132, 1
    %v4146 = vrot.slane %v3137, 1
    %v4147 = vsel %vm188, %v4145, %v4146
    %v4148 = vrot.slane %v3142, 1
    %v4149 = vsel %vm188, %v4146, %v4148
    %4150 = vrot.lane.b32.xlu0 %v4147, 96
    %v4151 = vpop.permute.xlu0 %4150
    %4152 = vrot.lane.b32.xlu0 %v4149, 96
    %v4153 = vpop.permute.xlu0 %4152
    %4154 = vrot.lane.b32.xlu0 %v4148, 96
    %v4155 = vpop.permute.xlu0 %4154
    %v4156 = vsel %vm444, %v4147, 0
    %v4158 = vsel %vm444, %v4149, 0
    %v4160 = vsel %vm444, %v4148, 0
    %v4162 = vsel %vm444, %v4151, 0
    %v4164 = vsel %vm444, %v4153, 0
    %v4166 = vsel %vm444, %v4155, 0
    %4168 = vmatprep.subr.mxu0 0.0
    %4169 = vmatpush1.xpose.msra.mxu0 0.0
    %4170 = vmatprep.subr.mxu0 0.0
    %4171 = vmatpush1.xpose.msra.mxu0 0.0
    %4172 = vmatprep.subr.mxu0 0.0
    %4173 = vmatpush1.xpose.msra.mxu0 0.0
    %4174 = vmatprep.subr.mxu0 0.0
    %4175 = vmatpush1.xpose.msra.mxu0 0.0
    %4176 = vmatprep.subr.mxu0 0.0
    %4177 = vmatpush1.xpose.msra.mxu0 0.0
    %4178 = vmatprep.subr.mxu0 0.0
    %4179 = vmatpush1.xpose.msra.mxu0 0.0
    %4180 = vmatprep.subr.mxu0 0.0
    %4181 = vmatpush1.xpose.msra.mxu0 0.0
    %4182 = vmatprep.subr.mxu0 0.0
    %4183 = vmatpush1.xpose.msra.mxu0 0.0
    %4184 = vmatprep.subr.mxu0 0.0
    %4185 = vmatpush1.xpose.msra.mxu0 0.0
    %4186 = vmatprep.subr.mxu0 0.0
    %4187 = vmatpush1.xpose.msra.mxu0 0.0
    %4188 = vmatprep.subr.mxu0 0.0
    %4189 = vmatpush1.xpose.msra.mxu0 0.0
    %4190 = vmatprep.subr.mxu0 0.0
    %4191 = vmatpush1.xpose.msra.mxu0 0.0
    %4192 = vmatprep.subr.mxu0 0.0
    %4193 = vmatpush1.xpose.msra.mxu0 0.0
    %4194 = vmatprep.subr.mxu0 0.0
    %4195 = vmatpush1.xpose.msra.mxu0 %v4166
    %4196 = vmatprep.subr.mxu0 0.0
    %4197 = vmatpush1.xpose.msra.mxu0 %v4164
    %4198 = vmatprep.subr.mxu0 0.0
    %4199 = vmatpush1.xpose.msra.mxu0 %v4162
    %4200 = vmatprep.subr.mxu0 0.0
    %4201 = vmatpush2.xpose.msra.mxu0 0.0
    %4202 = vmatprep.subr.mxu0 0.0
    %4203 = vmatpush2.xpose.msra.mxu0 0.0
    %4204 = vmatprep.subr.mxu0 0.0
    %4205 = vmatpush2.xpose.msra.mxu0 0.0
    %4206 = vmatprep.subr.mxu0 0.0
    %4207 = vmatpush2.xpose.msra.mxu0 0.0
    %4208 = vmatprep.subr.mxu0 0.0
    %4209 = vmatpush2.xpose.msra.mxu0 0.0
    %4210 = vmatprep.subr.mxu0 0.0
    %4211 = vmatpush2.xpose.msra.mxu0 0.0
    %4212 = vmatprep.subr.mxu0 0.0
    %4213 = vmatpush2.xpose.msra.mxu0 0.0
    %4214 = vmatprep.subr.mxu0 0.0
    %4215 = vmatpush2.xpose.msra.mxu0 0.0
    %4216 = vmatprep.subr.mxu0 0.0
    %4217 = vmatpush2.xpose.msra.mxu0 0.0
    %4218 = vmatprep.subr.mxu0 0.0
    %4219 = vmatpush2.xpose.msra.mxu0 0.0
    %4220 = vmatprep.subr.mxu0 0.0
    %4221 = vmatpush2.xpose.msra.mxu0 0.0
    %4222 = vmatprep.subr.mxu0 0.0
    %4223 = vmatpush2.xpose.msra.mxu0 0.0
    %4224 = vmatprep.subr.mxu0 0.0
    %4225 = vmatpush2.xpose.msra.mxu0 0.0
    %4226 = vmatprep.subr.mxu0 0.0
    %4227 = vmatpush2.xpose.msra.mxu0 0.0
    %4228 = vmatprep.subr.mxu0 0.0
    %4229 = vmatpush2.xpose.msra.mxu0 0.0
    %4230 = vmatprep.subr.mxu0 0.0
    %4231 = vmatpush2.xpose.msra.mxu0 0.0
    %4232 = vmatprep.mubr.f32.mxu0 0.0
    %4233 = vmatmul.mubr.f32.gmra.mxu0 %v4156
    %v4234 = vpop.f32.mrf.mxu0
    %v4235 = vadd.f32 0.0, %v4234
    %v4236 = vpop.f32.mrf.mxu0
    %4237 = vmatprep.mubr.f32.mxu0 0.0
    %4238 = vmatmul.mubr.f32.gmra.mxu0 %v4158
    %v4239 = vpop.f32.mrf.mxu0
    %v4240 = vadd.f32 0.0, %v4239
    %v4241 = vpop.f32.mrf.mxu0
    %4242 = vmatprep.mubr.f32.mxu0 0.0
    %4243 = vmatmul.mubr.f32.gmra.mxu0 %v4160
    %v4244 = vpop.f32.mrf.mxu0
    %v4245 = vadd.f32 0.0, %v4244
    %v4246 = vpop.f32.mrf.mxu0
    %4247 = vdwg.mxu0
    %v4248 = vmul.f32 %v4235, 0.35355338
    %v4249 = vmul.f32 %v4240, 0.35355338
    %v4250 = vmul.f32 %v4245, 0.35355338
    %v4251 = vsel %vm540, %v4248, -inf
    %4252 = vmax.xlane.f32.xlu0 %v4251
    %v4253 = vpop.xlane.xlu0 %4252
    %v4254 = vsel %vm540, %v4249, -inf
    %4255 = vmax.xlane.f32.xlu0 %v4254
    %v4256 = vpop.xlane.xlu0 %4255
    %v4257 = vsel %vm547, %v4250, -inf
    %4258 = vmax.xlane.f32.xlu0 %v4257
    %v4259 = vpop.xlane.xlu0 %4258
    %v4260 = vsub.f32 %v4248, %v4253
    %v4261 = vsub.f32 %v4249, %v4256
    %v4262 = vsub.f32 %v4250, %v4259
    %v4263 = vmul.f32 %v4260, 1.442695
    %v4264 = vpow.pop %v4263
    %v4265 = vmul.f32 %v4261, 1.442695
    %v4266 = vpow.pop %v4265
    %v4267 = vmul.f32 %v4262, 1.442695
    %v4268 = vpow.pop %v4267
    %v4269 = vsel %vm540, %v4264, 0.0
    %4270 = vadd.xlane.f32.xlu0 %v4269
    %v4271 = vpop.xlane.xlu0 %4270
    %v4272 = vsel %vm540, %v4266, 0.0
    %4273 = vadd.xlane.f32.xlu0 %v4272
    %v4274 = vpop.xlane.xlu0 %4273
    %v4275 = vsel %vm547, %v4268, 0.0
    %4276 = vadd.xlane.f32.xlu0 %v4275
    %v4277 = vpop.xlane.xlu0 %4276
    %v4278 = vrcp.pop %v4271
    %v4279 = vrcp.pop %v4274
    %v4280 = vrcp.pop %v4277
    %v4281 = vmul.f32 %v4264, %v4278
    %v4282 = vmul.f32 %v4266, %v4279
    %v4283 = vmul.f32 %v4268, %v4280
    %4284 = vrot.lane.b32.xlu0 %v4147, 64
    %v4285 = vpop.permute.xlu0 %4284
    %4286 = vrot.lane.b32.xlu0 %v4149, 64
    %v4287 = vpop.permute.xlu0 %4286
    %4288 = vrot.lane.b32.xlu0 %v4148, 64
    %v4289 = vpop.permute.xlu0 %4288
    %v4293 = vsel %vm540, %v4281, 0
    %v4296 = vsel %vm540, %v4282, 0
    %v4299 = vsel %vm540, %v4283, 0
    %v4301 = vsel %vm202, %v4289, 0
    %4303 = vmatprep.subr.mxu0 0.0
    %4304 = vmatpush1.msra.mxu0 0.0
    %4305 = vmatprep.subr.mxu0 0.0
    %4306 = vmatpush1.msra.mxu0 0.0
    %4307 = vmatprep.subr.mxu0 0.0
    %4308 = vmatpush1.msra.mxu0 0.0
    %4309 = vmatprep.subr.mxu0 0.0
    %4310 = vmatpush1.msra.mxu0 0.0
    %4311 = vmatprep.subr.mxu0 0.0
    %4312 = vmatpush1.msra.mxu0 0.0
    %4313 = vmatprep.subr.mxu0 0.0
    %4314 = vmatpush1.msra.mxu0 0.0
    %4315 = vmatprep.subr.mxu0 0.0
    %4316 = vmatpush1.msra.mxu0 0.0
    %4317 = vmatprep.subr.mxu0 0.0
    %4318 = vmatpush1.msra.mxu0 0.0
    %4319 = vmatprep.subr.mxu0 0.0
    %4320 = vmatpush1.msra.mxu0 0.0
    %4321 = vmatprep.subr.mxu0 0.0
    %4322 = vmatpush1.msra.mxu0 0.0
    %4323 = vmatprep.subr.mxu0 0.0
    %4324 = vmatpush1.msra.mxu0 0.0
    %4325 = vmatprep.subr.mxu0 0.0
    %4326 = vmatpush1.msra.mxu0 0.0
    %4327 = vmatprep.subr.mxu0 0.0
    %4328 = vmatpush1.msra.mxu0 0.0
    %4329 = vmatprep.subr.mxu0 0.0
    %4330 = vmatpush1.msra.mxu0 %v4301
    %4331 = vmatprep.subr.mxu0 0.0
    %4332 = vmatpush1.msra.mxu0 %v4287
    %4333 = vmatprep.subr.mxu0 0.0
    %4334 = vmatpush1.msra.mxu0 %v4285
    %4335 = vmatprep.subr.mxu0 0.0
    %4336 = vmatpush2.msra.mxu0 0.0
    %4337 = vmatprep.subr.mxu0 0.0
    %4338 = vmatpush2.msra.mxu0 0.0
    %4339 = vmatprep.subr.mxu0 0.0
    %4340 = vmatpush2.msra.mxu0 0.0
    %4341 = vmatprep.subr.mxu0 0.0
    %4342 = vmatpush2.msra.mxu0 0.0
    %4343 = vmatprep.subr.mxu0 0.0
    %4344 = vmatpush2.msra.mxu0 0.0
    %4345 = vmatprep.subr.mxu0 0.0
    %4346 = vmatpush2.msra.mxu0 0.0
    %4347 = vmatprep.subr.mxu0 0.0
    %4348 = vmatpush2.msra.mxu0 0.0
    %4349 = vmatprep.subr.mxu0 0.0
    %4350 = vmatpush2.msra.mxu0 0.0
    %4351 = vmatprep.subr.mxu0 0.0
    %4352 = vmatpush2.msra.mxu0 0.0
    %4353 = vmatprep.subr.mxu0 0.0
    %4354 = vmatpush2.msra.mxu0 0.0
    %4355 = vmatprep.subr.mxu0 0.0
    %4356 = vmatpush2.msra.mxu0 0.0
    %4357 = vmatprep.subr.mxu0 0.0
    %4358 = vmatpush2.msra.mxu0 0.0
    %4359 = vmatprep.subr.mxu0 0.0
    %4360 = vmatpush2.msra.mxu0 0.0
    %4361 = vmatprep.subr.mxu0 0.0
    %4362 = vmatpush2.msra.mxu0 0.0
    %4363 = vmatprep.subr.mxu0 0.0
    %4364 = vmatpush2.msra.mxu0 0.0
    %4365 = vmatprep.subr.mxu0 0.0
    %4366 = vmatpush2.msra.mxu0 0.0
    %4367 = vmatprep.mubr.f32.mxu0 0.0
    %4368 = vmatmul.mubr.f32.gmra.mxu0 %v4293
    %v4369 = vpop.f32.mrf.mxu0
    %v4370 = vadd.f32 0.0, %v4369
    %v4371 = vpop.f32.mrf.mxu0
    %4372 = vmatprep.mubr.f32.mxu0 0.0
    %4373 = vmatmul.mubr.f32.gmra.mxu0 %v4296
    %v4374 = vpop.f32.mrf.mxu0
    %v4375 = vadd.f32 0.0, %v4374
    %v4376 = vpop.f32.mrf.mxu0
    %4377 = vmatprep.mubr.f32.mxu0 0.0
    %4378 = vmatmul.mubr.f32.gmra.mxu0 %v4299
    %v4379 = vpop.f32.mrf.mxu0
    %v4380 = vadd.f32 0.0, %v4379
    %v4381 = vpop.f32.mrf.mxu0
    %4382 = vdwg.mxu0
    %4383 = vrot.lane.b32.xlu0 %v4147, 120
    %v4384 = vpop.permute.xlu0 %4383
    %4385 = vrot.lane.b32.xlu0 %v4149, 120
    %v4386 = vpop.permute.xlu0 %4385
    %4387 = vrot.lane.b32.xlu0 %v4148, 120
    %v4388 = vpop.permute.xlu0 %4387
    %4389 = vrot.lane.b32.xlu0 %v4147, 88
    %v4390 = vpop.permute.xlu0 %4389
    %4391 = vrot.lane.b32.xlu0 %v4149, 88
    %v4392 = vpop.permute.xlu0 %4391
    %4393 = vrot.lane.b32.xlu0 %v4148, 88
    %v4394 = vpop.permute.xlu0 %4393
    %v4395 = vsel %vm444, %v4384, 0
    %v4397 = vsel %vm444, %v4386, 0
    %v4399 = vsel %vm444, %v4388, 0
    %v4401 = vsel %vm444, %v4390, 0
    %v4403 = vsel %vm444, %v4392, 0
    %v4405 = vsel %vm444, %v4394, 0
    %4407 = vmatprep.subr.mxu0 0.0
    %4408 = vmatpush1.xpose.msra.mxu0 0.0
    %4409 = vmatprep.subr.mxu0 0.0
    %4410 = vmatpush1.xpose.msra.mxu0 0.0
    %4411 = vmatprep.subr.mxu0 0.0
    %4412 = vmatpush1.xpose.msra.mxu0 0.0
    %4413 = vmatprep.subr.mxu0 0.0
    %4414 = vmatpush1.xpose.msra.mxu0 0.0
    %4415 = vmatprep.subr.mxu0 0.0
    %4416 = vmatpush1.xpose.msra.mxu0 0.0
    %4417 = vmatprep.subr.mxu0 0.0
    %4418 = vmatpush1.xpose.msra.mxu0 0.0
    %4419 = vmatprep.subr.mxu0 0.0
    %4420 = vmatpush1.xpose.msra.mxu0 0.0
    %4421 = vmatprep.subr.mxu0 0.0
    %4422 = vmatpush1.xpose.msra.mxu0 0.0
    %4423 = vmatprep.subr.mxu0 0.0
    %4424 = vmatpush1.xpose.msra.mxu0 0.0
    %4425 = vmatprep.subr.mxu0 0.0
    %4426 = vmatpush1.xpose.msra.mxu0 0.0
    %4427 = vmatprep.subr.mxu0 0.0
    %4428 = vmatpush1.xpose.msra.mxu0 0.0
    %4429 = vmatprep.subr.mxu0 0.0
    %4430 = vmatpush1.xpose.msra.mxu0 0.0
    %4431 = vmatprep.subr.mxu0 0.0
    %4432 = vmatpush1.xpose.msra.mxu0 0.0
    %4433 = vmatprep.subr.mxu0 0.0
    %4434 = vmatpush1.xpose.msra.mxu0 %v4405
    %4435 = vmatprep.subr.mxu0 0.0
    %4436 = vmatpush1.xpose.msra.mxu0 %v4403
    %4437 = vmatprep.subr.mxu0 0.0
    %4438 = vmatpush1.xpose.msra.mxu0 %v4401
    %4439 = vmatprep.subr.mxu0 0.0
    %4440 = vmatpush2.xpose.msra.mxu0 0.0
    %4441 = vmatprep.subr.mxu0 0.0
    %4442 = vmatpush2.xpose.msra.mxu0 0.0
    %4443 = vmatprep.subr.mxu0 0.0
    %4444 = vmatpush2.xpose.msra.mxu0 0.0
    %4445 = vmatprep.subr.mxu0 0.0
    %4446 = vmatpush2.xpose.msra.mxu0 0.0
    %4447 = vmatprep.subr.mxu0 0.0
    %4448 = vmatpush2.xpose.msra.mxu0 0.0
    %4449 = vmatprep.subr.mxu0 0.0
    %4450 = vmatpush2.xpose.msra.mxu0 0.0
    %4451 = vmatprep.subr.mxu0 0.0
    %4452 = vmatpush2.xpose.msra.mxu0 0.0
    %4453 = vmatprep.subr.mxu0 0.0
    %4454 = vmatpush2.xpose.msra.mxu0 0.0
    %4455 = vmatprep.subr.mxu0 0.0
    %4456 = vmatpush2.xpose.msra.mxu0 0.0
    %4457 = vmatprep.subr.mxu0 0.0
    %4458 = vmatpush2.xpose.msra.mxu0 0.0
    %4459 = vmatprep.subr.mxu0 0.0
    %4460 = vmatpush2.xpose.msra.mxu0 0.0
    %4461 = vmatprep.subr.mxu0 0.0
    %4462 = vmatpush2.xpose.msra.mxu0 0.0
    %4463 = vmatprep.subr.mxu0 0.0
    %4464 = vmatpush2.xpose.msra.mxu0 0.0
    %4465 = vmatprep.subr.mxu0 0.0
    %4466 = vmatpush2.xpose.msra.mxu0 0.0
    %4467 = vmatprep.subr.mxu0 0.0
    %4468 = vmatpush2.xpose.msra.mxu0 0.0
    %4469 = vmatprep.subr.mxu0 0.0
    %4470 = vmatpush2.xpose.msra.mxu0 0.0
    %4471 = vmatprep.mubr.f32.mxu0 0.0
    %4472 = vmatmul.mubr.f32.gmra.mxu0 %v4395
    %v4473 = vpop.f32.mrf.mxu0
    %v4474 = vadd.f32 0.0, %v4473
    %v4475 = vpop.f32.mrf.mxu0
    %4476 = vmatprep.mubr.f32.mxu0 0.0
    %4477 = vmatmul.mubr.f32.gmra.mxu0 %v4397
    %v4478 = vpop.f32.mrf.mxu0
    %v4479 = vadd.f32 0.0, %v4478
    %v4480 = vpop.f32.mrf.mxu0
    %4481 = vmatprep.mubr.f32.mxu0 0.0
    %4482 = vmatmul.mubr.f32.gmra.mxu0 %v4399
    %v4483 = vpop.f32.mrf.mxu0
    %v4484 = vadd.f32 0.0, %v4483
    %v4485 = vpop.f32.mrf.mxu0
    %4486 = vdwg.mxu0
    %v4487 = vmul.f32 %v4474, 0.35355338
    %v4488 = vmul.f32 %v4479, 0.35355338
    %v4489 = vmul.f32 %v4484, 0.35355338
    %v4490 = vsel %vm540, %v4487, -inf
    %4491 = vmax.xlane.f32.xlu0 %v4490
    %v4492 = vpop.xlane.xlu0 %4491
    %v4493 = vsel %vm540, %v4488, -inf
    %4494 = vmax.xlane.f32.xlu0 %v4493
    %v4495 = vpop.xlane.xlu0 %4494
    %v4496 = vsel %vm547, %v4489, -inf
    %4497 = vmax.xlane.f32.xlu0 %v4496
    %v4498 = vpop.xlane.xlu0 %4497
    %v4499 = vsub.f32 %v4487, %v4492
    %v4500 = vsub.f32 %v4488, %v4495
    %v4501 = vsub.f32 %v4489, %v4498
    %v4502 = vmul.f32 %v4499, 1.442695
    %v4503 = vpow.pop %v4502
    %v4504 = vmul.f32 %v4500, 1.442695
    %v4505 = vpow.pop %v4504
    %v4506 = vmul.f32 %v4501, 1.442695
    %v4507 = vpow.pop %v4506
    %v4508 = vsel %vm540, %v4503, 0.0
    %4509 = vadd.xlane.f32.xlu0 %v4508
    %v4510 = vpop.xlane.xlu0 %4509
    %v4511 = vsel %vm540, %v4505, 0.0
    %4512 = vadd.xlane.f32.xlu0 %v4511
    %v4513 = vpop.xlane.xlu0 %4512
    %v4514 = vsel %vm547, %v4507, 0.0
    %4515 = vadd.xlane.f32.xlu0 %v4514
    %v4516 = vpop.xlane.xlu0 %4515
    %v4517 = vrcp.pop %v4510
    %v4518 = vrcp.pop %v4513
    %v4519 = vrcp.pop %v4516
    %v4520 = vmul.f32 %v4503, %v4517
    %v4521 = vmul.f32 %v4505, %v4518
    %v4522 = vmul.f32 %v4507, %v4519
    %4523 = vrot.lane.b32.xlu0 %v4147, 56
    %v4524 = vpop.permute.xlu0 %4523
    %4525 = vrot.lane.b32.xlu0 %v4149, 56
    %v4526 = vpop.permute.xlu0 %4525
    %4527 = vrot.lane.b32.xlu0 %v4148, 56
    %v4528 = vpop.permute.xlu0 %4527
    %v4532 = vsel %vm540, %v4520, 0
    %v4535 = vsel %vm540, %v4521, 0
    %v4538 = vsel %vm540, %v4522, 0
    %v4540 = vsel %vm202, %v4528, 0
    %4542 = vmatprep.subr.mxu0 0.0
    %4543 = vmatpush1.msra.mxu0 0.0
    %4544 = vmatprep.subr.mxu0 0.0
    %4545 = vmatpush1.msra.mxu0 0.0
    %4546 = vmatprep.subr.mxu0 0.0
    %4547 = vmatpush1.msra.mxu0 0.0
    %4548 = vmatprep.subr.mxu0 0.0
    %4549 = vmatpush1.msra.mxu0 0.0
    %4550 = vmatprep.subr.mxu0 0.0
    %4551 = vmatpush1.msra.mxu0 0.0
    %4552 = vmatprep.subr.mxu0 0.0
    %4553 = vmatpush1.msra.mxu0 0.0
    %4554 = vmatprep.subr.mxu0 0.0
    %4555 = vmatpush1.msra.mxu0 0.0
    %4556 = vmatprep.subr.mxu0 0.0
    %4557 = vmatpush1.msra.mxu0 0.0
    %4558 = vmatprep.subr.mxu0 0.0
    %4559 = vmatpush1.msra.mxu0 0.0
    %4560 = vmatprep.subr.mxu0 0.0
    %4561 = vmatpush1.msra.mxu0 0.0
    %4562 = vmatprep.subr.mxu0 0.0
    %4563 = vmatpush1.msra.mxu0 0.0
    %4564 = vmatprep.subr.mxu0 0.0
    %4565 = vmatpush1.msra.mxu0 0.0
    %4566 = vmatprep.subr.mxu0 0.0
    %4567 = vmatpush1.msra.mxu0 0.0
    %4568 = vmatprep.subr.mxu0 0.0
    %4569 = vmatpush1.msra.mxu0 %v4540
    %4570 = vmatprep.subr.mxu0 0.0
    %4571 = vmatpush1.msra.mxu0 %v4526
    %4572 = vmatprep.subr.mxu0 0.0
    %4573 = vmatpush1.msra.mxu0 %v4524
    %4574 = vmatprep.subr.mxu0 0.0
    %4575 = vmatpush2.msra.mxu0 0.0
    %4576 = vmatprep.subr.mxu0 0.0
    %4577 = vmatpush2.msra.mxu0 0.0
    %4578 = vmatprep.subr.mxu0 0.0
    %4579 = vmatpush2.msra.mxu0 0.0
    %4580 = vmatprep.subr.mxu0 0.0
    %4581 = vmatpush2.msra.mxu0 0.0
    %4582 = vmatprep.subr.mxu0 0.0
    %4583 = vmatpush2.msra.mxu0 0.0
    %4584 = vmatprep.subr.mxu0 0.0
    %4585 = vmatpush2.msra.mxu0 0.0
    %4586 = vmatprep.subr.mxu0 0.0
    %4587 = vmatpush2.msra.mxu0 0.0
    %4588 = vmatprep.subr.mxu0 0.0
    %4589 = vmatpush2.msra.mxu0 0.0
    %4590 = vmatprep.subr.mxu0 0.0
    %4591 = vmatpush2.msra.mxu0 0.0
    %4592 = vmatprep.subr.mxu0 0.0
    %4593 = vmatpush2.msra.mxu0 0.0
    %4594 = vmatprep.subr.mxu0 0.0
    %4595 = vmatpush2.msra.mxu0 0.0
    %4596 = vmatprep.subr.mxu0 0.0
    %4597 = vmatpush2.msra.mxu0 0.0
    %4598 = vmatprep.subr.mxu0 0.0
    %4599 = vmatpush2.msra.mxu0 0.0
    %4600 = vmatprep.subr.mxu0 0.0
    %4601 = vmatpush2.msra.mxu0 0.0
    %4602 = vmatprep.subr.mxu0 0.0
    %4603 = vmatpush2.msra.mxu0 0.0
    %4604 = vmatprep.subr.mxu0 0.0
    %4605 = vmatpush2.msra.mxu0 0.0
    %4606 = vmatprep.mubr.f32.mxu0 0.0
    %4607 = vmatmul.mubr.f32.gmra.mxu0 %v4532
    %v4608 = vpop.f32.mrf.mxu0
    %v4609 = vadd.f32 0.0, %v4608
    %v4610 = vpop.f32.mrf.mxu0
    %4611 = vmatprep.mubr.f32.mxu0 0.0
    %4612 = vmatmul.mubr.f32.gmra.mxu0 %v4535
    %v4613 = vpop.f32.mrf.mxu0
    %v4614 = vadd.f32 0.0, %v4613
    %v4615 = vpop.f32.mrf.mxu0
    %4616 = vmatprep.mubr.f32.mxu0 0.0
    %4617 = vmatmul.mubr.f32.gmra.mxu0 %v4538
    %v4618 = vpop.f32.mrf.mxu0
    %v4619 = vadd.f32 0.0, %v4618
    %v4620 = vpop.f32.mrf.mxu0
    %4621 = vdwg.mxu0
    %4622 = vrot.lane.b32.xlu0 %v4147, 112
    %v4623 = vpop.permute.xlu0 %4622
    %4624 = vrot.lane.b32.xlu0 %v4149, 112
    %v4625 = vpop.permute.xlu0 %4624
    %4626 = vrot.lane.b32.xlu0 %v4148, 112
    %v4627 = vpop.permute.xlu0 %4626
    %4628 = vrot.lane.b32.xlu0 %v4147, 80
    %v4629 = vpop.permute.xlu0 %4628
    %4630 = vrot.lane.b32.xlu0 %v4149, 80
    %v4631 = vpop.permute.xlu0 %4630
    %4632 = vrot.lane.b32.xlu0 %v4148, 80
    %v4633 = vpop.permute.xlu0 %4632
    %v4634 = vsel %vm444, %v4623, 0
    %v4636 = vsel %vm444, %v4625, 0
    %v4638 = vsel %vm444, %v4627, 0
    %v4640 = vsel %vm444, %v4629, 0
    %v4642 = vsel %vm444, %v4631, 0
    %v4644 = vsel %vm444, %v4633, 0
    %4646 = vmatprep.subr.mxu0 0.0
    %4647 = vmatpush1.xpose.msra.mxu0 0.0
    %4648 = vmatprep.subr.mxu0 0.0
    %4649 = vmatpush1.xpose.msra.mxu0 0.0
    %4650 = vmatprep.subr.mxu0 0.0
    %4651 = vmatpush1.xpose.msra.mxu0 0.0
    %4652 = vmatprep.subr.mxu0 0.0
    %4653 = vmatpush1.xpose.msra.mxu0 0.0
    %4654 = vmatprep.subr.mxu0 0.0
    %4655 = vmatpush1.xpose.msra.mxu0 0.0
    %4656 = vmatprep.subr.mxu0 0.0
    %4657 = vmatpush1.xpose.msra.mxu0 0.0
    %4658 = vmatprep.subr.mxu0 0.0
    %4659 = vmatpush1.xpose.msra.mxu0 0.0
    %4660 = vmatprep.subr.mxu0 0.0
    %4661 = vmatpush1.xpose.msra.mxu0 0.0
    %4662 = vmatprep.subr.mxu0 0.0
    %4663 = vmatpush1.xpose.msra.mxu0 0.0
    %4664 = vmatprep.subr.mxu0 0.0
    %4665 = vmatpush1.xpose.msra.mxu0 0.0
    %4666 = vmatprep.subr.mxu0 0.0
    %4667 = vmatpush1.xpose.msra.mxu0 0.0
    %4668 = vmatprep.subr.mxu0 0.0
    %4669 = vmatpush1.xpose.msra.mxu0 0.0
    %4670 = vmatprep.subr.mxu0 0.0
    %4671 = vmatpush1.xpose.msra.mxu0 0.0
    %4672 = vmatprep.subr.mxu0 0.0
    %4673 = vmatpush1.xpose.msra.mxu0 %v4644
    %4674 = vmatprep.subr.mxu0 0.0
    %4675 = vmatpush1.xpose.msra.mxu0 %v4642
    %4676 = vmatprep.subr.mxu0 0.0
    %4677 = vmatpush1.xpose.msra.mxu0 %v4640
    %4678 = vmatprep.subr.mxu0 0.0
    %4679 = vmatpush2.xpose.msra.mxu0 0.0
    %4680 = vmatprep.subr.mxu0 0.0
    %4681 = vmatpush2.xpose.msra.mxu0 0.0
    %4682 = vmatprep.subr.mxu0 0.0
    %4683 = vmatpush2.xpose.msra.mxu0 0.0
    %4684 = vmatprep.subr.mxu0 0.0
    %4685 = vmatpush2.xpose.msra.mxu0 0.0
    %4686 = vmatprep.subr.mxu0 0.0
    %4687 = vmatpush2.xpose.msra.mxu0 0.0
    %4688 = vmatprep.subr.mxu0 0.0
    %4689 = vmatpush2.xpose.msra.mxu0 0.0
    %4690 = vmatprep.subr.mxu0 0.0
    %4691 = vmatpush2.xpose.msra.mxu0 0.0
    %4692 = vmatprep.subr.mxu0 0.0
    %4693 = vmatpush2.xpose.msra.mxu0 0.0
    %4694 = vmatprep.subr.mxu0 0.0
    %4695 = vmatpush2.xpose.msra.mxu0 0.0
    %4696 = vmatprep.subr.mxu0 0.0
    %4697 = vmatpush2.xpose.msra.mxu0 0.0
    %4698 = vmatprep.subr.mxu0 0.0
    %4699 = vmatpush2.xpose.msra.mxu0 0.0
    %4700 = vmatprep.subr.mxu0 0.0
    %4701 = vmatpush2.xpose.msra.mxu0 0.0
    %4702 = vmatprep.subr.mxu0 0.0
    %4703 = vmatpush2.xpose.msra.mxu0 0.0
    %4704 = vmatprep.subr.mxu0 0.0
    %4705 = vmatpush2.xpose.msra.mxu0 0.0
    %4706 = vmatprep.subr.mxu0 0.0
    %4707 = vmatpush2.xpose.msra.mxu0 0.0
    %4708 = vmatprep.subr.mxu0 0.0
    %4709 = vmatpush2.xpose.msra.mxu0 0.0
    %4710 = vmatprep.mubr.f32.mxu0 0.0
    %4711 = vmatmul.mubr.f32.gmra.mxu0 %v4634
    %v4712 = vpop.f32.mrf.mxu0
    %v4713 = vadd.f32 0.0, %v4712
    %v4714 = vpop.f32.mrf.mxu0
    %4715 = vmatprep.mubr.f32.mxu0 0.0
    %4716 = vmatmul.mubr.f32.gmra.mxu0 %v4636
    %v4717 = vpop.f32.mrf.mxu0
    %v4718 = vadd.f32 0.0, %v4717
    %v4719 = vpop.f32.mrf.mxu0
    %4720 = vmatprep.mubr.f32.mxu0 0.0
    %4721 = vmatmul.mubr.f32.gmra.mxu0 %v4638
    %v4722 = vpop.f32.mrf.mxu0
    %v4723 = vadd.f32 0.0, %v4722
    %v4724 = vpop.f32.mrf.mxu0
    %4725 = vdwg.mxu0
    %v4726 = vmul.f32 %v4713, 0.35355338
    %v4727 = vmul.f32 %v4718, 0.35355338
    %v4728 = vmul.f32 %v4723, 0.35355338
    %v4729 = vsel %vm540, %v4726, -inf
    %4730 = vmax.xlane.f32.xlu0 %v4729
    %v4731 = vpop.xlane.xlu0 %4730
    %v4732 = vsel %vm540, %v4727, -inf
    %4733 = vmax.xlane.f32.xlu0 %v4732
    %v4734 = vpop.xlane.xlu0 %4733
    %v4735 = vsel %vm547, %v4728, -inf
    %4736 = vmax.xlane.f32.xlu0 %v4735
    %v4737 = vpop.xlane.xlu0 %4736
    %v4738 = vsub.f32 %v4726, %v4731
    %v4739 = vsub.f32 %v4727, %v4734
    %v4740 = vsub.f32 %v4728, %v4737
    %v4741 = vmul.f32 %v4738, 1.442695
    %v4742 = vpow.pop %v4741
    %v4743 = vmul.f32 %v4739, 1.442695
    %v4744 = vpow.pop %v4743
    %v4745 = vmul.f32 %v4740, 1.442695
    %v4746 = vpow.pop %v4745
    %v4747 = vsel %vm540, %v4742, 0.0
    %4748 = vadd.xlane.f32.xlu0 %v4747
    %v4749 = vpop.xlane.xlu0 %4748
    %v4750 = vsel %vm540, %v4744, 0.0
    %4751 = vadd.xlane.f32.xlu0 %v4750
    %v4752 = vpop.xlane.xlu0 %4751
    %v4753 = vsel %vm547, %v4746, 0.0
    %4754 = vadd.xlane.f32.xlu0 %v4753
    %v4755 = vpop.xlane.xlu0 %4754
    %v4756 = vrcp.pop %v4749
    %v4757 = vrcp.pop %v4752
    %v4758 = vrcp.pop %v4755
    %v4759 = vmul.f32 %v4742, %v4756
    %v4760 = vmul.f32 %v4744, %v4757
    %v4761 = vmul.f32 %v4746, %v4758
    %4762 = vrot.lane.b32.xlu0 %v4147, 48
    %v4763 = vpop.permute.xlu0 %4762
    %4764 = vrot.lane.b32.xlu0 %v4149, 48
    %v4765 = vpop.permute.xlu0 %4764
    %4766 = vrot.lane.b32.xlu0 %v4148, 48
    %v4767 = vpop.permute.xlu0 %4766
    %v4771 = vsel %vm540, %v4759, 0
    %v4774 = vsel %vm540, %v4760, 0
    %v4777 = vsel %vm540, %v4761, 0
    %v4779 = vsel %vm202, %v4767, 0
    %4781 = vmatprep.subr.mxu0 0.0
    %4782 = vmatpush1.msra.mxu0 0.0
    %4783 = vmatprep.subr.mxu0 0.0
    %4784 = vmatpush1.msra.mxu0 0.0
    %4785 = vmatprep.subr.mxu0 0.0
    %4786 = vmatpush1.msra.mxu0 0.0
    %4787 = vmatprep.subr.mxu0 0.0
    %4788 = vmatpush1.msra.mxu0 0.0
    %4789 = vmatprep.subr.mxu0 0.0
    %4790 = vmatpush1.msra.mxu0 0.0
    %4791 = vmatprep.subr.mxu0 0.0
    %4792 = vmatpush1.msra.mxu0 0.0
    %4793 = vmatprep.subr.mxu0 0.0
    %4794 = vmatpush1.msra.mxu0 0.0
    %4795 = vmatprep.subr.mxu0 0.0
    %4796 = vmatpush1.msra.mxu0 0.0
    %4797 = vmatprep.subr.mxu0 0.0
    %4798 = vmatpush1.msra.mxu0 0.0
    %4799 = vmatprep.subr.mxu0 0.0
    %4800 = vmatpush1.msra.mxu0 0.0
    %4801 = vmatprep.subr.mxu0 0.0
    %4802 = vmatpush1.msra.mxu0 0.0
    %4803 = vmatprep.subr.mxu0 0.0
    %4804 = vmatpush1.msra.mxu0 0.0
    %4805 = vmatprep.subr.mxu0 0.0
    %4806 = vmatpush1.msra.mxu0 0.0
    %4807 = vmatprep.subr.mxu0 0.0
    %4808 = vmatpush1.msra.mxu0 %v4779
    %4809 = vmatprep.subr.mxu0 0.0
    %4810 = vmatpush1.msra.mxu0 %v4765
    %4811 = vmatprep.subr.mxu0 0.0
    %4812 = vmatpush1.msra.mxu0 %v4763
    %4813 = vmatprep.subr.mxu0 0.0
    %4814 = vmatpush2.msra.mxu0 0.0
    %4815 = vmatprep.subr.mxu0 0.0
    %4816 = vmatpush2.msra.mxu0 0.0
    %4817 = vmatprep.subr.mxu0 0.0
    %4818 = vmatpush2.msra.mxu0 0.0
    %4819 = vmatprep.subr.mxu0 0.0
    %4820 = vmatpush2.msra.mxu0 0.0
    %4821 = vmatprep.subr.mxu0 0.0
    %4822 = vmatpush2.msra.mxu0 0.0
    %4823 = vmatprep.subr.mxu0 0.0
    %4824 = vmatpush2.msra.mxu0 0.0
    %4825 = vmatprep.subr.mxu0 0.0
    %4826 = vmatpush2.msra.mxu0 0.0
    %4827 = vmatprep.subr.mxu0 0.0
    %4828 = vmatpush2.msra.mxu0 0.0
    %4829 = vmatprep.subr.mxu0 0.0
    %4830 = vmatpush2.msra.mxu0 0.0
    %4831 = vmatprep.subr.mxu0 0.0
    %4832 = vmatpush2.msra.mxu0 0.0
    %4833 = vmatprep.subr.mxu0 0.0
    %4834 = vmatpush2.msra.mxu0 0.0
    %4835 = vmatprep.subr.mxu0 0.0
    %4836 = vmatpush2.msra.mxu0 0.0
    %4837 = vmatprep.subr.mxu0 0.0
    %4838 = vmatpush2.msra.mxu0 0.0
    %4839 = vmatprep.subr.mxu0 0.0
    %4840 = vmatpush2.msra.mxu0 0.0
    %4841 = vmatprep.subr.mxu0 0.0
    %4842 = vmatpush2.msra.mxu0 0.0
    %4843 = vmatprep.subr.mxu0 0.0
    %4844 = vmatpush2.msra.mxu0 0.0
    %4845 = vmatprep.mubr.f32.mxu0 0.0
    %4846 = vmatmul.mubr.f32.gmra.mxu0 %v4771
    %v4847 = vpop.f32.mrf.mxu0
    %v4848 = vadd.f32 0.0, %v4847
    %v4849 = vpop.f32.mrf.mxu0
    %4850 = vmatprep.mubr.f32.mxu0 0.0
    %4851 = vmatmul.mubr.f32.gmra.mxu0 %v4774
    %v4852 = vpop.f32.mrf.mxu0
    %v4853 = vadd.f32 0.0, %v4852
    %v4854 = vpop.f32.mrf.mxu0
    %4855 = vmatprep.mubr.f32.mxu0 0.0
    %4856 = vmatmul.mubr.f32.gmra.mxu0 %v4777
    %v4857 = vpop.f32.mrf.mxu0
    %v4858 = vadd.f32 0.0, %v4857
    %v4859 = vpop.f32.mrf.mxu0
    %4860 = vdwg.mxu0
    %4861 = vrot.lane.b32.xlu0 %v4147, 104
    %v4862 = vpop.permute.xlu0 %4861
    %4863 = vrot.lane.b32.xlu0 %v4149, 104
    %v4864 = vpop.permute.xlu0 %4863
    %4865 = vrot.lane.b32.xlu0 %v4148, 104
    %v4866 = vpop.permute.xlu0 %4865
    %4867 = vrot.lane.b32.xlu0 %v4147, 72
    %v4868 = vpop.permute.xlu0 %4867
    %4869 = vrot.lane.b32.xlu0 %v4149, 72
    %v4870 = vpop.permute.xlu0 %4869
    %4871 = vrot.lane.b32.xlu0 %v4148, 72
    %v4872 = vpop.permute.xlu0 %4871
    %v4873 = vsel %vm444, %v4862, 0
    %v4875 = vsel %vm444, %v4864, 0
    %v4877 = vsel %vm444, %v4866, 0
    %v4879 = vsel %vm444, %v4868, 0
    %v4881 = vsel %vm444, %v4870, 0
    %v4883 = vsel %vm444, %v4872, 0
    %4885 = vmatprep.subr.mxu0 0.0
    %4886 = vmatpush1.xpose.msra.mxu0 0.0
    %4887 = vmatprep.subr.mxu0 0.0
    %4888 = vmatpush1.xpose.msra.mxu0 0.0
    %4889 = vmatprep.subr.mxu0 0.0
    %4890 = vmatpush1.xpose.msra.mxu0 0.0
    %4891 = vmatprep.subr.mxu0 0.0
    %4892 = vmatpush1.xpose.msra.mxu0 0.0
    %4893 = vmatprep.subr.mxu0 0.0
    %4894 = vmatpush1.xpose.msra.mxu0 0.0
    %4895 = vmatprep.subr.mxu0 0.0
    %4896 = vmatpush1.xpose.msra.mxu0 0.0
    %4897 = vmatprep.subr.mxu0 0.0
    %4898 = vmatpush1.xpose.msra.mxu0 0.0
    %4899 = vmatprep.subr.mxu0 0.0
    %4900 = vmatpush1.xpose.msra.mxu0 0.0
    %4901 = vmatprep.subr.mxu0 0.0
    %4902 = vmatpush1.xpose.msra.mxu0 0.0
    %4903 = vmatprep.subr.mxu0 0.0
    %4904 = vmatpush1.xpose.msra.mxu0 0.0
    %4905 = vmatprep.subr.mxu0 0.0
    %4906 = vmatpush1.xpose.msra.mxu0 0.0
    %4907 = vmatprep.subr.mxu0 0.0
    %4908 = vmatpush1.xpose.msra.mxu0 0.0
    %4909 = vmatprep.subr.mxu0 0.0
    %4910 = vmatpush1.xpose.msra.mxu0 0.0
    %4911 = vmatprep.subr.mxu0 0.0
    %4912 = vmatpush1.xpose.msra.mxu0 %v4883
    %4913 = vmatprep.subr.mxu0 0.0
    %4914 = vmatpush1.xpose.msra.mxu0 %v4881
    %4915 = vmatprep.subr.mxu0 0.0
    %4916 = vmatpush1.xpose.msra.mxu0 %v4879
    %4917 = vmatprep.subr.mxu0 0.0
    %4918 = vmatpush2.xpose.msra.mxu0 0.0
    %4919 = vmatprep.subr.mxu0 0.0
    %4920 = vmatpush2.xpose.msra.mxu0 0.0
    %4921 = vmatprep.subr.mxu0 0.0
    %4922 = vmatpush2.xpose.msra.mxu0 0.0
    %4923 = vmatprep.subr.mxu0 0.0
    %4924 = vmatpush2.xpose.msra.mxu0 0.0
    %4925 = vmatprep.subr.mxu0 0.0
    %4926 = vmatpush2.xpose.msra.mxu0 0.0
    %4927 = vmatprep.subr.mxu0 0.0
    %4928 = vmatpush2.xpose.msra.mxu0 0.0
    %4929 = vmatprep.subr.mxu0 0.0
    %4930 = vmatpush2.xpose.msra.mxu0 0.0
    %4931 = vmatprep.subr.mxu0 0.0
    %4932 = vmatpush2.xpose.msra.mxu0 0.0
    %4933 = vmatprep.subr.mxu0 0.0
    %4934 = vmatpush2.xpose.msra.mxu0 0.0
    %4935 = vmatprep.subr.mxu0 0.0
    %4936 = vmatpush2.xpose.msra.mxu0 0.0
    %4937 = vmatprep.subr.mxu0 0.0
    %4938 = vmatpush2.xpose.msra.mxu0 0.0
    %4939 = vmatprep.subr.mxu0 0.0
    %4940 = vmatpush2.xpose.msra.mxu0 0.0
    %4941 = vmatprep.subr.mxu0 0.0
    %4942 = vmatpush2.xpose.msra.mxu0 0.0
    %4943 = vmatprep.subr.mxu0 0.0
    %4944 = vmatpush2.xpose.msra.mxu0 0.0
    %4945 = vmatprep.subr.mxu0 0.0
    %4946 = vmatpush2.xpose.msra.mxu0 0.0
    %4947 = vmatprep.subr.mxu0 0.0
    %4948 = vmatpush2.xpose.msra.mxu0 0.0
    %4949 = vmatprep.mubr.f32.mxu0 0.0
    %4950 = vmatmul.mubr.f32.gmra.mxu0 %v4873
    %v4951 = vpop.f32.mrf.mxu0
    %v4952 = vadd.f32 0.0, %v4951
    %v4953 = vpop.f32.mrf.mxu0
    %4954 = vmatprep.mubr.f32.mxu0 0.0
    %4955 = vmatmul.mubr.f32.gmra.mxu0 %v4875
    %v4956 = vpop.f32.mrf.mxu0
    %v4957 = vadd.f32 0.0, %v4956
    %v4958 = vpop.f32.mrf.mxu0
    %4959 = vmatprep.mubr.f32.mxu0 0.0
    %4960 = vmatmul.mubr.f32.gmra.mxu0 %v4877
    %v4961 = vpop.f32.mrf.mxu0
    %v4962 = vadd.f32 0.0, %v4961
    %v4963 = vpop.f32.mrf.mxu0
    %4964 = vdwg.mxu0
    %v4965 = vmul.f32 %v4952, 0.35355338
    %v4966 = vmul.f32 %v4957, 0.35355338
    %v4967 = vmul.f32 %v4962, 0.35355338
    %v4968 = vsel %vm540, %v4965, -inf
    %4969 = vmax.xlane.f32.xlu0 %v4968
    %v4970 = vpop.xlane.xlu0 %4969
    %v4971 = vsel %vm540, %v4966, -inf
    %4972 = vmax.xlane.f32.xlu0 %v4971
    %v4973 = vpop.xlane.xlu0 %4972
    %v4974 = vsel %vm547, %v4967, -inf
    %4975 = vmax.xlane.f32.xlu0 %v4974
    %v4976 = vpop.xlane.xlu0 %4975
    %v4977 = vsub.f32 %v4965, %v4970
    %v4978 = vsub.f32 %v4966, %v4973
    %v4979 = vsub.f32 %v4967, %v4976
    %v4980 = vmul.f32 %v4977, 1.442695
    %v4981 = vpow.pop %v4980
    %v4982 = vmul.f32 %v4978, 1.442695
    %v4983 = vpow.pop %v4982
    %v4984 = vmul.f32 %v4979, 1.442695
    %v4985 = vpow.pop %v4984
    %v4986 = vsel %vm540, %v4981, 0.0
    %4987 = vadd.xlane.f32.xlu0 %v4986
    %v4988 = vpop.xlane.xlu0 %4987
    %v4989 = vsel %vm540, %v4983, 0.0
    %4990 = vadd.xlane.f32.xlu0 %v4989
    %v4991 = vpop.xlane.xlu0 %4990
    %v4992 = vsel %vm547, %v4985, 0.0
    %4993 = vadd.xlane.f32.xlu0 %v4992
    %v4994 = vpop.xlane.xlu0 %4993
    %v4995 = vrcp.pop %v4988
    %v4996 = vrcp.pop %v4991
    %v4997 = vrcp.pop %v4994
    %v4998 = vmul.f32 %v4981, %v4995
    %v4999 = vmul.f32 %v4983, %v4996
    %v5000 = vmul.f32 %v4985, %v4997
    %5001 = vrot.lane.b32.xlu0 %v4147, 40
    %v5002 = vpop.permute.xlu0 %5001
    %5003 = vrot.lane.b32.xlu0 %v4149, 40
    %v5004 = vpop.permute.xlu0 %5003
    %5005 = vrot.lane.b32.xlu0 %v4148, 40
    %v5006 = vpop.permute.xlu0 %5005
    %v5010 = vsel %vm540, %v4998, 0
    %v5013 = vsel %vm540, %v4999, 0
    %v5016 = vsel %vm540, %v5000, 0
    %v5018 = vsel %vm202, %v5006, 0
    %5020 = vmatprep.subr.mxu0 0.0
    %5021 = vmatpush1.msra.mxu0 0.0
    %5022 = vmatprep.subr.mxu0 0.0
    %5023 = vmatpush1.msra.mxu0 0.0
    %5024 = vmatprep.subr.mxu0 0.0
    %5025 = vmatpush1.msra.mxu0 0.0
    %5026 = vmatprep.subr.mxu0 0.0
    %5027 = vmatpush1.msra.mxu0 0.0
    %5028 = vmatprep.subr.mxu0 0.0
    %5029 = vmatpush1.msra.mxu0 0.0
    %5030 = vmatprep.subr.mxu0 0.0
    %5031 = vmatpush1.msra.mxu0 0.0
    %5032 = vmatprep.subr.mxu0 0.0
    %5033 = vmatpush1.msra.mxu0 0.0
    %5034 = vmatprep.subr.mxu0 0.0
    %5035 = vmatpush1.msra.mxu0 0.0
    %5036 = vmatprep.subr.mxu0 0.0
    %5037 = vmatpush1.msra.mxu0 0.0
    %5038 = vmatprep.subr.mxu0 0.0
    %5039 = vmatpush1.msra.mxu0 0.0
    %5040 = vmatprep.subr.mxu0 0.0
    %5041 = vmatpush1.msra.mxu0 0.0
    %5042 = vmatprep.subr.mxu0 0.0
    %5043 = vmatpush1.msra.mxu0 0.0
    %5044 = vmatprep.subr.mxu0 0.0
    %5045 = vmatpush1.msra.mxu0 0.0
    %5046 = vmatprep.subr.mxu0 0.0
    %5047 = vmatpush1.msra.mxu0 %v5018
    %5048 = vmatprep.subr.mxu0 0.0
    %5049 = vmatpush1.msra.mxu0 %v5004
    %5050 = vmatprep.subr.mxu0 0.0
    %5051 = vmatpush1.msra.mxu0 %v5002
    %5052 = vmatprep.subr.mxu0 0.0
    %5053 = vmatpush2.msra.mxu0 0.0
    %5054 = vmatprep.subr.mxu0 0.0
    %5055 = vmatpush2.msra.mxu0 0.0
    %5056 = vmatprep.subr.mxu0 0.0
    %5057 = vmatpush2.msra.mxu0 0.0
    %5058 = vmatprep.subr.mxu0 0.0
    %5059 = vmatpush2.msra.mxu0 0.0
    %5060 = vmatprep.subr.mxu0 0.0
    %5061 = vmatpush2.msra.mxu0 0.0
    %5062 = vmatprep.subr.mxu0 0.0
    %5063 = vmatpush2.msra.mxu0 0.0
    %5064 = vmatprep.subr.mxu0 0.0
    %5065 = vmatpush2.msra.mxu0 0.0
    %5066 = vmatprep.subr.mxu0 0.0
    %5067 = vmatpush2.msra.mxu0 0.0
    %5068 = vmatprep.subr.mxu0 0.0
    %5069 = vmatpush2.msra.mxu0 0.0
    %5070 = vmatprep.subr.mxu0 0.0
    %5071 = vmatpush2.msra.mxu0 0.0
    %5072 = vmatprep.subr.mxu0 0.0
    %5073 = vmatpush2.msra.mxu0 0.0
    %5074 = vmatprep.subr.mxu0 0.0
    %5075 = vmatpush2.msra.mxu0 0.0
    %5076 = vmatprep.subr.mxu0 0.0
    %5077 = vmatpush2.msra.mxu0 0.0
    %5078 = vmatprep.subr.mxu0 0.0
    %5079 = vmatpush2.msra.mxu0 0.0
    %5080 = vmatprep.subr.mxu0 0.0
    %5081 = vmatpush2.msra.mxu0 0.0
    %5082 = vmatprep.subr.mxu0 0.0
    %5083 = vmatpush2.msra.mxu0 0.0
    %5084 = vmatprep.mubr.f32.mxu0 0.0
    %5085 = vmatmul.mubr.f32.gmra.mxu0 %v5010
    %v5086 = vpop.f32.mrf.mxu0
    %v5087 = vadd.f32 0.0, %v5086
    %v5088 = vpop.f32.mrf.mxu0
    %5089 = vmatprep.mubr.f32.mxu0 0.0
    %5090 = vmatmul.mubr.f32.gmra.mxu0 %v5013
    %v5091 = vpop.f32.mrf.mxu0
    %v5092 = vadd.f32 0.0, %v5091
    %v5093 = vpop.f32.mrf.mxu0
    %5094 = vmatprep.mubr.f32.mxu0 0.0
    %5095 = vmatmul.mubr.f32.gmra.mxu0 %v5016
    %v5096 = vpop.f32.mrf.mxu0
    %v5097 = vadd.f32 0.0, %v5096
    %v5098 = vpop.f32.mrf.mxu0
    %5099 = vdwg.mxu0
    %5103 = vrot.lane.b32.xlu0 %v4609, 8
    %v5104 = vpop.permute.xlu0 %5103
    %5105 = vrot.lane.b32.xlu0 %v4614, 8
    %v5106 = vpop.permute.xlu0 %5105
    %5107 = vrot.lane.b32.xlu0 %v4619, 8
    %v5108 = vpop.permute.xlu0 %5107
    %5115 = vrot.lane.b32.xlu0 %v4848, 16
    %v5116 = vpop.permute.xlu0 %5115
    %5117 = vrot.lane.b32.xlu0 %v4853, 16
    %v5118 = vpop.permute.xlu0 %5117
    %5119 = vrot.lane.b32.xlu0 %v4858, 16
    %v5120 = vpop.permute.xlu0 %5119
    %5127 = vrot.lane.b32.xlu0 %v5087, 24
    %v5128 = vpop.permute.xlu0 %5127
    %5129 = vrot.lane.b32.xlu0 %v5092, 24
    %v5130 = vpop.permute.xlu0 %5129
    %5131 = vrot.lane.b32.xlu0 %v5097, 24
    %v5132 = vpop.permute.xlu0 %5131
    %v5136 = vsel %vm444, %v4370, %v5104
    %v5137 = vsel %vm444, %v4375, %v5106
    %v5138 = vsel %vm444, %v4380, %v5108
    %v5139 = vsel %vm82, %v5136, %v5116
    %v5140 = vsel %vm82, %v5137, %v5118
    %v5141 = vsel %vm82, %v5138, %v5120
    %v5142 = vsel %vm1433, %v5139, %v5128
    %v5143 = vsel %vm1433, %v5140, %v5130
    %v5144 = vsel %vm1433, %v5141, %v5132
    %v5148 = vrot.slane %v5142, 7
    %v5149 = vrot.slane %v5143, 7
    %v5150 = vsel %vm202, %v5148, %v5149
    %v5151 = vrot.slane %v5144, 7
    %v5152 = vsel %vm202, %v5149, %v5151
    %v5154 = vsel %vm202, %v4142, %v5148
    %s5155 = scalar_lea.vmem %s9, 32
    %v5156 = vld [vmem:[%s5155] sm:$0xff]
    %v5157 = vld [vmem:[%s5155 + $0x8] sm:$0xff]
    %v5158 = vld [vmem:[%s5155 + $0x10] sm:$0xff]
    %v5159 = vld [vmem:[%s5155 + $0x18] sm:$0xff]
    %s5160 = scalar_lea.vmem %s10, 1
    %v5161 = vld [vmem:[%s5160] sm:$0x1]
    %v5163 = vlaneseq
    %v5164 = vshrl.u32 %v5163, 7
    %v5165 = vsub.s32 0, %v5164
    %v5166 = vrot.slane %v5161, %v5165
    %v5169 = vsel %vm229, %v4140, 0
    %v5172 = vsel %vm229, %v4141, 0
    %v5175 = vsel %vm229, %v5154, 0
    %v5177 = vsel %vm229, %v5150, 0
    %v5179 = vsel %vm229, %v5152, 0
    %5181 = vmatprep.subr.mxu0 0.0
    %5182 = vmatpush1.msra.mxu0 0.0
    %5183 = vmatprep.subr.mxu0 0.0
    %5184 = vmatpush1.msra.mxu0 0.0
    %5185 = vmatprep.subr.mxu0 0.0
    %5186 = vmatpush1.msra.mxu0 0.0
    %5187 = vmatprep.subr.mxu0 0.0
    %5188 = vmatpush1.msra.mxu0 0.0
    %5189 = vmatprep.subr.mxu0 0.0
    %5190 = vmatpush1.msra.mxu0 0.0
    %5191 = vmatprep.subr.mxu0 0.0
    %5192 = vmatpush1.msra.mxu0 0.0
    %5193 = vmatprep.subr.mxu0 0.0
    %5194 = vmatpush1.msra.mxu0 0.0
    %5195 = vmatprep.subr.mxu0 0.0
    %5196 = vmatpush1.msra.mxu0 0.0
    %5197 = vmatprep.subr.mxu0 0.0
    %5198 = vmatpush1.msra.mxu0 0.0
    %5199 = vmatprep.subr.mxu0 0.0
    %5200 = vmatpush1.msra.mxu0 0.0
    %5201 = vmatprep.subr.mxu0 0.0
    %5202 = vmatpush1.msra.mxu0 0.0
    %5203 = vmatprep.subr.mxu0 0.0
    %5204 = vmatpush1.msra.mxu0 0.0
    %5205 = vmatprep.subr.mxu0 0.0
    %5206 = vmatpush1.msra.mxu0 %v5159
    %5207 = vmatprep.subr.mxu0 0.0
    %5208 = vmatpush1.msra.mxu0 %v5158
    %5209 = vmatprep.subr.mxu0 0.0
    %5210 = vmatpush1.msra.mxu0 %v5157
    %5211 = vmatprep.subr.mxu0 0.0
    %5212 = vmatpush1.msra.mxu0 %v5156
    %5213 = vmatprep.subr.mxu0 0.0
    %5214 = vmatpush2.msra.mxu0 0.0
    %5215 = vmatprep.subr.mxu0 0.0
    %5216 = vmatpush2.msra.mxu0 0.0
    %5217 = vmatprep.subr.mxu0 0.0
    %5218 = vmatpush2.msra.mxu0 0.0
    %5219 = vmatprep.subr.mxu0 0.0
    %5220 = vmatpush2.msra.mxu0 0.0
    %5221 = vmatprep.subr.mxu0 0.0
    %5222 = vmatpush2.msra.mxu0 0.0
    %5223 = vmatprep.subr.mxu0 0.0
    %5224 = vmatpush2.msra.mxu0 0.0
    %5225 = vmatprep.subr.mxu0 0.0
    %5226 = vmatpush2.msra.mxu0 0.0
    %5227 = vmatprep.subr.mxu0 0.0
    %5228 = vmatpush2.msra.mxu0 0.0
    %5229 = vmatprep.subr.mxu0 0.0
    %5230 = vmatpush2.msra.mxu0 0.0
    %5231 = vmatprep.subr.mxu0 0.0
    %5232 = vmatpush2.msra.mxu0 0.0
    %5233 = vmatprep.subr.mxu0 0.0
    %5234 = vmatpush2.msra.mxu0 0.0
    %5235 = vmatprep.subr.mxu0 0.0
    %5236 = vmatpush2.msra.mxu0 0.0
    %5237 = vmatprep.subr.mxu0 0.0
    %5238 = vmatpush2.msra.mxu0 0.0
    %5239 = vmatprep.subr.mxu0 0.0
    %5240 = vmatpush2.msra.mxu0 0.0
    %5241 = vmatprep.subr.mxu0 0.0
    %5242 = vmatpush2.msra.mxu0 0.0
    %5243 = vmatprep.subr.mxu0 0.0
    %5244 = vmatpush2.msra.mxu0 0.0
    %5245 = vmatprep.mubr.f32.mxu0 0.0
    %5246 = vmatmul.mubr.f32.gmra.mxu0 %v5169
    %v5247 = vpop.f32.mrf.mxu0
    %v5248 = vadd.f32 %v5166, %v5247
    %v5249 = vpop.f32.mrf.mxu0
    %5250 = vmatprep.mubr.f32.mxu0 0.0
    %5251 = vmatmul.mubr.f32.gmra.mxu0 %v5172
    %v5252 = vpop.f32.mrf.mxu0
    %v5253 = vadd.f32 %v5166, %v5252
    %v5254 = vpop.f32.mrf.mxu0
    %5255 = vmatprep.mubr.f32.mxu0 0.0
    %5256 = vmatmul.mubr.f32.gmra.mxu0 %v5175
    %v5257 = vpop.f32.mrf.mxu0
    %v5258 = vadd.f32 %v5166, %v5257
    %v5259 = vpop.f32.mrf.mxu0
    %5260 = vmatprep.mubr.f32.mxu0 0.0
    %5261 = vmatmul.mubr.f32.gmra.mxu0 %v5177
    %v5262 = vpop.f32.mrf.mxu0
    %v5263 = vadd.f32 %v5166, %v5262
    %v5264 = vpop.f32.mrf.mxu0
    %5265 = vmatprep.mubr.f32.mxu0 0.0
    %5266 = vmatmul.mubr.f32.gmra.mxu0 %v5179
    %v5267 = vpop.f32.mrf.mxu0
    %v5268 = vadd.f32 %v5166, %v5267
    %v5269 = vpop.f32.mrf.mxu0
    %5270 = vdwg.mxu0
    %v5271 = vadd.f32 %v2931, %v5248
    %v5272 = vadd.f32 %v2932, %v5253
    %v5273 = vadd.f32 %v2933, %v5258
    %v5274 = vadd.f32 %v2934, %v5263
    %v5275 = vadd.f32 %v2935, %v5268
    %s5276 = scalar_lea.vmem %s11, 1
    %v5277 = vld [vmem:[%s5276] sm:$0x1]
    %s5278 = scalar_lea.vmem %s12, 1
    %v5279 = vld [vmem:[%s5278] sm:$0x1]
    %v5280 = vsel %vm229, %v5271, 0.0
    %5281 = vadd.xlane.f32.xlu0 %v5280
    %v5282 = vpop.xlane.xlu0 %5281
    %v5283 = vsel %vm229, %v5272, 0.0
    %5284 = vadd.xlane.f32.xlu0 %v5283
    %v5285 = vpop.xlane.xlu0 %5284
    %v5286 = vsel %vm229, %v5273, 0.0
    %5287 = vadd.xlane.f32.xlu0 %v5286
    %v5288 = vpop.xlane.xlu0 %5287
    %v5289 = vsel %vm229, %v5274, 0.0
    %5290 = vadd.xlane.f32.xlu0 %v5289
    %v5291 = vpop.xlane.xlu0 %5290
    %v5292 = vsel %vm242, %v5275, 0.0
    %5293 = vadd.xlane.f32.xlu0 %v5292
    %v5294 = vpop.xlane.xlu0 %5293
    %v5295 = vmul.f32 %v5282, %v246
    %v5296 = vmul.f32 %v5285, %v246
    %v5297 = vmul.f32 %v5288, %v246
    %v5298 = vmul.f32 %v5291, %v246
    %v5299 = vmul.f32 %v5294, %v246
    %v5300 = vsub.f32 %v5271, %v5295
    %v5301 = vsub.f32 %v5272, %v5296
    %v5302 = vsub.f32 %v5273, %v5297
    %v5303 = vsub.f32 %v5274, %v5298
    %v5304 = vsub.f32 %v5275, %v5299
    %v5305 = vmul.f32 %v5300, %v5300
    %v5306 = vmul.f32 %v5301, %v5301
    %v5307 = vmul.f32 %v5302, %v5302
    %v5308 = vmul.f32 %v5303, %v5303
    %v5309 = vmul.f32 %v5304, %v5304
    %v5310 = vsel %vm229, %v5305, 0.0
    %5311 = vadd.xlane.f32.xlu0 %v5310
    %v5312 = vpop.xlane.xlu0 %5311
    %v5313 = vsel %vm229, %v5306, 0.0
    %5314 = vadd.xlane.f32.xlu0 %v5313
    %v5315 = vpop.xlane.xlu0 %5314
    %v5316 = vsel %vm229, %v5307, 0.0
    %5317 = vadd.xlane.f32.xlu0 %v5316
    %v5318 = vpop.xlane.xlu0 %5317
    %v5319 = vsel %vm229, %v5308, 0.0
    %5320 = vadd.xlane.f32.xlu0 %v5319
    %v5321 = vpop.xlane.xlu0 %5320
    %v5322 = vsel %vm242, %v5309, 0.0
    %5323 = vadd.xlane.f32.xlu0 %v5322
    %v5324 = vpop.xlane.xlu0 %5323
    %v5325 = vmul.f32 %v5312, %v246
    %v5326 = vmul.f32 %v5315, %v246
    %v5327 = vmul.f32 %v5318, %v246
    %v5328 = vmul.f32 %v5321, %v246
    %v5329 = vmul.f32 %v5324, %v246
    %v5330 = vadd.f32 %v5325, 1e-06
    %v5331 = vadd.f32 %v5326, 1e-06
    %v5332 = vadd.f32 %v5327, 1e-06
    %v5333 = vadd.f32 %v5328, 1e-06
    %v5334 = vadd.f32 %v5329, 1e-06
    %v5335 = vrsqrt.pop %v5330
    %v5336 = vrsqrt.pop %v5331
    %v5337 = vrsqrt.pop %v5332
    %v5338 = vrsqrt.pop %v5333
    %v5339 = vrsqrt.pop %v5334
    %v5340 = vmul.f32 %v5300, %v5335
    %v5341 = vmul.f32 %v5301, %v5336
    %v5342 = vmul.f32 %v5302, %v5337
    %v5343 = vmul.f32 %v5303, %v5338
    %v5344 = vmul.f32 %v5304, %v5339
    %v5346 = vlaneseq
    %v5347 = vshrl.u32 %v5346, 7
    %v5348 = vsub.s32 0, %v5347
    %v5349 = vrot.slane %v5277, %v5348
    %v5351 = vmul.f32 %v5340, %v5349
    %v5352 = vmul.f32 %v5341, %v5349
    %v5353 = vmul.f32 %v5342, %v5349
    %v5354 = vmul.f32 %v5343, %v5349
    %v5355 = vmul.f32 %v5344, %v5349
    %v5357 = vlaneseq
    %v5358 = vshrl.u32 %v5357, 7
    %v5359 = vsub.s32 0, %v5358
    %v5360 = vrot.slane %v5279, %v5359
    %v5362 = vadd.f32 %v5351, %v5360
    %v5363 = vadd.f32 %v5352, %v5360
    %v5364 = vadd.f32 %v5353, %v5360
    %v5365 = vadd.f32 %v5354, %v5360
    %v5366 = vadd.f32 %v5355, %v5360
    %s5367 = scalar_lea.vmem %s13, 32
    %v5368 = vld [vmem:[%s5367] sm:$0xff]
    %v5369 = vld [vmem:[%s5367 + $0x8] sm:$0xff]
    %v5370 = vld [vmem:[%s5367 + $0x10] sm:$0xff]
    %v5371 = vld [vmem:[%s5367 + $0x18] sm:$0xff]
    %s5372 = scalar_lea.vmem %s14, 1
    %v5373 = vld [vmem:[%s5372] sm:$0x1]
    %v5375 = vlaneseq
    %v5376 = vshrl.u32 %v5375, 7
    %v5377 = vsub.s32 0, %v5376
    %v5378 = vrot.slane %v5373, %v5377
    %v5381 = vsel %vm229, %v5362, 0
    %v5384 = vsel %vm229, %v5363, 0
    %v5387 = vsel %vm229, %v5364, 0
    %v5390 = vsel %vm229, %v5365, 0
    %v5393 = vsel %vm229, %v5366, 0
    %5395 = vmatprep.subr.mxu0 0.0
    %5396 = vmatpush1.msra.mxu0 0.0
    %5397 = vmatprep.subr.mxu0 0.0
    %5398 = vmatpush1.msra.mxu0 0.0
    %5399 = vmatprep.subr.mxu0 0.0
    %5400 = vmatpush1.msra.mxu0 0.0
    %5401 = vmatprep.subr.mxu0 0.0
    %5402 = vmatpush1.msra.mxu0 0.0
    %5403 = vmatprep.subr.mxu0 0.0
    %5404 = vmatpush1.msra.mxu0 0.0
    %5405 = vmatprep.subr.mxu0 0.0
    %5406 = vmatpush1.msra.mxu0 0.0
    %5407 = vmatprep.subr.mxu0 0.0
    %5408 = vmatpush1.msra.mxu0 0.0
    %5409 = vmatprep.subr.mxu0 0.0
    %5410 = vmatpush1.msra.mxu0 0.0
    %5411 = vmatprep.subr.mxu0 0.0
    %5412 = vmatpush1.msra.mxu0 0.0
    %5413 = vmatprep.subr.mxu0 0.0
    %5414 = vmatpush1.msra.mxu0 0.0
    %5415 = vmatprep.subr.mxu0 0.0
    %5416 = vmatpush1.msra.mxu0 0.0
    %5417 = vmatprep.subr.mxu0 0.0
    %5418 = vmatpush1.msra.mxu0 0.0
    %5419 = vmatprep.subr.mxu0 0.0
    %5420 = vmatpush1.msra.mxu0 %v5371
    %5421 = vmatprep.subr.mxu0 0.0
    %5422 = vmatpush1.msra.mxu0 %v5370
    %5423 = vmatprep.subr.mxu0 0.0
    %5424 = vmatpush1.msra.mxu0 %v5369
    %5425 = vmatprep.subr.mxu0 0.0
    %5426 = vmatpush1.msra.mxu0 %v5368
    %5427 = vmatprep.subr.mxu0 0.0
    %5428 = vmatpush2.msra.mxu0 0.0
    %5429 = vmatprep.subr.mxu0 0.0
    %5430 = vmatpush2.msra.mxu0 0.0
    %5431 = vmatprep.subr.mxu0 0.0
    %5432 = vmatpush2.msra.mxu0 0.0
    %5433 = vmatprep.subr.mxu0 0.0
    %5434 = vmatpush2.msra.mxu0 0.0
    %5435 = vmatprep.subr.mxu0 0.0
    %5436 = vmatpush2.msra.mxu0 0.0
    %5437 = vmatprep.subr.mxu0 0.0
    %5438 = vmatpush2.msra.mxu0 0.0
    %5439 = vmatprep.subr.mxu0 0.0
    %5440 = vmatpush2.msra.mxu0 0.0
    %5441 = vmatprep.subr.mxu0 0.0
    %5442 = vmatpush2.msra.mxu0 0.0
    %5443 = vmatprep.subr.mxu0 0.0
    %5444 = vmatpush2.msra.mxu0 0.0
    %5445 = vmatprep.subr.mxu0 0.0
    %5446 = vmatpush2.msra.mxu0 0.0
    %5447 = vmatprep.subr.mxu0 0.0
    %5448 = vmatpush2.msra.mxu0 0.0
    %5449 = vmatprep.subr.mxu0 0.0
    %5450 = vmatpush2.msra.mxu0 0.0
    %5451 = vmatprep.subr.mxu0 0.0
    %5452 = vmatpush2.msra.mxu0 0.0
    %5453 = vmatprep.subr.mxu0 0.0
    %5454 = vmatpush2.msra.mxu0 0.0
    %5455 = vmatprep.subr.mxu0 0.0
    %5456 = vmatpush2.msra.mxu0 0.0
    %5457 = vmatprep.subr.mxu0 0.0
    %5458 = vmatpush2.msra.mxu0 0.0
    %5459 = vmatprep.mubr.f32.mxu0 0.0
    %5460 = vmatmul.mubr.f32.gmra.mxu0 %v5381
    %v5461 = vpop.f32.mrf.mxu0
    %v5462 = vadd.f32 %v5378, %v5461
    %v5463 = vpop.f32.mrf.mxu0
    %5464 = vmatprep.mubr.f32.mxu0 0.0
    %5465 = vmatmul.mubr.f32.gmra.mxu0 %v5384
    %v5466 = vpop.f32.mrf.mxu0
    %v5467 = vadd.f32 %v5378, %v5466
    %v5468 = vpop.f32.mrf.mxu0
    %5469 = vmatprep.mubr.f32.mxu0 0.0
    %5470 = vmatmul.mubr.f32.gmra.mxu0 %v5387
    %v5471 = vpop.f32.mrf.mxu0
    %v5472 = vadd.f32 %v5378, %v5471
    %v5473 = vpop.f32.mrf.mxu0
    %5474 = vmatprep.mubr.f32.mxu0 0.0
    %5475 = vmatmul.mubr.f32.gmra.mxu0 %v5390
    %v5476 = vpop.f32.mrf.mxu0
    %v5477 = vadd.f32 %v5378, %v5476
    %v5478 = vpop.f32.mrf.mxu0
    %5479 = vmatprep.mubr.f32.mxu0 0.0
    %5480 = vmatmul.mubr.f32.gmra.mxu0 %v5393
    %v5481 = vpop.f32.mrf.mxu0
    %v5482 = vadd.f32 %v5378, %v5481
    %v5483 = vpop.f32.mrf.mxu0
    %5484 = vdwg.mxu0
    %v5485 = vmul.f32 %v5462, %v5462
    %v5486 = vmul.f32 %v5467, %v5467
    %v5487 = vmul.f32 %v5472, %v5472
    %v5488 = vmul.f32 %v5477, %v5477
    %v5489 = vmul.f32 %v5482, %v5482
    %v5490 = vmul.f32 %v5462, %v5485
    %v5491 = vmul.f32 %v5467, %v5486
    %v5492 = vmul.f32 %v5472, %v5487
    %v5493 = vmul.f32 %v5477, %v5488
    %v5494 = vmul.f32 %v5482, %v5489
    %v5495 = vmul.f32 %v5490, 0.044715
    %v5496 = vmul.f32 %v5491, 0.044715
    %v5497 = vmul.f32 %v5492, 0.044715
    %v5498 = vmul.f32 %v5493, 0.044715
    %v5499 = vmul.f32 %v5494, 0.044715
    %v5500 = vadd.f32 %v5462, %v5495
    %v5501 = vadd.f32 %v5467, %v5496
    %v5502 = vadd.f32 %v5472, %v5497
    %v5503 = vadd.f32 %v5477, %v5498
    %v5504 = vadd.f32 %v5482, %v5499
    %v5505 = vmul.f32 %v5500, 0.7978846
    %v5506 = vmul.f32 %v5501, 0.7978846
    %v5507 = vmul.f32 %v5502, 0.7978846
    %v5508 = vmul.f32 %v5503, 0.7978846
    %v5509 = vmul.f32 %v5504, 0.7978846
    %v5510 = vtanh.pop %v5505
    %v5511 = vtanh.pop %v5506
    %v5512 = vtanh.pop %v5507
    %v5513 = vtanh.pop %v5508
    %v5514 = vtanh.pop %v5509
    %v5515 = vadd.f32 %v5510, 1.0
    %v5516 = vadd.f32 %v5511, 1.0
    %v5517 = vadd.f32 %v5512, 1.0
    %v5518 = vadd.f32 %v5513, 1.0
    %v5519 = vadd.f32 %v5514, 1.0
    %v5520 = vmul.f32 %v5515, 0.5
    %v5521 = vmul.f32 %v5516, 0.5
    %v5522 = vmul.f32 %v5517, 0.5
    %v5523 = vmul.f32 %v5518, 0.5
    %v5524 = vmul.f32 %v5519, 0.5
    %v5525 = vmul.f32 %v5462, %v5520
    %v5526 = vmul.f32 %v5467, %v5521
    %v5527 = vmul.f32 %v5472, %v5522
    %v5528 = vmul.f32 %v5477, %v5523
    %v5529 = vmul.f32 %v5482, %v5524
    %s5530 = scalar_lea.vmem %s15, 128
    %v5531 = vld [vmem:[%s5530] sm:$0xff]
    %v5532 = vld [vmem:[%s5530 + $0x8] sm:$0xff]
    %v5533 = vld [vmem:[%s5530 + $0x10] sm:$0xff]
    %v5534 = vld [vmem:[%s5530 + $0x18] sm:$0xff]
    %v5535 = vld [vmem:[%s5530 + $0x20] sm:$0xff]
    %v5536 = vld [vmem:[%s5530 + $0x28] sm:$0xff]
    %v5537 = vld [vmem:[%s5530 + $0x30] sm:$0xff]
    %v5538 = vld [vmem:[%s5530 + $0x38] sm:$0xff]
    %v5539 = vld [vmem:[%s5530 + $0x40] sm:$0xff]
    %v5540 = vld [vmem:[%s5530 + $0x48] sm:$0xff]
    %v5541 = vld [vmem:[%s5530 + $0x50] sm:$0xff]
    %v5542 = vld [vmem:[%s5530 + $0x58] sm:$0xff]
    %v5543 = vld [vmem:[%s5530 + $0x60] sm:$0xff]
    %v5544 = vld [vmem:[%s5530 + $0x68] sm:$0xff]
    %v5545 = vld [vmem:[%s5530 + $0x70] sm:$0xff]
    %v5546 = vld [vmem:[%s5530 + $0x78] sm:$0xff]
    %s5547 = scalar_lea.vmem %s16, 1
    %v5548 = vld [vmem:[%s5547] sm:$0x1]
    %v5550 = vlaneseq
    %v5551 = vshrl.u32 %v5550, 7
    %v5552 = vsub.s32 0, %v5551
    %v5553 = vrot.slane %v5548, %v5552
    %5555 = vmatprep.subr.mxu0 0.0
    %5556 = vmatpush1.msra.mxu0 %v5546
    %5557 = vmatprep.subr.mxu0 0.0
    %5558 = vmatpush1.msra.mxu0 %v5545
    %5559 = vmatprep.subr.mxu0 0.0
    %5560 = vmatpush1.msra.mxu0 %v5544
    %5561 = vmatprep.subr.mxu0 0.0
    %5562 = vmatpush1.msra.mxu0 %v5543
    %5563 = vmatprep.subr.mxu0 0.0
    %5564 = vmatpush1.msra.mxu0 %v5542
    %5565 = vmatprep.subr.mxu0 0.0
    %5566 = vmatpush1.msra.mxu0 %v5541
    %5567 = vmatprep.subr.mxu0 0.0
    %5568 = vmatpush1.msra.mxu0 %v5540
    %5569 = vmatprep.subr.mxu0 0.0
    %5570 = vmatpush1.msra.mxu0 %v5539
    %5571 = vmatprep.subr.mxu0 0.0
    %5572 = vmatpush1.msra.mxu0 %v5538
    %5573 = vmatprep.subr.mxu0 0.0
    %5574 = vmatpush1.msra.mxu0 %v5537
    %5575 = vmatprep.subr.mxu0 0.0
    %5576 = vmatpush1.msra.mxu0 %v5536
    %5577 = vmatprep.subr.mxu0 0.0
    %5578 = vmatpush1.msra.mxu0 %v5535
    %5579 = vmatprep.subr.mxu0 0.0
    %5580 = vmatpush1.msra.mxu0 %v5534
    %5581 = vmatprep.subr.mxu0 0.0
    %5582 = vmatpush1.msra.mxu0 %v5533
    %5583 = vmatprep.subr.mxu0 0.0
    %5584 = vmatpush1.msra.mxu0 %v5532
    %5585 = vmatprep.subr.mxu0 0.0
    %5586 = vmatpush1.msra.mxu0 %v5531
    %5587 = vmatprep.subr.mxu0 0.0
    %5588 = vmatpush2.msra.mxu0 0.0
    %5589 = vmatprep.subr.mxu0 0.0
    %5590 = vmatpush2.msra.mxu0 0.0
    %5591 = vmatprep.subr.mxu0 0.0
    %5592 = vmatpush2.msra.mxu0 0.0
    %5593 = vmatprep.subr.mxu0 0.0
    %5594 = vmatpush2.msra.mxu0 0.0
    %5595 = vmatprep.subr.mxu0 0.0
    %5596 = vmatpush2.msra.mxu0 0.0
    %5597 = vmatprep.subr.mxu0 0.0
    %5598 = vmatpush2.msra.mxu0 0.0
    %5599 = vmatprep.subr.mxu0 0.0
    %5600 = vmatpush2.msra.mxu0 0.0
    %5601 = vmatprep.subr.mxu0 0.0
    %5602 = vmatpush2.msra.mxu0 0.0
    %5603 = vmatprep.subr.mxu0 0.0
    %5604 = vmatpush2.msra.mxu0 0.0
    %5605 = vmatprep.subr.mxu0 0.0
    %5606 = vmatpush2.msra.mxu0 0.0
    %5607 = vmatprep.subr.mxu0 0.0
    %5608 = vmatpush2.msra.mxu0 0.0
    %5609 = vmatprep.subr.mxu0 0.0
    %5610 = vmatpush2.msra.mxu0 0.0
    %5611 = vmatprep.subr.mxu0 0.0
    %5612 = vmatpush2.msra.mxu0 0.0
    %5613 = vmatprep.subr.mxu0 0.0
    %5614 = vmatpush2.msra.mxu0 0.0
    %5615 = vmatprep.subr.mxu0 0.0
    %5616 = vmatpush2.msra.mxu0 0.0
    %5617 = vmatprep.subr.mxu0 0.0
    %5618 = vmatpush2.msra.mxu0 0.0
    %5619 = vmatprep.mubr.f32.mxu0 0.0
    %5620 = vmatmul.mubr.f32.gmra.mxu0 %v5525
    %v5621 = vpop.f32.mrf.mxu0
    %v5622 = vadd.f32 %v5553, %v5621
    %v5623 = vpop.f32.mrf.mxu0
    %5624 = vmatprep.mubr.f32.mxu0 0.0
    %5625 = vmatmul.mubr.f32.gmra.mxu0 %v5526
    %v5626 = vpop.f32.mrf.mxu0
    %v5627 = vpop.f32.mrf.mxu0
    %5628 = vmatprep.mubr.f32.mxu0 0.0
    %5629 = vmatmul.mubr.f32.gmra.mxu0 %v5527
    %v5630 = vpop.f32.mrf.mxu0
    %v5631 = vadd.f32 %v5553, %v5630
    %v5632 = vpop.f32.mrf.mxu0
    %5633 = vmatprep.mubr.f32.mxu0 0.0
    %5634 = vmatmul.mubr.f32.gmra.mxu0 %v5528
    %v5635 = vpop.f32.mrf.mxu0
    %v5636 = vpop.f32.mrf.mxu0
    %5637 = vmatprep.mubr.f32.mxu0 0.0
    %5638 = vmatmul.mubr.f32.gmra.mxu0 %v5529
    %v5639 = vpop.f32.mrf.mxu0
    %v5640 = vpop.f32.mrf.mxu0
    %5641 = vdwg.mxu0
    %v5642 = vadd.f32 %v5271, %v5622
    %v5643 = vadd.f32 %v5273, %v5631
    %v5644 = vld [vmem:[%s17] sm:$0x1]
    %v5645 = vld [vmem:[%s18] sm:$0x1]
    %v5646 = vsel %vm229, %v5642, 0.0
    %5647 = vadd.xlane.f32.xlu0 %v5646
    %v5648 = vpop.xlane.xlu0 %5647
    %v5649 = vsel %vm229, %v5643, 0.0
    %5650 = vadd.xlane.f32.xlu0 %v5649
    %v5651 = vpop.xlane.xlu0 %5650
    %v5652 = vmul.f32 %v5648, %v246
    %v5653 = vmul.f32 %v5651, %v246
    %v5654 = vsub.f32 %v5642, %v5652
    %v5655 = vsub.f32 %v5643, %v5653
    %v5656 = vmul.f32 %v5654, %v5654
    %v5657 = vmul.f32 %v5655, %v5655
    %v5658 = vsel %vm229, %v5656, 0.0
    %5659 = vadd.xlane.f32.xlu0 %v5658
    %v5660 = vpop.xlane.xlu0 %5659
    %v5661 = vsel %vm229, %v5657, 0.0
    %5662 = vadd.xlane.f32.xlu0 %v5661
    %v5663 = vpop.xlane.xlu0 %5662
    %v5664 = vmul.f32 %v5660, %v246
    %v5665 = vmul.f32 %v5663, %v246
    %v5666 = vadd.f32 %v5664, 1e-06
    %v5667 = vadd.f32 %v5665, 1e-06
    %v5668 = vrsqrt.pop %v5666
    %v5669 = vrsqrt.pop %v5667
    %v5670 = vmul.f32 %v5654, %v5668
    %v5671 = vmul.f32 %v5655, %v5669
    %v5673 = vlaneseq
    %v5674 = vshrl.u32 %v5673, 7
    %v5675 = vsub.s32 0, %v5674
    %v5676 = vrot.slane %v5644, %v5675
    %v5678 = vmul.f32 %v5670, %v5676
    %v5679 = vmul.f32 %v5671, %v5676
    %v5681 = vlaneseq
    %v5682 = vshrl.u32 %v5681, 7
    %v5683 = vsub.s32 0, %v5682
    %v5684 = vrot.slane %v5645, %v5683
    %v5686 = vadd.f32 %v5678, %v5684
    %v5687 = vadd.f32 %v5679, %v5684
    %v5688 = vsel %vm202, %v5686, %v5687
    %v5689 = vld [vmem:[%s19] sm:$0xff]
    %v5690 = vld [vmem:[%s19 + $0x8] sm:$0xff]
    %v5691 = vld [vmem:[%s19 + $0x10] sm:$0xff]
    %v5692 = vld [vmem:[%s19 + $0x18] sm:$0xff]
    %v5693 = vld [vmem:[%s20] sm:$0x1]
    %v5695 = vlaneseq
    %v5696 = vshrl.u32 %v5695, 7
    %v5697 = vsub.s32 0, %v5696
    %v5698 = vrot.slane %v5693, %v5697
    %v5701 = vsel %vm229, %v5688, 0
    %5703 = vmatprep.subr.mxu0 0.0
    %5704 = vmatpush1.msra.mxu0 0.0
    %5705 = vmatprep.subr.mxu0 0.0
    %5706 = vmatpush1.msra.mxu0 0.0
    %5707 = vmatprep.subr.mxu0 0.0
    %5708 = vmatpush1.msra.mxu0 0.0
    %5709 = vmatprep.subr.mxu0 0.0
    %5710 = vmatpush1.msra.mxu0 0.0
    %5711 = vmatprep.subr.mxu0 0.0
    %5712 = vmatpush1.msra.mxu0 0.0
    %5713 = vmatprep.subr.mxu0 0.0
    %5714 = vmatpush1.msra.mxu0 0.0
    %5715 = vmatprep.subr.mxu0 0.0
    %5716 = vmatpush1.msra.mxu0 0.0
    %5717 = vmatprep.subr.mxu0 0.0
    %5718 = vmatpush1.msra.mxu0 0.0
    %5719 = vmatprep.subr.mxu0 0.0
    %5720 = vmatpush1.msra.mxu0 0.0
    %5721 = vmatprep.subr.mxu0 0.0
    %5722 = vmatpush1.msra.mxu0 0.0
    %5723 = vmatprep.subr.mxu0 0.0
    %5724 = vmatpush1.msra.mxu0 0.0
    %5725 = vmatprep.subr.mxu0 0.0
    %5726 = vmatpush1.msra.mxu0 0.0
    %5727 = vmatprep.subr.mxu0 0.0
    %5728 = vmatpush1.msra.mxu0 %v5692
    %5729 = vmatprep.subr.mxu0 0.0
    %5730 = vmatpush1.msra.mxu0 %v5691
    %5731 = vmatprep.subr.mxu0 0.0
    %5732 = vmatpush1.msra.mxu0 %v5690
    %5733 = vmatprep.subr.mxu0 0.0
    %5734 = vmatpush1.msra.mxu0 %v5689
    %5735 = vmatprep.subr.mxu0 0.0
    %5736 = vmatpush2.msra.mxu0 0.0
    %5737 = vmatprep.subr.mxu0 0.0
    %5738 = vmatpush2.msra.mxu0 0.0
    %5739 = vmatprep.subr.mxu0 0.0
    %5740 = vmatpush2.msra.mxu0 0.0
    %5741 = vmatprep.subr.mxu0 0.0
    %5742 = vmatpush2.msra.mxu0 0.0
    %5743 = vmatprep.subr.mxu0 0.0
    %5744 = vmatpush2.msra.mxu0 0.0
    %5745 = vmatprep.subr.mxu0 0.0
    %5746 = vmatpush2.msra.mxu0 0.0
    %5747 = vmatprep.subr.mxu0 0.0
    %5748 = vmatpush2.msra.mxu0 0.0
    %5749 = vmatprep.subr.mxu0 0.0
    %5750 = vmatpush2.msra.mxu0 0.0
    %5751 = vmatprep.subr.mxu0 0.0
    %5752 = vmatpush2.msra.mxu0 0.0
    %5753 = vmatprep.subr.mxu0 0.0
    %5754 = vmatpush2.msra.mxu0 0.0
    %5755 = vmatprep.subr.mxu0 0.0
    %5756 = vmatpush2.msra.mxu0 0.0
    %5757 = vmatprep.subr.mxu0 0.0
    %5758 = vmatpush2.msra.mxu0 0.0
    %5759 = vmatprep.subr.mxu0 0.0
    %5760 = vmatpush2.msra.mxu0 0.0
    %5761 = vmatprep.subr.mxu0 0.0
    %5762 = vmatpush2.msra.mxu0 0.0
    %5763 = vmatprep.subr.mxu0 0.0
    %5764 = vmatpush2.msra.mxu0 0.0
    %5765 = vmatprep.subr.mxu0 0.0
    %5766 = vmatpush2.msra.mxu0 0.0
    %5767 = vmatprep.mubr.f32.mxu0 0.0
    %5768 = vmatmul.mubr.f32.gmra.mxu0 %v5701
    %v5769 = vpop.f32.mrf.mxu0
    %v5770 = vadd.f32 %v5698, %v5769
    %v5771 = vpop.f32.mrf.mxu0
    %5772 = vdwg.mxu0
    %vm5773 = vcmask 58368
    %5774 = vst.msk [vmem:[#allocation2] sm:$0x3] %vm5773, %v5770
    // Predicated region
    $region86: #{forward.1} parent=1 // pred_check
      _
    $region87: #{forward.1} parent=1 // pred_check_branch
      %5776 = sbr.rel (0) target = $region89
    $region88: #{forward.1} parent=1 // pred_region
      %s5778 = ssub.s32 32, 32
      %5779 = vsyncadd [#allocation3], %s5778
      %s5781 = sshll.u32 [#allocation2], 4
      %s5782 = int_to_ptr.vmem [resolvable:$true] %s5781
      %5784 = dma.vmem_to_hbm [thread:$0]  %s5782, 32, %s21, [#allocation3]
    $region89: #{forward.1} parent=1 // pred_fallthru
      _
    // Predicated region
    $region90: #{forward.1} parent=1 // pred_check
      _
    $region91: #{forward.1} parent=1 // pred_check_branch
      %5786 = sbr.rel (0) target = $region93
    $region92: #{forward.1} parent=1 // pred_region
      %5787 = dma.done [#allocation3], 32
    $region93: #{forward.1} parent=1 // pred_fallthru
      _
    %5788 = vsyncpa [#allocation3], 1

</llo_original>
